<compile_context>
chip_gen: v6e
topology: v6e:2x2x1
jax: 0.10.0
libtpu: 0.0.40
codegen_flags: <defaults>
</compile_context>

<pallas_src>
import functools
import numpy as np
import jax
import jax.numpy as jnp
from jax import lax
from jax.experimental import pallas as pl
from jax.experimental.pallas import tpu as pltpu


_DN_LAST = (((1,), (1,)), ((), ()))     # dot_general: contract last dims (A @ B^T)


# ---------------------------------------------------------------------------
# in-kernel helpers
# ---------------------------------------------------------------------------
def _softmax_last(x):
    x = x - jnp.max(x, axis=-1, keepdims=True)
    e = jnp.exp(x)
    return e / jnp.sum(e, axis=-1, keepdims=True)


def _eye(n, dtype):
    r = lax.broadcasted_iota(jnp.int32, (n, n), 0)
    c = lax.broadcasted_iota(jnp.int32, (n, n), 1)
    return (r == c).astype(dtype)


# ---------------------------------------------------------------------------
# Kernel 1: fused Q/K/V 1x1x1 convolutions (channels-last matmuls)
# ---------------------------------------------------------------------------
def _qkv_proj_kernel(x_ref, wq_ref, bq_ref, wk_ref, bk_ref, wv_ref, bv_ref,
                     q_ref, k_ref, v_ref):
    x = x_ref[...]                                               # (tile_m, C)
    q_ref[...] = jnp.dot(x, wq_ref[...],
                         preferred_element_type=jnp.float32) + bq_ref[...]
    k_ref[...] = jnp.dot(x, wk_ref[...],
                         preferred_element_type=jnp.float32) + bk_ref[...]
    v_ref[...] = jnp.dot(x, wv_ref[...],
                         preferred_element_type=jnp.float32) + bv_ref[...]


def pallas_qkv_proj(x2d, wq, bq, wk, bk, wv, bv, tile_m=512):
    M, C = x2d.shape
    dqk = wq.shape[1]
    tile_m = min(tile_m, M)
    assert M % tile_m == 0, (M, tile_m)
    rep = lambda i: (0, 0)
    return pl.pallas_call(
        _qkv_proj_kernel,
        out_shape=(jax.ShapeDtypeStruct((M, dqk), jnp.float32),
                   jax.ShapeDtypeStruct((M, dqk), jnp.float32),
                   jax.ShapeDtypeStruct((M, C), jnp.float32)),
        grid=(M // tile_m,),
        in_specs=[pl.BlockSpec((tile_m, C), lambda i: (i, 0)),
                  pl.BlockSpec((C, dqk), rep), pl.BlockSpec((1, dqk), rep),
                  pl.BlockSpec((C, dqk), rep), pl.BlockSpec((1, dqk), rep),
                  pl.BlockSpec((C, C), rep), pl.BlockSpec((1, C), rep)],
        out_specs=(pl.BlockSpec((tile_m, dqk), lambda i: (i, 0)),
                   pl.BlockSpec((tile_m, dqk), lambda i: (i, 0)),
                   pl.BlockSpec((tile_m, C), lambda i: (i, 0))),
        compiler_params=pltpu.CompilerParams(dimension_semantics=("parallel",)),
    )(x2d, wq, bq, wk, bk, wv, bv)


# ---------------------------------------------------------------------------
# Kernel 2: per-batch landmark stage (Q_l, K_l, pinv(F2), ZF3 = pinv(F2)@F3,
#           and W = ZF3 @ V^T — hoisted out of the row-tile kernel)
# ---------------------------------------------------------------------------
def _landmark_kernel(q_ref, k_ref, pool_ref, vT_ref,
                     kl_ref, zk3_ref, w_ref, *, scale, n_iter):
    q = q_ref[0]                                                 # (N, d)
    k = k_ref[0]                                                 # (N, d)
    pool = pool_ref[...]                                         # (m, N)
    ql = jnp.dot(pool, q, preferred_element_type=jnp.float32)    # (m, d)
    kl = jnp.dot(pool, k, preferred_element_type=jnp.float32)    # (m, d)

    f2 = _softmax_last(scale * lax.dot_general(
        ql, kl, _DN_LAST, preferred_element_type=jnp.float32))   # (m, m)
    f3 = _softmax_last(scale * lax.dot_general(
        ql, k, _DN_LAST, preferred_element_type=jnp.float32))    # (m, N)

    m = f2.shape[0]
    eye = _eye(m, jnp.float32)
    # f2^T via matmul with identity (avoids explicit in-kernel transpose)
    f2_t = lax.dot_general(eye, f2, _DN_LAST, preferred_element_type=jnp.float32)
    denom = (jnp.max(jnp.sum(f2, axis=0, keepdims=True), axis=1, keepdims=True) *
             jnp.max(jnp.sum(f2, axis=1, keepdims=True), axis=0, keepdims=True))
    z = f2_t / denom
    for _ in range(n_iter):                    # Newton-Schulz pinv, unrolled
        kz = jnp.dot(f2, z, preferred_element_type=jnp.float32)
        t = 7.0 * eye - kz
        t = 15.0 * eye - jnp.dot(kz, t, preferred_element_type=jnp.float32)
        t = 13.0 * eye - jnp.dot(kz, t, preferred_element_type=jnp.float32)
        z = 0.25 * jnp.dot(z, t, preferred_element_type=jnp.float32)

    zk3 = jnp.dot(z, f3, preferred_element_type=jnp.float32)     # (m, N)
    kl_ref[0] = kl
    zk3_ref[0] = zk3
    # W = ZF3 @ V^T  (m, C): out = attn @ V^T = F1 @ (ZF3 @ V^T) = F1 @ W
    w_ref[0] = jnp.dot(zk3, vT_ref[0], preferred_element_type=jnp.float32)


def pallas_landmarks(q, k, pool, vT, scale, n_iter=6):
    B, N, d = q.shape
    m = pool.shape[0]
    C = vT.shape[2]
    kernel = functools.partial(_landmark_kernel, scale=scale, n_iter=n_iter)
    return pl.pallas_call(
        kernel,
        out_shape=(jax.ShapeDtypeStruct((B, m, d), jnp.float32),
                   jax.ShapeDtypeStruct((B, m, N), jnp.float32),
                   jax.ShapeDtypeStruct((B, m, C), jnp.float32)),
        grid=(B,),
        in_specs=[pl.BlockSpec((1, N, d), lambda b: (b, 0, 0)),
                  pl.BlockSpec((1, N, d), lambda b: (b, 0, 0)),
                  pl.BlockSpec((m, N), lambda b: (0, 0)),
                  pl.BlockSpec((1, N, C), lambda b: (b, 0, 0))],
        out_specs=(pl.BlockSpec((1, m, d), lambda b: (b, 0, 0)),
                   pl.BlockSpec((1, m, N), lambda b: (b, 0, 0)),
                   pl.BlockSpec((1, m, C), lambda b: (b, 0, 0))),
        compiler_params=pltpu.CompilerParams(dimension_semantics=("parallel",)),
    )(q, k, pool, vT)


# ---------------------------------------------------------------------------
# Kernel 3: fused attention rows + output rows + residual
#   attn = F1 @ ZF3 ; out = gamma * (F1 @ W) + x   (W = ZF3 @ V^T from K2)
# ---------------------------------------------------------------------------
def _attn_out_kernel(gamma_ref, q_ref, kl_ref, zk3_ref, w_ref, xT_ref,
                     attn_ref, y_ref, *, scale):
    q = q_ref[0]                                                 # (tile_n, d)
    kl = kl_ref[0]                                               # (m, d)
    logits = scale * lax.dot_general(q, kl, _DN_LAST,
                                     preferred_element_type=jnp.float32)
    f1 = _softmax_last(logits)                                   # (tile_n, m)
    attn_ref[0] = jnp.dot(f1, zk3_ref[0],
                          preferred_element_type=jnp.float32)    # (tile_n, N)
    out = jnp.dot(f1, w_ref[0], preferred_element_type=jnp.float32)  # (tile_n, C)
    y_ref[0] = gamma_ref[0] * out + xT_ref[0]


def pallas_attn_out(q, kl, zk3, w, xT, gamma, scale, tile_n=128):
    B, N, d = q.shape
    m = kl.shape[1]
    C = w.shape[2]
    tile_n = min(tile_n, N)
    assert N % tile_n == 0, (N, tile_n)
    kernel = functools.partial(_attn_out_kernel, scale=scale)
    return pl.pallas_call(
        kernel,
        out_shape=(jax.ShapeDtypeStruct((B, N, N), jnp.float32),
                   jax.ShapeDtypeStruct((B, N, C), jnp.float32)),
        grid=(B, N // tile_n),
        in_specs=[pl.BlockSpec(memory_space=pltpu.MemorySpace.SMEM),      # gamma
                  pl.BlockSpec((1, tile_n, d), lambda b, i: (b, i, 0)),
                  pl.BlockSpec((1, m, d), lambda b, i: (b, 0, 0)),
                  pl.BlockSpec((1, m, N), lambda b, i: (b, 0, 0)),
                  pl.BlockSpec((1, m, C), lambda b, i: (b, 0, 0)),
                  pl.BlockSpec((1, tile_n, C), lambda b, i: (b, i, 0))],
        out_specs=(pl.BlockSpec((1, tile_n, N), lambda b, i: (b, i, 0)),
                   pl.BlockSpec((1, tile_n, C), lambda b, i: (b, i, 0))),
        compiler_params=pltpu.CompilerParams(
            dimension_semantics=("parallel", "parallel")),
    )(gamma, q, kl, zk3, w, xT)


# ---------------------------------------------------------------------------
# Forward (glue: layout plumbing only; all math is in the Pallas kernels)
# ---------------------------------------------------------------------------
@functools.partial(jax.jit, static_argnums=(2,))
def self_nys_attn_forward(x, params, num_landmarks):
    B, C, T, W, H = x.shape
    N = T * W * H
    dqk = params["wq"].shape[1]
    scale = 1.0 / float(np.sqrt(dqk))

    # channels-last layout for lane-dense matmuls: (B, N, C)
    xT = jnp.transpose(x.reshape(B, C, N), (0, 2, 1))
    x2d = xT.reshape(B * N, C)

    # fused Q/K/V 1x1x1 convs (single pass over the activation)
    q2d, k2d, v2d = pallas_qkv_proj(
        x2d, params["wq"], params["bq"], params["wk"], params["bk"],
        params["wv"], params["bv"])
    q = q2d.reshape(B, N, dqk)
    k = k2d.reshape(B, N, dqk)
    vT = v2d.reshape(B, N, C)          # V^T (channels-last value)

    # segment-mean (landmark) pooling operator, built host-side
    assert N % num_landmarks == 0
    seg = N // num_landmarks
    pool = np.zeros((num_landmarks, N), np.float32)
    for j in range(num_landmarks):
        pool[j, j * seg:(j + 1) * seg] = 1.0 / seg
    pool = jnp.asarray(pool)

    kl, zk3, w = pallas_landmarks(q, k, pool, vT, scale)
    attn, yT = pallas_attn_out(q, kl, zk3, w, xT, params["gamma"], scale)

    out = jnp.transpose(yT, (0, 2, 1)).reshape(B, C, T, W, H)
    return out, attn


# ---------------------------------------------------------------------------
# Pure-JAX reference (same math, HIGHEST precision)
# ---------------------------------------------------------------------------
def _ref_iterative_inv(mat, n_iter=6):
    hp = lax.Precision.HIGHEST
    m = mat.shape[-1]
    eye = jnp.eye(m, dtype=mat.dtype)
    denom = (jnp.max(jnp.sum(mat, axis=-2), axis=-1) *
             jnp.max(jnp.sum(mat, axis=-1), axis=-1))
    z = jnp.swapaxes(mat, -1, -2) / denom[:, None, None]
    for _ in range(n_iter):
        kz = jnp.matmul(mat, z, precision=hp)
        t = 7.0 * eye - kz
        t = 15.0 * eye - jnp.matmul(kz, t, precision=hp)
        t = 13.0 * eye - jnp.matmul(kz, t, precision=hp)
        z = 0.25 * jnp.matmul(z, t, precision=hp)
    return z


def reference_forward(x, params, num_landmarks):
    hp = lax.Precision.HIGHEST
    B, C, T, W, H = x.shape
    N = T * W * H
    dqk = params["wq"].shape[1]
    scale = 1.0 / float(np.sqrt(dqk))

    x_bcn = x.reshape(B, C, N)
    q = jnp.einsum("bcn,cd->bnd", x_bcn, params["wq"], precision=hp) + params["bq"][0]
    k = jnp.einsum("bcn,cd->bnd", x_bcn, params["wk"], precision=hp) + params["bk"][0]
    v = (jnp.einsum("bcn,ce->ben", x_bcn, params["wv"], precision=hp)
         + params["bv"][0][:, None])

    seg = N // num_landmarks
    ql = q.reshape(B, num_landmarks, seg, dqk).mean(axis=2)
    kl = k.reshape(B, num_landmarks, seg, dqk).mean(axis=2)

    f1 = jax.nn.softmax(scale * jnp.einsum("bnd,bmd->bnm", q, kl, precision=hp), axis=-1)
    f2 = jax.nn.softmax(scale * jnp.einsum("bid,bjd->bij", ql, kl, precision=hp), axis=-1)
    f3 = jax.nn.softmax(scale * jnp.einsum("bmd,bnd->bmn", ql, k, precision=hp), axis=-1)
    z = _ref_iterative_inv(f2)
    attn = jnp.einsum("bnm,bmk,bkj->bnj", f1, z, f3, precision=hp)
    out = jnp.einsum("bcj,bij->bci", v, attn, precision=hp)
    out = params["gamma"][0] * out + x_bcn
    return out.reshape(B, C, T, W, H), attn


# ---------------------------------------------------------------------------
if __name__ == "__main__":
    key = jax.random.PRNGKey(0)
    kx, k1, k2, k3, k4, k5, k6 = jax.random.split(key, 7)

    B, C = 2, 64
    T, W, H = 4, 8, 8
    N = T * W * H                 # seq_len = 256
    num_landmarks = 32
    dqk = C // 8                  # 8

    x = jax.random.normal(kx, (B, C, T, W, H), dtype=jnp.float32)

    params = {
        "wq": jax.random.normal(k1, (C, dqk), jnp.float32) * 0.2,
        "bq": (jax.random.normal(k2, (dqk,), jnp.float32) * 0.1)[None, :],
        "wk": jax.random.normal(k3, (C, dqk), jnp.float32) * 0.2,
        "bk": (jax.random.normal(k4, (dqk,), jnp.float32) * 0.1)[None, :],
        "wv": jax.random.normal(k5, (C, C), jnp.float32) * 0.2,
        "bv": (jax.random.normal(k6, (C,), jnp.float32) * 0.1)[None, :],
        # PyTorch initializes gamma to 0; use a nonzero value so the attention
        # branch actually contributes to `out` in this test.
        "gamma": jnp.asarray([0.5], jnp.float32),
    }

    out, attn = jax.block_until_ready(self_nys_attn_forward(x, params, num_landmarks))
    assert out.shape == (B, C, T, W, H), out.shape
    assert attn.shape == (B, N, N), attn.shape

    ref_out, ref_attn = reference_forward(x, params, num_landmarks)
    assert np.allclose(np.asarray(attn), np.asarray(ref_attn), rtol=5e-3, atol=5e-3)
    assert np.allclose(np.asarray(out), np.asarray(ref_out), rtol=5e-3, atol=5e-3)

    print("KERNEL_OK")
</pallas_src>

<mosaic_0001>
module attributes {stable_mosaic.version = 11 : i64} {
  func.func @_qkv_proj_kernel(%arg0: i32, %arg1: memref<512x64xf32, #tpu.memory_space<vmem>>, %arg2: memref<64x8xf32, #tpu.memory_space<vmem>>, %arg3: memref<1x8xf32, #tpu.memory_space<vmem>>, %arg4: memref<64x8xf32, #tpu.memory_space<vmem>>, %arg5: memref<1x8xf32, #tpu.memory_space<vmem>>, %arg6: memref<64x64xf32, #tpu.memory_space<vmem>>, %arg7: memref<1x64xf32, #tpu.memory_space<vmem>>, %arg8: memref<512x8xf32, #tpu.memory_space<vmem>>, %arg9: memref<512x8xf32, #tpu.memory_space<vmem>>, %arg10: memref<512x64xf32, #tpu.memory_space<vmem>>) attributes {dimension_semantics = [#tpu.dimension_semantics<parallel>], iteration_bounds = array<i64: 1>, scalar_prefetch = 0 : i64, scratch_operands = 0 : i64, tpu.core_type = #tpu.core_type<tc>, window_params = [{transform_indices = @transform_0, window_bounds = array<i64: 512, 64>}, {pipeline_mode = #tpu.pipeline_mode<synchronous>, transform_indices = @transform_1, window_bounds = array<i64: 64, 8>}, {pipeline_mode = #tpu.pipeline_mode<synchronous>, transform_indices = @transform_2, window_bounds = array<i64: 1, 8>}, {pipeline_mode = #tpu.pipeline_mode<synchronous>, transform_indices = @transform_3, window_bounds = array<i64: 64, 8>}, {pipeline_mode = #tpu.pipeline_mode<synchronous>, transform_indices = @transform_4, window_bounds = array<i64: 1, 8>}, {pipeline_mode = #tpu.pipeline_mode<synchronous>, transform_indices = @transform_5, window_bounds = array<i64: 64, 64>}, {pipeline_mode = #tpu.pipeline_mode<synchronous>, transform_indices = @transform_6, window_bounds = array<i64: 1, 64>}, {transform_indices = @transform_7, window_bounds = array<i64: 512, 8>}, {transform_indices = @transform_8, window_bounds = array<i64: 512, 8>}, {transform_indices = @transform_9, window_bounds = array<i64: 512, 64>}]} {
    %c0 = arith.constant 0 : index
    %c0_0 = arith.constant 0 : index
    %0 = vector.load %arg1[%c0, %c0_0] : memref<512x64xf32, #tpu.memory_space<vmem>>, vector<512x64xf32>
    %c0_1 = arith.constant 0 : index
    %c0_2 = arith.constant 0 : index
    %1 = vector.load %arg2[%c0_1, %c0_2] : memref<64x8xf32, #tpu.memory_space<vmem>>, vector<64x8xf32>
    %cst = arith.constant dense<0.000000e+00> : vector<512x8xf32>
    %2 = tpu.matmul %0, %1, %cst {dimension_numbers = #tpu.dot_dimension_numbers<[1], [0], [0], [1], [0, 0, 1, 1], [], []>} : vector<512x64xf32>, vector<64x8xf32>, vector<512x8xf32> -> vector<512x8xf32>
    %c0_3 = arith.constant 0 : index
    %c0_4 = arith.constant 0 : index
    %3 = vector.load %arg3[%c0_3, %c0_4] : memref<1x8xf32, #tpu.memory_space<vmem>>, vector<1x8xf32>
    %4 = vector.broadcast %3 : vector<1x8xf32> to vector<512x8xf32>
    %5 = arith.addf %2, %4 : vector<512x8xf32>
    %c0_5 = arith.constant 0 : index
    %c0_6 = arith.constant 0 : index
    %6 = vector.load %arg8[%c0_5, %c0_6] : memref<512x8xf32, #tpu.memory_space<vmem>>, vector<512x8xf32>
    tpu.vector_store %arg8[%c0_5, %c0_6], %5 {strides = array<i32>} : memref<512x8xf32, #tpu.memory_space<vmem>>, vector<512x8xf32>,
    %c0_7 = arith.constant 0 : index
    %c0_8 = arith.constant 0 : index
    %7 = vector.load %arg4[%c0_7, %c0_8] : memref<64x8xf32, #tpu.memory_space<vmem>>, vector<64x8xf32>
    %cst_9 = arith.constant dense<0.000000e+00> : vector<512x8xf32>
    %8 = tpu.matmul %0, %7, %cst_9 {dimension_numbers = #tpu.dot_dimension_numbers<[1], [0], [0], [1], [0, 0, 1, 1], [], []>} : vector<512x64xf32>, vector<64x8xf32>, vector<512x8xf32> -> vector<512x8xf32>
    %c0_10 = arith.constant 0 : index
    %c0_11 = arith.constant 0 : index
    %9 = vector.load %arg5[%c0_10, %c0_11] : memref<1x8xf32, #tpu.memory_space<vmem>>, vector<1x8xf32>
    %10 = vector.broadcast %9 : vector<1x8xf32> to vector<512x8xf32>
    %11 = arith.addf %8, %10 : vector<512x8xf32>
    %c0_12 = arith.constant 0 : index
    %c0_13 = arith.constant 0 : index
    %12 = vector.load %arg9[%c0_12, %c0_13] : memref<512x8xf32, #tpu.memory_space<vmem>>, vector<512x8xf32>
    tpu.vector_store %arg9[%c0_12, %c0_13], %11 {strides = array<i32>} : memref<512x8xf32, #tpu.memory_space<vmem>>, vector<512x8xf32>,
    %c0_14 = arith.constant 0 : index
    %c0_15 = arith.constant 0 : index
    %13 = vector.load %arg6[%c0_14, %c0_15] : memref<64x64xf32, #tpu.memory_space<vmem>>, vector<64x64xf32>
    %cst_16 = arith.constant dense<0.000000e+00> : vector<512x64xf32>
    %14 = tpu.matmul %0, %13, %cst_16 {dimension_numbers = #tpu.dot_dimension_numbers<[1], [0], [0], [1], [0, 0, 1, 1], [], []>} : vector<512x64xf32>, vector<64x64xf32>, vector<512x64xf32> -> vector<512x64xf32>
    %c0_17 = arith.constant 0 : index
    %c0_18 = arith.constant 0 : index
    %15 = vector.load %arg7[%c0_17, %c0_18] : memref<1x64xf32, #tpu.memory_space<vmem>>, vector<1x64xf32>
    %16 = vector.broadcast %15 : vector<1x64xf32> to vector<512x64xf32>
    %17 = arith.addf %14, %16 : vector<512x64xf32>
    %c0_19 = arith.constant 0 : index
    %c0_20 = arith.constant 0 : index
    %18 = vector.load %arg10[%c0_19, %c0_20] : memref<512x64xf32, #tpu.memory_space<vmem>>, vector<512x64xf32>
    tpu.vector_store %arg10[%c0_19, %c0_20], %17 {strides = array<i32>} : memref<512x64xf32, #tpu.memory_space<vmem>>, vector<512x64xf32>,
    return
  }
  func.func @transform_0(%arg0: i32) -> (i32, i32) {
    %c0_i32 = arith.constant 0 : i32
    %c0_i32_0 = arith.constant 0 : i32
    return %arg0, %c0_i32 : i32, i32
  }
  func.func @transform_1(%arg0: i32) -> (i32, i32) {
    %c0_i32 = arith.constant 0 : i32
    %c0_i32_0 = arith.constant 0 : i32
    %c0_i32_1 = arith.constant 0 : i32
    return %c0_i32, %c0_i32_0 : i32, i32
  }
  func.func @transform_2(%arg0: i32) -> (i32, i32) {
    %c0_i32 = arith.constant 0 : i32
    %c0_i32_0 = arith.constant 0 : i32
    %c0_i32_1 = arith.constant 0 : i32
    return %c0_i32, %c0_i32_0 : i32, i32
  }
  func.func @transform_3(%arg0: i32) -> (i32, i32) {
    %c0_i32 = arith.constant 0 : i32
    %c0_i32_0 = arith.constant 0 : i32
    %c0_i32_1 = arith.constant 0 : i32
    return %c0_i32, %c0_i32_0 : i32, i32
  }
  func.func @transform_4(%arg0: i32) -> (i32, i32) {
    %c0_i32 = arith.constant 0 : i32
    %c0_i32_0 = arith.constant 0 : i32
    %c0_i32_1 = arith.constant 0 : i32
    return %c0_i32, %c0_i32_0 : i32, i32
  }
  func.func @transform_5(%arg0: i32) -> (i32, i32) {
    %c0_i32 = arith.constant 0 : i32
    %c0_i32_0 = arith.constant 0 : i32
    %c0_i32_1 = arith.constant 0 : i32
    return %c0_i32, %c0_i32_0 : i32, i32
  }
  func.func @transform_6(%arg0: i32) -> (i32, i32) {
    %c0_i32 = arith.constant 0 : i32
    %c0_i32_0 = arith.constant 0 : i32
    %c0_i32_1 = arith.constant 0 : i32
    return %c0_i32, %c0_i32_0 : i32, i32
  }
  func.func @transform_7(%arg0: i32) -> (i32, i32) {
    %c0_i32 = arith.constant 0 : i32
    %c0_i32_0 = arith.constant 0 : i32
    return %arg0, %c0_i32 : i32, i32
  }
  func.func @transform_8(%arg0: i32) -> (i32, i32) {
    %c0_i32 = arith.constant 0 : i32
    %c0_i32_0 = arith.constant 0 : i32
    return %arg0, %c0_i32 : i32, i32
  }
  func.func @transform_9(%arg0: i32) -> (i32, i32) {
    %c0_i32 = arith.constant 0 : i32
    %c0_i32_0 = arith.constant 0 : i32
    return %arg0, %c0_i32 : i32, i32
  }
}

module attributes {stable_mosaic.version = 11 : i64} {
  func.func @_attn_out_kernel(%arg0: i32, %arg1: i32, %arg2: memref<1xf32, #tpu.memory_space<smem>>, %arg3: memref<1x128x8xf32, #tpu.memory_space<vmem>>, %arg4: memref<1x32x8xf32, #tpu.memory_space<vmem>>, %arg5: memref<1x32x256xf32, #tpu.memory_space<vmem>>, %arg6: memref<1x32x64xf32, #tpu.memory_space<vmem>>, %arg7: memref<1x128x64xf32, #tpu.memory_space<vmem>>, %arg8: memref<1x128x256xf32, #tpu.memory_space<vmem>>, %arg9: memref<1x128x64xf32, #tpu.memory_space<vmem>>) attributes {dimension_semantics = [#tpu.dimension_semantics<parallel>, #tpu.dimension_semantics<parallel>], iteration_bounds = array<i64: 2, 2>, scalar_prefetch = 0 : i64, scratch_operands = 0 : i64, tpu.core_type = #tpu.core_type<tc>, window_params = [{transform_indices = @transform_0, window_bounds = array<i64: 1>}, {transform_indices = @transform_1, window_bounds = array<i64: 1, 128, 8>}, {transform_indices = @transform_2, window_bounds = array<i64: 1, 32, 8>}, {transform_indices = @transform_3, window_bounds = array<i64: 1, 32, 256>}, {transform_indices = @transform_4, window_bounds = array<i64: 1, 32, 64>}, {transform_indices = @transform_5, window_bounds = array<i64: 1, 128, 64>}, {transform_indices = @transform_6, window_bounds = array<i64: 1, 128, 256>}, {transform_indices = @transform_7, window_bounds = array<i64: 1, 128, 64>}]} {
    %c0 = arith.constant 0 : index
    %c0_0 = arith.constant 0 : index
    %c0_1 = arith.constant 0 : index
    %0 = vector.load %arg3[%c0, %c0_0, %c0_1] : memref<1x128x8xf32, #tpu.memory_space<vmem>>, vector<1x128x8xf32>
    %1 = vector.shape_cast %0 : vector<1x128x8xf32> to vector<128x8xf32>
    %c0_2 = arith.constant 0 : index
    %c0_3 = arith.constant 0 : index
    %c0_4 = arith.constant 0 : index
    %2 = vector.load %arg4[%c0_2, %c0_3, %c0_4] : memref<1x32x8xf32, #tpu.memory_space<vmem>>, vector<1x32x8xf32>
    %3 = vector.shape_cast %2 : vector<1x32x8xf32> to vector<32x8xf32>
    %cst = arith.constant dense<0.000000e+00> : vector<128x32xf32>
    %4 = tpu.matmul %1, %3, %cst {dimension_numbers = #tpu.dot_dimension_numbers<[1], [1], [0], [0], [0, 0, 1, 0], [], []>} : vector<128x8xf32>, vector<32x8xf32>, vector<128x32xf32> -> vector<128x32xf32>
    %cst_5 = arith.constant 0.353553385 : f32
    %5 = vector.broadcast %cst_5 : f32 to vector<128x32xf32>
    %6 = arith.mulf %5, %4 : vector<128x32xf32>
    %cst_6 = arith.constant dense<0xFF800000> : vector<128xf32>
    %7 = vector.multi_reduction <maximumf>, %6, %cst_6 [1] : vector<128x32xf32> to vector<128xf32>
    %8 = vector.shape_cast %7 : vector<128xf32> to vector<128x1xf32>
    %9 = vector.broadcast %8 : vector<128x1xf32> to vector<128x32xf32>
    %10 = arith.subf %6, %9 : vector<128x32xf32>
    %11 = math.exp %10 : vector<128x32xf32>
    %cst_7 = arith.constant dense<0.000000e+00> : vector<128xf32>
    %12 = vector.multi_reduction <add>, %11, %cst_7 [1] : vector<128x32xf32> to vector<128xf32>
    %13 = vector.shape_cast %12 : vector<128xf32> to vector<128x1xf32>
    %14 = vector.broadcast %13 : vector<128x1xf32> to vector<128x32xf32>
    %15 = arith.divf %11, %14 : vector<128x32xf32>
    %c0_8 = arith.constant 0 : index
    %c0_9 = arith.constant 0 : index
    %c0_10 = arith.constant 0 : index
    %16 = vector.load %arg5[%c0_8, %c0_9, %c0_10] : memref<1x32x256xf32, #tpu.memory_space<vmem>>, vector<1x32x256xf32>
    %17 = vector.shape_cast %16 : vector<1x32x256xf32> to vector<32x256xf32>
    %cst_11 = arith.constant dense<0.000000e+00> : vector<128x256xf32>
    %18 = tpu.matmul %15, %17, %cst_11 {dimension_numbers = #tpu.dot_dimension_numbers<[1], [0], [0], [1], [0, 0, 1, 1], [], []>} : vector<128x32xf32>, vector<32x256xf32>, vector<128x256xf32> -> vector<128x256xf32>
    %c0_12 = arith.constant 0 : index
    %c0_13 = arith.constant 0 : index
    %c0_14 = arith.constant 0 : index
    %19 = vector.load %arg8[%c0_12, %c0_13, %c0_14] : memref<1x128x256xf32, #tpu.memory_space<vmem>>, vector<1x128x256xf32>
    %20 = vector.shape_cast %19 : vector<1x128x256xf32> to vector<128x256xf32>
    %21 = vector.shape_cast %18 : vector<128x256xf32> to vector<1x128x256xf32>
    tpu.vector_store %arg8[%c0_12, %c0_13, %c0_14], %21 {strides = array<i32>} : memref<1x128x256xf32, #tpu.memory_space<vmem>>, vector<1x128x256xf32>,
    %c0_15 = arith.constant 0 : index
    %c0_16 = arith.constant 0 : index
    %c0_17 = arith.constant 0 : index
    %22 = vector.load %arg6[%c0_15, %c0_16, %c0_17] : memref<1x32x64xf32, #tpu.memory_space<vmem>>, vector<1x32x64xf32>
    %23 = vector.shape_cast %22 : vector<1x32x64xf32> to vector<32x64xf32>
    %cst_18 = arith.constant dense<0.000000e+00> : vector<128x64xf32>
    %24 = tpu.matmul %15, %23, %cst_18 {dimension_numbers = #tpu.dot_dimension_numbers<[1], [0], [0], [1], [0, 0, 1, 1], [], []>} : vector<128x32xf32>, vector<32x64xf32>, vector<128x64xf32> -> vector<128x64xf32>
    %c0_19 = arith.constant 0 : index
    %25 = memref.load %arg2[%c0_19] : memref<1xf32, #tpu.memory_space<smem>>
    %26 = vector.broadcast %25 : f32 to vector<128x64xf32>
    %27 = arith.mulf %26, %24 : vector<128x64xf32>
    %c0_20 = arith.constant 0 : index
    %c0_21 = arith.constant 0 : index
    %c0_22 = arith.constant 0 : index
    %28 = vector.load %arg7[%c0_20, %c0_21, %c0_22] : memref<1x128x64xf32, #tpu.memory_space<vmem>>, vector<1x128x64xf32>
    %29 = vector.shape_cast %28 : vector<1x128x64xf32> to vector<128x64xf32>
    %30 = arith.addf %27, %29 : vector<128x64xf32>
    %c0_23 = arith.constant 0 : index
    %c0_24 = arith.constant 0 : index
    %c0_25 = arith.constant 0 : index
    %31 = vector.load %arg9[%c0_23, %c0_24, %c0_25] : memref<1x128x64xf32, #tpu.memory_space<vmem>>, vector<1x128x64xf32>
    %32 = vector.shape_cast %31 : vector<1x128x64xf32> to vector<128x64xf32>
    %33 = vector.shape_cast %30 : vector<128x64xf32> to vector<1x128x64xf32>
    tpu.vector_store %arg9[%c0_23, %c0_24, %c0_25], %33 {strides = array<i32>} : memref<1x128x64xf32, #tpu.memory_space<vmem>>, vector<1x128x64xf32>,
    return
  }
  func.func @transform_0(%arg0: i32, %arg1: i32) -> i32 {
    %c0_i32 = arith.constant 0 : i32
    %c0_i32_0 = arith.constant 0 : i32
    return %c0_i32 : i32
  }
  func.func @transform_1(%arg0: i32, %arg1: i32) -> (i32, i32, i32) {
    %c0_i32 = arith.constant 0 : i32
    %c0_i32_0 = arith.constant 0 : i32
    return %arg0, %arg1, %c0_i32 : i32, i32, i32
  }
  func.func @transform_2(%arg0: i32, %arg1: i32) -> (i32, i32, i32) {
    %c0_i32 = arith.constant 0 : i32
    %c0_i32_0 = arith.constant 0 : i32
    %c0_i32_1 = arith.constant 0 : i32
    return %arg0, %c0_i32, %c0_i32_0 : i32, i32, i32
  }
  func.func @transform_3(%arg0: i32, %arg1: i32) -> (i32, i32, i32) {
    %c0_i32 = arith.constant 0 : i32
    %c0_i32_0 = arith.constant 0 : i32
    %c0_i32_1 = arith.constant 0 : i32
    return %arg0, %c0_i32, %c0_i32_0 : i32, i32, i32
  }
  func.func @transform_4(%arg0: i32, %arg1: i32) -> (i32, i32, i32) {
    %c0_i32 = arith.constant 0 : i32
    %c0_i32_0 = arith.constant 0 : i32
    %c0_i32_1 = arith.constant 0 : i32
    return %arg0, %c0_i32, %c0_i32_0 : i32, i32, i32
  }
  func.func @transform_5(%arg0: i32, %arg1: i32) -> (i32, i32, i32) {
    %c0_i32 = arith.constant 0 : i32
    %c0_i32_0 = arith.constant 0 : i32
    return %arg0, %arg1, %c0_i32 : i32, i32, i32
  }
  func.func @transform_6(%arg0: i32, %arg1: i32) -> (i32, i32, i32) {
    %c0_i32 = arith.constant 0 : i32
    %c0_i32_0 = arith.constant 0 : i32
    return %arg0, %arg1, %c0_i32 : i32, i32, i32
  }
  func.func @transform_7(%arg0: i32, %arg1: i32) -> (i32, i32, i32) {
    %c0_i32 = arith.constant 0 : i32
    %c0_i32_0 = arith.constant 0 : i32
    return %arg0, %arg1, %c0_i32 : i32, i32, i32
  }
}

module attributes {stable_mosaic.version = 11 : i64} {
  func.func @_landmark_kernel(%arg0: i32, %arg1: memref<1x256x8xf32, #tpu.memory_space<vmem>>, %arg2: memref<1x256x8xf32, #tpu.memory_space<vmem>>, %arg3: memref<32x256xf32, #tpu.memory_space<vmem>>, %arg4: memref<1x256x64xf32, #tpu.memory_space<vmem>>, %arg5: memref<1x32x8xf32, #tpu.memory_space<vmem>>, %arg6: memref<1x32x256xf32, #tpu.memory_space<vmem>>, %arg7: memref<1x32x64xf32, #tpu.memory_space<vmem>>) attributes {dimension_semantics = [#tpu.dimension_semantics<parallel>], iteration_bounds = array<i64: 2>, scalar_prefetch = 0 : i64, scratch_operands = 0 : i64, tpu.core_type = #tpu.core_type<tc>, window_params = [{transform_indices = @transform_0, window_bounds = array<i64: 1, 256, 8>}, {transform_indices = @transform_1, window_bounds = array<i64: 1, 256, 8>}, {pipeline_mode = #tpu.pipeline_mode<synchronous>, transform_indices = @transform_2, window_bounds = array<i64: 32, 256>}, {transform_indices = @transform_3, window_bounds = array<i64: 1, 256, 64>}, {transform_indices = @transform_4, window_bounds = array<i64: 1, 32, 8>}, {transform_indices = @transform_5, window_bounds = array<i64: 1, 32, 256>}, {transform_indices = @transform_6, window_bounds = array<i64: 1, 32, 64>}]} {
    %c0 = arith.constant 0 : index
    %c0_0 = arith.constant 0 : index
    %c0_1 = arith.constant 0 : index
    %0 = vector.load %arg1[%c0, %c0_0, %c0_1] : memref<1x256x8xf32, #tpu.memory_space<vmem>>, vector<1x256x8xf32>
    %1 = vector.shape_cast %0 : vector<1x256x8xf32> to vector<256x8xf32>
    %c0_2 = arith.constant 0 : index
    %c0_3 = arith.constant 0 : index
    %c0_4 = arith.constant 0 : index
    %2 = vector.load %arg2[%c0_2, %c0_3, %c0_4] : memref<1x256x8xf32, #tpu.memory_space<vmem>>, vector<1x256x8xf32>
    %3 = vector.shape_cast %2 : vector<1x256x8xf32> to vector<256x8xf32>
    %c0_5 = arith.constant 0 : index
    %c0_6 = arith.constant 0 : index
    %4 = vector.load %arg3[%c0_5, %c0_6] : memref<32x256xf32, #tpu.memory_space<vmem>>, vector<32x256xf32>
    %cst = arith.constant dense<0.000000e+00> : vector<32x8xf32>
    %5 = tpu.matmul %4, %1, %cst {dimension_numbers = #tpu.dot_dimension_numbers<[1], [0], [0], [1], [0, 0, 1, 1], [], []>} : vector<32x256xf32>, vector<256x8xf32>, vector<32x8xf32> -> vector<32x8xf32>
    %cst_7 = arith.constant dense<0.000000e+00> : vector<32x8xf32>
    %6 = tpu.matmul %4, %3, %cst_7 {dimension_numbers = #tpu.dot_dimension_numbers<[1], [0], [0], [1], [0, 0, 1, 1], [], []>} : vector<32x256xf32>, vector<256x8xf32>, vector<32x8xf32> -> vector<32x8xf32>
    %cst_8 = arith.constant dense<0.000000e+00> : vector<32x32xf32>
    %7 = tpu.matmul %5, %6, %cst_8 {dimension_numbers = #tpu.dot_dimension_numbers<[1], [1], [0], [0], [0, 0, 1, 0], [], []>} : vector<32x8xf32>, vector<32x8xf32>, vector<32x32xf32> -> vector<32x32xf32>
    %cst_9 = arith.constant 0.353553385 : f32
    %8 = vector.broadcast %cst_9 : f32 to vector<32x32xf32>
    %9 = arith.mulf %8, %7 : vector<32x32xf32>
    %cst_10 = arith.constant dense<0xFF800000> : vector<32xf32>
    %10 = vector.multi_reduction <maximumf>, %9, %cst_10 [1] : vector<32x32xf32> to vector<32xf32>
    %11 = vector.shape_cast %10 : vector<32xf32> to vector<32x1xf32>
    %12 = vector.broadcast %11 : vector<32x1xf32> to vector<32x32xf32>
    %13 = arith.subf %9, %12 : vector<32x32xf32>
    %14 = math.exp %13 : vector<32x32xf32>
    %cst_11 = arith.constant dense<0.000000e+00> : vector<32xf32>
    %15 = vector.multi_reduction <add>, %14, %cst_11 [1] : vector<32x32xf32> to vector<32xf32>
    %16 = vector.shape_cast %15 : vector<32xf32> to vector<32x1xf32>
    %17 = vector.broadcast %16 : vector<32x1xf32> to vector<32x32xf32>
    %18 = arith.divf %14, %17 : vector<32x32xf32>
    %cst_12 = arith.constant dense<0.000000e+00> : vector<32x256xf32>
    %19 = tpu.matmul %5, %3, %cst_12 {dimension_numbers = #tpu.dot_dimension_numbers<[1], [1], [0], [0], [0, 0, 1, 0], [], []>} : vector<32x8xf32>, vector<256x8xf32>, vector<32x256xf32> -> vector<32x256xf32>
    %cst_13 = arith.constant 0.353553385 : f32
    %20 = vector.broadcast %cst_13 : f32 to vector<32x256xf32>
    %21 = arith.mulf %20, %19 : vector<32x256xf32>
    %cst_14 = arith.constant dense<0xFF800000> : vector<32xf32>
    %22 = vector.multi_reduction <maximumf>, %21, %cst_14 [1] : vector<32x256xf32> to vector<32xf32>
    %23 = vector.shape_cast %22 : vector<32xf32> to vector<32x1xf32>
    %24 = vector.broadcast %23 : vector<32x1xf32> to vector<32x256xf32>
    %25 = arith.subf %21, %24 : vector<32x256xf32>
    %26 = math.exp %25 : vector<32x256xf32>
    %cst_15 = arith.constant dense<0.000000e+00> : vector<32xf32>
    %27 = vector.multi_reduction <add>, %26, %cst_15 [1] : vector<32x256xf32> to vector<32xf32>
    %28 = vector.shape_cast %27 : vector<32xf32> to vector<32x1xf32>
    %29 = vector.broadcast %28 : vector<32x1xf32> to vector<32x256xf32>
    %30 = arith.divf %26, %29 : vector<32x256xf32>
    %31 = tpu.iota {dimensions = array<i32: 0>} : vector<32x32xi32>
    %32 = tpu.iota {dimensions = array<i32: 1>} : vector<32x32xi32>
    %33 = arith.cmpi eq, %31, %32 : vector<32x32xi32>
    %34 = arith.extui %33 : vector<32x32xi1> to vector<32x32xi32>
    %35 = arith.sitofp %34 : vector<32x32xi32> to vector<32x32xf32>
    %cst_16 = arith.constant dense<0.000000e+00> : vector<32x32xf32>
    %36 = tpu.matmul %35, %18, %cst_16 {dimension_numbers = #tpu.dot_dimension_numbers<[1], [1], [0], [0], [0, 0, 1, 0], [], []>} : vector<32x32xf32>, vector<32x32xf32>, vector<32x32xf32> -> vector<32x32xf32>
    %cst_17 = arith.constant dense<0.000000e+00> : vector<32xf32>
    %37 = vector.multi_reduction <add>, %18, %cst_17 [0] : vector<32x32xf32> to vector<32xf32>
    %38 = vector.shape_cast %37 : vector<32xf32> to vector<1x32xf32>
    %cst_18 = arith.constant dense<0xFF800000> : vector<1xf32>
    %39 = vector.multi_reduction <maximumf>, %38, %cst_18 [1] : vector<1x32xf32> to vector<1xf32>
    %40 = vector.shape_cast %39 : vector<1xf32> to vector<1x1xf32>
    %cst_19 = arith.constant dense<0.000000e+00> : vector<32xf32>
    %41 = vector.multi_reduction <add>, %18, %cst_19 [1] : vector<32x32xf32> to vector<32xf32>
    %42 = vector.shape_cast %41 : vector<32xf32> to vector<32x1xf32>
    %cst_20 = arith.constant dense<0xFF800000> : vector<1xf32>
    %43 = vector.multi_reduction <maximumf>, %42, %cst_20 [0] : vector<32x1xf32> to vector<1xf32>
    %44 = vector.shape_cast %43 : vector<1xf32> to vector<1x1xf32>
    %45 = arith.mulf %40, %44 : vector<1x1xf32>
    %46 = vector.broadcast %45 : vector<1x1xf32> to vector<32x32xf32>
    %47 = arith.divf %36, %46 : vector<32x32xf32>
    %cst_21 = arith.constant dense<0.000000e+00> : vector<32x32xf32>
    %48 = tpu.matmul %18, %47, %cst_21 {dimension_numbers = #tpu.dot_dimension_numbers<[1], [0], [0], [1], [0, 0, 1, 1], [], []>} : vector<32x32xf32>, vector<32x32xf32>, vector<32x32xf32> -> vector<32x32xf32>
    %cst_22 = arith.constant 7.000000e+00 : f32
    %49 = vector.broadcast %cst_22 : f32 to vector<32x32xf32>
    %50 = arith.mulf %49, %35 : vector<32x32xf32>
    %51 = arith.subf %50, %48 : vector<32x32xf32>
    %cst_23 = arith.constant 1.500000e+01 : f32
    %52 = vector.broadcast %cst_23 : f32 to vector<32x32xf32>
    %53 = arith.mulf %52, %35 : vector<32x32xf32>
    %cst_24 = arith.constant dense<0.000000e+00> : vector<32x32xf32>
    %54 = tpu.matmul %48, %51, %cst_24 {dimension_numbers = #tpu.dot_dimension_numbers<[1], [0], [0], [1], [0, 0, 1, 1], [], []>} : vector<32x32xf32>, vector<32x32xf32>, vector<32x32xf32> -> vector<32x32xf32>
    %55 = arith.subf %53, %54 : vector<32x32xf32>
    %cst_25 = arith.constant 1.300000e+01 : f32
    %56 = vector.broadcast %cst_25 : f32 to vector<32x32xf32>
    %57 = arith.mulf %56, %35 : vector<32x32xf32>
    %cst_26 = arith.constant dense<0.000000e+00> : vector<32x32xf32>
    %58 = tpu.matmul %48, %55, %cst_26 {dimension_numbers = #tpu.dot_dimension_numbers<[1], [0], [0], [1], [0, 0, 1, 1], [], []>} : vector<32x32xf32>, vector<32x32xf32>, vector<32x32xf32> -> vector<32x32xf32>
    %59 = arith.subf %57, %58 : vector<32x32xf32>
    %cst_27 = arith.constant dense<0.000000e+00> : vector<32x32xf32>
    %60 = tpu.matmul %47, %59, %cst_27 {dimension_numbers = #tpu.dot_dimension_numbers<[1], [0], [0], [1], [0, 0, 1, 1], [], []>} : vector<32x32xf32>, vector<32x32xf32>, vector<32x32xf32> -> vector<32x32xf32>
    %cst_28 = arith.constant 2.500000e-01 : f32
    %61 = vector.broadcast %cst_28 : f32 to vector<32x32xf32>
    %62 = arith.mulf %61, %60 : vector<32x32xf32>
    %cst_29 = arith.constant dense<0.000000e+00> : vector<32x32xf32>
    %63 = tpu.matmul %18, %62, %cst_29 {dimension_numbers = #tpu.dot_dimension_numbers<[1], [0], [0], [1], [0, 0, 1, 1], [], []>} : vector<32x32xf32>, vector<32x32xf32>, vector<32x32xf32> -> vector<32x32xf32>
    %cst_30 = arith.constant 7.000000e+00 : f32
    %64 = vector.broadcast %cst_30 : f32 to vector<32x32xf32>
    %65 = arith.mulf %64, %35 : vector<32x32xf32>
    %66 = arith.subf %65, %63 : vector<32x32xf32>
    %cst_31 = arith.constant 1.500000e+01 : f32
    %67 = vector.broadcast %cst_31 : f32 to vector<32x32xf32>
    %68 = arith.mulf %67, %35 : vector<32x32xf32>
    %cst_32 = arith.constant dense<0.000000e+00> : vector<32x32xf32>
    %69 = tpu.matmul %63, %66, %cst_32 {dimension_numbers = #tpu.dot_dimension_numbers<[1], [0], [0], [1], [0, 0, 1, 1], [], []>} : vector<32x32xf32>, vector<32x32xf32>, vector<32x32xf32> -> vector<32x32xf32>
    %70 = arith.subf %68, %69 : vector<32x32xf32>
    %cst_33 = arith.constant 1.300000e+01 : f32
    %71 = vector.broadcast %cst_33 : f32 to vector<32x32xf32>
    %72 = arith.mulf %71, %35 : vector<32x32xf32>
    %cst_34 = arith.constant dense<0.000000e+00> : vector<32x32xf32>
    %73 = tpu.matmul %63, %70, %cst_34 {dimension_numbers = #tpu.dot_dimension_numbers<[1], [0], [0], [1], [0, 0, 1, 1], [], []>} : vector<32x32xf32>, vector<32x32xf32>, vector<32x32xf32> -> vector<32x32xf32>
    %74 = arith.subf %72, %73 : vector<32x32xf32>
    %cst_35 = arith.constant dense<0.000000e+00> : vector<32x32xf32>
    %75 = tpu.matmul %62, %74, %cst_35 {dimension_numbers = #tpu.dot_dimension_numbers<[1], [0], [0], [1], [0, 0, 1, 1], [], []>} : vector<32x32xf32>, vector<32x32xf32>, vector<32x32xf32> -> vector<32x32xf32>
    %cst_36 = arith.constant 2.500000e-01 : f32
    %76 = vector.broadcast %cst_36 : f32 to vector<32x32xf32>
    %77 = arith.mulf %76, %75 : vector<32x32xf32>
    %cst_37 = arith.constant dense<0.000000e+00> : vector<32x32xf32>
    %78 = tpu.matmul %18, %77, %cst_37 {dimension_numbers = #tpu.dot_dimension_numbers<[1], [0], [0], [1], [0, 0, 1, 1], [], []>} : vector<32x32xf32>, vector<32x32xf32>, vector<32x32xf32> -> vector<32x32xf32>
    %cst_38 = arith.constant 7.000000e+00 : f32
    %79 = vector.broadcast %cst_38 : f32 to vector<32x32xf32>
    %80 = arith.mulf %79, %35 : vector<32x32xf32>
    %81 = arith.subf %80, %78 : vector<32x32xf32>
    %cst_39 = arith.constant 1.500000e+01 : f32
    %82 = vector.broadcast %cst_39 : f32 to vector<32x32xf32>
    %83 = arith.mulf %82, %35 : vector<32x32xf32>
    %cst_40 = arith.constant dense<0.000000e+00> : vector<32x32xf32>
    %84 = tpu.matmul %78, %81, %cst_40 {dimension_numbers = #tpu.dot_dimension_numbers<[1], [0], [0], [1], [0, 0, 1, 1], [], []>} : vector<32x32xf32>, vector<32x32xf32>, vector<32x32xf32> -> vector<32x32xf32>
    %85 = arith.subf %83, %84 : vector<32x32xf32>
    %cst_41 = arith.constant 1.300000e+01 : f32
    %86 = vector.broadcast %cst_41 : f32 to vector<32x32xf32>
    %87 = arith.mulf %86, %35 : vector<32x32xf32>
    %cst_42 = arith.constant dense<0.000000e+00> : vector<32x32xf32>
    %88 = tpu.matmul %78, %85, %cst_42 {dimension_numbers = #tpu.dot_dimension_numbers<[1], [0], [0], [1], [0, 0, 1, 1], [], []>} : vector<32x32xf32>, vector<32x32xf32>, vector<32x32xf32> -> vector<32x32xf32>
    %89 = arith.subf %87, %88 : vector<32x32xf32>
    %cst_43 = arith.constant dense<0.000000e+00> : vector<32x32xf32>
    %90 = tpu.matmul %77, %89, %cst_43 {dimension_numbers = #tpu.dot_dimension_numbers<[1], [0], [0], [1], [0, 0, 1, 1], [], []>} : vector<32x32xf32>, vector<32x32xf32>, vector<32x32xf32> -> vector<32x32xf32>
    %cst_44 = arith.constant 2.500000e-01 : f32
    %91 = vector.broadcast %cst_44 : f32 to vector<32x32xf32>
    %92 = arith.mulf %91, %90 : vector<32x32xf32>
    %cst_45 = arith.constant dense<0.000000e+00> : vector<32x32xf32>
    %93 = tpu.matmul %18, %92, %cst_45 {dimension_numbers = #tpu.dot_dimension_numbers<[1], [0], [0], [1], [0, 0, 1, 1], [], []>} : vector<32x32xf32>, vector<32x32xf32>, vector<32x32xf32> -> vector<32x32xf32>
    %cst_46 = arith.constant 7.000000e+00 : f32
    %94 = vector.broadcast %cst_46 : f32 to vector<32x32xf32>
    %95 = arith.mulf %94, %35 : vector<32x32xf32>
    %96 = arith.subf %95, %93 : vector<32x32xf32>
    %cst_47 = arith.constant 1.500000e+01 : f32
    %97 = vector.broadcast %cst_47 : f32 to vector<32x32xf32>
    %98 = arith.mulf %97, %35 : vector<32x32xf32>
    %cst_48 = arith.constant dense<0.000000e+00> : vector<32x32xf32>
    %99 = tpu.matmul %93, %96, %cst_48 {dimension_numbers = #tpu.dot_dimension_numbers<[1], [0], [0], [1], [0, 0, 1, 1], [], []>} : vector<32x32xf32>, vector<32x32xf32>, vector<32x32xf32> -> vector<32x32xf32>
    %100 = arith.subf %98, %99 : vector<32x32xf32>
    %cst_49 = arith.constant 1.300000e+01 : f32
    %101 = vector.broadcast %cst_49 : f32 to vector<32x32xf32>
    %102 = arith.mulf %101, %35 : vector<32x32xf32>
    %cst_50 = arith.constant dense<0.000000e+00> : vector<32x32xf32>
    %103 = tpu.matmul %93, %100, %cst_50 {dimension_numbers = #tpu.dot_dimension_numbers<[1], [0], [0], [1], [0, 0, 1, 1], [], []>} : vector<32x32xf32>, vector<32x32xf32>, vector<32x32xf32> -> vector<32x32xf32>
    %104 = arith.subf %102, %103 : vector<32x32xf32>
    %cst_51 = arith.constant dense<0.000000e+00> : vector<32x32xf32>
    %105 = tpu.matmul %92, %104, %cst_51 {dimension_numbers = #tpu.dot_dimension_numbers<[1], [0], [0], [1], [0, 0, 1, 1], [], []>} : vector<32x32xf32>, vector<32x32xf32>, vector<32x32xf32> -> vector<32x32xf32>
    %cst_52 = arith.constant 2.500000e-01 : f32
    %106 = vector.broadcast %cst_52 : f32 to vector<32x32xf32>
    %107 = arith.mulf %106, %105 : vector<32x32xf32>
    %cst_53 = arith.constant dense<0.000000e+00> : vector<32x32xf32>
    %108 = tpu.matmul %18, %107, %cst_53 {dimension_numbers = #tpu.dot_dimension_numbers<[1], [0], [0], [1], [0, 0, 1, 1], [], []>} : vector<32x32xf32>, vector<32x32xf32>, vector<32x32xf32> -> vector<32x32xf32>
    %cst_54 = arith.constant 7.000000e+00 : f32
    %109 = vector.broadcast %cst_54 : f32 to vector<32x32xf32>
    %110 = arith.mulf %109, %35 : vector<32x32xf32>
    %111 = arith.subf %110, %108 : vector<32x32xf32>
    %cst_55 = arith.constant 1.500000e+01 : f32
    %112 = vector.broadcast %cst_55 : f32 to vector<32x32xf32>
    %113 = arith.mulf %112, %35 : vector<32x32xf32>
    %cst_56 = arith.constant dense<0.000000e+00> : vector<32x32xf32>
    %114 = tpu.matmul %108, %111, %cst_56 {dimension_numbers = #tpu.dot_dimension_numbers<[1], [0], [0], [1], [0, 0, 1, 1], [], []>} : vector<32x32xf32>, vector<32x32xf32>, vector<32x32xf32> -> vector<32x32xf32>
    %115 = arith.subf %113, %114 : vector<32x32xf32>
    %cst_57 = arith.constant 1.300000e+01 : f32
    %116 = vector.broadcast %cst_57 : f32 to vector<32x32xf32>
    %117 = arith.mulf %116, %35 : vector<32x32xf32>
    %cst_58 = arith.constant dense<0.000000e+00> : vector<32x32xf32>
    %118 = tpu.matmul %108, %115, %cst_58 {dimension_numbers = #tpu.dot_dimension_numbers<[1], [0], [0], [1], [0, 0, 1, 1], [], []>} : vector<32x32xf32>, vector<32x32xf32>, vector<32x32xf32> -> vector<32x32xf32>
    %119 = arith.subf %117, %118 : vector<32x32xf32>
    %cst_59 = arith.constant dense<0.000000e+00> : vector<32x32xf32>
    %120 = tpu.matmul %107, %119, %cst_59 {dimension_numbers = #tpu.dot_dimension_numbers<[1], [0], [0], [1], [0, 0, 1, 1], [], []>} : vector<32x32xf32>, vector<32x32xf32>, vector<32x32xf32> -> vector<32x32xf32>
    %cst_60 = arith.constant 2.500000e-01 : f32
    %121 = vector.broadcast %cst_60 : f32 to vector<32x32xf32>
    %122 = arith.mulf %121, %120 : vector<32x32xf32>
    %cst_61 = arith.constant dense<0.000000e+00> : vector<32x32xf32>
    %123 = tpu.matmul %18, %122, %cst_61 {dimension_numbers = #tpu.dot_dimension_numbers<[1], [0], [0], [1], [0, 0, 1, 1], [], []>} : vector<32x32xf32>, vector<32x32xf32>, vector<32x32xf32> -> vector<32x32xf32>
    %cst_62 = arith.constant 7.000000e+00 : f32
    %124 = vector.broadcast %cst_62 : f32 to vector<32x32xf32>
    %125 = arith.mulf %124, %35 : vector<32x32xf32>
    %126 = arith.subf %125, %123 : vector<32x32xf32>
    %cst_63 = arith.constant 1.500000e+01 : f32
    %127 = vector.broadcast %cst_63 : f32 to vector<32x32xf32>
    %128 = arith.mulf %127, %35 : vector<32x32xf32>
    %cst_64 = arith.constant dense<0.000000e+00> : vector<32x32xf32>
    %129 = tpu.matmul %123, %126, %cst_64 {dimension_numbers = #tpu.dot_dimension_numbers<[1], [0], [0], [1], [0, 0, 1, 1], [], []>} : vector<32x32xf32>, vector<32x32xf32>, vector<32x32xf32> -> vector<32x32xf32>
    %130 = arith.subf %128, %129 : vector<32x32xf32>
    %cst_65 = arith.constant 1.300000e+01 : f32
    %131 = vector.broadcast %cst_65 : f32 to vector<32x32xf32>
    %132 = arith.mulf %131, %35 : vector<32x32xf32>
    %cst_66 = arith.constant dense<0.000000e+00> : vector<32x32xf32>
    %133 = tpu.matmul %123, %130, %cst_66 {dimension_numbers = #tpu.dot_dimension_numbers<[1], [0], [0], [1], [0, 0, 1, 1], [], []>} : vector<32x32xf32>, vector<32x32xf32>, vector<32x32xf32> -> vector<32x32xf32>
    %134 = arith.subf %132, %133 : vector<32x32xf32>
    %cst_67 = arith.constant dense<0.000000e+00> : vector<32x32xf32>
    %135 = tpu.matmul %122, %134, %cst_67 {dimension_numbers = #tpu.dot_dimension_numbers<[1], [0], [0], [1], [0, 0, 1, 1], [], []>} : vector<32x32xf32>, vector<32x32xf32>, vector<32x32xf32> -> vector<32x32xf32>
    %cst_68 = arith.constant 2.500000e-01 : f32
    %136 = vector.broadcast %cst_68 : f32 to vector<32x32xf32>
    %137 = arith.mulf %136, %135 : vector<32x32xf32>
    %cst_69 = arith.constant dense<0.000000e+00> : vector<32x256xf32>
    %138 = tpu.matmul %137, %30, %cst_69 {dimension_numbers = #tpu.dot_dimension_numbers<[1], [0], [0], [1], [0, 0, 1, 1], [], []>} : vector<32x32xf32>, vector<32x256xf32>, vector<32x256xf32> -> vector<32x256xf32>
    %c0_70 = arith.constant 0 : index
    %c0_71 = arith.constant 0 : index
    %c0_72 = arith.constant 0 : index
    %139 = vector.load %arg5[%c0_70, %c0_71, %c0_72] : memref<1x32x8xf32, #tpu.memory_space<vmem>>, vector<1x32x8xf32>
    %140 = vector.shape_cast %139 : vector<1x32x8xf32> to vector<32x8xf32>
    %141 = vector.shape_cast %6 : vector<32x8xf32> to vector<1x32x8xf32>
    tpu.vector_store %arg5[%c0_70, %c0_71, %c0_72], %141 {strides = array<i32>} : memref<1x32x8xf32, #tpu.memory_space<vmem>>, vector<1x32x8xf32>,
    %c0_73 = arith.constant 0 : index
    %c0_74 = arith.constant 0 : index
    %c0_75 = arith.constant 0 : index
    %142 = vector.load %arg6[%c0_73, %c0_74, %c0_75] : memref<1x32x256xf32, #tpu.memory_space<vmem>>, vector<1x32x256xf32>
    %143 = vector.shape_cast %142 : vector<1x32x256xf32> to vector<32x256xf32>
    %144 = vector.shape_cast %138 : vector<32x256xf32> to vector<1x32x256xf32>
    tpu.vector_store %arg6[%c0_73, %c0_74, %c0_75], %144 {strides = array<i32>} : memref<1x32x256xf32, #tpu.memory_space<vmem>>, vector<1x32x256xf32>,
    %c0_76 = arith.constant 0 : index
    %c0_77 = arith.constant 0 : index
    %c0_78 = arith.constant 0 : index
    %145 = vector.load %arg4[%c0_76, %c0_77, %c0_78] : memref<1x256x64xf32, #tpu.memory_space<vmem>>, vector<1x256x64xf32>
    %146 = vector.shape_cast %145 : vector<1x256x64xf32> to vector<256x64xf32>
    %cst_79 = arith.constant dense<0.000000e+00> : vector<32x64xf32>
    %147 = tpu.matmul %138, %146, %cst_79 {dimension_numbers = #tpu.dot_dimension_numbers<[1], [0], [0], [1], [0, 0, 1, 1], [], []>} : vector<32x256xf32>, vector<256x64xf32>, vector<32x64xf32> -> vector<32x64xf32>
    %c0_80 = arith.constant 0 : index
    %c0_81 = arith.constant 0 : index
    %c0_82 = arith.constant 0 : index
    %148 = vector.load %arg7[%c0_80, %c0_81, %c0_82] : memref<1x32x64xf32, #tpu.memory_space<vmem>>, vector<1x32x64xf32>
    %149 = vector.shape_cast %148 : vector<1x32x64xf32> to vector<32x64xf32>
    %150 = vector.shape_cast %147 : vector<32x64xf32> to vector<1x32x64xf32>
    tpu.vector_store %arg7[%c0_80, %c0_81, %c0_82], %150 {strides = array<i32>} : memref<1x32x64xf32, #tpu.memory_space<vmem>>, vector<1x32x64xf32>,
    return
  }
  func.func @transform_0(%arg0: i32) -> (i32, i32, i32) {
    %c0_i32 = arith.constant 0 : i32
    %c0_i32_0 = arith.constant 0 : i32
    %c0_i32_1 = arith.constant 0 : i32
    return %arg0, %c0_i32, %c0_i32_0 : i32, i32, i32
  }
  func.func @transform_1(%arg0: i32) -> (i32, i32, i32) {
    %c0_i32 = arith.constant 0 : i32
    %c0_i32_0 = arith.constant 0 : i32
    %c0_i32_1 = arith.constant 0 : i32
    return %arg0, %c0_i32, %c0_i32_0 : i32, i32, i32
  }
  func.func @transform_2(%arg0: i32) -> (i32, i32) {
    %c0_i32 = arith.constant 0 : i32
    %c0_i32_0 = arith.constant 0 : i32
    %c0_i32_1 = arith.constant 0 : i32
    return %c0_i32, %c0_i32_0 : i32, i32
  }
  func.func @transform_3(%arg0: i32) -> (i32, i32, i32) {
    %c0_i32 = arith.constant 0 : i32
    %c0_i32_0 = arith.constant 0 : i32
    %c0_i32_1 = arith.constant 0 : i32
    return %arg0, %c0_i32, %c0_i32_0 : i32, i32, i32
  }
  func.func @transform_4(%arg0: i32) -> (i32, i32, i32) {
    %c0_i32 = arith.constant 0 : i32
    %c0_i32_0 = arith.constant 0 : i32
    %c0_i32_1 = arith.constant 0 : i32
    return %arg0, %c0_i32, %c0_i32_0 : i32, i32, i32
  }
  func.func @transform_5(%arg0: i32) -> (i32, i32, i32) {
    %c0_i32 = arith.constant 0 : i32
    %c0_i32_0 = arith.constant 0 : i32
    %c0_i32_1 = arith.constant 0 : i32
    return %arg0, %c0_i32, %c0_i32_0 : i32, i32, i32
  }
  func.func @transform_6(%arg0: i32) -> (i32, i32, i32) {
    %c0_i32 = arith.constant 0 : i32
    %c0_i32_0 = arith.constant 0 : i32
    %c0_i32_1 = arith.constant 0 : i32
    return %arg0, %c0_i32, %c0_i32_0 : i32, i32, i32
  }
}

</mosaic_0001>

<llo_original>
// kernel: self_nys_attn_forward.5
$region0: #{self_nys_attn_forward.5}
  #allocation0 [shape = 'u32[]', space=smem, size = 0x4, offset = 0x4, fixed_abs, tag = 'smem constant byte address 0x4 - core index']
  #allocation1 [shape = 'u32[144,128]{1,0:T(1,128)}', space=vmem, size = 0x12000, scoped, tag = 'internal scratch']
  #allocation2 [shape = 'f32[1]{0:T(128)S(6)}', space=smem, size = 0x200, scoped, tag = 'scoped memory for self_nys_attn_forward.5']
  %s0 = inlined_call_operand.<no memory space> [shape: f32[1], index: 0, kind: input, shape index: {}]
  %s1 = inlined_call_operand.vmem [shape: f32[2,256,8], index: 1, kind: input, shape index: {}]
  %s2 = inlined_call_operand.vmem [shape: f32[2,32,8], index: 2, kind: input, shape index: {}]
  %s3 = inlined_call_operand.vmem [shape: f32[2,32,256], index: 3, kind: input, shape index: {}]
  %s4 = inlined_call_operand.vmem [shape: f32[2,32,64], index: 4, kind: input, shape index: {}]
  %s5 = inlined_call_operand.vmem [shape: f32[2,256,64], index: 5, kind: input, shape index: {}]
  %s6 = inlined_call_operand.hbm [shape: f32[2,256,256], index: 6, kind: output, shape index: {0}]
  %s7 = inlined_call_operand.hbm [shape: f32[2,256,64], index: 7, kind: output, shape index: {1}]
  %8 = xla_tuple %s6, %s7
  %s9 = sld [smem:[#allocation0]]
  $region65: #{self_nys_attn_forward.5} parent=0
    _
  %s11 = ssub.s32 1, %s9
  %s12 = scalar_select 0, %s11, %s9
  %13 = sst [smem:[#allocation2]] %s0
  $region1: #{self_nys_attn_forward.5} parent=0
    #allocation3 [shape = 'u8[262144]{0}', space=vmem, size = 0x40000, scoped, tag = 'output window, operand 0']
    #allocation4 [shape = 's32[2]{0}', space=sflag, size = 0x8, scoped, tag = 'scoped memory for self_nys_attn_forward.5']
    #allocation5 [shape = 'u8[131072]{0}', space=vmem, size = 0x20000, scoped, tag = 'output window, operand 1']
    #allocation6 [shape = 's32[2]{0}', space=sflag, size = 0x8, scoped, tag = 'scoped memory for self_nys_attn_forward.5']
    %14 = vsyncpa [#allocation4], 0
    %s15 = scalar_lea.sflag [#allocation4], 1
    %16 = vsyncpa %s15, 0
    %17 = vsyncpa [#allocation6], 0
    %s18 = scalar_lea.sflag [#allocation6], 1
    %19 = vsyncpa %s18, 0
    loop: start=0, step=1, limit=6
    $region2: #{self_nys_attn_forward.5} parent=1 // loop_pre_header
      _
    $region3: #{self_nys_attn_forward.5} parent=1 // loop_header
      %s21 = sphi 0, %s25
      %p22 = scmp.ge.s32.totalorder %s21, 6
      %s28 = sphi 0, %s40
      %s29 = sphi 0, %s36
      %s30 = sphi 0, %s28
      %s31 = sphi 0, %s29
      %s32 = sphi 0, %s30
      %s33 = sphi 0, %s31
      %s41 = sphi 0, %s41
      %s43 = sphi 0, %s41
      %s44 = sphi 0, %s43
      %s58 = sphi 0, %s44
      %s66 = sphi 0, %s68
      %s69 = sphi 0, %s66
      %s70 = sphi 0, %s69
      %s86 = sphi 0, %s70
      %s92 = sphi 0, %s94
      %s95 = sphi 0, %s92
      %s96 = sphi 0, %s95
      %s112 = sphi 0, %s96
      %s118 = sphi 0, %s120
      %s121 = sphi 0, %s118
      %s122 = sphi 0, %s121
      %s138 = sphi 0, %s122
      %s144 = sphi 0, %s146
      %s147 = sphi 0, %s144
      %s148 = sphi 0, %s147
      %s164 = sphi 0, %s148
      %s172 = sphi 0, %s174
      %s175 = sphi 0, %s172
      %s176 = sphi 0, %s175
      %s192 = sphi 0, %s176
      %s200 = sphi 0, %s202
      %s203 = sphi 0, %s200
      %s204 = sphi 0, %s203
      %s220 = sphi 0, %s204
      %s228 = sphi 0, %s230
      %s231 = sphi 0, %s228
      %s232 = sphi 0, %s231
      %s248 = sphi 0, %s232
    $region4: #{self_nys_attn_forward.5} parent=1 // loop_header_branch
      %24 = sbr.rel (%p22) target = $region8
    $region5: #{self_nys_attn_forward.5} parent=1 // loop_body
      %s26 = ssub.s32 %s21, 1
      %s27 = ssub.s32 %s21, 2
      %s34 = sadd.s32 1, %s29
      %p35 = scmp.ge.s32.totalorder %s34, 2
      %s36 = scalar_select %p35, 0, %s34
      %s37 = sadd.s32 1, %s28
      %s38 = scalar_select %p35, %s37, %s28
      %p39 = scmp.ge.s32.totalorder %s38, 2
      %s40 = scalar_select %p39, 0, %s38
      %s42 = sadd.s32 %s41, 1
      %p45 = scmp.eq.s32.totalorder %s21, 3
      %p46 = scmp.ne.s32.totalorder %s41, %s43
      %p47 = scmp.eq.s32.totalorder %s21, 0
      %p48 = por %p46, %p47
      %p49 = scmp.ne.s32.totalorder %s41, %s43
      %p50 = scmp.eq.s32.totalorder %s26, 3
      %p51 = por %p49, %p50
      %p52 = scmp.ne.s32.totalorder %s43, %s44
      %p53 = scmp.eq.s32.totalorder %s26, 0
      %p54 = por %p52, %p53
      %p55 = scmp.ne.s32.totalorder %s43, %s44
      %p56 = scmp.eq.s32.totalorder %s27, 3
      %p57 = por %p55, %p56
      %p59 = scmp.ne.s32.totalorder %s44, %s58
      %p60 = scmp.eq.s32.totalorder %s27, 0
      %p61 = por %p59, %p60
      %s62 = ssub.s32 %s28, %s40
      %s63 = ssub.s32 %s29, %s36
      %s64 = sor.u32 %s62, %s63
      %p65 = scmp.eq.s32.totalorder %s64, 0
      %s67 = sadd.s32 %s66, 1
      %s68 = scalar_select %p65, %s66, %s67
      %p71 = pneg %p65
      %p72 = scmp.eq.s32.totalorder %s21, 3
      %p73 = por %p71, %p72
      %p74 = scmp.ne.s32.totalorder %s66, %s69
      %p75 = scmp.eq.s32.totalorder %s21, 0
      %p76 = por %p74, %p75
      %p77 = scmp.ne.s32.totalorder %s66, %s69
      %p78 = scmp.eq.s32.totalorder %s26, 3
      %p79 = por %p77, %p78
      %p80 = scmp.ne.s32.totalorder %s69, %s70
      %p81 = scmp.eq.s32.totalorder %s26, 0
      %p82 = por %p80, %p81
      %p83 = scmp.ne.s32.totalorder %s69, %s70
      %p84 = scmp.eq.s32.totalorder %s27, 3
      %p85 = por %p83, %p84
      %p87 = scmp.ne.s32.totalorder %s70, %s86
      %p88 = scmp.eq.s32.totalorder %s27, 0
      %p89 = por %p87, %p88
      %s90 = ssub.s32 %s28, %s40
      %p91 = scmp.eq.s32.totalorder %s90, 0
      %s93 = sadd.s32 %s92, 1
      %s94 = scalar_select %p91, %s92, %s93
      %p97 = pneg %p91
      %p98 = scmp.eq.s32.totalorder %s21, 3
      %p99 = por %p97, %p98
      %p100 = scmp.ne.s32.totalorder %s92, %s95
      %p101 = scmp.eq.s32.totalorder %s21, 0
      %p102 = por %p100, %p101
      %p103 = scmp.ne.s32.totalorder %s92, %s95
      %p104 = scmp.eq.s32.totalorder %s26, 3
      %p105 = por %p103, %p104
      %p106 = scmp.ne.s32.totalorder %s95, %s96
      %p107 = scmp.eq.s32.totalorder %s26, 0
      %p108 = por %p106, %p107
      %p109 = scmp.ne.s32.totalorder %s95, %s96
      %p110 = scmp.eq.s32.totalorder %s27, 3
      %p111 = por %p109, %p110
      %p113 = scmp.ne.s32.totalorder %s96, %s112
      %p114 = scmp.eq.s32.totalorder %s27, 0
      %p115 = por %p113, %p114
      %s116 = ssub.s32 %s28, %s40
      %p117 = scmp.eq.s32.totalorder %s116, 0
      %s119 = sadd.s32 %s118, 1
      %s120 = scalar_select %p117, %s118, %s119
      %p123 = pneg %p117
      %p124 = scmp.eq.s32.totalorder %s21, 3
      %p125 = por %p123, %p124
      %p126 = scmp.ne.s32.totalorder %s118, %s121
      %p127 = scmp.eq.s32.totalorder %s21, 0
      %p128 = por %p126, %p127
      %p129 = scmp.ne.s32.totalorder %s118, %s121
      %p130 = scmp.eq.s32.totalorder %s26, 3
      %p131 = por %p129, %p130
      %p132 = scmp.ne.s32.totalorder %s121, %s122
      %p133 = scmp.eq.s32.totalorder %s26, 0
      %p134 = por %p132, %p133
      %p135 = scmp.ne.s32.totalorder %s121, %s122
      %p136 = scmp.eq.s32.totalorder %s27, 3
      %p137 = por %p135, %p136
      %p139 = scmp.ne.s32.totalorder %s122, %s138
      %p140 = scmp.eq.s32.totalorder %s27, 0
      %p141 = por %p139, %p140
      %s142 = ssub.s32 %s28, %s40
      %p143 = scmp.eq.s32.totalorder %s142, 0
      %s145 = sadd.s32 %s144, 1
      %s146 = scalar_select %p143, %s144, %s145
      %p149 = pneg %p143
      %p150 = scmp.eq.s32.totalorder %s21, 3
      %p151 = por %p149, %p150
      %p152 = scmp.ne.s32.totalorder %s144, %s147
      %p153 = scmp.eq.s32.totalorder %s21, 0
      %p154 = por %p152, %p153
      %p155 = scmp.ne.s32.totalorder %s144, %s147
      %p156 = scmp.eq.s32.totalorder %s26, 3
      %p157 = por %p155, %p156
      %p158 = scmp.ne.s32.totalorder %s147, %s148
      %p159 = scmp.eq.s32.totalorder %s26, 0
      %p160 = por %p158, %p159
      %p161 = scmp.ne.s32.totalorder %s147, %s148
      %p162 = scmp.eq.s32.totalorder %s27, 3
      %p163 = por %p161, %p162
      %p165 = scmp.ne.s32.totalorder %s148, %s164
      %p166 = scmp.eq.s32.totalorder %s27, 0
      %p167 = por %p165, %p166
      %s168 = ssub.s32 %s28, %s40
      %s169 = ssub.s32 %s29, %s36
      %s170 = sor.u32 %s168, %s169
      %p171 = scmp.eq.s32.totalorder %s170, 0
      %s173 = sadd.s32 %s172, 1
      %s174 = scalar_select %p171, %s172, %s173
      %p177 = pneg %p171
      %p178 = scmp.eq.s32.totalorder %s21, 3
      %p179 = por %p177, %p178
      %p180 = scmp.ne.s32.totalorder %s172, %s175
      %p181 = scmp.eq.s32.totalorder %s21, 0
      %p182 = por %p180, %p181
      %p183 = scmp.ne.s32.totalorder %s172, %s175
      %p184 = scmp.eq.s32.totalorder %s26, 3
      %p185 = por %p183, %p184
      %p186 = scmp.ne.s32.totalorder %s175, %s176
      %p187 = scmp.eq.s32.totalorder %s26, 0
      %p188 = por %p186, %p187
      %p189 = scmp.ne.s32.totalorder %s175, %s176
      %p190 = scmp.eq.s32.totalorder %s27, 3
      %p191 = por %p189, %p190
      %p193 = scmp.ne.s32.totalorder %s176, %s192
      %p194 = scmp.eq.s32.totalorder %s27, 0
      %p195 = por %p193, %p194
      %s196 = ssub.s32 %s28, %s40
      %s197 = ssub.s32 %s29, %s36
      %s198 = sor.u32 %s196, %s197
      %p199 = scmp.eq.s32.totalorder %s198, 0
      %s201 = sadd.s32 %s200, 1
      %s202 = scalar_select %p199, %s200, %s201
      %p205 = pneg %p199
      %p206 = scmp.eq.s32.totalorder %s21, 3
      %p207 = por %p205, %p206
      %p208 = scmp.ne.s32.totalorder %s200, %s203
      %p209 = scmp.eq.s32.totalorder %s21, 0
      %p210 = por %p208, %p209
      %p211 = scmp.ne.s32.totalorder %s200, %s203
      %p212 = scmp.eq.s32.totalorder %s26, 3
      %p213 = por %p211, %p212
      %p214 = scmp.ne.s32.totalorder %s203, %s204
      %p215 = scmp.eq.s32.totalorder %s26, 0
      %p216 = por %p214, %p215
      %p217 = scmp.ne.s32.totalorder %s203, %s204
      %p218 = scmp.eq.s32.totalorder %s27, 3
      %p219 = por %p217, %p218
      %p221 = scmp.ne.s32.totalorder %s204, %s220
      %p222 = scmp.eq.s32.totalorder %s27, 0
      %p223 = por %p221, %p222
      %s224 = ssub.s32 %s28, %s40
      %s225 = ssub.s32 %s29, %s36
      %s226 = sor.u32 %s224, %s225
      %p227 = scmp.eq.s32.totalorder %s226, 0
      %s229 = sadd.s32 %s228, 1
      %s230 = scalar_select %p227, %s228, %s229
      %p233 = pneg %p227
      %p234 = scmp.eq.s32.totalorder %s21, 3
      %p235 = por %p233, %p234
      %p236 = scmp.ne.s32.totalorder %s228, %s231
      %p237 = scmp.eq.s32.totalorder %s21, 0
      %p238 = por %p236, %p237
      %p239 = scmp.ne.s32.totalorder %s228, %s231
      %p240 = scmp.eq.s32.totalorder %s26, 3
      %p241 = por %p239, %p240
      %p242 = scmp.ne.s32.totalorder %s231, %s232
      %p243 = scmp.eq.s32.totalorder %s26, 0
      %p244 = por %p242, %p243
      %p245 = scmp.ne.s32.totalorder %s231, %s232
      %p246 = scmp.eq.s32.totalorder %s27, 3
      %p247 = por %p245, %p246
      %p249 = scmp.ne.s32.totalorder %s232, %s248
      %p250 = scmp.eq.s32.totalorder %s27, 0
      %p251 = por %p249, %p250
      %p252 = scmp.le.s32.totalorder 1, %s21
      %p253 = scmp.lt.s32.totalorder %s21, 5
      %p254 = pnand %p252, %p253
      %p255 = pneg %p254
      // Predicated region
      $region9: #{self_nys_attn_forward.5} parent=5 // pred_check
        _
      $region10: #{self_nys_attn_forward.5} parent=5 // pred_check_branch
        %257 = sbr.rel (%p254) target = $region12
      $region11: #{self_nys_attn_forward.5} parent=5 // pred_region
        %s258 = ssub.s32 %s21, 1
        // Predicated region
        $region13: #{self_nys_attn_forward.5} parent=11 // pred_check
          %p259 = pneg %p54
        $region14: #{self_nys_attn_forward.5} parent=11 // pred_check_branch
          %261 = sbr.rel (%p259) target = $region16
        $region15: #{self_nys_attn_forward.5} parent=11 // pred_region
          _
        $region16: #{self_nys_attn_forward.5} parent=11 // pred_fallthru
          _
      $region12: #{self_nys_attn_forward.5} parent=5 // pred_fallthru
        _
      %p262 = scmp.lt.s32.totalorder %s21, 4
      // Predicated region
      $region17: #{self_nys_attn_forward.5} parent=5 // pred_check
        %p263 = pneg %p262
      $region18: #{self_nys_attn_forward.5} parent=5 // pred_check_branch
        %265 = sbr.rel (%p263) target = $region20
      $region19: #{self_nys_attn_forward.5} parent=5 // pred_region
        // Predicated region
        $region21: #{self_nys_attn_forward.5} parent=19 // pred_check
          %p266 = pneg %p76
        $region22: #{self_nys_attn_forward.5} parent=19 // pred_check_branch
          %268 = sbr.rel (%p266) target = $region24
        $region23: #{self_nys_attn_forward.5} parent=19 // pred_region
          %s269 = smul.u32 16, %s29
          %p270 = scmp.lt.s32.totalorder %s28, 1
          %s271 = scalar_select %p270, %s28, 1
          %p272 = scmp.lt.s32.totalorder %s269, 31
          %s273 = scalar_select %p272, %s269, 31
          %s274 = smul.addr %s271, 32
          %s275 = sadd.s32 %s273, %s274
          %s276 = smul.addr %s275, 8
          %s277 = scalar_lea.vmem %s1, %s276
          %s278 = smul.u32 16, %s29
        $region24: #{self_nys_attn_forward.5} parent=19 // pred_fallthru
          _
        // Predicated region
        $region25: #{self_nys_attn_forward.5} parent=19 // pred_check
          %p279 = pneg %p102
        $region26: #{self_nys_attn_forward.5} parent=19 // pred_check_branch
          %281 = sbr.rel (%p279) target = $region28
        $region27: #{self_nys_attn_forward.5} parent=19 // pred_region
          %p282 = scmp.lt.s32.totalorder %s28, 1
          %s283 = scalar_select %p282, %s28, 1
          %s284 = smul.addr %s283, 4
          %s285 = smul.addr %s284, 8
          %s286 = scalar_lea.vmem %s2, %s285
        $region28: #{self_nys_attn_forward.5} parent=19 // pred_fallthru
          _
        // Predicated region
        $region29: #{self_nys_attn_forward.5} parent=19 // pred_check
          %p287 = pneg %p128
        $region30: #{self_nys_attn_forward.5} parent=19 // pred_check_branch
          %289 = sbr.rel (%p287) target = $region32
        $region31: #{self_nys_attn_forward.5} parent=19 // pred_region
          %p290 = scmp.lt.s32.totalorder %s28, 1
          %s291 = scalar_select %p290, %s28, 1
          %s292 = smul.addr %s291, 8
          %s293 = smul.addr %s292, 8
          %s294 = scalar_lea.vmem %s3, %s293
        $region32: #{self_nys_attn_forward.5} parent=19 // pred_fallthru
          _
        // Predicated region
        $region33: #{self_nys_attn_forward.5} parent=19 // pred_check
          %p295 = pneg %p154
        $region34: #{self_nys_attn_forward.5} parent=19 // pred_check_branch
          %297 = sbr.rel (%p295) target = $region36
        $region35: #{self_nys_attn_forward.5} parent=19 // pred_region
          %p298 = scmp.lt.s32.totalorder %s28, 1
          %s299 = scalar_select %p298, %s28, 1
          %s300 = smul.addr %s299, 4
          %s301 = smul.addr %s300, 8
          %s302 = scalar_lea.vmem %s4, %s301
        $region36: #{self_nys_attn_forward.5} parent=19 // pred_fallthru
          _
        // Predicated region
        $region37: #{self_nys_attn_forward.5} parent=19 // pred_check
          %p303 = pneg %p182
        $region38: #{self_nys_attn_forward.5} parent=19 // pred_check_branch
          %305 = sbr.rel (%p303) target = $region40
        $region39: #{self_nys_attn_forward.5} parent=19 // pred_region
          %s306 = smul.u32 16, %s29
          %p307 = scmp.lt.s32.totalorder %s28, 1
          %s308 = scalar_select %p307, %s28, 1
          %p309 = scmp.lt.s32.totalorder %s306, 31
          %s310 = scalar_select %p309, %s306, 31
          %s311 = smul.addr %s308, 32
          %s312 = sadd.s32 %s310, %s311
          %s313 = smul.addr %s312, 8
          %s314 = scalar_lea.vmem %s5, %s313
          %s315 = smul.u32 16, %s29
        $region40: #{self_nys_attn_forward.5} parent=19 // pred_fallthru
          _
      $region20: #{self_nys_attn_forward.5} parent=5 // pred_fallthru
        _
      %p316 = scmp.le.s32.totalorder 1, %s21
      %p317 = scmp.lt.s32.totalorder %s21, 5
      %p318 = pnand %p316, %p317
      %p319 = pneg %p318
      // Predicated region
      $region41: #{self_nys_attn_forward.5} parent=5 // pred_check
        _
      $region42: #{self_nys_attn_forward.5} parent=5 // pred_check_branch
        %321 = sbr.rel (%p318) target = $region44
      $region43: #{self_nys_attn_forward.5} parent=5 // pred_region
        %s322 = ssub.s32 %s21, 1
        %p323 = pneg %p54
        %p324 = pneg %p51
        %s325 = smul.u32 16, %s31
        %p326 = scmp.lt.s32.totalorder %s30, 1
        %s327 = scalar_select %p326, %s30, 1
        %p328 = scmp.lt.s32.totalorder %s325, 31
        %s329 = scalar_select %p328, %s325, 31
        %s330 = smul.addr %s327, 32
        %s331 = sadd.s32 %s329, %s330
        %s332 = smul.addr %s331, 8
        %s333 = scalar_lea.vmem %s1, %s332
        %p334 = pneg %p82
        %p335 = pneg %p79
        %p336 = scmp.lt.s32.totalorder %s30, 1
        %s337 = scalar_select %p336, %s30, 1
        %s338 = smul.addr %s337, 4
        %s339 = smul.addr %s338, 8
        %s340 = scalar_lea.vmem %s2, %s339
        %p341 = pneg %p108
        %p342 = pneg %p105
        %p343 = scmp.lt.s32.totalorder %s30, 1
        %s344 = scalar_select %p343, %s30, 1
        %s345 = smul.addr %s344, 8
        %s346 = smul.addr %s345, 8
        %s347 = scalar_lea.vmem %s3, %s346
        %p348 = pneg %p134
        %p349 = pneg %p131
        %p350 = scmp.lt.s32.totalorder %s30, 1
        %s351 = scalar_select %p350, %s30, 1
        %s352 = smul.addr %s351, 4
        %s353 = smul.addr %s352, 8
        %s354 = scalar_lea.vmem %s4, %s353
        %p355 = pneg %p160
        %p356 = pneg %p157
        %s357 = smul.u32 16, %s31
        %p358 = scmp.lt.s32.totalorder %s30, 1
        %s359 = scalar_select %p358, %s30, 1
        %p360 = scmp.lt.s32.totalorder %s357, 31
        %s361 = scalar_select %p360, %s357, 31
        %s362 = smul.addr %s359, 32
        %s363 = sadd.s32 %s361, %s362
        %s364 = smul.addr %s363, 8
        %s365 = scalar_lea.vmem %s5, %s364
        %p366 = pneg %p188
        %p367 = pneg %p185
        %p368 = pneg %p216
        %p369 = pneg %p213
        %s370 = sand.u32 %s203, 1
        %s371 = scalar_lea.sflag [#allocation4], %s370
        %s372 = sand.u32 %s203, 1
        %s373 = smul.addr %s372, 256
        %s374 = scalar_lea.vmem [#allocation3], %s373
        %p375 = pneg %p244
        %p376 = pneg %p241
        %s377 = sand.u32 %s231, 1
        %s378 = scalar_lea.sflag [#allocation6], %s377
        %s379 = sand.u32 %s231, 1
        %s380 = smul.addr %s379, 128
        %s381 = scalar_lea.vmem [#allocation5], %s380
        %s382 = smul.u32 16, %s31
        %p383 = scmp.lt.s32.totalorder %s30, 1
        %s384 = scalar_select %p383, %s30, 1
        %p385 = scmp.lt.s32.totalorder %s382, 31
        %s386 = scalar_select %p385, %s382, 31
        %s387 = smul.addr %s384, 32
        %s388 = sadd.s32 %s386, %s387
        %s389 = smul.addr %s388, 8
        %s390 = scalar_lea.vmem %s1, %s389
        %s391 = smul.u32 16, %s31
        %p392 = scmp.lt.s32.totalorder %s30, 1
        %s393 = scalar_select %p392, %s30, 1
        %s394 = smul.addr %s393, 4
        %s395 = smul.addr %s394, 8
        %s396 = scalar_lea.vmem %s2, %s395
        %p397 = scmp.lt.s32.totalorder %s30, 1
        %s398 = scalar_select %p397, %s30, 1
        %s399 = smul.addr %s398, 8
        %s400 = smul.addr %s399, 8
        %s401 = scalar_lea.vmem %s3, %s400
        %p402 = scmp.lt.s32.totalorder %s30, 1
        %s403 = scalar_select %p402, %s30, 1
        %s404 = smul.addr %s403, 4
        %s405 = smul.addr %s404, 8
        %s406 = scalar_lea.vmem %s4, %s405
        %s407 = smul.u32 16, %s31
        %p408 = scmp.lt.s32.totalorder %s30, 1
        %s409 = scalar_select %p408, %s30, 1
        %p410 = scmp.lt.s32.totalorder %s407, 31
        %s411 = scalar_select %p410, %s407, 31
        %s412 = smul.addr %s409, 32
        %s413 = sadd.s32 %s411, %s412
        %s414 = smul.addr %s413, 8
        %s415 = scalar_lea.vmem %s5, %s414
        %s416 = smul.u32 16, %s31
        %s417 = smul.u32 16, %s31
        %s418 = smul.u32 16, %s31
        %v419 = vld [vmem:[%s390] sm:$0xff]
        %v420 = vld [vmem:[%s390 + $0x8] sm:$0xff]
        %v421 = vld [vmem:[%s390 + $0x10] sm:$0xff]
        %v422 = vld [vmem:[%s390 + $0x18] sm:$0xff]
        %v423 = vld [vmem:[%s390 + $0x20] sm:$0xff]
        %v424 = vld [vmem:[%s390 + $0x28] sm:$0xff]
        %v425 = vld [vmem:[%s390 + $0x30] sm:$0xff]
        %v426 = vld [vmem:[%s390 + $0x38] sm:$0xff]
        %v427 = vld [vmem:[%s390 + $0x40] sm:$0xff]
        %v428 = vld [vmem:[%s390 + $0x48] sm:$0xff]
        %v429 = vld [vmem:[%s390 + $0x50] sm:$0xff]
        %v430 = vld [vmem:[%s390 + $0x58] sm:$0xff]
        %v431 = vld [vmem:[%s390 + $0x60] sm:$0xff]
        %v432 = vld [vmem:[%s390 + $0x68] sm:$0xff]
        %v433 = vld [vmem:[%s390 + $0x70] sm:$0xff]
        %v434 = vld [vmem:[%s390 + $0x78] sm:$0xff]
        %v435 = vld [vmem:[%s396] sm:$0xff]
        %v436 = vld [vmem:[%s396 + $0x8] sm:$0xff]
        %v437 = vld [vmem:[%s396 + $0x10] sm:$0xff]
        %v438 = vld [vmem:[%s396 + $0x18] sm:$0xff]
        %vm439 = vcmask 64512
        %v441 = vsel %vm439, %v419, 0
        %v444 = vsel %vm439, %v420, 0
        %v447 = vsel %vm439, %v421, 0
        %v450 = vsel %vm439, %v422, 0
        %v453 = vsel %vm439, %v423, 0
        %v456 = vsel %vm439, %v424, 0
        %v459 = vsel %vm439, %v425, 0
        %v462 = vsel %vm439, %v426, 0
        %v465 = vsel %vm439, %v427, 0
        %v468 = vsel %vm439, %v428, 0
        %v471 = vsel %vm439, %v429, 0
        %v474 = vsel %vm439, %v430, 0
        %v477 = vsel %vm439, %v431, 0
        %v480 = vsel %vm439, %v432, 0
        %v483 = vsel %vm439, %v433, 0
        %v486 = vsel %vm439, %v434, 0
        %v489 = vsel %vm439, %v435, 0
        %v492 = vsel %vm439, %v436, 0
        %v495 = vsel %vm439, %v437, 0
        %v498 = vsel %vm439, %v438, 0
        %500 = vmatprep.subr.mxu0 0.0
        %501 = vmatpush1.xpose.msra.mxu0 0.0
        %502 = vmatprep.subr.mxu0 0.0
        %503 = vmatpush1.xpose.msra.mxu0 0.0
        %504 = vmatprep.subr.mxu0 0.0
        %505 = vmatpush1.xpose.msra.mxu0 0.0
        %506 = vmatprep.subr.mxu0 0.0
        %507 = vmatpush1.xpose.msra.mxu0 0.0
        %508 = vmatprep.subr.mxu0 0.0
        %509 = vmatpush1.xpose.msra.mxu0 0.0
        %510 = vmatprep.subr.mxu0 0.0
        %511 = vmatpush1.xpose.msra.mxu0 0.0
        %512 = vmatprep.subr.mxu0 0.0
        %513 = vmatpush1.xpose.msra.mxu0 0.0
        %514 = vmatprep.subr.mxu0 0.0
        %515 = vmatpush1.xpose.msra.mxu0 0.0
        %516 = vmatprep.subr.mxu0 0.0
        %517 = vmatpush1.xpose.msra.mxu0 0.0
        %518 = vmatprep.subr.mxu0 0.0
        %519 = vmatpush1.xpose.msra.mxu0 0.0
        %520 = vmatprep.subr.mxu0 0.0
        %521 = vmatpush1.xpose.msra.mxu0 0.0
        %522 = vmatprep.subr.mxu0 0.0
        %523 = vmatpush1.xpose.msra.mxu0 0.0
        %524 = vmatprep.subr.mxu0 0.0
        %525 = vmatpush1.xpose.msra.mxu0 %v498
        %526 = vmatprep.subr.mxu0 0.0
        %527 = vmatpush1.xpose.msra.mxu0 %v495
        %528 = vmatprep.subr.mxu0 0.0
        %529 = vmatpush1.xpose.msra.mxu0 %v492
        %530 = vmatprep.subr.mxu0 0.0
        %531 = vmatpush1.xpose.msra.mxu0 %v489
        %532 = vmatprep.subr.mxu0 0.0
        %533 = vmatpush2.xpose.msra.mxu0 0.0
        %534 = vmatprep.subr.mxu0 0.0
        %535 = vmatpush2.xpose.msra.mxu0 0.0
        %536 = vmatprep.subr.mxu0 0.0
        %537 = vmatpush2.xpose.msra.mxu0 0.0
        %538 = vmatprep.subr.mxu0 0.0
        %539 = vmatpush2.xpose.msra.mxu0 0.0
        %540 = vmatprep.subr.mxu0 0.0
        %541 = vmatpush2.xpose.msra.mxu0 0.0
        %542 = vmatprep.subr.mxu0 0.0
        %543 = vmatpush2.xpose.msra.mxu0 0.0
        %544 = vmatprep.subr.mxu0 0.0
        %545 = vmatpush2.xpose.msra.mxu0 0.0
        %546 = vmatprep.subr.mxu0 0.0
        %547 = vmatpush2.xpose.msra.mxu0 0.0
        %548 = vmatprep.subr.mxu0 0.0
        %549 = vmatpush2.xpose.msra.mxu0 0.0
        %550 = vmatprep.subr.mxu0 0.0
        %551 = vmatpush2.xpose.msra.mxu0 0.0
        %552 = vmatprep.subr.mxu0 0.0
        %553 = vmatpush2.xpose.msra.mxu0 0.0
        %554 = vmatprep.subr.mxu0 0.0
        %555 = vmatpush2.xpose.msra.mxu0 0.0
        %556 = vmatprep.subr.mxu0 0.0
        %557 = vmatpush2.xpose.msra.mxu0 0.0
        %558 = vmatprep.subr.mxu0 0.0
        %559 = vmatpush2.xpose.msra.mxu0 0.0
        %560 = vmatprep.subr.mxu0 0.0
        %561 = vmatpush2.xpose.msra.mxu0 0.0
        %562 = vmatprep.subr.mxu0 0.0
        %563 = vmatpush2.xpose.msra.mxu0 0.0
        %564 = vmatprep.mubr.f32.mxu0 0.0
        %565 = vmatmul.mubr.f32.gmra.mxu0 %v441
        %v566 = vpop.f32.mrf.mxu0
        %v567 = vadd.f32 0.0, %v566
        %v568 = vpop.f32.mrf.mxu0
        %569 = vmatprep.mubr.f32.mxu0 0.0
        %570 = vmatmul.mubr.f32.gmra.mxu0 %v444
        %v571 = vpop.f32.mrf.mxu0
        %v572 = vadd.f32 0.0, %v571
        %v573 = vpop.f32.mrf.mxu0
        %574 = vmatprep.mubr.f32.mxu0 0.0
        %575 = vmatmul.mubr.f32.gmra.mxu0 %v447
        %v576 = vpop.f32.mrf.mxu0
        %v577 = vadd.f32 0.0, %v576
        %v578 = vpop.f32.mrf.mxu0
        %579 = vmatprep.mubr.f32.mxu0 0.0
        %580 = vmatmul.mubr.f32.gmra.mxu0 %v450
        %v581 = vpop.f32.mrf.mxu0
        %v582 = vadd.f32 0.0, %v581
        %v583 = vpop.f32.mrf.mxu0
        %584 = vmatprep.mubr.f32.mxu0 0.0
        %585 = vmatmul.mubr.f32.gmra.mxu0 %v453
        %v586 = vpop.f32.mrf.mxu0
        %v587 = vadd.f32 0.0, %v586
        %v588 = vpop.f32.mrf.mxu0
        %589 = vmatprep.mubr.f32.mxu0 0.0
        %590 = vmatmul.mubr.f32.gmra.mxu0 %v456
        %v591 = vpop.f32.mrf.mxu0
        %v592 = vadd.f32 0.0, %v591
        %v593 = vpop.f32.mrf.mxu0
        %594 = vmatprep.mubr.f32.mxu0 0.0
        %595 = vmatmul.mubr.f32.gmra.mxu0 %v459
        %v596 = vpop.f32.mrf.mxu0
        %v597 = vadd.f32 0.0, %v596
        %v598 = vpop.f32.mrf.mxu0
        %599 = vmatprep.mubr.f32.mxu0 0.0
        %600 = vmatmul.mubr.f32.gmra.mxu0 %v462
        %v601 = vpop.f32.mrf.mxu0
        %v602 = vadd.f32 0.0, %v601
        %v603 = vpop.f32.mrf.mxu0
        %604 = vmatprep.mubr.f32.mxu0 0.0
        %605 = vmatmul.mubr.f32.gmra.mxu0 %v465
        %v606 = vpop.f32.mrf.mxu0
        %v607 = vadd.f32 0.0, %v606
        %v608 = vpop.f32.mrf.mxu0
        %609 = vmatprep.mubr.f32.mxu0 0.0
        %610 = vmatmul.mubr.f32.gmra.mxu0 %v468
        %v611 = vpop.f32.mrf.mxu0
        %v612 = vadd.f32 0.0, %v611
        %v613 = vpop.f32.mrf.mxu0
        %614 = vmatprep.mubr.f32.mxu0 0.0
        %615 = vmatmul.mubr.f32.gmra.mxu0 %v471
        %v616 = vpop.f32.mrf.mxu0
        %v617 = vadd.f32 0.0, %v616
        %v618 = vpop.f32.mrf.mxu0
        %619 = vmatprep.mubr.f32.mxu0 0.0
        %620 = vmatmul.mubr.f32.gmra.mxu0 %v474
        %v621 = vpop.f32.mrf.mxu0
        %v622 = vadd.f32 0.0, %v621
        %v623 = vpop.f32.mrf.mxu0
        %624 = vmatprep.mubr.f32.mxu0 0.0
        %625 = vmatmul.mubr.f32.gmra.mxu0 %v477
        %v626 = vpop.f32.mrf.mxu0
        %v627 = vadd.f32 0.0, %v626
        %v628 = vpop.f32.mrf.mxu0
        %629 = vmatprep.mubr.f32.mxu0 0.0
        %630 = vmatmul.mubr.f32.gmra.mxu0 %v480
        %v631 = vpop.f32.mrf.mxu0
        %v632 = vadd.f32 0.0, %v631
        %v633 = vpop.f32.mrf.mxu0
        %634 = vmatprep.mubr.f32.mxu0 0.0
        %635 = vmatmul.mubr.f32.gmra.mxu0 %v483
        %v636 = vpop.f32.mrf.mxu0
        %v637 = vadd.f32 0.0, %v636
        %v638 = vpop.f32.mrf.mxu0
        %639 = vmatprep.mubr.f32.mxu0 0.0
        %640 = vmatmul.mubr.f32.gmra.mxu0 %v486
        %v641 = vpop.f32.mrf.mxu0
        %v642 = vadd.f32 0.0, %v641
        %v643 = vpop.f32.mrf.mxu0
        %644 = vdwg.mxu0
        %v645 = vmul.f32 %v567, 0.35355338
        %v646 = vmul.f32 %v572, 0.35355338
        %v647 = vmul.f32 %v577, 0.35355338
        %v648 = vmul.f32 %v582, 0.35355338
        %v649 = vmul.f32 %v587, 0.35355338
        %v650 = vmul.f32 %v592, 0.35355338
        %v651 = vmul.f32 %v597, 0.35355338
        %v652 = vmul.f32 %v602, 0.35355338
        %v653 = vmul.f32 %v607, 0.35355338
        %v654 = vmul.f32 %v612, 0.35355338
        %v655 = vmul.f32 %v617, 0.35355338
        %v656 = vmul.f32 %v622, 0.35355338
        %v657 = vmul.f32 %v627, 0.35355338
        %v658 = vmul.f32 %v632, 0.35355338
        %v659 = vmul.f32 %v637, 0.35355338
        %v660 = vmul.f32 %v642, 0.35355338
        %vm661 = vcmask 261120
        %v662 = vsel %vm661, %v645, -inf
        %663 = vmax.xlane.f32.xlu0 %v662
        %v664 = vpop.xlane.xlu0 %663
        %v665 = vsel %vm661, %v646, -inf
        %666 = vmax.xlane.f32.xlu0 %v665
        %v667 = vpop.xlane.xlu0 %666
        %v668 = vsel %vm661, %v647, -inf
        %669 = vmax.xlane.f32.xlu0 %v668
        %v670 = vpop.xlane.xlu0 %669
        %v671 = vsel %vm661, %v648, -inf
        %672 = vmax.xlane.f32.xlu0 %v671
        %v673 = vpop.xlane.xlu0 %672
        %v674 = vsel %vm661, %v649, -inf
        %675 = vmax.xlane.f32.xlu0 %v674
        %v676 = vpop.xlane.xlu0 %675
        %v677 = vsel %vm661, %v650, -inf
        %678 = vmax.xlane.f32.xlu0 %v677
        %v679 = vpop.xlane.xlu0 %678
        %v680 = vsel %vm661, %v651, -inf
        %681 = vmax.xlane.f32.xlu0 %v680
        %v682 = vpop.xlane.xlu0 %681
        %v683 = vsel %vm661, %v652, -inf
        %684 = vmax.xlane.f32.xlu0 %v683
        %v685 = vpop.xlane.xlu0 %684
        %v686 = vsel %vm661, %v653, -inf
        %687 = vmax.xlane.f32.xlu0 %v686
        %v688 = vpop.xlane.xlu0 %687
        %v689 = vsel %vm661, %v654, -inf
        %690 = vmax.xlane.f32.xlu0 %v689
        %v691 = vpop.xlane.xlu0 %690
        %v692 = vsel %vm661, %v655, -inf
        %693 = vmax.xlane.f32.xlu0 %v692
        %v694 = vpop.xlane.xlu0 %693
        %v695 = vsel %vm661, %v656, -inf
        %696 = vmax.xlane.f32.xlu0 %v695
        %v697 = vpop.xlane.xlu0 %696
        %v698 = vsel %vm661, %v657, -inf
        %699 = vmax.xlane.f32.xlu0 %v698
        %v700 = vpop.xlane.xlu0 %699
        %v701 = vsel %vm661, %v658, -inf
        %702 = vmax.xlane.f32.xlu0 %v701
        %v703 = vpop.xlane.xlu0 %702
        %v704 = vsel %vm661, %v659, -inf
        %705 = vmax.xlane.f32.xlu0 %v704
        %v706 = vpop.xlane.xlu0 %705
        %v707 = vsel %vm661, %v660, -inf
        %708 = vmax.xlane.f32.xlu0 %v707
        %v709 = vpop.xlane.xlu0 %708
        %v710 = vsub.f32 %v645, %v664
        %v711 = vsub.f32 %v646, %v667
        %v712 = vsub.f32 %v647, %v670
        %v713 = vsub.f32 %v648, %v673
        %v714 = vsub.f32 %v649, %v676
        %v715 = vsub.f32 %v650, %v679
        %v716 = vsub.f32 %v651, %v682
        %v717 = vsub.f32 %v652, %v685
        %v718 = vsub.f32 %v653, %v688
        %v719 = vsub.f32 %v654, %v691
        %v720 = vsub.f32 %v655, %v694
        %v721 = vsub.f32 %v656, %v697
        %v722 = vsub.f32 %v657, %v700
        %v723 = vsub.f32 %v658, %v703
        %v724 = vsub.f32 %v659, %v706
        %v725 = vsub.f32 %v660, %v709
        %v726 = vmul.f32 %v710, 1.442695
        %v727 = vpow.pop %v726
        %v728 = vmul.f32 %v711, 1.442695
        %v729 = vpow.pop %v728
        %v730 = vmul.f32 %v712, 1.442695
        %v731 = vpow.pop %v730
        %v732 = vmul.f32 %v713, 1.442695
        %v733 = vpow.pop %v732
        %v734 = vmul.f32 %v714, 1.442695
        %v735 = vpow.pop %v734
        %v736 = vmul.f32 %v715, 1.442695
        %v737 = vpow.pop %v736
        %v738 = vmul.f32 %v716, 1.442695
        %v739 = vpow.pop %v738
        %v740 = vmul.f32 %v717, 1.442695
        %v741 = vpow.pop %v740
        %v742 = vmul.f32 %v718, 1.442695
        %v743 = vpow.pop %v742
        %v744 = vmul.f32 %v719, 1.442695
        %v745 = vpow.pop %v744
        %v746 = vmul.f32 %v720, 1.442695
        %v747 = vpow.pop %v746
        %v748 = vmul.f32 %v721, 1.442695
        %v749 = vpow.pop %v748
        %v750 = vmul.f32 %v722, 1.442695
        %v751 = vpow.pop %v750
        %v752 = vmul.f32 %v723, 1.442695
        %v753 = vpow.pop %v752
        %v754 = vmul.f32 %v724, 1.442695
        %v755 = vpow.pop %v754
        %v756 = vmul.f32 %v725, 1.442695
        %v757 = vpow.pop %v756
        %v758 = vsel %vm661, %v727, 0.0
        %759 = vadd.xlane.f32.xlu0 %v758
        %v760 = vpop.xlane.xlu0 %759
        %v761 = vsel %vm661, %v729, 0.0
        %762 = vadd.xlane.f32.xlu0 %v761
        %v763 = vpop.xlane.xlu0 %762
        %v764 = vsel %vm661, %v731, 0.0
        %765 = vadd.xlane.f32.xlu0 %v764
        %v766 = vpop.xlane.xlu0 %765
        %v767 = vsel %vm661, %v733, 0.0
        %768 = vadd.xlane.f32.xlu0 %v767
        %v769 = vpop.xlane.xlu0 %768
        %v770 = vsel %vm661, %v735, 0.0
        %771 = vadd.xlane.f32.xlu0 %v770
        %v772 = vpop.xlane.xlu0 %771
        %v773 = vsel %vm661, %v737, 0.0
        %774 = vadd.xlane.f32.xlu0 %v773
        %v775 = vpop.xlane.xlu0 %774
        %v776 = vsel %vm661, %v739, 0.0
        %777 = vadd.xlane.f32.xlu0 %v776
        %v778 = vpop.xlane.xlu0 %777
        %v779 = vsel %vm661, %v741, 0.0
        %780 = vadd.xlane.f32.xlu0 %v779
        %v781 = vpop.xlane.xlu0 %780
        %v782 = vsel %vm661, %v743, 0.0
        %783 = vadd.xlane.f32.xlu0 %v782
        %v784 = vpop.xlane.xlu0 %783
        %v785 = vsel %vm661, %v745, 0.0
        %786 = vadd.xlane.f32.xlu0 %v785
        %v787 = vpop.xlane.xlu0 %786
        %v788 = vsel %vm661, %v747, 0.0
        %789 = vadd.xlane.f32.xlu0 %v788
        %v790 = vpop.xlane.xlu0 %789
        %v791 = vsel %vm661, %v749, 0.0
        %792 = vadd.xlane.f32.xlu0 %v791
        %v793 = vpop.xlane.xlu0 %792
        %v794 = vsel %vm661, %v751, 0.0
        %795 = vadd.xlane.f32.xlu0 %v794
        %v796 = vpop.xlane.xlu0 %795
        %v797 = vsel %vm661, %v753, 0.0
        %798 = vadd.xlane.f32.xlu0 %v797
        %v799 = vpop.xlane.xlu0 %798
        %v800 = vsel %vm661, %v755, 0.0
        %801 = vadd.xlane.f32.xlu0 %v800
        %v802 = vpop.xlane.xlu0 %801
        %v803 = vsel %vm661, %v757, 0.0
        %804 = vadd.xlane.f32.xlu0 %v803
        %v805 = vpop.xlane.xlu0 %804
        %v806 = vrcp.pop %v760
        %v807 = vmul.f32 %v727, %v806
        %v808 = vrcp.pop %v763
        %v809 = vmul.f32 %v729, %v808
        %v810 = vrcp.pop %v766
        %v811 = vmul.f32 %v731, %v810
        %v812 = vrcp.pop %v769
        %v813 = vmul.f32 %v733, %v812
        %v814 = vrcp.pop %v772
        %v815 = vmul.f32 %v735, %v814
        %v816 = vrcp.pop %v775
        %v817 = vmul.f32 %v737, %v816
        %v818 = vrcp.pop %v778
        %v819 = vmul.f32 %v739, %v818
        %v820 = vrcp.pop %v781
        %v821 = vmul.f32 %v741, %v820
        %v822 = vrcp.pop %v784
        %v823 = vmul.f32 %v743, %v822
        %v824 = vrcp.pop %v787
        %v825 = vmul.f32 %v745, %v824
        %v826 = vrcp.pop %v790
        %v827 = vmul.f32 %v747, %v826
        %v828 = vrcp.pop %v793
        %v829 = vmul.f32 %v749, %v828
        %v830 = vrcp.pop %v796
        %v831 = vmul.f32 %v751, %v830
        %v832 = vrcp.pop %v799
        %v833 = vmul.f32 %v753, %v832
        %v834 = vrcp.pop %v802
        %v835 = vmul.f32 %v755, %v834
        %v836 = vrcp.pop %v805
        %v837 = vmul.f32 %v757, %v836
        %v838 = vld [vmem:[%s401] sm:$0xff]
        %v839 = vld [vmem:[%s401 + $0x8] sm:$0xff]
        %v840 = vld [vmem:[%s401 + $0x10] sm:$0xff]
        %v841 = vld [vmem:[%s401 + $0x18] sm:$0xff]
        %v842 = vld [vmem:[%s401 + $0x20] sm:$0xff]
        %v843 = vld [vmem:[%s401 + $0x28] sm:$0xff]
        %v844 = vld [vmem:[%s401 + $0x30] sm:$0xff]
        %v845 = vld [vmem:[%s401 + $0x38] sm:$0xff]
        %v847 = vsel %vm661, %v807, 0
        %v850 = vsel %vm661, %v809, 0
        %v853 = vsel %vm661, %v811, 0
        %v856 = vsel %vm661, %v813, 0
        %v859 = vsel %vm661, %v815, 0
        %v862 = vsel %vm661, %v817, 0
        %v865 = vsel %vm661, %v819, 0
        %v868 = vsel %vm661, %v821, 0
        %v871 = vsel %vm661, %v823, 0
        %v874 = vsel %vm661, %v825, 0
        %v877 = vsel %vm661, %v827, 0
        %v880 = vsel %vm661, %v829, 0
        %v883 = vsel %vm661, %v831, 0
        %v886 = vsel %vm661, %v833, 0
        %v889 = vsel %vm661, %v835, 0
        %v892 = vsel %vm661, %v837, 0
        %894 = vmatprep.subr.mxu0 0.0
        %895 = vmatpush1.msra.mxu0 0.0
        %896 = vmatprep.subr.mxu0 0.0
        %897 = vmatpush1.msra.mxu0 0.0
        %898 = vmatprep.subr.mxu0 0.0
        %899 = vmatpush1.msra.mxu0 0.0
        %900 = vmatprep.subr.mxu0 0.0
        %901 = vmatpush1.msra.mxu0 0.0
        %902 = vmatprep.subr.mxu0 0.0
        %903 = vmatpush1.msra.mxu0 0.0
        %904 = vmatprep.subr.mxu0 0.0
        %905 = vmatpush1.msra.mxu0 0.0
        %906 = vmatprep.subr.mxu0 0.0
        %907 = vmatpush1.msra.mxu0 0.0
        %908 = vmatprep.subr.mxu0 0.0
        %909 = vmatpush1.msra.mxu0 0.0
        %910 = vmatprep.subr.mxu0 0.0
        %911 = vmatpush1.msra.mxu0 0.0
        %912 = vmatprep.subr.mxu0 0.0
        %913 = vmatpush1.msra.mxu0 0.0
        %914 = vmatprep.subr.mxu0 0.0
        %915 = vmatpush1.msra.mxu0 0.0
        %916 = vmatprep.subr.mxu0 0.0
        %917 = vmatpush1.msra.mxu0 0.0
        %918 = vmatprep.subr.mxu0 %v845
        %919 = vmatpush1.msra.mxu0 %v844
        %920 = vmatprep.subr.mxu0 %v843
        %921 = vmatpush1.msra.mxu0 %v842
        %922 = vmatprep.subr.mxu0 %v841
        %923 = vmatpush1.msra.mxu0 %v840
        %924 = vmatprep.subr.mxu0 %v839
        %925 = vmatpush1.msra.mxu0 %v838
        %926 = vmatprep.subr.mxu0 0.0
        %927 = vmatpush2.msra.mxu0 0.0
        %928 = vmatprep.subr.mxu0 0.0
        %929 = vmatpush2.msra.mxu0 0.0
        %930 = vmatprep.subr.mxu0 0.0
        %931 = vmatpush2.msra.mxu0 0.0
        %932 = vmatprep.subr.mxu0 0.0
        %933 = vmatpush2.msra.mxu0 0.0
        %934 = vmatprep.subr.mxu0 0.0
        %935 = vmatpush2.msra.mxu0 0.0
        %936 = vmatprep.subr.mxu0 0.0
        %937 = vmatpush2.msra.mxu0 0.0
        %938 = vmatprep.subr.mxu0 0.0
        %939 = vmatpush2.msra.mxu0 0.0
        %940 = vmatprep.subr.mxu0 0.0
        %941 = vmatpush2.msra.mxu0 0.0
        %942 = vmatprep.subr.mxu0 0.0
        %943 = vmatpush2.msra.mxu0 0.0
        %944 = vmatprep.subr.mxu0 0.0
        %945 = vmatpush2.msra.mxu0 0.0
        %946 = vmatprep.subr.mxu0 0.0
        %947 = vmatpush2.msra.mxu0 0.0
        %948 = vmatprep.subr.mxu0 0.0
        %949 = vmatpush2.msra.mxu0 0.0
        %950 = vmatprep.subr.mxu0 0.0
        %951 = vmatpush2.msra.mxu0 0.0
        %952 = vmatprep.subr.mxu0 0.0
        %953 = vmatpush2.msra.mxu0 0.0
        %954 = vmatprep.subr.mxu0 0.0
        %955 = vmatpush2.msra.mxu0 0.0
        %956 = vmatprep.subr.mxu0 0.0
        %957 = vmatpush2.msra.mxu0 0.0
        %958 = vmatprep.mubr.f32.mxu0 0.0
        %959 = vmatmul.mubr.f32.gmra.mxu0 %v847
        %v960 = vpop.f32.mrf.mxu0
        %v961 = vadd.f32 0.0, %v960
        %v962 = vpop.f32.mrf.mxu0
        %v963 = vadd.f32 0.0, %v962
        %964 = vmatprep.mubr.f32.mxu0 0.0
        %965 = vmatmul.mubr.f32.gmra.mxu0 %v850
        %v966 = vpop.f32.mrf.mxu0
        %v967 = vadd.f32 0.0, %v966
        %v968 = vpop.f32.mrf.mxu0
        %v969 = vadd.f32 0.0, %v968
        %970 = vmatprep.mubr.f32.mxu0 0.0
        %971 = vmatmul.mubr.f32.gmra.mxu0 %v853
        %v972 = vpop.f32.mrf.mxu0
        %v973 = vadd.f32 0.0, %v972
        %v974 = vpop.f32.mrf.mxu0
        %v975 = vadd.f32 0.0, %v974
        %976 = vmatprep.mubr.f32.mxu0 0.0
        %977 = vmatmul.mubr.f32.gmra.mxu0 %v856
        %v978 = vpop.f32.mrf.mxu0
        %v979 = vadd.f32 0.0, %v978
        %v980 = vpop.f32.mrf.mxu0
        %v981 = vadd.f32 0.0, %v980
        %982 = vmatprep.mubr.f32.mxu0 0.0
        %983 = vmatmul.mubr.f32.gmra.mxu0 %v859
        %v984 = vpop.f32.mrf.mxu0
        %v985 = vadd.f32 0.0, %v984
        %v986 = vpop.f32.mrf.mxu0
        %v987 = vadd.f32 0.0, %v986
        %988 = vmatprep.mubr.f32.mxu0 0.0
        %989 = vmatmul.mubr.f32.gmra.mxu0 %v862
        %v990 = vpop.f32.mrf.mxu0
        %v991 = vadd.f32 0.0, %v990
        %v992 = vpop.f32.mrf.mxu0
        %v993 = vadd.f32 0.0, %v992
        %994 = vmatprep.mubr.f32.mxu0 0.0
        %995 = vmatmul.mubr.f32.gmra.mxu0 %v865
        %v996 = vpop.f32.mrf.mxu0
        %v997 = vadd.f32 0.0, %v996
        %v998 = vpop.f32.mrf.mxu0
        %v999 = vadd.f32 0.0, %v998
        %1000 = vmatprep.mubr.f32.mxu0 0.0
        %1001 = vmatmul.mubr.f32.gmra.mxu0 %v868
        %v1002 = vpop.f32.mrf.mxu0
        %v1003 = vadd.f32 0.0, %v1002
        %v1004 = vpop.f32.mrf.mxu0
        %v1005 = vadd.f32 0.0, %v1004
        %1006 = vmatprep.mubr.f32.mxu0 0.0
        %1007 = vmatmul.mubr.f32.gmra.mxu0 %v871
        %v1008 = vpop.f32.mrf.mxu0
        %v1009 = vadd.f32 0.0, %v1008
        %v1010 = vpop.f32.mrf.mxu0
        %v1011 = vadd.f32 0.0, %v1010
        %1012 = vmatprep.mubr.f32.mxu0 0.0
        %1013 = vmatmul.mubr.f32.gmra.mxu0 %v874
        %v1014 = vpop.f32.mrf.mxu0
        %v1015 = vadd.f32 0.0, %v1014
        %v1016 = vpop.f32.mrf.mxu0
        %v1017 = vadd.f32 0.0, %v1016
        %1018 = vmatprep.mubr.f32.mxu0 0.0
        %1019 = vmatmul.mubr.f32.gmra.mxu0 %v877
        %v1020 = vpop.f32.mrf.mxu0
        %v1021 = vadd.f32 0.0, %v1020
        %v1022 = vpop.f32.mrf.mxu0
        %v1023 = vadd.f32 0.0, %v1022
        %1024 = vmatprep.mubr.f32.mxu0 0.0
        %1025 = vmatmul.mubr.f32.gmra.mxu0 %v880
        %v1026 = vpop.f32.mrf.mxu0
        %v1027 = vadd.f32 0.0, %v1026
        %v1028 = vpop.f32.mrf.mxu0
        %v1029 = vadd.f32 0.0, %v1028
        %1030 = vmatprep.mubr.f32.mxu0 0.0
        %1031 = vmatmul.mubr.f32.gmra.mxu0 %v883
        %v1032 = vpop.f32.mrf.mxu0
        %v1033 = vadd.f32 0.0, %v1032
        %v1034 = vpop.f32.mrf.mxu0
        %v1035 = vadd.f32 0.0, %v1034
        %1036 = vmatprep.mubr.f32.mxu0 0.0
        %1037 = vmatmul.mubr.f32.gmra.mxu0 %v886
        %v1038 = vpop.f32.mrf.mxu0
        %v1039 = vadd.f32 0.0, %v1038
        %v1040 = vpop.f32.mrf.mxu0
        %v1041 = vadd.f32 0.0, %v1040
        %1042 = vmatprep.mubr.f32.mxu0 0.0
        %1043 = vmatmul.mubr.f32.gmra.mxu0 %v889
        %v1044 = vpop.f32.mrf.mxu0
        %v1045 = vadd.f32 0.0, %v1044
        %v1046 = vpop.f32.mrf.mxu0
        %v1047 = vadd.f32 0.0, %v1046
        %1048 = vmatprep.mubr.f32.mxu0 0.0
        %1049 = vmatmul.mubr.f32.gmra.mxu0 %v892
        %v1050 = vpop.f32.mrf.mxu0
        %v1051 = vadd.f32 0.0, %v1050
        %v1052 = vpop.f32.mrf.mxu0
        %v1053 = vadd.f32 0.0, %v1052
        %1054 = vdwg.mxu0
        %1055 = vst [vmem:[%s374] sm:$0xff] %v961
        %1056 = vst [vmem:[%s374 + $0x8] sm:$0xff] %v963
        %1057 = vst [vmem:[%s374 + $0x10] sm:$0xff] %v967
        %1058 = vst [vmem:[%s374 + $0x18] sm:$0xff] %v969
        %1059 = vst [vmem:[%s374 + $0x20] sm:$0xff] %v973
        %1060 = vst [vmem:[%s374 + $0x28] sm:$0xff] %v975
        %1061 = vst [vmem:[%s374 + $0x30] sm:$0xff] %v979
        %1062 = vst [vmem:[%s374 + $0x38] sm:$0xff] %v981
        %1063 = vst [vmem:[%s374 + $0x40] sm:$0xff] %v985
        %1064 = vst [vmem:[%s374 + $0x48] sm:$0xff] %v987
        %1065 = vst [vmem:[%s374 + $0x50] sm:$0xff] %v991
        %1066 = vst [vmem:[%s374 + $0x58] sm:$0xff] %v993
        %1067 = vst [vmem:[%s374 + $0x60] sm:$0xff] %v997
        %1068 = vst [vmem:[%s374 + $0x68] sm:$0xff] %v999
        %1069 = vst [vmem:[%s374 + $0x70] sm:$0xff] %v1003
        %1070 = vst [vmem:[%s374 + $0x78] sm:$0xff] %v1005
        %1071 = vst [vmem:[%s374 + $0x80] sm:$0xff] %v1009
        %1072 = vst [vmem:[%s374 + $0x88] sm:$0xff] %v1011
        %1073 = vst [vmem:[%s374 + $0x90] sm:$0xff] %v1015
        %1074 = vst [vmem:[%s374 + $0x98] sm:$0xff] %v1017
        %1075 = vst [vmem:[%s374 + $0xa0] sm:$0xff] %v1021
        %1076 = vst [vmem:[%s374 + $0xa8] sm:$0xff] %v1023
        %1077 = vst [vmem:[%s374 + $0xb0] sm:$0xff] %v1027
        %1078 = vst [vmem:[%s374 + $0xb8] sm:$0xff] %v1029
        %1079 = vst [vmem:[%s374 + $0xc0] sm:$0xff] %v1033
        %1080 = vst [vmem:[%s374 + $0xc8] sm:$0xff] %v1035
        %1081 = vst [vmem:[%s374 + $0xd0] sm:$0xff] %v1039
        %1082 = vst [vmem:[%s374 + $0xd8] sm:$0xff] %v1041
        %1083 = vst [vmem:[%s374 + $0xe0] sm:$0xff] %v1045
        %1084 = vst [vmem:[%s374 + $0xe8] sm:$0xff] %v1047
        %1085 = vst [vmem:[%s374 + $0xf0] sm:$0xff] %v1051
        %1086 = vst [vmem:[%s374 + $0xf8] sm:$0xff] %v1053
        %v1087 = vld [vmem:[%s406] sm:$0xff]
        %v1088 = vld [vmem:[%s406 + $0x8] sm:$0xff]
        %v1089 = vld [vmem:[%s406 + $0x10] sm:$0xff]
        %v1090 = vld [vmem:[%s406 + $0x18] sm:$0xff]
        %1091 = vmatprep.subr.mxu0 0.0
        %1092 = vmatpush1.msra.mxu0 0.0
        %1093 = vmatprep.subr.mxu0 0.0
        %1094 = vmatpush1.msra.mxu0 0.0
        %1095 = vmatprep.subr.mxu0 0.0
        %1096 = vmatpush1.msra.mxu0 0.0
        %1097 = vmatprep.subr.mxu0 0.0
        %1098 = vmatpush1.msra.mxu0 0.0
        %1099 = vmatprep.subr.mxu0 0.0
        %1100 = vmatpush1.msra.mxu0 0.0
        %1101 = vmatprep.subr.mxu0 0.0
        %1102 = vmatpush1.msra.mxu0 0.0
        %1103 = vmatprep.subr.mxu0 0.0
        %1104 = vmatpush1.msra.mxu0 0.0
        %1105 = vmatprep.subr.mxu0 0.0
        %1106 = vmatpush1.msra.mxu0 0.0
        %1107 = vmatprep.subr.mxu0 0.0
        %1108 = vmatpush1.msra.mxu0 0.0
        %1109 = vmatprep.subr.mxu0 0.0
        %1110 = vmatpush1.msra.mxu0 0.0
        %1111 = vmatprep.subr.mxu0 0.0
        %1112 = vmatpush1.msra.mxu0 0.0
        %1113 = vmatprep.subr.mxu0 0.0
        %1114 = vmatpush1.msra.mxu0 0.0
        %1115 = vmatprep.subr.mxu0 0.0
        %1116 = vmatpush1.msra.mxu0 %v1090
        %1117 = vmatprep.subr.mxu0 0.0
        %1118 = vmatpush1.msra.mxu0 %v1089
        %1119 = vmatprep.subr.mxu0 0.0
        %1120 = vmatpush1.msra.mxu0 %v1088
        %1121 = vmatprep.subr.mxu0 0.0
        %1122 = vmatpush1.msra.mxu0 %v1087
        %1123 = vmatprep.subr.mxu0 0.0
        %1124 = vmatpush2.msra.mxu0 0.0
        %1125 = vmatprep.subr.mxu0 0.0
        %1126 = vmatpush2.msra.mxu0 0.0
        %1127 = vmatprep.subr.mxu0 0.0
        %1128 = vmatpush2.msra.mxu0 0.0
        %1129 = vmatprep.subr.mxu0 0.0
        %1130 = vmatpush2.msra.mxu0 0.0
        %1131 = vmatprep.subr.mxu0 0.0
        %1132 = vmatpush2.msra.mxu0 0.0
        %1133 = vmatprep.subr.mxu0 0.0
        %1134 = vmatpush2.msra.mxu0 0.0
        %1135 = vmatprep.subr.mxu0 0.0
        %1136 = vmatpush2.msra.mxu0 0.0
        %1137 = vmatprep.subr.mxu0 0.0
        %1138 = vmatpush2.msra.mxu0 0.0
        %1139 = vmatprep.subr.mxu0 0.0
        %1140 = vmatpush2.msra.mxu0 0.0
        %1141 = vmatprep.subr.mxu0 0.0
        %1142 = vmatpush2.msra.mxu0 0.0
        %1143 = vmatprep.subr.mxu0 0.0
        %1144 = vmatpush2.msra.mxu0 0.0
        %1145 = vmatprep.subr.mxu0 0.0
        %1146 = vmatpush2.msra.mxu0 0.0
        %1147 = vmatprep.subr.mxu0 0.0
        %1148 = vmatpush2.msra.mxu0 0.0
        %1149 = vmatprep.subr.mxu0 0.0
        %1150 = vmatpush2.msra.mxu0 0.0
        %1151 = vmatprep.subr.mxu0 0.0
        %1152 = vmatpush2.msra.mxu0 0.0
        %1153 = vmatprep.subr.mxu0 0.0
        %1154 = vmatpush2.msra.mxu0 0.0
        %1155 = vmatprep.mubr.f32.mxu0 0.0
        %1156 = vmatmul.mubr.f32.gmra.mxu0 %v847
        %v1157 = vpop.f32.mrf.mxu0
        %v1158 = vadd.f32 0.0, %v1157
        %v1159 = vpop.f32.mrf.mxu0
        %1160 = vmatprep.mubr.f32.mxu0 0.0
        %1161 = vmatmul.mubr.f32.gmra.mxu0 %v850
        %v1162 = vpop.f32.mrf.mxu0
        %v1163 = vadd.f32 0.0, %v1162
        %v1164 = vpop.f32.mrf.mxu0
        %1165 = vmatprep.mubr.f32.mxu0 0.0
        %1166 = vmatmul.mubr.f32.gmra.mxu0 %v853
        %v1167 = vpop.f32.mrf.mxu0
        %v1168 = vadd.f32 0.0, %v1167
        %v1169 = vpop.f32.mrf.mxu0
        %1170 = vmatprep.mubr.f32.mxu0 0.0
        %1171 = vmatmul.mubr.f32.gmra.mxu0 %v856
        %v1172 = vpop.f32.mrf.mxu0
        %v1173 = vadd.f32 0.0, %v1172
        %v1174 = vpop.f32.mrf.mxu0
        %1175 = vmatprep.mubr.f32.mxu0 0.0
        %1176 = vmatmul.mubr.f32.gmra.mxu0 %v859
        %v1177 = vpop.f32.mrf.mxu0
        %v1178 = vadd.f32 0.0, %v1177
        %v1179 = vpop.f32.mrf.mxu0
        %1180 = vmatprep.mubr.f32.mxu0 0.0
        %1181 = vmatmul.mubr.f32.gmra.mxu0 %v862
        %v1182 = vpop.f32.mrf.mxu0
        %v1183 = vadd.f32 0.0, %v1182
        %v1184 = vpop.f32.mrf.mxu0
        %1185 = vmatprep.mubr.f32.mxu0 0.0
        %1186 = vmatmul.mubr.f32.gmra.mxu0 %v865
        %v1187 = vpop.f32.mrf.mxu0
        %v1188 = vadd.f32 0.0, %v1187
        %v1189 = vpop.f32.mrf.mxu0
        %1190 = vmatprep.mubr.f32.mxu0 0.0
        %1191 = vmatmul.mubr.f32.gmra.mxu0 %v868
        %v1192 = vpop.f32.mrf.mxu0
        %v1193 = vadd.f32 0.0, %v1192
        %v1194 = vpop.f32.mrf.mxu0
        %1195 = vmatprep.mubr.f32.mxu0 0.0
        %1196 = vmatmul.mubr.f32.gmra.mxu0 %v871
        %v1197 = vpop.f32.mrf.mxu0
        %v1198 = vadd.f32 0.0, %v1197
        %v1199 = vpop.f32.mrf.mxu0
        %1200 = vmatprep.mubr.f32.mxu0 0.0
        %1201 = vmatmul.mubr.f32.gmra.mxu0 %v874
        %v1202 = vpop.f32.mrf.mxu0
        %v1203 = vadd.f32 0.0, %v1202
        %v1204 = vpop.f32.mrf.mxu0
        %1205 = vmatprep.mubr.f32.mxu0 0.0
        %1206 = vmatmul.mubr.f32.gmra.mxu0 %v877
        %v1207 = vpop.f32.mrf.mxu0
        %v1208 = vadd.f32 0.0, %v1207
        %v1209 = vpop.f32.mrf.mxu0
        %1210 = vmatprep.mubr.f32.mxu0 0.0
        %1211 = vmatmul.mubr.f32.gmra.mxu0 %v880
        %v1212 = vpop.f32.mrf.mxu0
        %v1213 = vadd.f32 0.0, %v1212
        %v1214 = vpop.f32.mrf.mxu0
        %1215 = vmatprep.mubr.f32.mxu0 0.0
        %1216 = vmatmul.mubr.f32.gmra.mxu0 %v883
        %v1217 = vpop.f32.mrf.mxu0
        %v1218 = vadd.f32 0.0, %v1217
        %v1219 = vpop.f32.mrf.mxu0
        %1220 = vmatprep.mubr.f32.mxu0 0.0
        %1221 = vmatmul.mubr.f32.gmra.mxu0 %v886
        %v1222 = vpop.f32.mrf.mxu0
        %v1223 = vadd.f32 0.0, %v1222
        %v1224 = vpop.f32.mrf.mxu0
        %1225 = vmatprep.mubr.f32.mxu0 0.0
        %1226 = vmatmul.mubr.f32.gmra.mxu0 %v889
        %v1227 = vpop.f32.mrf.mxu0
        %v1228 = vadd.f32 0.0, %v1227
        %v1229 = vpop.f32.mrf.mxu0
        %1230 = vmatprep.mubr.f32.mxu0 0.0
        %1231 = vmatmul.mubr.f32.gmra.mxu0 %v892
        %v1232 = vpop.f32.mrf.mxu0
        %v1233 = vadd.f32 0.0, %v1232
        %v1234 = vpop.f32.mrf.mxu0
        %1235 = vdwg.mxu0
        %s1236 = sld [smem:[#allocation2]]
        %v1237 = vstv %s1236
        %v1238 = vmul.f32 %v1237, %v1158
        %v1239 = vmul.f32 %v1237, %v1163
        %v1240 = vmul.f32 %v1237, %v1168
        %v1241 = vmul.f32 %v1237, %v1173
        %v1242 = vmul.f32 %v1237, %v1178
        %v1243 = vmul.f32 %v1237, %v1183
        %v1244 = vmul.f32 %v1237, %v1188
        %v1245 = vmul.f32 %v1237, %v1193
        %v1246 = vmul.f32 %v1237, %v1198
        %v1247 = vmul.f32 %v1237, %v1203
        %v1248 = vmul.f32 %v1237, %v1208
        %v1249 = vmul.f32 %v1237, %v1213
        %v1250 = vmul.f32 %v1237, %v1218
        %v1251 = vmul.f32 %v1237, %v1223
        %v1252 = vmul.f32 %v1237, %v1228
        %v1253 = vmul.f32 %v1237, %v1233
        %v1254 = vld [vmem:[%s415] sm:$0xff]
        %v1255 = vld [vmem:[%s415 + $0x8] sm:$0xff]
        %v1256 = vld [vmem:[%s415 + $0x10] sm:$0xff]
        %v1257 = vld [vmem:[%s415 + $0x18] sm:$0xff]
        %v1258 = vld [vmem:[%s415 + $0x20] sm:$0xff]
        %v1259 = vld [vmem:[%s415 + $0x28] sm:$0xff]
        %v1260 = vld [vmem:[%s415 + $0x30] sm:$0xff]
        %v1261 = vld [vmem:[%s415 + $0x38] sm:$0xff]
        %v1262 = vld [vmem:[%s415 + $0x40] sm:$0xff]
        %v1263 = vld [vmem:[%s415 + $0x48] sm:$0xff]
        %v1264 = vld [vmem:[%s415 + $0x50] sm:$0xff]
        %v1265 = vld [vmem:[%s415 + $0x58] sm:$0xff]
        %v1266 = vld [vmem:[%s415 + $0x60] sm:$0xff]
        %v1267 = vld [vmem:[%s415 + $0x68] sm:$0xff]
        %v1268 = vld [vmem:[%s415 + $0x70] sm:$0xff]
        %v1269 = vld [vmem:[%s415 + $0x78] sm:$0xff]
        %v1270 = vadd.f32 %v1238, %v1254
        %v1271 = vadd.f32 %v1239, %v1255
        %v1272 = vadd.f32 %v1240, %v1256
        %v1273 = vadd.f32 %v1241, %v1257
        %v1274 = vadd.f32 %v1242, %v1258
        %v1275 = vadd.f32 %v1243, %v1259
        %v1276 = vadd.f32 %v1244, %v1260
        %v1277 = vadd.f32 %v1245, %v1261
        %v1278 = vadd.f32 %v1246, %v1262
        %v1279 = vadd.f32 %v1247, %v1263
        %v1280 = vadd.f32 %v1248, %v1264
        %v1281 = vadd.f32 %v1249, %v1265
        %v1282 = vadd.f32 %v1250, %v1266
        %v1283 = vadd.f32 %v1251, %v1267
        %v1284 = vadd.f32 %v1252, %v1268
        %v1285 = vadd.f32 %v1253, %v1269
        %vm1286 = vcmask 523264
        %1287 = vst.msk [vmem:[%s381] sm:$0xff] %vm1286, %v1270
        %1288 = vst.msk [vmem:[%s381 + $0x8] sm:$0xff] %vm1286, %v1271
        %1289 = vst.msk [vmem:[%s381 + $0x10] sm:$0xff] %vm1286, %v1272
        %1290 = vst.msk [vmem:[%s381 + $0x18] sm:$0xff] %vm1286, %v1273
        %1291 = vst.msk [vmem:[%s381 + $0x20] sm:$0xff] %vm1286, %v1274
        %1292 = vst.msk [vmem:[%s381 + $0x28] sm:$0xff] %vm1286, %v1275
        %1293 = vst.msk [vmem:[%s381 + $0x30] sm:$0xff] %vm1286, %v1276
        %1294 = vst.msk [vmem:[%s381 + $0x38] sm:$0xff] %vm1286, %v1277
        %1295 = vst.msk [vmem:[%s381 + $0x40] sm:$0xff] %vm1286, %v1278
        %1296 = vst.msk [vmem:[%s381 + $0x48] sm:$0xff] %vm1286, %v1279
        %1297 = vst.msk [vmem:[%s381 + $0x50] sm:$0xff] %vm1286, %v1280
        %1298 = vst.msk [vmem:[%s381 + $0x58] sm:$0xff] %vm1286, %v1281
        %1299 = vst.msk [vmem:[%s381 + $0x60] sm:$0xff] %vm1286, %v1282
        %1300 = vst.msk [vmem:[%s381 + $0x68] sm:$0xff] %vm1286, %v1283
        %1301 = vst.msk [vmem:[%s381 + $0x70] sm:$0xff] %vm1286, %v1284
        %1302 = vst.msk [vmem:[%s381 + $0x78] sm:$0xff] %vm1286, %v1285
        %s1303 = sand.u32 %s203, 1
        %s1304 = scalar_lea.sflag [#allocation4], %s1303
        %s1305 = sand.u32 %s203, 1
        %s1306 = smul.addr %s1305, 256
        %s1307 = scalar_lea.vmem [#allocation3], %s1306
        %s1308 = sand.u32 %s231, 1
        %s1309 = scalar_lea.sflag [#allocation6], %s1308
        %s1310 = sand.u32 %s231, 1
        %s1311 = smul.addr %s1310, 128
        %s1312 = scalar_lea.vmem [#allocation5], %s1311
        // Predicated region
        $region45: #{self_nys_attn_forward.5} parent=43 // pred_check
          %p1313 = pneg %p213
        $region46: #{self_nys_attn_forward.5} parent=43 // pred_check_branch
          %1315 = sbr.rel (%p1313) target = $region48
        $region47: #{self_nys_attn_forward.5} parent=43 // pred_region
          %s1316 = smul.u32 16, %s31
          %s1318 = ssub.s32 4096, 4096
          %1319 = vsyncadd %s1304, %s1318
          %s1320 = smul.addr %s1316, 2
          %s1321 = smul.addr %s30, 64
          %s1322 = sadd.s32 %s1320, %s1321
          %s1323 = smul.addr %s1322, 128
          %s1324 = scalar_lea.hbm %s6, %s1323
          %s1325 = sshll.u32 %s1307, 4
          %s1326 = int_to_ptr.vmem [resolvable:$true] %s1325
          %1331 = dma.vmem_to_hbm [thread:$0]  %s1326, 4096, %s1324, %s1304, 256, 256, 16
        $region48: #{self_nys_attn_forward.5} parent=43 // pred_fallthru
          _
        // Predicated region
        $region49: #{self_nys_attn_forward.5} parent=43 // pred_check
          %p1332 = pneg %p241
        $region50: #{self_nys_attn_forward.5} parent=43 // pred_check_branch
          %1334 = sbr.rel (%p1332) target = $region52
        $region51: #{self_nys_attn_forward.5} parent=43 // pred_region
          %s1335 = smul.u32 16, %s31
          %s1337 = ssub.s32 2048, 2048
          %1338 = vsyncadd %s1309, %s1337
          %s1339 = smul.addr %s30, 32
          %s1340 = sadd.s32 %s1335, %s1339
          %s1341 = smul.addr %s1340, 128
          %s1342 = scalar_lea.hbm %s7, %s1341
          %s1343 = sshll.u32 %s1312, 4
          %s1344 = int_to_ptr.vmem [resolvable:$true] %s1343
          %1349 = dma.vmem_to_hbm [thread:$0]  %s1344, 2048, %s1342, %s1309, 128, 128, 8
        $region52: #{self_nys_attn_forward.5} parent=43 // pred_fallthru
          _
      $region44: #{self_nys_attn_forward.5} parent=5 // pred_fallthru
        _
      %p1350 = scmp.le.s32.totalorder 2, %s21
      // Predicated region
      $region53: #{self_nys_attn_forward.5} parent=5 // pred_check
        %p1351 = pneg %p1350
      $region54: #{self_nys_attn_forward.5} parent=5 // pred_check_branch
        %1353 = sbr.rel (%p1351) target = $region56
      $region55: #{self_nys_attn_forward.5} parent=5 // pred_region
        %s1354 = ssub.s32 %s21, 2
        // Predicated region
        $region57: #{self_nys_attn_forward.5} parent=55 // pred_check
          %p1355 = pneg %p219
        $region58: #{self_nys_attn_forward.5} parent=55 // pred_check_branch
          %1357 = sbr.rel (%p1355) target = $region60
        $region59: #{self_nys_attn_forward.5} parent=55 // pred_region
          %s1358 = sand.u32 %s204, 1
          %s1359 = scalar_lea.sflag [#allocation4], %s1358
          %s1360 = sand.u32 %s204, 1
          %s1361 = smul.addr %s1360, 256
          %s1362 = scalar_lea.vmem [#allocation3], %s1361
          %1363 = dma.done %s1359, 4096
        $region60: #{self_nys_attn_forward.5} parent=55 // pred_fallthru
          _
        // Predicated region
        $region61: #{self_nys_attn_forward.5} parent=55 // pred_check
          %p1364 = pneg %p247
        $region62: #{self_nys_attn_forward.5} parent=55 // pred_check_branch
          %1366 = sbr.rel (%p1364) target = $region64
        $region63: #{self_nys_attn_forward.5} parent=55 // pred_region
          %s1367 = sand.u32 %s232, 1
          %s1368 = scalar_lea.sflag [#allocation6], %s1367
          %s1369 = sand.u32 %s232, 1
          %s1370 = smul.addr %s1369, 128
          %s1371 = scalar_lea.vmem [#allocation5], %s1370
          %1372 = dma.done %s1368, 2048
        $region64: #{self_nys_attn_forward.5} parent=55 // pred_fallthru
          _
      $region56: #{self_nys_attn_forward.5} parent=5 // pred_fallthru
        _
    $region6: #{self_nys_attn_forward.5} parent=1 // loop_footer
      %s25 = sadd.s32 1, %s21
    $region7: #{self_nys_attn_forward.5} parent=1 // loop_footer_branch
      %20 = sbr.rel target = $region3
    $region8: #{self_nys_attn_forward.5} parent=1 // loop_exit
      _
    %1373 = vsyncpa [#allocation4], 1
    %s1374 = scalar_lea.sflag [#allocation4], 1
    %1375 = vsyncpa %s1374, 1
    %1376 = vsyncpa [#allocation6], 1
    %s1377 = scalar_lea.sflag [#allocation6], 1
    %1378 = vsyncpa %s1377, 1

// kernel: self_nys_attn_forward.3
$region0: #{self_nys_attn_forward.3}
  #allocation0 [shape = 'u32[]', space=smem, size = 0x4, offset = 0x4, fixed_abs, tag = 'smem constant byte address 0x4 - core index']
  #allocation1 [shape = 'u32[144,128]{1,0:T(1,128)}', space=vmem, size = 0x12000, scoped, tag = 'internal scratch']
  %s0 = inlined_call_operand.hbm [shape: f32[512,64], index: 0, kind: input, shape index: {}]
  %s1 = inlined_call_operand.vmem [shape: f32[64,8], index: 1, kind: input, shape index: {}]
  %s2 = inlined_call_operand.vmem [shape: f32[1,8], index: 2, kind: input, shape index: {}]
  %s3 = inlined_call_operand.vmem [shape: f32[64,8], index: 3, kind: input, shape index: {}]
  %s4 = inlined_call_operand.vmem [shape: f32[1,8], index: 4, kind: input, shape index: {}]
  %s5 = inlined_call_operand.vmem [shape: f32[64,64], index: 5, kind: input, shape index: {}]
  %s6 = inlined_call_operand.vmem [shape: f32[1,64], index: 6, kind: input, shape index: {}]
  %s7 = inlined_call_operand.vmem [shape: f32[512,8], index: 7, kind: output, shape index: {0}]
  %s8 = inlined_call_operand.vmem [shape: f32[512,8], index: 8, kind: output, shape index: {1}]
  %s9 = inlined_call_operand.vmem [shape: f32[512,64], index: 9, kind: output, shape index: {2}]
  %10 = xla_tuple %s7, %s8, %s9
  %s11 = sld [smem:[#allocation0]]
  $region58: #{self_nys_attn_forward.3} parent=0
    _
  %s13 = ssub.s32 1, %s11
  %s14 = scalar_select 0, %s13, %s11
  $region1: #{self_nys_attn_forward.3} parent=0
    #allocation2 [shape = 'u8[262144]{0}', space=vmem, size = 0x40000, scoped, tag = 'input window, operand 0, single buffered']
    #allocation3 [shape = 's32[1]{0}', space=sflag, size = 0x4, scoped, tag = 'scoped memory for self_nys_attn_forward.3']
    %15 = vsyncpa [#allocation3], 0
    // Predicated region
    $region2: #{self_nys_attn_forward.3} parent=1 // pred_check
      _
    $region3: #{self_nys_attn_forward.3} parent=1 // pred_check_branch
      %17 = sbr.rel (0) target = $region5
    $region4: #{self_nys_attn_forward.3} parent=1 // pred_region
      %s19 = ssub.s32 8192, 8192
      %20 = vsyncadd [#allocation3], %s19
      %s21 = sshll.u32 [#allocation2], 4
      %s22 = int_to_ptr.vmem [resolvable:$true] %s21
      %27 = dma.hbm_to_vmem [thread:$0]  %s0, 8192, %s22, [#allocation3], 128, 128, 8
    $region5: #{self_nys_attn_forward.3} parent=1 // pred_fallthru
      _
    // Predicated region
    $region6: #{self_nys_attn_forward.3} parent=1 // pred_check
      _
    $region7: #{self_nys_attn_forward.3} parent=1 // pred_check_branch
      %29 = sbr.rel (0) target = $region9
    $region8: #{self_nys_attn_forward.3} parent=1 // pred_region
      _
    $region9: #{self_nys_attn_forward.3} parent=1 // pred_fallthru
      _
    // Predicated region
    $region10: #{self_nys_attn_forward.3} parent=1 // pred_check
      _
    $region11: #{self_nys_attn_forward.3} parent=1 // pred_check_branch
      %31 = sbr.rel (0) target = $region13
    $region12: #{self_nys_attn_forward.3} parent=1 // pred_region
      _
    $region13: #{self_nys_attn_forward.3} parent=1 // pred_fallthru
      _
    // Predicated region
    $region14: #{self_nys_attn_forward.3} parent=1 // pred_check
      _
    $region15: #{self_nys_attn_forward.3} parent=1 // pred_check_branch
      %33 = sbr.rel (0) target = $region17
    $region16: #{self_nys_attn_forward.3} parent=1 // pred_region
      _
    $region17: #{self_nys_attn_forward.3} parent=1 // pred_fallthru
      _
    // Predicated region
    $region18: #{self_nys_attn_forward.3} parent=1 // pred_check
      _
    $region19: #{self_nys_attn_forward.3} parent=1 // pred_check_branch
      %35 = sbr.rel (0) target = $region21
    $region20: #{self_nys_attn_forward.3} parent=1 // pred_region
      _
    $region21: #{self_nys_attn_forward.3} parent=1 // pred_fallthru
      _
    // Predicated region
    $region22: #{self_nys_attn_forward.3} parent=1 // pred_check
      _
    $region23: #{self_nys_attn_forward.3} parent=1 // pred_check_branch
      %37 = sbr.rel (0) target = $region25
    $region24: #{self_nys_attn_forward.3} parent=1 // pred_region
      _
    $region25: #{self_nys_attn_forward.3} parent=1 // pred_fallthru
      _
    // Predicated region
    $region26: #{self_nys_attn_forward.3} parent=1 // pred_check
      _
    $region27: #{self_nys_attn_forward.3} parent=1 // pred_check_branch
      %39 = sbr.rel (0) target = $region29
    $region28: #{self_nys_attn_forward.3} parent=1 // pred_region
      _
    $region29: #{self_nys_attn_forward.3} parent=1 // pred_fallthru
      _
    // Predicated region
    $region30: #{self_nys_attn_forward.3} parent=1 // pred_check
      _
    $region31: #{self_nys_attn_forward.3} parent=1 // pred_check_branch
      %41 = sbr.rel (0) target = $region33
    $region32: #{self_nys_attn_forward.3} parent=1 // pred_region
      %42 = dma.done [#allocation3], 8192
    $region33: #{self_nys_attn_forward.3} parent=1 // pred_fallthru
      _
    %v43 = vld [vmem:[#allocation2] sm:$0xff]
    %v44 = vld [vmem:[#allocation2 + $0x8] sm:$0xff]
    %v45 = vld [vmem:[#allocation2 + $0x10] sm:$0xff]
    %v46 = vld [vmem:[#allocation2 + $0x18] sm:$0xff]
    %v47 = vld [vmem:[#allocation2 + $0x20] sm:$0xff]
    %v48 = vld [vmem:[#allocation2 + $0x28] sm:$0xff]
    %v49 = vld [vmem:[#allocation2 + $0x30] sm:$0xff]
    %v50 = vld [vmem:[#allocation2 + $0x38] sm:$0xff]
    %v51 = vld [vmem:[#allocation2 + $0x40] sm:$0xff]
    %v52 = vld [vmem:[#allocation2 + $0x48] sm:$0xff]
    %v53 = vld [vmem:[#allocation2 + $0x50] sm:$0xff]
    %v54 = vld [vmem:[#allocation2 + $0x58] sm:$0xff]
    %v55 = vld [vmem:[#allocation2 + $0x60] sm:$0xff]
    %v56 = vld [vmem:[#allocation2 + $0x68] sm:$0xff]
    %v57 = vld [vmem:[#allocation2 + $0x70] sm:$0xff]
    %v58 = vld [vmem:[#allocation2 + $0x78] sm:$0xff]
    %v59 = vld [vmem:[#allocation2 + $0x80] sm:$0xff]
    %v60 = vld [vmem:[#allocation2 + $0x88] sm:$0xff]
    %v61 = vld [vmem:[#allocation2 + $0x90] sm:$0xff]
    %v62 = vld [vmem:[#allocation2 + $0x98] sm:$0xff]
    %v63 = vld [vmem:[#allocation2 + $0xa0] sm:$0xff]
    %v64 = vld [vmem:[#allocation2 + $0xa8] sm:$0xff]
    %v65 = vld [vmem:[#allocation2 + $0xb0] sm:$0xff]
    %v66 = vld [vmem:[#allocation2 + $0xb8] sm:$0xff]
    %v67 = vld [vmem:[#allocation2 + $0xc0] sm:$0xff]
    %v68 = vld [vmem:[#allocation2 + $0xc8] sm:$0xff]
    %v69 = vld [vmem:[#allocation2 + $0xd0] sm:$0xff]
    %v70 = vld [vmem:[#allocation2 + $0xd8] sm:$0xff]
    %v71 = vld [vmem:[#allocation2 + $0xe0] sm:$0xff]
    %v72 = vld [vmem:[#allocation2 + $0xe8] sm:$0xff]
    %v73 = vld [vmem:[#allocation2 + $0xf0] sm:$0xff]
    %v74 = vld [vmem:[#allocation2 + $0xf8] sm:$0xff]
    %v75 = vld [vmem:[#allocation2 + $0x100] sm:$0xff]
    %v76 = vld [vmem:[#allocation2 + $0x108] sm:$0xff]
    %v77 = vld [vmem:[#allocation2 + $0x110] sm:$0xff]
    %v78 = vld [vmem:[#allocation2 + $0x118] sm:$0xff]
    %v79 = vld [vmem:[#allocation2 + $0x120] sm:$0xff]
    %v80 = vld [vmem:[#allocation2 + $0x128] sm:$0xff]
    %v81 = vld [vmem:[#allocation2 + $0x130] sm:$0xff]
    %v82 = vld [vmem:[#allocation2 + $0x138] sm:$0xff]
    %v83 = vld [vmem:[#allocation2 + $0x140] sm:$0xff]
    %v84 = vld [vmem:[#allocation2 + $0x148] sm:$0xff]
    %v85 = vld [vmem:[#allocation2 + $0x150] sm:$0xff]
    %v86 = vld [vmem:[#allocation2 + $0x158] sm:$0xff]
    %v87 = vld [vmem:[#allocation2 + $0x160] sm:$0xff]
    %v88 = vld [vmem:[#allocation2 + $0x168] sm:$0xff]
    %v89 = vld [vmem:[#allocation2 + $0x170] sm:$0xff]
    %v90 = vld [vmem:[#allocation2 + $0x178] sm:$0xff]
    %v91 = vld [vmem:[#allocation2 + $0x180] sm:$0xff]
    %v92 = vld [vmem:[#allocation2 + $0x188] sm:$0xff]
    %v93 = vld [vmem:[#allocation2 + $0x190] sm:$0xff]
    %v94 = vld [vmem:[#allocation2 + $0x198] sm:$0xff]
    %v95 = vld [vmem:[#allocation2 + $0x1a0] sm:$0xff]
    %v96 = vld [vmem:[#allocation2 + $0x1a8] sm:$0xff]
    %v97 = vld [vmem:[#allocation2 + $0x1b0] sm:$0xff]
    %v98 = vld [vmem:[#allocation2 + $0x1b8] sm:$0xff]
    %v99 = vld [vmem:[#allocation2 + $0x1c0] sm:$0xff]
    %v100 = vld [vmem:[#allocation2 + $0x1c8] sm:$0xff]
    %v101 = vld [vmem:[#allocation2 + $0x1d0] sm:$0xff]
    %v102 = vld [vmem:[#allocation2 + $0x1d8] sm:$0xff]
    %v103 = vld [vmem:[#allocation2 + $0x1e0] sm:$0xff]
    %v104 = vld [vmem:[#allocation2 + $0x1e8] sm:$0xff]
    %v105 = vld [vmem:[#allocation2 + $0x1f0] sm:$0xff]
    %v106 = vld [vmem:[#allocation2 + $0x1f8] sm:$0xff]
    %v107 = vld [vmem:[%s1] sm:$0xff]
    %v108 = vld [vmem:[%s1 + $0x8] sm:$0xff]
    %v109 = vld [vmem:[%s1 + $0x10] sm:$0xff]
    %v110 = vld [vmem:[%s1 + $0x18] sm:$0xff]
    %v111 = vld [vmem:[%s1 + $0x20] sm:$0xff]
    %v112 = vld [vmem:[%s1 + $0x28] sm:$0xff]
    %v113 = vld [vmem:[%s1 + $0x30] sm:$0xff]
    %v114 = vld [vmem:[%s1 + $0x38] sm:$0xff]
    %v115 = vld [vmem:[%s2] sm:$0x1]
    %v117 = vlaneseq
    %v118 = vshrl.u32 %v117, 7
    %v119 = vsub.s32 0, %v118
    %v120 = vrot.slane %v115, %v119
    %vm122 = vcmask 523264
    %v124 = vsel %vm122, %v43, 0
    %v127 = vsel %vm122, %v44, 0
    %v130 = vsel %vm122, %v45, 0
    %v133 = vsel %vm122, %v46, 0
    %v136 = vsel %vm122, %v47, 0
    %v139 = vsel %vm122, %v48, 0
    %v142 = vsel %vm122, %v49, 0
    %v145 = vsel %vm122, %v50, 0
    %v148 = vsel %vm122, %v51, 0
    %v151 = vsel %vm122, %v52, 0
    %v154 = vsel %vm122, %v53, 0
    %v157 = vsel %vm122, %v54, 0
    %v160 = vsel %vm122, %v55, 0
    %v163 = vsel %vm122, %v56, 0
    %v166 = vsel %vm122, %v57, 0
    %v169 = vsel %vm122, %v58, 0
    %v172 = vsel %vm122, %v59, 0
    %v175 = vsel %vm122, %v60, 0
    %v178 = vsel %vm122, %v61, 0
    %v181 = vsel %vm122, %v62, 0
    %v184 = vsel %vm122, %v63, 0
    %v187 = vsel %vm122, %v64, 0
    %v190 = vsel %vm122, %v65, 0
    %v193 = vsel %vm122, %v66, 0
    %v196 = vsel %vm122, %v67, 0
    %v199 = vsel %vm122, %v68, 0
    %v202 = vsel %vm122, %v69, 0
    %v205 = vsel %vm122, %v70, 0
    %v208 = vsel %vm122, %v71, 0
    %v211 = vsel %vm122, %v72, 0
    %v214 = vsel %vm122, %v73, 0
    %v217 = vsel %vm122, %v74, 0
    %v220 = vsel %vm122, %v75, 0
    %v223 = vsel %vm122, %v76, 0
    %v226 = vsel %vm122, %v77, 0
    %v229 = vsel %vm122, %v78, 0
    %v232 = vsel %vm122, %v79, 0
    %v235 = vsel %vm122, %v80, 0
    %v238 = vsel %vm122, %v81, 0
    %v241 = vsel %vm122, %v82, 0
    %v244 = vsel %vm122, %v83, 0
    %v247 = vsel %vm122, %v84, 0
    %v250 = vsel %vm122, %v85, 0
    %v253 = vsel %vm122, %v86, 0
    %v256 = vsel %vm122, %v87, 0
    %v259 = vsel %vm122, %v88, 0
    %v262 = vsel %vm122, %v89, 0
    %v265 = vsel %vm122, %v90, 0
    %v268 = vsel %vm122, %v91, 0
    %v271 = vsel %vm122, %v92, 0
    %v274 = vsel %vm122, %v93, 0
    %v277 = vsel %vm122, %v94, 0
    %v280 = vsel %vm122, %v95, 0
    %v283 = vsel %vm122, %v96, 0
    %v286 = vsel %vm122, %v97, 0
    %v289 = vsel %vm122, %v98, 0
    %v292 = vsel %vm122, %v99, 0
    %v295 = vsel %vm122, %v100, 0
    %v298 = vsel %vm122, %v101, 0
    %v301 = vsel %vm122, %v102, 0
    %v304 = vsel %vm122, %v103, 0
    %v307 = vsel %vm122, %v104, 0
    %v310 = vsel %vm122, %v105, 0
    %v313 = vsel %vm122, %v106, 0
    %315 = vmatprep.subr.mxu0 0.0
    %316 = vmatpush1.msra.mxu0 0.0
    %317 = vmatprep.subr.mxu0 0.0
    %318 = vmatpush1.msra.mxu0 0.0
    %319 = vmatprep.subr.mxu0 0.0
    %320 = vmatpush1.msra.mxu0 0.0
    %321 = vmatprep.subr.mxu0 0.0
    %322 = vmatpush1.msra.mxu0 0.0
    %323 = vmatprep.subr.mxu0 0.0
    %324 = vmatpush1.msra.mxu0 0.0
    %325 = vmatprep.subr.mxu0 0.0
    %326 = vmatpush1.msra.mxu0 0.0
    %327 = vmatprep.subr.mxu0 0.0
    %328 = vmatpush1.msra.mxu0 0.0
    %329 = vmatprep.subr.mxu0 0.0
    %330 = vmatpush1.msra.mxu0 0.0
    %331 = vmatprep.subr.mxu0 0.0
    %332 = vmatpush1.msra.mxu0 %v114
    %333 = vmatprep.subr.mxu0 0.0
    %334 = vmatpush1.msra.mxu0 %v113
    %335 = vmatprep.subr.mxu0 0.0
    %336 = vmatpush1.msra.mxu0 %v112
    %337 = vmatprep.subr.mxu0 0.0
    %338 = vmatpush1.msra.mxu0 %v111
    %339 = vmatprep.subr.mxu0 0.0
    %340 = vmatpush1.msra.mxu0 %v110
    %341 = vmatprep.subr.mxu0 0.0
    %342 = vmatpush1.msra.mxu0 %v109
    %343 = vmatprep.subr.mxu0 0.0
    %344 = vmatpush1.msra.mxu0 %v108
    %345 = vmatprep.subr.mxu0 0.0
    %346 = vmatpush1.msra.mxu0 %v107
    %347 = vmatprep.subr.mxu0 0.0
    %348 = vmatpush2.msra.mxu0 0.0
    %349 = vmatprep.subr.mxu0 0.0
    %350 = vmatpush2.msra.mxu0 0.0
    %351 = vmatprep.subr.mxu0 0.0
    %352 = vmatpush2.msra.mxu0 0.0
    %353 = vmatprep.subr.mxu0 0.0
    %354 = vmatpush2.msra.mxu0 0.0
    %355 = vmatprep.subr.mxu0 0.0
    %356 = vmatpush2.msra.mxu0 0.0
    %357 = vmatprep.subr.mxu0 0.0
    %358 = vmatpush2.msra.mxu0 0.0
    %359 = vmatprep.subr.mxu0 0.0
    %360 = vmatpush2.msra.mxu0 0.0
    %361 = vmatprep.subr.mxu0 0.0
    %362 = vmatpush2.msra.mxu0 0.0
    %363 = vmatprep.subr.mxu0 0.0
    %364 = vmatpush2.msra.mxu0 0.0
    %365 = vmatprep.subr.mxu0 0.0
    %366 = vmatpush2.msra.mxu0 0.0
    %367 = vmatprep.subr.mxu0 0.0
    %368 = vmatpush2.msra.mxu0 0.0
    %369 = vmatprep.subr.mxu0 0.0
    %370 = vmatpush2.msra.mxu0 0.0
    %371 = vmatprep.subr.mxu0 0.0
    %372 = vmatpush2.msra.mxu0 0.0
    %373 = vmatprep.subr.mxu0 0.0
    %374 = vmatpush2.msra.mxu0 0.0
    %375 = vmatprep.subr.mxu0 0.0
    %376 = vmatpush2.msra.mxu0 0.0
    %377 = vmatprep.subr.mxu0 0.0
    %378 = vmatpush2.msra.mxu0 0.0
    %379 = vmatprep.mubr.f32.mxu0 0.0
    %380 = vmatmul.mubr.f32.gmra.mxu0 %v124
    %v381 = vpop.f32.mrf.mxu0
    %v382 = vadd.f32 %v120, %v381
    %v383 = vpop.f32.mrf.mxu0
    %384 = vmatprep.mubr.f32.mxu0 0.0
    %385 = vmatmul.mubr.f32.gmra.mxu0 %v127
    %v386 = vpop.f32.mrf.mxu0
    %v387 = vadd.f32 %v120, %v386
    %v388 = vpop.f32.mrf.mxu0
    %389 = vmatprep.mubr.f32.mxu0 0.0
    %390 = vmatmul.mubr.f32.gmra.mxu0 %v130
    %v391 = vpop.f32.mrf.mxu0
    %v392 = vadd.f32 %v120, %v391
    %v393 = vpop.f32.mrf.mxu0
    %394 = vmatprep.mubr.f32.mxu0 0.0
    %395 = vmatmul.mubr.f32.gmra.mxu0 %v133
    %v396 = vpop.f32.mrf.mxu0
    %v397 = vadd.f32 %v120, %v396
    %v398 = vpop.f32.mrf.mxu0
    %399 = vmatprep.mubr.f32.mxu0 0.0
    %400 = vmatmul.mubr.f32.gmra.mxu0 %v136
    %v401 = vpop.f32.mrf.mxu0
    %v402 = vadd.f32 %v120, %v401
    %v403 = vpop.f32.mrf.mxu0
    %404 = vmatprep.mubr.f32.mxu0 0.0
    %405 = vmatmul.mubr.f32.gmra.mxu0 %v139
    %v406 = vpop.f32.mrf.mxu0
    %v407 = vadd.f32 %v120, %v406
    %v408 = vpop.f32.mrf.mxu0
    %409 = vmatprep.mubr.f32.mxu0 0.0
    %410 = vmatmul.mubr.f32.gmra.mxu0 %v142
    %v411 = vpop.f32.mrf.mxu0
    %v412 = vadd.f32 %v120, %v411
    %v413 = vpop.f32.mrf.mxu0
    %414 = vmatprep.mubr.f32.mxu0 0.0
    %415 = vmatmul.mubr.f32.gmra.mxu0 %v145
    %v416 = vpop.f32.mrf.mxu0
    %v417 = vadd.f32 %v120, %v416
    %v418 = vpop.f32.mrf.mxu0
    %419 = vmatprep.mubr.f32.mxu0 0.0
    %420 = vmatmul.mubr.f32.gmra.mxu0 %v148
    %v421 = vpop.f32.mrf.mxu0
    %v422 = vadd.f32 %v120, %v421
    %v423 = vpop.f32.mrf.mxu0
    %424 = vmatprep.mubr.f32.mxu0 0.0
    %425 = vmatmul.mubr.f32.gmra.mxu0 %v151
    %v426 = vpop.f32.mrf.mxu0
    %v427 = vadd.f32 %v120, %v426
    %v428 = vpop.f32.mrf.mxu0
    %429 = vmatprep.mubr.f32.mxu0 0.0
    %430 = vmatmul.mubr.f32.gmra.mxu0 %v154
    %v431 = vpop.f32.mrf.mxu0
    %v432 = vadd.f32 %v120, %v431
    %v433 = vpop.f32.mrf.mxu0
    %434 = vmatprep.mubr.f32.mxu0 0.0
    %435 = vmatmul.mubr.f32.gmra.mxu0 %v157
    %v436 = vpop.f32.mrf.mxu0
    %v437 = vadd.f32 %v120, %v436
    %v438 = vpop.f32.mrf.mxu0
    %439 = vmatprep.mubr.f32.mxu0 0.0
    %440 = vmatmul.mubr.f32.gmra.mxu0 %v160
    %v441 = vpop.f32.mrf.mxu0
    %v442 = vadd.f32 %v120, %v441
    %v443 = vpop.f32.mrf.mxu0
    %444 = vmatprep.mubr.f32.mxu0 0.0
    %445 = vmatmul.mubr.f32.gmra.mxu0 %v163
    %v446 = vpop.f32.mrf.mxu0
    %v447 = vadd.f32 %v120, %v446
    %v448 = vpop.f32.mrf.mxu0
    %449 = vmatprep.mubr.f32.mxu0 0.0
    %450 = vmatmul.mubr.f32.gmra.mxu0 %v166
    %v451 = vpop.f32.mrf.mxu0
    %v452 = vadd.f32 %v120, %v451
    %v453 = vpop.f32.mrf.mxu0
    %454 = vmatprep.mubr.f32.mxu0 0.0
    %455 = vmatmul.mubr.f32.gmra.mxu0 %v169
    %v456 = vpop.f32.mrf.mxu0
    %v457 = vadd.f32 %v120, %v456
    %v458 = vpop.f32.mrf.mxu0
    %459 = vmatprep.mubr.f32.mxu0 0.0
    %460 = vmatmul.mubr.f32.gmra.mxu0 %v172
    %v461 = vpop.f32.mrf.mxu0
    %v462 = vadd.f32 %v120, %v461
    %v463 = vpop.f32.mrf.mxu0
    %464 = vmatprep.mubr.f32.mxu0 0.0
    %465 = vmatmul.mubr.f32.gmra.mxu0 %v175
    %v466 = vpop.f32.mrf.mxu0
    %v467 = vadd.f32 %v120, %v466
    %v468 = vpop.f32.mrf.mxu0
    %469 = vmatprep.mubr.f32.mxu0 0.0
    %470 = vmatmul.mubr.f32.gmra.mxu0 %v178
    %v471 = vpop.f32.mrf.mxu0
    %v472 = vadd.f32 %v120, %v471
    %v473 = vpop.f32.mrf.mxu0
    %474 = vmatprep.mubr.f32.mxu0 0.0
    %475 = vmatmul.mubr.f32.gmra.mxu0 %v181
    %v476 = vpop.f32.mrf.mxu0
    %v477 = vadd.f32 %v120, %v476
    %v478 = vpop.f32.mrf.mxu0
    %479 = vmatprep.mubr.f32.mxu0 0.0
    %480 = vmatmul.mubr.f32.gmra.mxu0 %v184
    %v481 = vpop.f32.mrf.mxu0
    %v482 = vadd.f32 %v120, %v481
    %v483 = vpop.f32.mrf.mxu0
    %484 = vmatprep.mubr.f32.mxu0 0.0
    %485 = vmatmul.mubr.f32.gmra.mxu0 %v187
    %v486 = vpop.f32.mrf.mxu0
    %v487 = vadd.f32 %v120, %v486
    %v488 = vpop.f32.mrf.mxu0
    %489 = vmatprep.mubr.f32.mxu0 0.0
    %490 = vmatmul.mubr.f32.gmra.mxu0 %v190
    %v491 = vpop.f32.mrf.mxu0
    %v492 = vadd.f32 %v120, %v491
    %v493 = vpop.f32.mrf.mxu0
    %494 = vmatprep.mubr.f32.mxu0 0.0
    %495 = vmatmul.mubr.f32.gmra.mxu0 %v193
    %v496 = vpop.f32.mrf.mxu0
    %v497 = vadd.f32 %v120, %v496
    %v498 = vpop.f32.mrf.mxu0
    %499 = vmatprep.mubr.f32.mxu0 0.0
    %500 = vmatmul.mubr.f32.gmra.mxu0 %v196
    %v501 = vpop.f32.mrf.mxu0
    %v502 = vadd.f32 %v120, %v501
    %v503 = vpop.f32.mrf.mxu0
    %504 = vmatprep.mubr.f32.mxu0 0.0
    %505 = vmatmul.mubr.f32.gmra.mxu0 %v199
    %v506 = vpop.f32.mrf.mxu0
    %v507 = vadd.f32 %v120, %v506
    %v508 = vpop.f32.mrf.mxu0
    %509 = vmatprep.mubr.f32.mxu0 0.0
    %510 = vmatmul.mubr.f32.gmra.mxu0 %v202
    %v511 = vpop.f32.mrf.mxu0
    %v512 = vadd.f32 %v120, %v511
    %v513 = vpop.f32.mrf.mxu0
    %514 = vmatprep.mubr.f32.mxu0 0.0
    %515 = vmatmul.mubr.f32.gmra.mxu0 %v205
    %v516 = vpop.f32.mrf.mxu0
    %v517 = vadd.f32 %v120, %v516
    %v518 = vpop.f32.mrf.mxu0
    %519 = vmatprep.mubr.f32.mxu0 0.0
    %520 = vmatmul.mubr.f32.gmra.mxu0 %v208
    %v521 = vpop.f32.mrf.mxu0
    %v522 = vadd.f32 %v120, %v521
    %v523 = vpop.f32.mrf.mxu0
    %524 = vmatprep.mubr.f32.mxu0 0.0
    %525 = vmatmul.mubr.f32.gmra.mxu0 %v211
    %v526 = vpop.f32.mrf.mxu0
    %v527 = vadd.f32 %v120, %v526
    %v528 = vpop.f32.mrf.mxu0
    %529 = vmatprep.mubr.f32.mxu0 0.0
    %530 = vmatmul.mubr.f32.gmra.mxu0 %v214
    %v531 = vpop.f32.mrf.mxu0
    %v532 = vadd.f32 %v120, %v531
    %v533 = vpop.f32.mrf.mxu0
    %534 = vmatprep.mubr.f32.mxu0 0.0
    %535 = vmatmul.mubr.f32.gmra.mxu0 %v217
    %v536 = vpop.f32.mrf.mxu0
    %v537 = vadd.f32 %v120, %v536
    %v538 = vpop.f32.mrf.mxu0
    %539 = vmatprep.mubr.f32.mxu0 0.0
    %540 = vmatmul.mubr.f32.gmra.mxu0 %v220
    %v541 = vpop.f32.mrf.mxu0
    %v542 = vadd.f32 %v120, %v541
    %v543 = vpop.f32.mrf.mxu0
    %544 = vmatprep.mubr.f32.mxu0 0.0
    %545 = vmatmul.mubr.f32.gmra.mxu0 %v223
    %v546 = vpop.f32.mrf.mxu0
    %v547 = vadd.f32 %v120, %v546
    %v548 = vpop.f32.mrf.mxu0
    %549 = vmatprep.mubr.f32.mxu0 0.0
    %550 = vmatmul.mubr.f32.gmra.mxu0 %v226
    %v551 = vpop.f32.mrf.mxu0
    %v552 = vadd.f32 %v120, %v551
    %v553 = vpop.f32.mrf.mxu0
    %554 = vmatprep.mubr.f32.mxu0 0.0
    %555 = vmatmul.mubr.f32.gmra.mxu0 %v229
    %v556 = vpop.f32.mrf.mxu0
    %v557 = vadd.f32 %v120, %v556
    %v558 = vpop.f32.mrf.mxu0
    %559 = vmatprep.mubr.f32.mxu0 0.0
    %560 = vmatmul.mubr.f32.gmra.mxu0 %v232
    %v561 = vpop.f32.mrf.mxu0
    %v562 = vadd.f32 %v120, %v561
    %v563 = vpop.f32.mrf.mxu0
    %564 = vmatprep.mubr.f32.mxu0 0.0
    %565 = vmatmul.mubr.f32.gmra.mxu0 %v235
    %v566 = vpop.f32.mrf.mxu0
    %v567 = vadd.f32 %v120, %v566
    %v568 = vpop.f32.mrf.mxu0
    %569 = vmatprep.mubr.f32.mxu0 0.0
    %570 = vmatmul.mubr.f32.gmra.mxu0 %v238
    %v571 = vpop.f32.mrf.mxu0
    %v572 = vadd.f32 %v120, %v571
    %v573 = vpop.f32.mrf.mxu0
    %574 = vmatprep.mubr.f32.mxu0 0.0
    %575 = vmatmul.mubr.f32.gmra.mxu0 %v241
    %v576 = vpop.f32.mrf.mxu0
    %v577 = vadd.f32 %v120, %v576
    %v578 = vpop.f32.mrf.mxu0
    %579 = vmatprep.mubr.f32.mxu0 0.0
    %580 = vmatmul.mubr.f32.gmra.mxu0 %v244
    %v581 = vpop.f32.mrf.mxu0
    %v582 = vadd.f32 %v120, %v581
    %v583 = vpop.f32.mrf.mxu0
    %584 = vmatprep.mubr.f32.mxu0 0.0
    %585 = vmatmul.mubr.f32.gmra.mxu0 %v247
    %v586 = vpop.f32.mrf.mxu0
    %v587 = vadd.f32 %v120, %v586
    %v588 = vpop.f32.mrf.mxu0
    %589 = vmatprep.mubr.f32.mxu0 0.0
    %590 = vmatmul.mubr.f32.gmra.mxu0 %v250
    %v591 = vpop.f32.mrf.mxu0
    %v592 = vadd.f32 %v120, %v591
    %v593 = vpop.f32.mrf.mxu0
    %594 = vmatprep.mubr.f32.mxu0 0.0
    %595 = vmatmul.mubr.f32.gmra.mxu0 %v253
    %v596 = vpop.f32.mrf.mxu0
    %v597 = vadd.f32 %v120, %v596
    %v598 = vpop.f32.mrf.mxu0
    %599 = vmatprep.mubr.f32.mxu0 0.0
    %600 = vmatmul.mubr.f32.gmra.mxu0 %v256
    %v601 = vpop.f32.mrf.mxu0
    %v602 = vadd.f32 %v120, %v601
    %v603 = vpop.f32.mrf.mxu0
    %604 = vmatprep.mubr.f32.mxu0 0.0
    %605 = vmatmul.mubr.f32.gmra.mxu0 %v259
    %v606 = vpop.f32.mrf.mxu0
    %v607 = vadd.f32 %v120, %v606
    %v608 = vpop.f32.mrf.mxu0
    %609 = vmatprep.mubr.f32.mxu0 0.0
    %610 = vmatmul.mubr.f32.gmra.mxu0 %v262
    %v611 = vpop.f32.mrf.mxu0
    %v612 = vadd.f32 %v120, %v611
    %v613 = vpop.f32.mrf.mxu0
    %614 = vmatprep.mubr.f32.mxu0 0.0
    %615 = vmatmul.mubr.f32.gmra.mxu0 %v265
    %v616 = vpop.f32.mrf.mxu0
    %v617 = vadd.f32 %v120, %v616
    %v618 = vpop.f32.mrf.mxu0
    %619 = vmatprep.mubr.f32.mxu0 0.0
    %620 = vmatmul.mubr.f32.gmra.mxu0 %v268
    %v621 = vpop.f32.mrf.mxu0
    %v622 = vadd.f32 %v120, %v621
    %v623 = vpop.f32.mrf.mxu0
    %624 = vmatprep.mubr.f32.mxu0 0.0
    %625 = vmatmul.mubr.f32.gmra.mxu0 %v271
    %v626 = vpop.f32.mrf.mxu0
    %v627 = vadd.f32 %v120, %v626
    %v628 = vpop.f32.mrf.mxu0
    %629 = vmatprep.mubr.f32.mxu0 0.0
    %630 = vmatmul.mubr.f32.gmra.mxu0 %v274
    %v631 = vpop.f32.mrf.mxu0
    %v632 = vadd.f32 %v120, %v631
    %v633 = vpop.f32.mrf.mxu0
    %634 = vmatprep.mubr.f32.mxu0 0.0
    %635 = vmatmul.mubr.f32.gmra.mxu0 %v277
    %v636 = vpop.f32.mrf.mxu0
    %v637 = vadd.f32 %v120, %v636
    %v638 = vpop.f32.mrf.mxu0
    %639 = vmatprep.mubr.f32.mxu0 0.0
    %640 = vmatmul.mubr.f32.gmra.mxu0 %v280
    %v641 = vpop.f32.mrf.mxu0
    %v642 = vadd.f32 %v120, %v641
    %v643 = vpop.f32.mrf.mxu0
    %644 = vmatprep.mubr.f32.mxu0 0.0
    %645 = vmatmul.mubr.f32.gmra.mxu0 %v283
    %v646 = vpop.f32.mrf.mxu0
    %v647 = vadd.f32 %v120, %v646
    %v648 = vpop.f32.mrf.mxu0
    %649 = vmatprep.mubr.f32.mxu0 0.0
    %650 = vmatmul.mubr.f32.gmra.mxu0 %v286
    %v651 = vpop.f32.mrf.mxu0
    %v652 = vadd.f32 %v120, %v651
    %v653 = vpop.f32.mrf.mxu0
    %654 = vmatprep.mubr.f32.mxu0 0.0
    %655 = vmatmul.mubr.f32.gmra.mxu0 %v289
    %v656 = vpop.f32.mrf.mxu0
    %v657 = vadd.f32 %v120, %v656
    %v658 = vpop.f32.mrf.mxu0
    %659 = vmatprep.mubr.f32.mxu0 0.0
    %660 = vmatmul.mubr.f32.gmra.mxu0 %v292
    %v661 = vpop.f32.mrf.mxu0
    %v662 = vadd.f32 %v120, %v661
    %v663 = vpop.f32.mrf.mxu0
    %664 = vmatprep.mubr.f32.mxu0 0.0
    %665 = vmatmul.mubr.f32.gmra.mxu0 %v295
    %v666 = vpop.f32.mrf.mxu0
    %v667 = vadd.f32 %v120, %v666
    %v668 = vpop.f32.mrf.mxu0
    %669 = vmatprep.mubr.f32.mxu0 0.0
    %670 = vmatmul.mubr.f32.gmra.mxu0 %v298
    %v671 = vpop.f32.mrf.mxu0
    %v672 = vadd.f32 %v120, %v671
    %v673 = vpop.f32.mrf.mxu0
    %674 = vmatprep.mubr.f32.mxu0 0.0
    %675 = vmatmul.mubr.f32.gmra.mxu0 %v301
    %v676 = vpop.f32.mrf.mxu0
    %v677 = vadd.f32 %v120, %v676
    %v678 = vpop.f32.mrf.mxu0
    %679 = vmatprep.mubr.f32.mxu0 0.0
    %680 = vmatmul.mubr.f32.gmra.mxu0 %v304
    %v681 = vpop.f32.mrf.mxu0
    %v682 = vadd.f32 %v120, %v681
    %v683 = vpop.f32.mrf.mxu0
    %684 = vmatprep.mubr.f32.mxu0 0.0
    %685 = vmatmul.mubr.f32.gmra.mxu0 %v307
    %v686 = vpop.f32.mrf.mxu0
    %v687 = vadd.f32 %v120, %v686
    %v688 = vpop.f32.mrf.mxu0
    %689 = vmatprep.mubr.f32.mxu0 0.0
    %690 = vmatmul.mubr.f32.gmra.mxu0 %v310
    %v691 = vpop.f32.mrf.mxu0
    %v692 = vadd.f32 %v120, %v691
    %v693 = vpop.f32.mrf.mxu0
    %694 = vmatprep.mubr.f32.mxu0 0.0
    %695 = vmatmul.mubr.f32.gmra.mxu0 %v313
    %v696 = vpop.f32.mrf.mxu0
    %v697 = vadd.f32 %v120, %v696
    %v698 = vpop.f32.mrf.mxu0
    %699 = vdwg.mxu0
    %vm700 = vcmask 64512
    %701 = vst.msk [vmem:[%s7] sm:$0xff] %vm700, %v382
    %702 = vst.msk [vmem:[%s7 + $0x8] sm:$0xff] %vm700, %v387
    %703 = vst.msk [vmem:[%s7 + $0x10] sm:$0xff] %vm700, %v392
    %704 = vst.msk [vmem:[%s7 + $0x18] sm:$0xff] %vm700, %v397
    %705 = vst.msk [vmem:[%s7 + $0x20] sm:$0xff] %vm700, %v402
    %706 = vst.msk [vmem:[%s7 + $0x28] sm:$0xff] %vm700, %v407
    %707 = vst.msk [vmem:[%s7 + $0x30] sm:$0xff] %vm700, %v412
    %708 = vst.msk [vmem:[%s7 + $0x38] sm:$0xff] %vm700, %v417
    %709 = vst.msk [vmem:[%s7 + $0x40] sm:$0xff] %vm700, %v422
    %710 = vst.msk [vmem:[%s7 + $0x48] sm:$0xff] %vm700, %v427
    %711 = vst.msk [vmem:[%s7 + $0x50] sm:$0xff] %vm700, %v432
    %712 = vst.msk [vmem:[%s7 + $0x58] sm:$0xff] %vm700, %v437
    %713 = vst.msk [vmem:[%s7 + $0x60] sm:$0xff] %vm700, %v442
    %714 = vst.msk [vmem:[%s7 + $0x68] sm:$0xff] %vm700, %v447
    %715 = vst.msk [vmem:[%s7 + $0x70] sm:$0xff] %vm700, %v452
    %716 = vst.msk [vmem:[%s7 + $0x78] sm:$0xff] %vm700, %v457
    %717 = vst.msk [vmem:[%s7 + $0x80] sm:$0xff] %vm700, %v462
    %718 = vst.msk [vmem:[%s7 + $0x88] sm:$0xff] %vm700, %v467
    %719 = vst.msk [vmem:[%s7 + $0x90] sm:$0xff] %vm700, %v472
    %720 = vst.msk [vmem:[%s7 + $0x98] sm:$0xff] %vm700, %v477
    %721 = vst.msk [vmem:[%s7 + $0xa0] sm:$0xff] %vm700, %v482
    %722 = vst.msk [vmem:[%s7 + $0xa8] sm:$0xff] %vm700, %v487
    %723 = vst.msk [vmem:[%s7 + $0xb0] sm:$0xff] %vm700, %v492
    %724 = vst.msk [vmem:[%s7 + $0xb8] sm:$0xff] %vm700, %v497
    %725 = vst.msk [vmem:[%s7 + $0xc0] sm:$0xff] %vm700, %v502
    %726 = vst.msk [vmem:[%s7 + $0xc8] sm:$0xff] %vm700, %v507
    %727 = vst.msk [vmem:[%s7 + $0xd0] sm:$0xff] %vm700, %v512
    %728 = vst.msk [vmem:[%s7 + $0xd8] sm:$0xff] %vm700, %v517
    %729 = vst.msk [vmem:[%s7 + $0xe0] sm:$0xff] %vm700, %v522
    %730 = vst.msk [vmem:[%s7 + $0xe8] sm:$0xff] %vm700, %v527
    %731 = vst.msk [vmem:[%s7 + $0xf0] sm:$0xff] %vm700, %v532
    %732 = vst.msk [vmem:[%s7 + $0xf8] sm:$0xff] %vm700, %v537
    %733 = vst.msk [vmem:[%s7 + $0x100] sm:$0xff] %vm700, %v542
    %734 = vst.msk [vmem:[%s7 + $0x108] sm:$0xff] %vm700, %v547
    %735 = vst.msk [vmem:[%s7 + $0x110] sm:$0xff] %vm700, %v552
    %736 = vst.msk [vmem:[%s7 + $0x118] sm:$0xff] %vm700, %v557
    %737 = vst.msk [vmem:[%s7 + $0x120] sm:$0xff] %vm700, %v562
    %738 = vst.msk [vmem:[%s7 + $0x128] sm:$0xff] %vm700, %v567
    %739 = vst.msk [vmem:[%s7 + $0x130] sm:$0xff] %vm700, %v572
    %740 = vst.msk [vmem:[%s7 + $0x138] sm:$0xff] %vm700, %v577
    %741 = vst.msk [vmem:[%s7 + $0x140] sm:$0xff] %vm700, %v582
    %742 = vst.msk [vmem:[%s7 + $0x148] sm:$0xff] %vm700, %v587
    %743 = vst.msk [vmem:[%s7 + $0x150] sm:$0xff] %vm700, %v592
    %744 = vst.msk [vmem:[%s7 + $0x158] sm:$0xff] %vm700, %v597
    %745 = vst.msk [vmem:[%s7 + $0x160] sm:$0xff] %vm700, %v602
    %746 = vst.msk [vmem:[%s7 + $0x168] sm:$0xff] %vm700, %v607
    %747 = vst.msk [vmem:[%s7 + $0x170] sm:$0xff] %vm700, %v612
    %748 = vst.msk [vmem:[%s7 + $0x178] sm:$0xff] %vm700, %v617
    %749 = vst.msk [vmem:[%s7 + $0x180] sm:$0xff] %vm700, %v622
    %750 = vst.msk [vmem:[%s7 + $0x188] sm:$0xff] %vm700, %v627
    %751 = vst.msk [vmem:[%s7 + $0x190] sm:$0xff] %vm700, %v632
    %752 = vst.msk [vmem:[%s7 + $0x198] sm:$0xff] %vm700, %v637
    %753 = vst.msk [vmem:[%s7 + $0x1a0] sm:$0xff] %vm700, %v642
    %754 = vst.msk [vmem:[%s7 + $0x1a8] sm:$0xff] %vm700, %v647
    %755 = vst.msk [vmem:[%s7 + $0x1b0] sm:$0xff] %vm700, %v652
    %756 = vst.msk [vmem:[%s7 + $0x1b8] sm:$0xff] %vm700, %v657
    %757 = vst.msk [vmem:[%s7 + $0x1c0] sm:$0xff] %vm700, %v662
    %758 = vst.msk [vmem:[%s7 + $0x1c8] sm:$0xff] %vm700, %v667
    %759 = vst.msk [vmem:[%s7 + $0x1d0] sm:$0xff] %vm700, %v672
    %760 = vst.msk [vmem:[%s7 + $0x1d8] sm:$0xff] %vm700, %v677
    %761 = vst.msk [vmem:[%s7 + $0x1e0] sm:$0xff] %vm700, %v682
    %762 = vst.msk [vmem:[%s7 + $0x1e8] sm:$0xff] %vm700, %v687
    %763 = vst.msk [vmem:[%s7 + $0x1f0] sm:$0xff] %vm700, %v692
    %764 = vst.msk [vmem:[%s7 + $0x1f8] sm:$0xff] %vm700, %v697
    %v765 = vld [vmem:[%s3] sm:$0xff]
    %v766 = vld [vmem:[%s3 + $0x8] sm:$0xff]
    %v767 = vld [vmem:[%s3 + $0x10] sm:$0xff]
    %v768 = vld [vmem:[%s3 + $0x18] sm:$0xff]
    %v769 = vld [vmem:[%s3 + $0x20] sm:$0xff]
    %v770 = vld [vmem:[%s3 + $0x28] sm:$0xff]
    %v771 = vld [vmem:[%s3 + $0x30] sm:$0xff]
    %v772 = vld [vmem:[%s3 + $0x38] sm:$0xff]
    %v773 = vld [vmem:[%s4] sm:$0x1]
    %v775 = vlaneseq
    %v776 = vshrl.u32 %v775, 7
    %v777 = vsub.s32 0, %v776
    %v778 = vrot.slane %v773, %v777
    %780 = vmatprep.subr.mxu0 0.0
    %781 = vmatpush1.msra.mxu0 0.0
    %782 = vmatprep.subr.mxu0 0.0
    %783 = vmatpush1.msra.mxu0 0.0
    %784 = vmatprep.subr.mxu0 0.0
    %785 = vmatpush1.msra.mxu0 0.0
    %786 = vmatprep.subr.mxu0 0.0
    %787 = vmatpush1.msra.mxu0 0.0
    %788 = vmatprep.subr.mxu0 0.0
    %789 = vmatpush1.msra.mxu0 0.0
    %790 = vmatprep.subr.mxu0 0.0
    %791 = vmatpush1.msra.mxu0 0.0
    %792 = vmatprep.subr.mxu0 0.0
    %793 = vmatpush1.msra.mxu0 0.0
    %794 = vmatprep.subr.mxu0 0.0
    %795 = vmatpush1.msra.mxu0 0.0
    %796 = vmatprep.subr.mxu0 0.0
    %797 = vmatpush1.msra.mxu0 %v772
    %798 = vmatprep.subr.mxu0 0.0
    %799 = vmatpush1.msra.mxu0 %v771
    %800 = vmatprep.subr.mxu0 0.0
    %801 = vmatpush1.msra.mxu0 %v770
    %802 = vmatprep.subr.mxu0 0.0
    %803 = vmatpush1.msra.mxu0 %v769
    %804 = vmatprep.subr.mxu0 0.0
    %805 = vmatpush1.msra.mxu0 %v768
    %806 = vmatprep.subr.mxu0 0.0
    %807 = vmatpush1.msra.mxu0 %v767
    %808 = vmatprep.subr.mxu0 0.0
    %809 = vmatpush1.msra.mxu0 %v766
    %810 = vmatprep.subr.mxu0 0.0
    %811 = vmatpush1.msra.mxu0 %v765
    %812 = vmatprep.subr.mxu0 0.0
    %813 = vmatpush2.msra.mxu0 0.0
    %814 = vmatprep.subr.mxu0 0.0
    %815 = vmatpush2.msra.mxu0 0.0
    %816 = vmatprep.subr.mxu0 0.0
    %817 = vmatpush2.msra.mxu0 0.0
    %818 = vmatprep.subr.mxu0 0.0
    %819 = vmatpush2.msra.mxu0 0.0
    %820 = vmatprep.subr.mxu0 0.0
    %821 = vmatpush2.msra.mxu0 0.0
    %822 = vmatprep.subr.mxu0 0.0
    %823 = vmatpush2.msra.mxu0 0.0
    %824 = vmatprep.subr.mxu0 0.0
    %825 = vmatpush2.msra.mxu0 0.0
    %826 = vmatprep.subr.mxu0 0.0
    %827 = vmatpush2.msra.mxu0 0.0
    %828 = vmatprep.subr.mxu0 0.0
    %829 = vmatpush2.msra.mxu0 0.0
    %830 = vmatprep.subr.mxu0 0.0
    %831 = vmatpush2.msra.mxu0 0.0
    %832 = vmatprep.subr.mxu0 0.0
    %833 = vmatpush2.msra.mxu0 0.0
    %834 = vmatprep.subr.mxu0 0.0
    %835 = vmatpush2.msra.mxu0 0.0
    %836 = vmatprep.subr.mxu0 0.0
    %837 = vmatpush2.msra.mxu0 0.0
    %838 = vmatprep.subr.mxu0 0.0
    %839 = vmatpush2.msra.mxu0 0.0
    %840 = vmatprep.subr.mxu0 0.0
    %841 = vmatpush2.msra.mxu0 0.0
    %842 = vmatprep.subr.mxu0 0.0
    %843 = vmatpush2.msra.mxu0 0.0
    %844 = vmatprep.mubr.f32.mxu0 0.0
    %845 = vmatmul.mubr.f32.gmra.mxu0 %v124
    %v846 = vpop.f32.mrf.mxu0
    %v847 = vadd.f32 %v778, %v846
    %v848 = vpop.f32.mrf.mxu0
    %849 = vmatprep.mubr.f32.mxu0 0.0
    %850 = vmatmul.mubr.f32.gmra.mxu0 %v127
    %v851 = vpop.f32.mrf.mxu0
    %v852 = vadd.f32 %v778, %v851
    %v853 = vpop.f32.mrf.mxu0
    %854 = vmatprep.mubr.f32.mxu0 0.0
    %855 = vmatmul.mubr.f32.gmra.mxu0 %v130
    %v856 = vpop.f32.mrf.mxu0
    %v857 = vadd.f32 %v778, %v856
    %v858 = vpop.f32.mrf.mxu0
    %859 = vmatprep.mubr.f32.mxu0 0.0
    %860 = vmatmul.mubr.f32.gmra.mxu0 %v133
    %v861 = vpop.f32.mrf.mxu0
    %v862 = vadd.f32 %v778, %v861
    %v863 = vpop.f32.mrf.mxu0
    %864 = vmatprep.mubr.f32.mxu0 0.0
    %865 = vmatmul.mubr.f32.gmra.mxu0 %v136
    %v866 = vpop.f32.mrf.mxu0
    %v867 = vadd.f32 %v778, %v866
    %v868 = vpop.f32.mrf.mxu0
    %869 = vmatprep.mubr.f32.mxu0 0.0
    %870 = vmatmul.mubr.f32.gmra.mxu0 %v139
    %v871 = vpop.f32.mrf.mxu0
    %v872 = vadd.f32 %v778, %v871
    %v873 = vpop.f32.mrf.mxu0
    %874 = vmatprep.mubr.f32.mxu0 0.0
    %875 = vmatmul.mubr.f32.gmra.mxu0 %v142
    %v876 = vpop.f32.mrf.mxu0
    %v877 = vadd.f32 %v778, %v876
    %v878 = vpop.f32.mrf.mxu0
    %879 = vmatprep.mubr.f32.mxu0 0.0
    %880 = vmatmul.mubr.f32.gmra.mxu0 %v145
    %v881 = vpop.f32.mrf.mxu0
    %v882 = vadd.f32 %v778, %v881
    %v883 = vpop.f32.mrf.mxu0
    %884 = vmatprep.mubr.f32.mxu0 0.0
    %885 = vmatmul.mubr.f32.gmra.mxu0 %v148
    %v886 = vpop.f32.mrf.mxu0
    %v887 = vadd.f32 %v778, %v886
    %v888 = vpop.f32.mrf.mxu0
    %889 = vmatprep.mubr.f32.mxu0 0.0
    %890 = vmatmul.mubr.f32.gmra.mxu0 %v151
    %v891 = vpop.f32.mrf.mxu0
    %v892 = vadd.f32 %v778, %v891
    %v893 = vpop.f32.mrf.mxu0
    %894 = vmatprep.mubr.f32.mxu0 0.0
    %895 = vmatmul.mubr.f32.gmra.mxu0 %v154
    %v896 = vpop.f32.mrf.mxu0
    %v897 = vadd.f32 %v778, %v896
    %v898 = vpop.f32.mrf.mxu0
    %899 = vmatprep.mubr.f32.mxu0 0.0
    %900 = vmatmul.mubr.f32.gmra.mxu0 %v157
    %v901 = vpop.f32.mrf.mxu0
    %v902 = vadd.f32 %v778, %v901
    %v903 = vpop.f32.mrf.mxu0
    %904 = vmatprep.mubr.f32.mxu0 0.0
    %905 = vmatmul.mubr.f32.gmra.mxu0 %v160
    %v906 = vpop.f32.mrf.mxu0
    %v907 = vadd.f32 %v778, %v906
    %v908 = vpop.f32.mrf.mxu0
    %909 = vmatprep.mubr.f32.mxu0 0.0
    %910 = vmatmul.mubr.f32.gmra.mxu0 %v163
    %v911 = vpop.f32.mrf.mxu0
    %v912 = vadd.f32 %v778, %v911
    %v913 = vpop.f32.mrf.mxu0
    %914 = vmatprep.mubr.f32.mxu0 0.0
    %915 = vmatmul.mubr.f32.gmra.mxu0 %v166
    %v916 = vpop.f32.mrf.mxu0
    %v917 = vadd.f32 %v778, %v916
    %v918 = vpop.f32.mrf.mxu0
    %919 = vmatprep.mubr.f32.mxu0 0.0
    %920 = vmatmul.mubr.f32.gmra.mxu0 %v169
    %v921 = vpop.f32.mrf.mxu0
    %v922 = vadd.f32 %v778, %v921
    %v923 = vpop.f32.mrf.mxu0
    %924 = vmatprep.mubr.f32.mxu0 0.0
    %925 = vmatmul.mubr.f32.gmra.mxu0 %v172
    %v926 = vpop.f32.mrf.mxu0
    %v927 = vadd.f32 %v778, %v926
    %v928 = vpop.f32.mrf.mxu0
    %929 = vmatprep.mubr.f32.mxu0 0.0
    %930 = vmatmul.mubr.f32.gmra.mxu0 %v175
    %v931 = vpop.f32.mrf.mxu0
    %v932 = vadd.f32 %v778, %v931
    %v933 = vpop.f32.mrf.mxu0
    %934 = vmatprep.mubr.f32.mxu0 0.0
    %935 = vmatmul.mubr.f32.gmra.mxu0 %v178
    %v936 = vpop.f32.mrf.mxu0
    %v937 = vadd.f32 %v778, %v936
    %v938 = vpop.f32.mrf.mxu0
    %939 = vmatprep.mubr.f32.mxu0 0.0
    %940 = vmatmul.mubr.f32.gmra.mxu0 %v181
    %v941 = vpop.f32.mrf.mxu0
    %v942 = vadd.f32 %v778, %v941
    %v943 = vpop.f32.mrf.mxu0
    %944 = vmatprep.mubr.f32.mxu0 0.0
    %945 = vmatmul.mubr.f32.gmra.mxu0 %v184
    %v946 = vpop.f32.mrf.mxu0
    %v947 = vadd.f32 %v778, %v946
    %v948 = vpop.f32.mrf.mxu0
    %949 = vmatprep.mubr.f32.mxu0 0.0
    %950 = vmatmul.mubr.f32.gmra.mxu0 %v187
    %v951 = vpop.f32.mrf.mxu0
    %v952 = vadd.f32 %v778, %v951
    %v953 = vpop.f32.mrf.mxu0
    %954 = vmatprep.mubr.f32.mxu0 0.0
    %955 = vmatmul.mubr.f32.gmra.mxu0 %v190
    %v956 = vpop.f32.mrf.mxu0
    %v957 = vadd.f32 %v778, %v956
    %v958 = vpop.f32.mrf.mxu0
    %959 = vmatprep.mubr.f32.mxu0 0.0
    %960 = vmatmul.mubr.f32.gmra.mxu0 %v193
    %v961 = vpop.f32.mrf.mxu0
    %v962 = vadd.f32 %v778, %v961
    %v963 = vpop.f32.mrf.mxu0
    %964 = vmatprep.mubr.f32.mxu0 0.0
    %965 = vmatmul.mubr.f32.gmra.mxu0 %v196
    %v966 = vpop.f32.mrf.mxu0
    %v967 = vadd.f32 %v778, %v966
    %v968 = vpop.f32.mrf.mxu0
    %969 = vmatprep.mubr.f32.mxu0 0.0
    %970 = vmatmul.mubr.f32.gmra.mxu0 %v199
    %v971 = vpop.f32.mrf.mxu0
    %v972 = vadd.f32 %v778, %v971
    %v973 = vpop.f32.mrf.mxu0
    %974 = vmatprep.mubr.f32.mxu0 0.0
    %975 = vmatmul.mubr.f32.gmra.mxu0 %v202
    %v976 = vpop.f32.mrf.mxu0
    %v977 = vadd.f32 %v778, %v976
    %v978 = vpop.f32.mrf.mxu0
    %979 = vmatprep.mubr.f32.mxu0 0.0
    %980 = vmatmul.mubr.f32.gmra.mxu0 %v205
    %v981 = vpop.f32.mrf.mxu0
    %v982 = vadd.f32 %v778, %v981
    %v983 = vpop.f32.mrf.mxu0
    %984 = vmatprep.mubr.f32.mxu0 0.0
    %985 = vmatmul.mubr.f32.gmra.mxu0 %v208
    %v986 = vpop.f32.mrf.mxu0
    %v987 = vadd.f32 %v778, %v986
    %v988 = vpop.f32.mrf.mxu0
    %989 = vmatprep.mubr.f32.mxu0 0.0
    %990 = vmatmul.mubr.f32.gmra.mxu0 %v211
    %v991 = vpop.f32.mrf.mxu0
    %v992 = vadd.f32 %v778, %v991
    %v993 = vpop.f32.mrf.mxu0
    %994 = vmatprep.mubr.f32.mxu0 0.0
    %995 = vmatmul.mubr.f32.gmra.mxu0 %v214
    %v996 = vpop.f32.mrf.mxu0
    %v997 = vadd.f32 %v778, %v996
    %v998 = vpop.f32.mrf.mxu0
    %999 = vmatprep.mubr.f32.mxu0 0.0
    %1000 = vmatmul.mubr.f32.gmra.mxu0 %v217
    %v1001 = vpop.f32.mrf.mxu0
    %v1002 = vadd.f32 %v778, %v1001
    %v1003 = vpop.f32.mrf.mxu0
    %1004 = vmatprep.mubr.f32.mxu0 0.0
    %1005 = vmatmul.mubr.f32.gmra.mxu0 %v220
    %v1006 = vpop.f32.mrf.mxu0
    %v1007 = vadd.f32 %v778, %v1006
    %v1008 = vpop.f32.mrf.mxu0
    %1009 = vmatprep.mubr.f32.mxu0 0.0
    %1010 = vmatmul.mubr.f32.gmra.mxu0 %v223
    %v1011 = vpop.f32.mrf.mxu0
    %v1012 = vadd.f32 %v778, %v1011
    %v1013 = vpop.f32.mrf.mxu0
    %1014 = vmatprep.mubr.f32.mxu0 0.0
    %1015 = vmatmul.mubr.f32.gmra.mxu0 %v226
    %v1016 = vpop.f32.mrf.mxu0
    %v1017 = vadd.f32 %v778, %v1016
    %v1018 = vpop.f32.mrf.mxu0
    %1019 = vmatprep.mubr.f32.mxu0 0.0
    %1020 = vmatmul.mubr.f32.gmra.mxu0 %v229
    %v1021 = vpop.f32.mrf.mxu0
    %v1022 = vadd.f32 %v778, %v1021
    %v1023 = vpop.f32.mrf.mxu0
    %1024 = vmatprep.mubr.f32.mxu0 0.0
    %1025 = vmatmul.mubr.f32.gmra.mxu0 %v232
    %v1026 = vpop.f32.mrf.mxu0
    %v1027 = vadd.f32 %v778, %v1026
    %v1028 = vpop.f32.mrf.mxu0
    %1029 = vmatprep.mubr.f32.mxu0 0.0
    %1030 = vmatmul.mubr.f32.gmra.mxu0 %v235
    %v1031 = vpop.f32.mrf.mxu0
    %v1032 = vadd.f32 %v778, %v1031
    %v1033 = vpop.f32.mrf.mxu0
    %1034 = vmatprep.mubr.f32.mxu0 0.0
    %1035 = vmatmul.mubr.f32.gmra.mxu0 %v238
    %v1036 = vpop.f32.mrf.mxu0
    %v1037 = vadd.f32 %v778, %v1036
    %v1038 = vpop.f32.mrf.mxu0
    %1039 = vmatprep.mubr.f32.mxu0 0.0
    %1040 = vmatmul.mubr.f32.gmra.mxu0 %v241
    %v1041 = vpop.f32.mrf.mxu0
    %v1042 = vadd.f32 %v778, %v1041
    %v1043 = vpop.f32.mrf.mxu0
    %1044 = vmatprep.mubr.f32.mxu0 0.0
    %1045 = vmatmul.mubr.f32.gmra.mxu0 %v244
    %v1046 = vpop.f32.mrf.mxu0
    %v1047 = vadd.f32 %v778, %v1046
    %v1048 = vpop.f32.mrf.mxu0
    %1049 = vmatprep.mubr.f32.mxu0 0.0
    %1050 = vmatmul.mubr.f32.gmra.mxu0 %v247
    %v1051 = vpop.f32.mrf.mxu0
    %v1052 = vadd.f32 %v778, %v1051
    %v1053 = vpop.f32.mrf.mxu0
    %1054 = vmatprep.mubr.f32.mxu0 0.0
    %1055 = vmatmul.mubr.f32.gmra.mxu0 %v250
    %v1056 = vpop.f32.mrf.mxu0
    %v1057 = vadd.f32 %v778, %v1056
    %v1058 = vpop.f32.mrf.mxu0
    %1059 = vmatprep.mubr.f32.mxu0 0.0
    %1060 = vmatmul.mubr.f32.gmra.mxu0 %v253
    %v1061 = vpop.f32.mrf.mxu0
    %v1062 = vadd.f32 %v778, %v1061
    %v1063 = vpop.f32.mrf.mxu0
    %1064 = vmatprep.mubr.f32.mxu0 0.0
    %1065 = vmatmul.mubr.f32.gmra.mxu0 %v256
    %v1066 = vpop.f32.mrf.mxu0
    %v1067 = vadd.f32 %v778, %v1066
    %v1068 = vpop.f32.mrf.mxu0
    %1069 = vmatprep.mubr.f32.mxu0 0.0
    %1070 = vmatmul.mubr.f32.gmra.mxu0 %v259
    %v1071 = vpop.f32.mrf.mxu0
    %v1072 = vadd.f32 %v778, %v1071
    %v1073 = vpop.f32.mrf.mxu0
    %1074 = vmatprep.mubr.f32.mxu0 0.0
    %1075 = vmatmul.mubr.f32.gmra.mxu0 %v262
    %v1076 = vpop.f32.mrf.mxu0
    %v1077 = vadd.f32 %v778, %v1076
    %v1078 = vpop.f32.mrf.mxu0
    %1079 = vmatprep.mubr.f32.mxu0 0.0
    %1080 = vmatmul.mubr.f32.gmra.mxu0 %v265
    %v1081 = vpop.f32.mrf.mxu0
    %v1082 = vadd.f32 %v778, %v1081
    %v1083 = vpop.f32.mrf.mxu0
    %1084 = vmatprep.mubr.f32.mxu0 0.0
    %1085 = vmatmul.mubr.f32.gmra.mxu0 %v268
    %v1086 = vpop.f32.mrf.mxu0
    %v1087 = vadd.f32 %v778, %v1086
    %v1088 = vpop.f32.mrf.mxu0
    %1089 = vmatprep.mubr.f32.mxu0 0.0
    %1090 = vmatmul.mubr.f32.gmra.mxu0 %v271
    %v1091 = vpop.f32.mrf.mxu0
    %v1092 = vadd.f32 %v778, %v1091
    %v1093 = vpop.f32.mrf.mxu0
    %1094 = vmatprep.mubr.f32.mxu0 0.0
    %1095 = vmatmul.mubr.f32.gmra.mxu0 %v274
    %v1096 = vpop.f32.mrf.mxu0
    %v1097 = vadd.f32 %v778, %v1096
    %v1098 = vpop.f32.mrf.mxu0
    %1099 = vmatprep.mubr.f32.mxu0 0.0
    %1100 = vmatmul.mubr.f32.gmra.mxu0 %v277
    %v1101 = vpop.f32.mrf.mxu0
    %v1102 = vadd.f32 %v778, %v1101
    %v1103 = vpop.f32.mrf.mxu0
    %1104 = vmatprep.mubr.f32.mxu0 0.0
    %1105 = vmatmul.mubr.f32.gmra.mxu0 %v280
    %v1106 = vpop.f32.mrf.mxu0
    %v1107 = vadd.f32 %v778, %v1106
    %v1108 = vpop.f32.mrf.mxu0
    %1109 = vmatprep.mubr.f32.mxu0 0.0
    %1110 = vmatmul.mubr.f32.gmra.mxu0 %v283
    %v1111 = vpop.f32.mrf.mxu0
    %v1112 = vadd.f32 %v778, %v1111
    %v1113 = vpop.f32.mrf.mxu0
    %1114 = vmatprep.mubr.f32.mxu0 0.0
    %1115 = vmatmul.mubr.f32.gmra.mxu0 %v286
    %v1116 = vpop.f32.mrf.mxu0
    %v1117 = vadd.f32 %v778, %v1116
    %v1118 = vpop.f32.mrf.mxu0
    %1119 = vmatprep.mubr.f32.mxu0 0.0
    %1120 = vmatmul.mubr.f32.gmra.mxu0 %v289
    %v1121 = vpop.f32.mrf.mxu0
    %v1122 = vadd.f32 %v778, %v1121
    %v1123 = vpop.f32.mrf.mxu0
    %1124 = vmatprep.mubr.f32.mxu0 0.0
    %1125 = vmatmul.mubr.f32.gmra.mxu0 %v292
    %v1126 = vpop.f32.mrf.mxu0
    %v1127 = vadd.f32 %v778, %v1126
    %v1128 = vpop.f32.mrf.mxu0
    %1129 = vmatprep.mubr.f32.mxu0 0.0
    %1130 = vmatmul.mubr.f32.gmra.mxu0 %v295
    %v1131 = vpop.f32.mrf.mxu0
    %v1132 = vadd.f32 %v778, %v1131
    %v1133 = vpop.f32.mrf.mxu0
    %1134 = vmatprep.mubr.f32.mxu0 0.0
    %1135 = vmatmul.mubr.f32.gmra.mxu0 %v298
    %v1136 = vpop.f32.mrf.mxu0
    %v1137 = vadd.f32 %v778, %v1136
    %v1138 = vpop.f32.mrf.mxu0
    %1139 = vmatprep.mubr.f32.mxu0 0.0
    %1140 = vmatmul.mubr.f32.gmra.mxu0 %v301
    %v1141 = vpop.f32.mrf.mxu0
    %v1142 = vadd.f32 %v778, %v1141
    %v1143 = vpop.f32.mrf.mxu0
    %1144 = vmatprep.mubr.f32.mxu0 0.0
    %1145 = vmatmul.mubr.f32.gmra.mxu0 %v304
    %v1146 = vpop.f32.mrf.mxu0
    %v1147 = vadd.f32 %v778, %v1146
    %v1148 = vpop.f32.mrf.mxu0
    %1149 = vmatprep.mubr.f32.mxu0 0.0
    %1150 = vmatmul.mubr.f32.gmra.mxu0 %v307
    %v1151 = vpop.f32.mrf.mxu0
    %v1152 = vadd.f32 %v778, %v1151
    %v1153 = vpop.f32.mrf.mxu0
    %1154 = vmatprep.mubr.f32.mxu0 0.0
    %1155 = vmatmul.mubr.f32.gmra.mxu0 %v310
    %v1156 = vpop.f32.mrf.mxu0
    %v1157 = vadd.f32 %v778, %v1156
    %v1158 = vpop.f32.mrf.mxu0
    %1159 = vmatprep.mubr.f32.mxu0 0.0
    %1160 = vmatmul.mubr.f32.gmra.mxu0 %v313
    %v1161 = vpop.f32.mrf.mxu0
    %v1162 = vadd.f32 %v778, %v1161
    %v1163 = vpop.f32.mrf.mxu0
    %1164 = vdwg.mxu0
    %1165 = vst.msk [vmem:[%s8] sm:$0xff] %vm700, %v847
    %1166 = vst.msk [vmem:[%s8 + $0x8] sm:$0xff] %vm700, %v852
    %1167 = vst.msk [vmem:[%s8 + $0x10] sm:$0xff] %vm700, %v857
    %1168 = vst.msk [vmem:[%s8 + $0x18] sm:$0xff] %vm700, %v862
    %1169 = vst.msk [vmem:[%s8 + $0x20] sm:$0xff] %vm700, %v867
    %1170 = vst.msk [vmem:[%s8 + $0x28] sm:$0xff] %vm700, %v872
    %1171 = vst.msk [vmem:[%s8 + $0x30] sm:$0xff] %vm700, %v877
    %1172 = vst.msk [vmem:[%s8 + $0x38] sm:$0xff] %vm700, %v882
    %1173 = vst.msk [vmem:[%s8 + $0x40] sm:$0xff] %vm700, %v887
    %1174 = vst.msk [vmem:[%s8 + $0x48] sm:$0xff] %vm700, %v892
    %1175 = vst.msk [vmem:[%s8 + $0x50] sm:$0xff] %vm700, %v897
    %1176 = vst.msk [vmem:[%s8 + $0x58] sm:$0xff] %vm700, %v902
    %1177 = vst.msk [vmem:[%s8 + $0x60] sm:$0xff] %vm700, %v907
    %1178 = vst.msk [vmem:[%s8 + $0x68] sm:$0xff] %vm700, %v912
    %1179 = vst.msk [vmem:[%s8 + $0x70] sm:$0xff] %vm700, %v917
    %1180 = vst.msk [vmem:[%s8 + $0x78] sm:$0xff] %vm700, %v922
    %1181 = vst.msk [vmem:[%s8 + $0x80] sm:$0xff] %vm700, %v927
    %1182 = vst.msk [vmem:[%s8 + $0x88] sm:$0xff] %vm700, %v932
    %1183 = vst.msk [vmem:[%s8 + $0x90] sm:$0xff] %vm700, %v937
    %1184 = vst.msk [vmem:[%s8 + $0x98] sm:$0xff] %vm700, %v942
    %1185 = vst.msk [vmem:[%s8 + $0xa0] sm:$0xff] %vm700, %v947
    %1186 = vst.msk [vmem:[%s8 + $0xa8] sm:$0xff] %vm700, %v952
    %1187 = vst.msk [vmem:[%s8 + $0xb0] sm:$0xff] %vm700, %v957
    %1188 = vst.msk [vmem:[%s8 + $0xb8] sm:$0xff] %vm700, %v962
    %1189 = vst.msk [vmem:[%s8 + $0xc0] sm:$0xff] %vm700, %v967
    %1190 = vst.msk [vmem:[%s8 + $0xc8] sm:$0xff] %vm700, %v972
    %1191 = vst.msk [vmem:[%s8 + $0xd0] sm:$0xff] %vm700, %v977
    %1192 = vst.msk [vmem:[%s8 + $0xd8] sm:$0xff] %vm700, %v982
    %1193 = vst.msk [vmem:[%s8 + $0xe0] sm:$0xff] %vm700, %v987
    %1194 = vst.msk [vmem:[%s8 + $0xe8] sm:$0xff] %vm700, %v992
    %1195 = vst.msk [vmem:[%s8 + $0xf0] sm:$0xff] %vm700, %v997
    %1196 = vst.msk [vmem:[%s8 + $0xf8] sm:$0xff] %vm700, %v1002
    %1197 = vst.msk [vmem:[%s8 + $0x100] sm:$0xff] %vm700, %v1007
    %1198 = vst.msk [vmem:[%s8 + $0x108] sm:$0xff] %vm700, %v1012
    %1199 = vst.msk [vmem:[%s8 + $0x110] sm:$0xff] %vm700, %v1017
    %1200 = vst.msk [vmem:[%s8 + $0x118] sm:$0xff] %vm700, %v1022
    %1201 = vst.msk [vmem:[%s8 + $0x120] sm:$0xff] %vm700, %v1027
    %1202 = vst.msk [vmem:[%s8 + $0x128] sm:$0xff] %vm700, %v1032
    %1203 = vst.msk [vmem:[%s8 + $0x130] sm:$0xff] %vm700, %v1037
    %1204 = vst.msk [vmem:[%s8 + $0x138] sm:$0xff] %vm700, %v1042
    %1205 = vst.msk [vmem:[%s8 + $0x140] sm:$0xff] %vm700, %v1047
    %1206 = vst.msk [vmem:[%s8 + $0x148] sm:$0xff] %vm700, %v1052
    %1207 = vst.msk [vmem:[%s8 + $0x150] sm:$0xff] %vm700, %v1057
    %1208 = vst.msk [vmem:[%s8 + $0x158] sm:$0xff] %vm700, %v1062
    %1209 = vst.msk [vmem:[%s8 + $0x160] sm:$0xff] %vm700, %v1067
    %1210 = vst.msk [vmem:[%s8 + $0x168] sm:$0xff] %vm700, %v1072
    %1211 = vst.msk [vmem:[%s8 + $0x170] sm:$0xff] %vm700, %v1077
    %1212 = vst.msk [vmem:[%s8 + $0x178] sm:$0xff] %vm700, %v1082
    %1213 = vst.msk [vmem:[%s8 + $0x180] sm:$0xff] %vm700, %v1087
    %1214 = vst.msk [vmem:[%s8 + $0x188] sm:$0xff] %vm700, %v1092
    %1215 = vst.msk [vmem:[%s8 + $0x190] sm:$0xff] %vm700, %v1097
    %1216 = vst.msk [vmem:[%s8 + $0x198] sm:$0xff] %vm700, %v1102
    %1217 = vst.msk [vmem:[%s8 + $0x1a0] sm:$0xff] %vm700, %v1107
    %1218 = vst.msk [vmem:[%s8 + $0x1a8] sm:$0xff] %vm700, %v1112
    %1219 = vst.msk [vmem:[%s8 + $0x1b0] sm:$0xff] %vm700, %v1117
    %1220 = vst.msk [vmem:[%s8 + $0x1b8] sm:$0xff] %vm700, %v1122
    %1221 = vst.msk [vmem:[%s8 + $0x1c0] sm:$0xff] %vm700, %v1127
    %1222 = vst.msk [vmem:[%s8 + $0x1c8] sm:$0xff] %vm700, %v1132
    %1223 = vst.msk [vmem:[%s8 + $0x1d0] sm:$0xff] %vm700, %v1137
    %1224 = vst.msk [vmem:[%s8 + $0x1d8] sm:$0xff] %vm700, %v1142
    %1225 = vst.msk [vmem:[%s8 + $0x1e0] sm:$0xff] %vm700, %v1147
    %1226 = vst.msk [vmem:[%s8 + $0x1e8] sm:$0xff] %vm700, %v1152
    %1227 = vst.msk [vmem:[%s8 + $0x1f0] sm:$0xff] %vm700, %v1157
    %1228 = vst.msk [vmem:[%s8 + $0x1f8] sm:$0xff] %vm700, %v1162
    %v1229 = vld [vmem:[%s5] sm:$0xff]
    %v1230 = vld [vmem:[%s5 + $0x8] sm:$0xff]
    %v1231 = vld [vmem:[%s5 + $0x10] sm:$0xff]
    %v1232 = vld [vmem:[%s5 + $0x18] sm:$0xff]
    %v1233 = vld [vmem:[%s5 + $0x20] sm:$0xff]
    %v1234 = vld [vmem:[%s5 + $0x28] sm:$0xff]
    %v1235 = vld [vmem:[%s5 + $0x30] sm:$0xff]
    %v1236 = vld [vmem:[%s5 + $0x38] sm:$0xff]
    %v1237 = vld [vmem:[%s6] sm:$0x1]
    %v1239 = vlaneseq
    %v1240 = vshrl.u32 %v1239, 7
    %v1241 = vsub.s32 0, %v1240
    %v1242 = vrot.slane %v1237, %v1241
    %1244 = vmatprep.subr.mxu0 0.0
    %1245 = vmatpush1.msra.mxu0 0.0
    %1246 = vmatprep.subr.mxu0 0.0
    %1247 = vmatpush1.msra.mxu0 0.0
    %1248 = vmatprep.subr.mxu0 0.0
    %1249 = vmatpush1.msra.mxu0 0.0
    %1250 = vmatprep.subr.mxu0 0.0
    %1251 = vmatpush1.msra.mxu0 0.0
    %1252 = vmatprep.subr.mxu0 0.0
    %1253 = vmatpush1.msra.mxu0 0.0
    %1254 = vmatprep.subr.mxu0 0.0
    %1255 = vmatpush1.msra.mxu0 0.0
    %1256 = vmatprep.subr.mxu0 0.0
    %1257 = vmatpush1.msra.mxu0 0.0
    %1258 = vmatprep.subr.mxu0 0.0
    %1259 = vmatpush1.msra.mxu0 0.0
    %1260 = vmatprep.subr.mxu0 0.0
    %1261 = vmatpush1.msra.mxu0 %v1236
    %1262 = vmatprep.subr.mxu0 0.0
    %1263 = vmatpush1.msra.mxu0 %v1235
    %1264 = vmatprep.subr.mxu0 0.0
    %1265 = vmatpush1.msra.mxu0 %v1234
    %1266 = vmatprep.subr.mxu0 0.0
    %1267 = vmatpush1.msra.mxu0 %v1233
    %1268 = vmatprep.subr.mxu0 0.0
    %1269 = vmatpush1.msra.mxu0 %v1232
    %1270 = vmatprep.subr.mxu0 0.0
    %1271 = vmatpush1.msra.mxu0 %v1231
    %1272 = vmatprep.subr.mxu0 0.0
    %1273 = vmatpush1.msra.mxu0 %v1230
    %1274 = vmatprep.subr.mxu0 0.0
    %1275 = vmatpush1.msra.mxu0 %v1229
    %1276 = vmatprep.subr.mxu0 0.0
    %1277 = vmatpush2.msra.mxu0 0.0
    %1278 = vmatprep.subr.mxu0 0.0
    %1279 = vmatpush2.msra.mxu0 0.0
    %1280 = vmatprep.subr.mxu0 0.0
    %1281 = vmatpush2.msra.mxu0 0.0
    %1282 = vmatprep.subr.mxu0 0.0
    %1283 = vmatpush2.msra.mxu0 0.0
    %1284 = vmatprep.subr.mxu0 0.0
    %1285 = vmatpush2.msra.mxu0 0.0
    %1286 = vmatprep.subr.mxu0 0.0
    %1287 = vmatpush2.msra.mxu0 0.0
    %1288 = vmatprep.subr.mxu0 0.0
    %1289 = vmatpush2.msra.mxu0 0.0
    %1290 = vmatprep.subr.mxu0 0.0
    %1291 = vmatpush2.msra.mxu0 0.0
    %1292 = vmatprep.subr.mxu0 0.0
    %1293 = vmatpush2.msra.mxu0 0.0
    %1294 = vmatprep.subr.mxu0 0.0
    %1295 = vmatpush2.msra.mxu0 0.0
    %1296 = vmatprep.subr.mxu0 0.0
    %1297 = vmatpush2.msra.mxu0 0.0
    %1298 = vmatprep.subr.mxu0 0.0
    %1299 = vmatpush2.msra.mxu0 0.0
    %1300 = vmatprep.subr.mxu0 0.0
    %1301 = vmatpush2.msra.mxu0 0.0
    %1302 = vmatprep.subr.mxu0 0.0
    %1303 = vmatpush2.msra.mxu0 0.0
    %1304 = vmatprep.subr.mxu0 0.0
    %1305 = vmatpush2.msra.mxu0 0.0
    %1306 = vmatprep.subr.mxu0 0.0
    %1307 = vmatpush2.msra.mxu0 0.0
    %1308 = vmatprep.mubr.f32.mxu0 0.0
    %1309 = vmatmul.mubr.f32.gmra.mxu0 %v124
    %v1310 = vpop.f32.mrf.mxu0
    %v1311 = vadd.f32 %v1242, %v1310
    %v1312 = vpop.f32.mrf.mxu0
    %1313 = vmatprep.mubr.f32.mxu0 0.0
    %1314 = vmatmul.mubr.f32.gmra.mxu0 %v127
    %v1315 = vpop.f32.mrf.mxu0
    %v1316 = vadd.f32 %v1242, %v1315
    %v1317 = vpop.f32.mrf.mxu0
    %1318 = vmatprep.mubr.f32.mxu0 0.0
    %1319 = vmatmul.mubr.f32.gmra.mxu0 %v130
    %v1320 = vpop.f32.mrf.mxu0
    %v1321 = vadd.f32 %v1242, %v1320
    %v1322 = vpop.f32.mrf.mxu0
    %1323 = vmatprep.mubr.f32.mxu0 0.0
    %1324 = vmatmul.mubr.f32.gmra.mxu0 %v133
    %v1325 = vpop.f32.mrf.mxu0
    %v1326 = vadd.f32 %v1242, %v1325
    %v1327 = vpop.f32.mrf.mxu0
    %1328 = vmatprep.mubr.f32.mxu0 0.0
    %1329 = vmatmul.mubr.f32.gmra.mxu0 %v136
    %v1330 = vpop.f32.mrf.mxu0
    %v1331 = vadd.f32 %v1242, %v1330
    %v1332 = vpop.f32.mrf.mxu0
    %1333 = vmatprep.mubr.f32.mxu0 0.0
    %1334 = vmatmul.mubr.f32.gmra.mxu0 %v139
    %v1335 = vpop.f32.mrf.mxu0
    %v1336 = vadd.f32 %v1242, %v1335
    %v1337 = vpop.f32.mrf.mxu0
    %1338 = vmatprep.mubr.f32.mxu0 0.0
    %1339 = vmatmul.mubr.f32.gmra.mxu0 %v142
    %v1340 = vpop.f32.mrf.mxu0
    %v1341 = vadd.f32 %v1242, %v1340
    %v1342 = vpop.f32.mrf.mxu0
    %1343 = vmatprep.mubr.f32.mxu0 0.0
    %1344 = vmatmul.mubr.f32.gmra.mxu0 %v145
    %v1345 = vpop.f32.mrf.mxu0
    %v1346 = vadd.f32 %v1242, %v1345
    %v1347 = vpop.f32.mrf.mxu0
    %1348 = vmatprep.mubr.f32.mxu0 0.0
    %1349 = vmatmul.mubr.f32.gmra.mxu0 %v148
    %v1350 = vpop.f32.mrf.mxu0
    %v1351 = vadd.f32 %v1242, %v1350
    %v1352 = vpop.f32.mrf.mxu0
    %1353 = vmatprep.mubr.f32.mxu0 0.0
    %1354 = vmatmul.mubr.f32.gmra.mxu0 %v151
    %v1355 = vpop.f32.mrf.mxu0
    %v1356 = vadd.f32 %v1242, %v1355
    %v1357 = vpop.f32.mrf.mxu0
    %1358 = vmatprep.mubr.f32.mxu0 0.0
    %1359 = vmatmul.mubr.f32.gmra.mxu0 %v154
    %v1360 = vpop.f32.mrf.mxu0
    %v1361 = vadd.f32 %v1242, %v1360
    %v1362 = vpop.f32.mrf.mxu0
    %1363 = vmatprep.mubr.f32.mxu0 0.0
    %1364 = vmatmul.mubr.f32.gmra.mxu0 %v157
    %v1365 = vpop.f32.mrf.mxu0
    %v1366 = vadd.f32 %v1242, %v1365
    %v1367 = vpop.f32.mrf.mxu0
    %1368 = vmatprep.mubr.f32.mxu0 0.0
    %1369 = vmatmul.mubr.f32.gmra.mxu0 %v160
    %v1370 = vpop.f32.mrf.mxu0
    %v1371 = vadd.f32 %v1242, %v1370
    %v1372 = vpop.f32.mrf.mxu0
    %1373 = vmatprep.mubr.f32.mxu0 0.0
    %1374 = vmatmul.mubr.f32.gmra.mxu0 %v163
    %v1375 = vpop.f32.mrf.mxu0
    %v1376 = vadd.f32 %v1242, %v1375
    %v1377 = vpop.f32.mrf.mxu0
    %1378 = vmatprep.mubr.f32.mxu0 0.0
    %1379 = vmatmul.mubr.f32.gmra.mxu0 %v166
    %v1380 = vpop.f32.mrf.mxu0
    %v1381 = vadd.f32 %v1242, %v1380
    %v1382 = vpop.f32.mrf.mxu0
    %1383 = vmatprep.mubr.f32.mxu0 0.0
    %1384 = vmatmul.mubr.f32.gmra.mxu0 %v169
    %v1385 = vpop.f32.mrf.mxu0
    %v1386 = vadd.f32 %v1242, %v1385
    %v1387 = vpop.f32.mrf.mxu0
    %1388 = vmatprep.mubr.f32.mxu0 0.0
    %1389 = vmatmul.mubr.f32.gmra.mxu0 %v172
    %v1390 = vpop.f32.mrf.mxu0
    %v1391 = vadd.f32 %v1242, %v1390
    %v1392 = vpop.f32.mrf.mxu0
    %1393 = vmatprep.mubr.f32.mxu0 0.0
    %1394 = vmatmul.mubr.f32.gmra.mxu0 %v175
    %v1395 = vpop.f32.mrf.mxu0
    %v1396 = vadd.f32 %v1242, %v1395
    %v1397 = vpop.f32.mrf.mxu0
    %1398 = vmatprep.mubr.f32.mxu0 0.0
    %1399 = vmatmul.mubr.f32.gmra.mxu0 %v178
    %v1400 = vpop.f32.mrf.mxu0
    %v1401 = vadd.f32 %v1242, %v1400
    %v1402 = vpop.f32.mrf.mxu0
    %1403 = vmatprep.mubr.f32.mxu0 0.0
    %1404 = vmatmul.mubr.f32.gmra.mxu0 %v181
    %v1405 = vpop.f32.mrf.mxu0
    %v1406 = vadd.f32 %v1242, %v1405
    %v1407 = vpop.f32.mrf.mxu0
    %1408 = vmatprep.mubr.f32.mxu0 0.0
    %1409 = vmatmul.mubr.f32.gmra.mxu0 %v184
    %v1410 = vpop.f32.mrf.mxu0
    %v1411 = vadd.f32 %v1242, %v1410
    %v1412 = vpop.f32.mrf.mxu0
    %1413 = vmatprep.mubr.f32.mxu0 0.0
    %1414 = vmatmul.mubr.f32.gmra.mxu0 %v187
    %v1415 = vpop.f32.mrf.mxu0
    %v1416 = vadd.f32 %v1242, %v1415
    %v1417 = vpop.f32.mrf.mxu0
    %1418 = vmatprep.mubr.f32.mxu0 0.0
    %1419 = vmatmul.mubr.f32.gmra.mxu0 %v190
    %v1420 = vpop.f32.mrf.mxu0
    %v1421 = vadd.f32 %v1242, %v1420
    %v1422 = vpop.f32.mrf.mxu0
    %1423 = vmatprep.mubr.f32.mxu0 0.0
    %1424 = vmatmul.mubr.f32.gmra.mxu0 %v193
    %v1425 = vpop.f32.mrf.mxu0
    %v1426 = vadd.f32 %v1242, %v1425
    %v1427 = vpop.f32.mrf.mxu0
    %1428 = vmatprep.mubr.f32.mxu0 0.0
    %1429 = vmatmul.mubr.f32.gmra.mxu0 %v196
    %v1430 = vpop.f32.mrf.mxu0
    %v1431 = vadd.f32 %v1242, %v1430
    %v1432 = vpop.f32.mrf.mxu0
    %1433 = vmatprep.mubr.f32.mxu0 0.0
    %1434 = vmatmul.mubr.f32.gmra.mxu0 %v199
    %v1435 = vpop.f32.mrf.mxu0
    %v1436 = vadd.f32 %v1242, %v1435
    %v1437 = vpop.f32.mrf.mxu0
    %1438 = vmatprep.mubr.f32.mxu0 0.0
    %1439 = vmatmul.mubr.f32.gmra.mxu0 %v202
    %v1440 = vpop.f32.mrf.mxu0
    %v1441 = vadd.f32 %v1242, %v1440
    %v1442 = vpop.f32.mrf.mxu0
    %1443 = vmatprep.mubr.f32.mxu0 0.0
    %1444 = vmatmul.mubr.f32.gmra.mxu0 %v205
    %v1445 = vpop.f32.mrf.mxu0
    %v1446 = vadd.f32 %v1242, %v1445
    %v1447 = vpop.f32.mrf.mxu0
    %1448 = vmatprep.mubr.f32.mxu0 0.0
    %1449 = vmatmul.mubr.f32.gmra.mxu0 %v208
    %v1450 = vpop.f32.mrf.mxu0
    %v1451 = vadd.f32 %v1242, %v1450
    %v1452 = vpop.f32.mrf.mxu0
    %1453 = vmatprep.mubr.f32.mxu0 0.0
    %1454 = vmatmul.mubr.f32.gmra.mxu0 %v211
    %v1455 = vpop.f32.mrf.mxu0
    %v1456 = vadd.f32 %v1242, %v1455
    %v1457 = vpop.f32.mrf.mxu0
    %1458 = vmatprep.mubr.f32.mxu0 0.0
    %1459 = vmatmul.mubr.f32.gmra.mxu0 %v214
    %v1460 = vpop.f32.mrf.mxu0
    %v1461 = vadd.f32 %v1242, %v1460
    %v1462 = vpop.f32.mrf.mxu0
    %1463 = vmatprep.mubr.f32.mxu0 0.0
    %1464 = vmatmul.mubr.f32.gmra.mxu0 %v217
    %v1465 = vpop.f32.mrf.mxu0
    %v1466 = vadd.f32 %v1242, %v1465
    %v1467 = vpop.f32.mrf.mxu0
    %1468 = vmatprep.mubr.f32.mxu0 0.0
    %1469 = vmatmul.mubr.f32.gmra.mxu0 %v220
    %v1470 = vpop.f32.mrf.mxu0
    %v1471 = vadd.f32 %v1242, %v1470
    %v1472 = vpop.f32.mrf.mxu0
    %1473 = vmatprep.mubr.f32.mxu0 0.0
    %1474 = vmatmul.mubr.f32.gmra.mxu0 %v223
    %v1475 = vpop.f32.mrf.mxu0
    %v1476 = vadd.f32 %v1242, %v1475
    %v1477 = vpop.f32.mrf.mxu0
    %1478 = vmatprep.mubr.f32.mxu0 0.0
    %1479 = vmatmul.mubr.f32.gmra.mxu0 %v226
    %v1480 = vpop.f32.mrf.mxu0
    %v1481 = vadd.f32 %v1242, %v1480
    %v1482 = vpop.f32.mrf.mxu0
    %1483 = vmatprep.mubr.f32.mxu0 0.0
    %1484 = vmatmul.mubr.f32.gmra.mxu0 %v229
    %v1485 = vpop.f32.mrf.mxu0
    %v1486 = vadd.f32 %v1242, %v1485
    %v1487 = vpop.f32.mrf.mxu0
    %1488 = vmatprep.mubr.f32.mxu0 0.0
    %1489 = vmatmul.mubr.f32.gmra.mxu0 %v232
    %v1490 = vpop.f32.mrf.mxu0
    %v1491 = vadd.f32 %v1242, %v1490
    %v1492 = vpop.f32.mrf.mxu0
    %1493 = vmatprep.mubr.f32.mxu0 0.0
    %1494 = vmatmul.mubr.f32.gmra.mxu0 %v235
    %v1495 = vpop.f32.mrf.mxu0
    %v1496 = vadd.f32 %v1242, %v1495
    %v1497 = vpop.f32.mrf.mxu0
    %1498 = vmatprep.mubr.f32.mxu0 0.0
    %1499 = vmatmul.mubr.f32.gmra.mxu0 %v238
    %v1500 = vpop.f32.mrf.mxu0
    %v1501 = vadd.f32 %v1242, %v1500
    %v1502 = vpop.f32.mrf.mxu0
    %1503 = vmatprep.mubr.f32.mxu0 0.0
    %1504 = vmatmul.mubr.f32.gmra.mxu0 %v241
    %v1505 = vpop.f32.mrf.mxu0
    %v1506 = vadd.f32 %v1242, %v1505
    %v1507 = vpop.f32.mrf.mxu0
    %1508 = vmatprep.mubr.f32.mxu0 0.0
    %1509 = vmatmul.mubr.f32.gmra.mxu0 %v244
    %v1510 = vpop.f32.mrf.mxu0
    %v1511 = vadd.f32 %v1242, %v1510
    %v1512 = vpop.f32.mrf.mxu0
    %1513 = vmatprep.mubr.f32.mxu0 0.0
    %1514 = vmatmul.mubr.f32.gmra.mxu0 %v247
    %v1515 = vpop.f32.mrf.mxu0
    %v1516 = vadd.f32 %v1242, %v1515
    %v1517 = vpop.f32.mrf.mxu0
    %1518 = vmatprep.mubr.f32.mxu0 0.0
    %1519 = vmatmul.mubr.f32.gmra.mxu0 %v250
    %v1520 = vpop.f32.mrf.mxu0
    %v1521 = vadd.f32 %v1242, %v1520
    %v1522 = vpop.f32.mrf.mxu0
    %1523 = vmatprep.mubr.f32.mxu0 0.0
    %1524 = vmatmul.mubr.f32.gmra.mxu0 %v253
    %v1525 = vpop.f32.mrf.mxu0
    %v1526 = vadd.f32 %v1242, %v1525
    %v1527 = vpop.f32.mrf.mxu0
    %1528 = vmatprep.mubr.f32.mxu0 0.0
    %1529 = vmatmul.mubr.f32.gmra.mxu0 %v256
    %v1530 = vpop.f32.mrf.mxu0
    %v1531 = vadd.f32 %v1242, %v1530
    %v1532 = vpop.f32.mrf.mxu0
    %1533 = vmatprep.mubr.f32.mxu0 0.0
    %1534 = vmatmul.mubr.f32.gmra.mxu0 %v259
    %v1535 = vpop.f32.mrf.mxu0
    %v1536 = vadd.f32 %v1242, %v1535
    %v1537 = vpop.f32.mrf.mxu0
    %1538 = vmatprep.mubr.f32.mxu0 0.0
    %1539 = vmatmul.mubr.f32.gmra.mxu0 %v262
    %v1540 = vpop.f32.mrf.mxu0
    %v1541 = vadd.f32 %v1242, %v1540
    %v1542 = vpop.f32.mrf.mxu0
    %1543 = vmatprep.mubr.f32.mxu0 0.0
    %1544 = vmatmul.mubr.f32.gmra.mxu0 %v265
    %v1545 = vpop.f32.mrf.mxu0
    %v1546 = vadd.f32 %v1242, %v1545
    %v1547 = vpop.f32.mrf.mxu0
    %1548 = vmatprep.mubr.f32.mxu0 0.0
    %1549 = vmatmul.mubr.f32.gmra.mxu0 %v268
    %v1550 = vpop.f32.mrf.mxu0
    %v1551 = vadd.f32 %v1242, %v1550
    %v1552 = vpop.f32.mrf.mxu0
    %1553 = vmatprep.mubr.f32.mxu0 0.0
    %1554 = vmatmul.mubr.f32.gmra.mxu0 %v271
    %v1555 = vpop.f32.mrf.mxu0
    %v1556 = vadd.f32 %v1242, %v1555
    %v1557 = vpop.f32.mrf.mxu0
    %1558 = vmatprep.mubr.f32.mxu0 0.0
    %1559 = vmatmul.mubr.f32.gmra.mxu0 %v274
    %v1560 = vpop.f32.mrf.mxu0
    %v1561 = vadd.f32 %v1242, %v1560
    %v1562 = vpop.f32.mrf.mxu0
    %1563 = vmatprep.mubr.f32.mxu0 0.0
    %1564 = vmatmul.mubr.f32.gmra.mxu0 %v277
    %v1565 = vpop.f32.mrf.mxu0
    %v1566 = vadd.f32 %v1242, %v1565
    %v1567 = vpop.f32.mrf.mxu0
    %1568 = vmatprep.mubr.f32.mxu0 0.0
    %1569 = vmatmul.mubr.f32.gmra.mxu0 %v280
    %v1570 = vpop.f32.mrf.mxu0
    %v1571 = vadd.f32 %v1242, %v1570
    %v1572 = vpop.f32.mrf.mxu0
    %1573 = vmatprep.mubr.f32.mxu0 0.0
    %1574 = vmatmul.mubr.f32.gmra.mxu0 %v283
    %v1575 = vpop.f32.mrf.mxu0
    %v1576 = vadd.f32 %v1242, %v1575
    %v1577 = vpop.f32.mrf.mxu0
    %1578 = vmatprep.mubr.f32.mxu0 0.0
    %1579 = vmatmul.mubr.f32.gmra.mxu0 %v286
    %v1580 = vpop.f32.mrf.mxu0
    %v1581 = vadd.f32 %v1242, %v1580
    %v1582 = vpop.f32.mrf.mxu0
    %1583 = vmatprep.mubr.f32.mxu0 0.0
    %1584 = vmatmul.mubr.f32.gmra.mxu0 %v289
    %v1585 = vpop.f32.mrf.mxu0
    %v1586 = vadd.f32 %v1242, %v1585
    %v1587 = vpop.f32.mrf.mxu0
    %1588 = vmatprep.mubr.f32.mxu0 0.0
    %1589 = vmatmul.mubr.f32.gmra.mxu0 %v292
    %v1590 = vpop.f32.mrf.mxu0
    %v1591 = vadd.f32 %v1242, %v1590
    %v1592 = vpop.f32.mrf.mxu0
    %1593 = vmatprep.mubr.f32.mxu0 0.0
    %1594 = vmatmul.mubr.f32.gmra.mxu0 %v295
    %v1595 = vpop.f32.mrf.mxu0
    %v1596 = vadd.f32 %v1242, %v1595
    %v1597 = vpop.f32.mrf.mxu0
    %1598 = vmatprep.mubr.f32.mxu0 0.0
    %1599 = vmatmul.mubr.f32.gmra.mxu0 %v298
    %v1600 = vpop.f32.mrf.mxu0
    %v1601 = vadd.f32 %v1242, %v1600
    %v1602 = vpop.f32.mrf.mxu0
    %1603 = vmatprep.mubr.f32.mxu0 0.0
    %1604 = vmatmul.mubr.f32.gmra.mxu0 %v301
    %v1605 = vpop.f32.mrf.mxu0
    %v1606 = vadd.f32 %v1242, %v1605
    %v1607 = vpop.f32.mrf.mxu0
    %1608 = vmatprep.mubr.f32.mxu0 0.0
    %1609 = vmatmul.mubr.f32.gmra.mxu0 %v304
    %v1610 = vpop.f32.mrf.mxu0
    %v1611 = vadd.f32 %v1242, %v1610
    %v1612 = vpop.f32.mrf.mxu0
    %1613 = vmatprep.mubr.f32.mxu0 0.0
    %1614 = vmatmul.mubr.f32.gmra.mxu0 %v307
    %v1615 = vpop.f32.mrf.mxu0
    %v1616 = vadd.f32 %v1242, %v1615
    %v1617 = vpop.f32.mrf.mxu0
    %1618 = vmatprep.mubr.f32.mxu0 0.0
    %1619 = vmatmul.mubr.f32.gmra.mxu0 %v310
    %v1620 = vpop.f32.mrf.mxu0
    %v1621 = vadd.f32 %v1242, %v1620
    %v1622 = vpop.f32.mrf.mxu0
    %1623 = vmatprep.mubr.f32.mxu0 0.0
    %1624 = vmatmul.mubr.f32.gmra.mxu0 %v313
    %v1625 = vpop.f32.mrf.mxu0
    %v1626 = vadd.f32 %v1242, %v1625
    %v1627 = vpop.f32.mrf.mxu0
    %1628 = vdwg.mxu0
    %1629 = vst.msk [vmem:[%s9] sm:$0xff] %vm122, %v1311
    %1630 = vst.msk [vmem:[%s9 + $0x8] sm:$0xff] %vm122, %v1316
    %1631 = vst.msk [vmem:[%s9 + $0x10] sm:$0xff] %vm122, %v1321
    %1632 = vst.msk [vmem:[%s9 + $0x18] sm:$0xff] %vm122, %v1326
    %1633 = vst.msk [vmem:[%s9 + $0x20] sm:$0xff] %vm122, %v1331
    %1634 = vst.msk [vmem:[%s9 + $0x28] sm:$0xff] %vm122, %v1336
    %1635 = vst.msk [vmem:[%s9 + $0x30] sm:$0xff] %vm122, %v1341
    %1636 = vst.msk [vmem:[%s9 + $0x38] sm:$0xff] %vm122, %v1346
    %1637 = vst.msk [vmem:[%s9 + $0x40] sm:$0xff] %vm122, %v1351
    %1638 = vst.msk [vmem:[%s9 + $0x48] sm:$0xff] %vm122, %v1356
    %1639 = vst.msk [vmem:[%s9 + $0x50] sm:$0xff] %vm122, %v1361
    %1640 = vst.msk [vmem:[%s9 + $0x58] sm:$0xff] %vm122, %v1366
    %1641 = vst.msk [vmem:[%s9 + $0x60] sm:$0xff] %vm122, %v1371
    %1642 = vst.msk [vmem:[%s9 + $0x68] sm:$0xff] %vm122, %v1376
    %1643 = vst.msk [vmem:[%s9 + $0x70] sm:$0xff] %vm122, %v1381
    %1644 = vst.msk [vmem:[%s9 + $0x78] sm:$0xff] %vm122, %v1386
    %1645 = vst.msk [vmem:[%s9 + $0x80] sm:$0xff] %vm122, %v1391
    %1646 = vst.msk [vmem:[%s9 + $0x88] sm:$0xff] %vm122, %v1396
    %1647 = vst.msk [vmem:[%s9 + $0x90] sm:$0xff] %vm122, %v1401
    %1648 = vst.msk [vmem:[%s9 + $0x98] sm:$0xff] %vm122, %v1406
    %1649 = vst.msk [vmem:[%s9 + $0xa0] sm:$0xff] %vm122, %v1411
    %1650 = vst.msk [vmem:[%s9 + $0xa8] sm:$0xff] %vm122, %v1416
    %1651 = vst.msk [vmem:[%s9 + $0xb0] sm:$0xff] %vm122, %v1421
    %1652 = vst.msk [vmem:[%s9 + $0xb8] sm:$0xff] %vm122, %v1426
    %1653 = vst.msk [vmem:[%s9 + $0xc0] sm:$0xff] %vm122, %v1431
    %1654 = vst.msk [vmem:[%s9 + $0xc8] sm:$0xff] %vm122, %v1436
    %1655 = vst.msk [vmem:[%s9 + $0xd0] sm:$0xff] %vm122, %v1441
    %1656 = vst.msk [vmem:[%s9 + $0xd8] sm:$0xff] %vm122, %v1446
    %1657 = vst.msk [vmem:[%s9 + $0xe0] sm:$0xff] %vm122, %v1451
    %1658 = vst.msk [vmem:[%s9 + $0xe8] sm:$0xff] %vm122, %v1456
    %1659 = vst.msk [vmem:[%s9 + $0xf0] sm:$0xff] %vm122, %v1461
    %1660 = vst.msk [vmem:[%s9 + $0xf8] sm:$0xff] %vm122, %v1466
    %1661 = vst.msk [vmem:[%s9 + $0x100] sm:$0xff] %vm122, %v1471
    %1662 = vst.msk [vmem:[%s9 + $0x108] sm:$0xff] %vm122, %v1476
    %1663 = vst.msk [vmem:[%s9 + $0x110] sm:$0xff] %vm122, %v1481
    %1664 = vst.msk [vmem:[%s9 + $0x118] sm:$0xff] %vm122, %v1486
    %1665 = vst.msk [vmem:[%s9 + $0x120] sm:$0xff] %vm122, %v1491
    %1666 = vst.msk [vmem:[%s9 + $0x128] sm:$0xff] %vm122, %v1496
    %1667 = vst.msk [vmem:[%s9 + $0x130] sm:$0xff] %vm122, %v1501
    %1668 = vst.msk [vmem:[%s9 + $0x138] sm:$0xff] %vm122, %v1506
    %1669 = vst.msk [vmem:[%s9 + $0x140] sm:$0xff] %vm122, %v1511
    %1670 = vst.msk [vmem:[%s9 + $0x148] sm:$0xff] %vm122, %v1516
    %1671 = vst.msk [vmem:[%s9 + $0x150] sm:$0xff] %vm122, %v1521
    %1672 = vst.msk [vmem:[%s9 + $0x158] sm:$0xff] %vm122, %v1526
    %1673 = vst.msk [vmem:[%s9 + $0x160] sm:$0xff] %vm122, %v1531
    %1674 = vst.msk [vmem:[%s9 + $0x168] sm:$0xff] %vm122, %v1536
    %1675 = vst.msk [vmem:[%s9 + $0x170] sm:$0xff] %vm122, %v1541
    %1676 = vst.msk [vmem:[%s9 + $0x178] sm:$0xff] %vm122, %v1546
    %1677 = vst.msk [vmem:[%s9 + $0x180] sm:$0xff] %vm122, %v1551
    %1678 = vst.msk [vmem:[%s9 + $0x188] sm:$0xff] %vm122, %v1556
    %1679 = vst.msk [vmem:[%s9 + $0x190] sm:$0xff] %vm122, %v1561
    %1680 = vst.msk [vmem:[%s9 + $0x198] sm:$0xff] %vm122, %v1566
    %1681 = vst.msk [vmem:[%s9 + $0x1a0] sm:$0xff] %vm122, %v1571
    %1682 = vst.msk [vmem:[%s9 + $0x1a8] sm:$0xff] %vm122, %v1576
    %1683 = vst.msk [vmem:[%s9 + $0x1b0] sm:$0xff] %vm122, %v1581
    %1684 = vst.msk [vmem:[%s9 + $0x1b8] sm:$0xff] %vm122, %v1586
    %1685 = vst.msk [vmem:[%s9 + $0x1c0] sm:$0xff] %vm122, %v1591
    %1686 = vst.msk [vmem:[%s9 + $0x1c8] sm:$0xff] %vm122, %v1596
    %1687 = vst.msk [vmem:[%s9 + $0x1d0] sm:$0xff] %vm122, %v1601
    %1688 = vst.msk [vmem:[%s9 + $0x1d8] sm:$0xff] %vm122, %v1606
    %1689 = vst.msk [vmem:[%s9 + $0x1e0] sm:$0xff] %vm122, %v1611
    %1690 = vst.msk [vmem:[%s9 + $0x1e8] sm:$0xff] %vm122, %v1616
    %1691 = vst.msk [vmem:[%s9 + $0x1f0] sm:$0xff] %vm122, %v1621
    %1692 = vst.msk [vmem:[%s9 + $0x1f8] sm:$0xff] %vm122, %v1626
    // Predicated region
    $region34: #{self_nys_attn_forward.3} parent=1 // pred_check
      _
    $region35: #{self_nys_attn_forward.3} parent=1 // pred_check_branch
      %1694 = sbr.rel (0) target = $region37
    $region36: #{self_nys_attn_forward.3} parent=1 // pred_region
      _
    $region37: #{self_nys_attn_forward.3} parent=1 // pred_fallthru
      _
    // Predicated region
    $region38: #{self_nys_attn_forward.3} parent=1 // pred_check
      _
    $region39: #{self_nys_attn_forward.3} parent=1 // pred_check_branch
      %1696 = sbr.rel (0) target = $region41
    $region40: #{self_nys_attn_forward.3} parent=1 // pred_region
      _
    $region41: #{self_nys_attn_forward.3} parent=1 // pred_fallthru
      _
    // Predicated region
    $region42: #{self_nys_attn_forward.3} parent=1 // pred_check
      _
    $region43: #{self_nys_attn_forward.3} parent=1 // pred_check_branch
      %1698 = sbr.rel (0) target = $region45
    $region44: #{self_nys_attn_forward.3} parent=1 // pred_region
      _
    $region45: #{self_nys_attn_forward.3} parent=1 // pred_fallthru
      _
    // Predicated region
    $region46: #{self_nys_attn_forward.3} parent=1 // pred_check
      _
    $region47: #{self_nys_attn_forward.3} parent=1 // pred_check_branch
      %1700 = sbr.rel (0) target = $region49
    $region48: #{self_nys_attn_forward.3} parent=1 // pred_region
      _
    $region49: #{self_nys_attn_forward.3} parent=1 // pred_fallthru
      _
    // Predicated region
    $region50: #{self_nys_attn_forward.3} parent=1 // pred_check
      _
    $region51: #{self_nys_attn_forward.3} parent=1 // pred_check_branch
      %1702 = sbr.rel (0) target = $region53
    $region52: #{self_nys_attn_forward.3} parent=1 // pred_region
      _
    $region53: #{self_nys_attn_forward.3} parent=1 // pred_fallthru
      _
    // Predicated region
    $region54: #{self_nys_attn_forward.3} parent=1 // pred_check
      _
    $region55: #{self_nys_attn_forward.3} parent=1 // pred_check_branch
      %1704 = sbr.rel (0) target = $region57
    $region56: #{self_nys_attn_forward.3} parent=1 // pred_region
      _
    $region57: #{self_nys_attn_forward.3} parent=1 // pred_fallthru
      _
    %1705 = vsyncpa [#allocation3], 1

// kernel: self_nys_attn_forward.4
$region0: #{self_nys_attn_forward.4}
  #allocation0 [shape = 'u32[]', space=smem, size = 0x4, offset = 0x4, fixed_abs, tag = 'smem constant byte address 0x4 - core index']
  #allocation1 [shape = 'u32[144,128]{1,0:T(1,128)}', space=vmem, size = 0x12000, scoped, tag = 'internal scratch']
  %s0 = inlined_call_operand.vmem [shape: f32[2,256,8], index: 0, kind: input, shape index: {}]
  %s1 = inlined_call_operand.vmem [shape: f32[2,256,8], index: 1, kind: input, shape index: {}]
  %s2 = inlined_call_operand.vmem [shape: f32[32,256], index: 2, kind: input, shape index: {}]
  %s3 = inlined_call_operand.vmem [shape: f32[2,256,64], index: 3, kind: input, shape index: {}]
  %s4 = inlined_call_operand.vmem [shape: f32[2,32,8], index: 4, kind: output, shape index: {0}]
  %s5 = inlined_call_operand.vmem [shape: f32[2,32,256], index: 5, kind: output, shape index: {1}]
  %s6 = inlined_call_operand.vmem [shape: f32[2,32,64], index: 6, kind: output, shape index: {2}]
  %7 = xla_tuple %s4, %s5, %s6
  %s8 = sld [smem:[#allocation0]]
  $region65: #{self_nys_attn_forward.4} parent=0
    _
  %s10 = ssub.s32 1, %s8
  %s11 = scalar_select 0, %s10, %s8
  loop: start=0, step=1, limit=4
  $region2: #{self_nys_attn_forward.4} parent=0 // loop_pre_header
    _
  $region3: #{self_nys_attn_forward.4} parent=0 // loop_header
    %s13 = sphi 0, %s17
    %p14 = scmp.ge.s32.totalorder %s13, 4
    %s23 = sphi 0, %s25
    %s26 = sphi 0, %s23
    %s27 = sphi 0, %s26
    %s43 = sphi 0, %s27
    %s49 = sphi 0, %s51
    %s52 = sphi 0, %s49
    %s53 = sphi 0, %s52
    %s69 = sphi 0, %s53
    %s73 = sphi 0, %s73
    %s75 = sphi 0, %s73
    %s76 = sphi 0, %s75
    %s90 = sphi 0, %s76
    %s96 = sphi 0, %s98
    %s99 = sphi 0, %s96
    %s100 = sphi 0, %s99
    %s116 = sphi 0, %s100
    %s122 = sphi 0, %s124
    %s125 = sphi 0, %s122
    %s126 = sphi 0, %s125
    %s142 = sphi 0, %s126
    %s148 = sphi 0, %s150
    %s151 = sphi 0, %s148
    %s152 = sphi 0, %s151
    %s168 = sphi 0, %s152
    %s174 = sphi 0, %s176
    %s177 = sphi 0, %s174
    %s178 = sphi 0, %s177
    %s194 = sphi 0, %s178
  $region4: #{self_nys_attn_forward.4} parent=0 // loop_header_branch
    %16 = sbr.rel (%p14) target = $region8
  $region5: #{self_nys_attn_forward.4} parent=0 // loop_body
    %s18 = ssub.s32 %s13, 1
    %s19 = ssub.s32 %s13, 2
    %s20 = sadd.s32 %s13, 1
    %s21 = ssub.s32 %s13, %s20
    %p22 = scmp.eq.s32.totalorder %s21, 0
    %s24 = sadd.s32 %s23, 1
    %s25 = scalar_select %p22, %s23, %s24
    %p28 = pneg %p22
    %p29 = scmp.eq.s32.totalorder %s13, 1
    %p30 = por %p28, %p29
    %p31 = scmp.ne.s32.totalorder %s23, %s26
    %p32 = scmp.eq.s32.totalorder %s13, 0
    %p33 = por %p31, %p32
    %p34 = scmp.ne.s32.totalorder %s23, %s26
    %p35 = scmp.eq.s32.totalorder %s18, 1
    %p36 = por %p34, %p35
    %p37 = scmp.ne.s32.totalorder %s26, %s27
    %p38 = scmp.eq.s32.totalorder %s18, 0
    %p39 = por %p37, %p38
    %p40 = scmp.ne.s32.totalorder %s26, %s27
    %p41 = scmp.eq.s32.totalorder %s19, 1
    %p42 = por %p40, %p41
    %p44 = scmp.ne.s32.totalorder %s27, %s43
    %p45 = scmp.eq.s32.totalorder %s19, 0
    %p46 = por %p44, %p45
    %s47 = ssub.s32 %s13, %s20
    %p48 = scmp.eq.s32.totalorder %s47, 0
    %s50 = sadd.s32 %s49, 1
    %s51 = scalar_select %p48, %s49, %s50
    %p54 = pneg %p48
    %p55 = scmp.eq.s32.totalorder %s13, 1
    %p56 = por %p54, %p55
    %p57 = scmp.ne.s32.totalorder %s49, %s52
    %p58 = scmp.eq.s32.totalorder %s13, 0
    %p59 = por %p57, %p58
    %p60 = scmp.ne.s32.totalorder %s49, %s52
    %p61 = scmp.eq.s32.totalorder %s18, 1
    %p62 = por %p60, %p61
    %p63 = scmp.ne.s32.totalorder %s52, %s53
    %p64 = scmp.eq.s32.totalorder %s18, 0
    %p65 = por %p63, %p64
    %p66 = scmp.ne.s32.totalorder %s52, %s53
    %p67 = scmp.eq.s32.totalorder %s19, 1
    %p68 = por %p66, %p67
    %p70 = scmp.ne.s32.totalorder %s53, %s69
    %p71 = scmp.eq.s32.totalorder %s19, 0
    %p72 = por %p70, %p71
    %s74 = sadd.s32 %s73, 1
    %p77 = scmp.eq.s32.totalorder %s13, 1
    %p78 = scmp.ne.s32.totalorder %s73, %s75
    %p79 = scmp.eq.s32.totalorder %s13, 0
    %p80 = por %p78, %p79
    %p81 = scmp.ne.s32.totalorder %s73, %s75
    %p82 = scmp.eq.s32.totalorder %s18, 1
    %p83 = por %p81, %p82
    %p84 = scmp.ne.s32.totalorder %s75, %s76
    %p85 = scmp.eq.s32.totalorder %s18, 0
    %p86 = por %p84, %p85
    %p87 = scmp.ne.s32.totalorder %s75, %s76
    %p88 = scmp.eq.s32.totalorder %s19, 1
    %p89 = por %p87, %p88
    %p91 = scmp.ne.s32.totalorder %s76, %s90
    %p92 = scmp.eq.s32.totalorder %s19, 0
    %p93 = por %p91, %p92
    %s94 = ssub.s32 %s13, %s20
    %p95 = scmp.eq.s32.totalorder %s94, 0
    %s97 = sadd.s32 %s96, 1
    %s98 = scalar_select %p95, %s96, %s97
    %p101 = pneg %p95
    %p102 = scmp.eq.s32.totalorder %s13, 1
    %p103 = por %p101, %p102
    %p104 = scmp.ne.s32.totalorder %s96, %s99
    %p105 = scmp.eq.s32.totalorder %s13, 0
    %p106 = por %p104, %p105
    %p107 = scmp.ne.s32.totalorder %s96, %s99
    %p108 = scmp.eq.s32.totalorder %s18, 1
    %p109 = por %p107, %p108
    %p110 = scmp.ne.s32.totalorder %s99, %s100
    %p111 = scmp.eq.s32.totalorder %s18, 0
    %p112 = por %p110, %p111
    %p113 = scmp.ne.s32.totalorder %s99, %s100
    %p114 = scmp.eq.s32.totalorder %s19, 1
    %p115 = por %p113, %p114
    %p117 = scmp.ne.s32.totalorder %s100, %s116
    %p118 = scmp.eq.s32.totalorder %s19, 0
    %p119 = por %p117, %p118
    %s120 = ssub.s32 %s13, %s20
    %p121 = scmp.eq.s32.totalorder %s120, 0
    %s123 = sadd.s32 %s122, 1
    %s124 = scalar_select %p121, %s122, %s123
    %p127 = pneg %p121
    %p128 = scmp.eq.s32.totalorder %s13, 1
    %p129 = por %p127, %p128
    %p130 = scmp.ne.s32.totalorder %s122, %s125
    %p131 = scmp.eq.s32.totalorder %s13, 0
    %p132 = por %p130, %p131
    %p133 = scmp.ne.s32.totalorder %s122, %s125
    %p134 = scmp.eq.s32.totalorder %s18, 1
    %p135 = por %p133, %p134
    %p136 = scmp.ne.s32.totalorder %s125, %s126
    %p137 = scmp.eq.s32.totalorder %s18, 0
    %p138 = por %p136, %p137
    %p139 = scmp.ne.s32.totalorder %s125, %s126
    %p140 = scmp.eq.s32.totalorder %s19, 1
    %p141 = por %p139, %p140
    %p143 = scmp.ne.s32.totalorder %s126, %s142
    %p144 = scmp.eq.s32.totalorder %s19, 0
    %p145 = por %p143, %p144
    %s146 = ssub.s32 %s13, %s20
    %p147 = scmp.eq.s32.totalorder %s146, 0
    %s149 = sadd.s32 %s148, 1
    %s150 = scalar_select %p147, %s148, %s149
    %p153 = pneg %p147
    %p154 = scmp.eq.s32.totalorder %s13, 1
    %p155 = por %p153, %p154
    %p156 = scmp.ne.s32.totalorder %s148, %s151
    %p157 = scmp.eq.s32.totalorder %s13, 0
    %p158 = por %p156, %p157
    %p159 = scmp.ne.s32.totalorder %s148, %s151
    %p160 = scmp.eq.s32.totalorder %s18, 1
    %p161 = por %p159, %p160
    %p162 = scmp.ne.s32.totalorder %s151, %s152
    %p163 = scmp.eq.s32.totalorder %s18, 0
    %p164 = por %p162, %p163
    %p165 = scmp.ne.s32.totalorder %s151, %s152
    %p166 = scmp.eq.s32.totalorder %s19, 1
    %p167 = por %p165, %p166
    %p169 = scmp.ne.s32.totalorder %s152, %s168
    %p170 = scmp.eq.s32.totalorder %s19, 0
    %p171 = por %p169, %p170
    %s172 = ssub.s32 %s13, %s20
    %p173 = scmp.eq.s32.totalorder %s172, 0
    %s175 = sadd.s32 %s174, 1
    %s176 = scalar_select %p173, %s174, %s175
    %p179 = pneg %p173
    %p180 = scmp.eq.s32.totalorder %s13, 1
    %p181 = por %p179, %p180
    %p182 = scmp.ne.s32.totalorder %s174, %s177
    %p183 = scmp.eq.s32.totalorder %s13, 0
    %p184 = por %p182, %p183
    %p185 = scmp.ne.s32.totalorder %s174, %s177
    %p186 = scmp.eq.s32.totalorder %s18, 1
    %p187 = por %p185, %p186
    %p188 = scmp.ne.s32.totalorder %s177, %s178
    %p189 = scmp.eq.s32.totalorder %s18, 0
    %p190 = por %p188, %p189
    %p191 = scmp.ne.s32.totalorder %s177, %s178
    %p192 = scmp.eq.s32.totalorder %s19, 1
    %p193 = por %p191, %p192
    %p195 = scmp.ne.s32.totalorder %s178, %s194
    %p196 = scmp.eq.s32.totalorder %s19, 0
    %p197 = por %p195, %p196
    %p198 = scmp.le.s32.totalorder 1, %s13
    %p199 = scmp.lt.s32.totalorder %s13, 3
    %p200 = pnand %p198, %p199
    %p201 = pneg %p200
    // Predicated region
    $region9: #{self_nys_attn_forward.4} parent=5 // pred_check
      _
    $region10: #{self_nys_attn_forward.4} parent=5 // pred_check_branch
      %203 = sbr.rel (%p200) target = $region12
    $region11: #{self_nys_attn_forward.4} parent=5 // pred_region
      %s204 = ssub.s32 %s13, 1
      // Predicated region
      $region13: #{self_nys_attn_forward.4} parent=11 // pred_check
        %p205 = pneg %p86
      $region14: #{self_nys_attn_forward.4} parent=11 // pred_check_branch
        %207 = sbr.rel (%p205) target = $region16
      $region15: #{self_nys_attn_forward.4} parent=11 // pred_region
        _
      $region16: #{self_nys_attn_forward.4} parent=11 // pred_fallthru
        _
    $region12: #{self_nys_attn_forward.4} parent=5 // pred_fallthru
      _
    %p208 = scmp.lt.s32.totalorder %s13, 2
    // Predicated region
    $region17: #{self_nys_attn_forward.4} parent=5 // pred_check
      %p209 = pneg %p208
    $region18: #{self_nys_attn_forward.4} parent=5 // pred_check_branch
      %211 = sbr.rel (%p209) target = $region20
    $region19: #{self_nys_attn_forward.4} parent=5 // pred_region
      // Predicated region
      $region21: #{self_nys_attn_forward.4} parent=19 // pred_check
        %p212 = pneg %p33
      $region22: #{self_nys_attn_forward.4} parent=19 // pred_check_branch
        %214 = sbr.rel (%p212) target = $region24
      $region23: #{self_nys_attn_forward.4} parent=19 // pred_region
        %p215 = scmp.lt.s32.totalorder %s13, 1
        %s216 = scalar_select %p215, %s13, 1
        %s217 = smul.addr %s216, 32
        %s218 = smul.addr %s217, 8
        %s219 = scalar_lea.vmem %s0, %s218
      $region24: #{self_nys_attn_forward.4} parent=19 // pred_fallthru
        _
      // Predicated region
      $region25: #{self_nys_attn_forward.4} parent=19 // pred_check
        %p220 = pneg %p59
      $region26: #{self_nys_attn_forward.4} parent=19 // pred_check_branch
        %222 = sbr.rel (%p220) target = $region28
      $region27: #{self_nys_attn_forward.4} parent=19 // pred_region
        %p223 = scmp.lt.s32.totalorder %s13, 1
        %s224 = scalar_select %p223, %s13, 1
        %s225 = smul.addr %s224, 32
        %s226 = smul.addr %s225, 8
        %s227 = scalar_lea.vmem %s1, %s226
      $region28: #{self_nys_attn_forward.4} parent=19 // pred_fallthru
        _
      // Predicated region
      $region29: #{self_nys_attn_forward.4} parent=19 // pred_check
        %p228 = pneg %p106
      $region30: #{self_nys_attn_forward.4} parent=19 // pred_check_branch
        %230 = sbr.rel (%p228) target = $region32
      $region31: #{self_nys_attn_forward.4} parent=19 // pred_region
        %p231 = scmp.lt.s32.totalorder %s13, 1
        %s232 = scalar_select %p231, %s13, 1
        %s233 = smul.addr %s232, 32
        %s234 = smul.addr %s233, 8
        %s235 = scalar_lea.vmem %s3, %s234
      $region32: #{self_nys_attn_forward.4} parent=19 // pred_fallthru
        _
    $region20: #{self_nys_attn_forward.4} parent=5 // pred_fallthru
      _
    %p236 = scmp.le.s32.totalorder 1, %s13
    %p237 = scmp.lt.s32.totalorder %s13, 3
    %p238 = pnand %p236, %p237
    %p239 = pneg %p238
    // Predicated region
    $region33: #{self_nys_attn_forward.4} parent=5 // pred_check
      _
    $region34: #{self_nys_attn_forward.4} parent=5 // pred_check_branch
      %241 = sbr.rel (%p238) target = $region36
    $region35: #{self_nys_attn_forward.4} parent=5 // pred_region
      %s242 = ssub.s32 %s13, 1
      %p243 = scmp.lt.s32.totalorder %s18, 1
      %s244 = scalar_select %p243, %s18, 1
      %s245 = smul.addr %s244, 32
      %s246 = smul.addr %s245, 8
      %s247 = scalar_lea.vmem %s0, %s246
      %p248 = pneg %p39
      %p249 = pneg %p36
      %p250 = scmp.lt.s32.totalorder %s18, 1
      %s251 = scalar_select %p250, %s18, 1
      %s252 = smul.addr %s251, 32
      %s253 = smul.addr %s252, 8
      %s254 = scalar_lea.vmem %s1, %s253
      %p255 = pneg %p65
      %p256 = pneg %p62
      %p257 = pneg %p86
      %p258 = pneg %p83
      %p259 = scmp.lt.s32.totalorder %s18, 1
      %s260 = scalar_select %p259, %s18, 1
      %s261 = smul.addr %s260, 32
      %s262 = smul.addr %s261, 8
      %s263 = scalar_lea.vmem %s3, %s262
      %p264 = pneg %p112
      %p265 = pneg %p109
      %p266 = pneg %p138
      %p267 = pneg %p135
      %p268 = scmp.lt.s32.totalorder %s18, 1
      %s269 = scalar_select %p268, %s18, 1
      %s270 = smul.addr %s269, 4
      %s271 = smul.addr %s270, 8
      %s272 = scalar_lea.vmem %s4, %s271
      %p273 = pneg %p164
      %p274 = pneg %p161
      %p275 = scmp.lt.s32.totalorder %s18, 1
      %s276 = scalar_select %p275, %s18, 1
      %s277 = smul.addr %s276, 8
      %s278 = smul.addr %s277, 8
      %s279 = scalar_lea.vmem %s5, %s278
      %p280 = pneg %p190
      %p281 = pneg %p187
      %p282 = scmp.lt.s32.totalorder %s18, 1
      %s283 = scalar_select %p282, %s18, 1
      %s284 = smul.addr %s283, 4
      %s285 = smul.addr %s284, 8
      %s286 = scalar_lea.vmem %s6, %s285
      %p287 = scmp.lt.s32.totalorder %s18, 1
      %s288 = scalar_select %p287, %s18, 1
      %s289 = smul.addr %s288, 32
      %s290 = smul.addr %s289, 8
      %s291 = scalar_lea.vmem %s0, %s290
      %p292 = scmp.lt.s32.totalorder %s18, 1
      %s293 = scalar_select %p292, %s18, 1
      %s294 = smul.addr %s293, 32
      %s295 = smul.addr %s294, 8
      %s296 = scalar_lea.vmem %s1, %s295
      %p297 = scmp.lt.s32.totalorder %s18, 1
      %s298 = scalar_select %p297, %s18, 1
      %s299 = smul.addr %s298, 32
      %s300 = smul.addr %s299, 8
      %s301 = scalar_lea.vmem %s3, %s300
      %p302 = scmp.lt.s32.totalorder %s18, 1
      %s303 = scalar_select %p302, %s18, 1
      %s304 = smul.addr %s303, 4
      %s305 = smul.addr %s304, 8
      %s306 = scalar_lea.vmem %s4, %s305
      %p307 = scmp.lt.s32.totalorder %s18, 1
      %s308 = scalar_select %p307, %s18, 1
      %s309 = smul.addr %s308, 8
      %s310 = smul.addr %s309, 8
      %s311 = scalar_lea.vmem %s5, %s310
      %p312 = scmp.lt.s32.totalorder %s18, 1
      %s313 = scalar_select %p312, %s18, 1
      %s314 = smul.addr %s313, 4
      %s315 = smul.addr %s314, 8
      %s316 = scalar_lea.vmem %s6, %s315
      %v317 = vld [vmem:[%s291] sm:$0xff]
      %v318 = vld [vmem:[%s291 + $0x8] sm:$0xff]
      %v319 = vld [vmem:[%s291 + $0x10] sm:$0xff]
      %v320 = vld [vmem:[%s291 + $0x18] sm:$0xff]
      %v321 = vld [vmem:[%s291 + $0x20] sm:$0xff]
      %v322 = vld [vmem:[%s291 + $0x28] sm:$0xff]
      %v323 = vld [vmem:[%s291 + $0x30] sm:$0xff]
      %v324 = vld [vmem:[%s291 + $0x38] sm:$0xff]
      %v325 = vld [vmem:[%s291 + $0x40] sm:$0xff]
      %v326 = vld [vmem:[%s291 + $0x48] sm:$0xff]
      %v327 = vld [vmem:[%s291 + $0x50] sm:$0xff]
      %v328 = vld [vmem:[%s291 + $0x58] sm:$0xff]
      %v329 = vld [vmem:[%s291 + $0x60] sm:$0xff]
      %v330 = vld [vmem:[%s291 + $0x68] sm:$0xff]
      %v331 = vld [vmem:[%s291 + $0x70] sm:$0xff]
      %v332 = vld [vmem:[%s291 + $0x78] sm:$0xff]
      %v333 = vld [vmem:[%s291 + $0x80] sm:$0xff]
      %v334 = vld [vmem:[%s291 + $0x88] sm:$0xff]
      %v335 = vld [vmem:[%s291 + $0x90] sm:$0xff]
      %v336 = vld [vmem:[%s291 + $0x98] sm:$0xff]
      %v337 = vld [vmem:[%s291 + $0xa0] sm:$0xff]
      %v338 = vld [vmem:[%s291 + $0xa8] sm:$0xff]
      %v339 = vld [vmem:[%s291 + $0xb0] sm:$0xff]
      %v340 = vld [vmem:[%s291 + $0xb8] sm:$0xff]
      %v341 = vld [vmem:[%s291 + $0xc0] sm:$0xff]
      %v342 = vld [vmem:[%s291 + $0xc8] sm:$0xff]
      %v343 = vld [vmem:[%s291 + $0xd0] sm:$0xff]
      %v344 = vld [vmem:[%s291 + $0xd8] sm:$0xff]
      %v345 = vld [vmem:[%s291 + $0xe0] sm:$0xff]
      %v346 = vld [vmem:[%s291 + $0xe8] sm:$0xff]
      %v347 = vld [vmem:[%s291 + $0xf0] sm:$0xff]
      %v348 = vld [vmem:[%s291 + $0xf8] sm:$0xff]
      %v349 = vld [vmem:[%s296] sm:$0xff]
      %v350 = vld [vmem:[%s296 + $0x8] sm:$0xff]
      %v351 = vld [vmem:[%s296 + $0x10] sm:$0xff]
      %v352 = vld [vmem:[%s296 + $0x18] sm:$0xff]
      %v353 = vld [vmem:[%s296 + $0x20] sm:$0xff]
      %v354 = vld [vmem:[%s296 + $0x28] sm:$0xff]
      %v355 = vld [vmem:[%s296 + $0x30] sm:$0xff]
      %v356 = vld [vmem:[%s296 + $0x38] sm:$0xff]
      %v357 = vld [vmem:[%s296 + $0x40] sm:$0xff]
      %v358 = vld [vmem:[%s296 + $0x48] sm:$0xff]
      %v359 = vld [vmem:[%s296 + $0x50] sm:$0xff]
      %v360 = vld [vmem:[%s296 + $0x58] sm:$0xff]
      %v361 = vld [vmem:[%s296 + $0x60] sm:$0xff]
      %v362 = vld [vmem:[%s296 + $0x68] sm:$0xff]
      %v363 = vld [vmem:[%s296 + $0x70] sm:$0xff]
      %v364 = vld [vmem:[%s296 + $0x78] sm:$0xff]
      %v365 = vld [vmem:[%s296 + $0x80] sm:$0xff]
      %v366 = vld [vmem:[%s296 + $0x88] sm:$0xff]
      %v367 = vld [vmem:[%s296 + $0x90] sm:$0xff]
      %v368 = vld [vmem:[%s296 + $0x98] sm:$0xff]
      %v369 = vld [vmem:[%s296 + $0xa0] sm:$0xff]
      %v370 = vld [vmem:[%s296 + $0xa8] sm:$0xff]
      %v371 = vld [vmem:[%s296 + $0xb0] sm:$0xff]
      %v372 = vld [vmem:[%s296 + $0xb8] sm:$0xff]
      %v373 = vld [vmem:[%s296 + $0xc0] sm:$0xff]
      %v374 = vld [vmem:[%s296 + $0xc8] sm:$0xff]
      %v375 = vld [vmem:[%s296 + $0xd0] sm:$0xff]
      %v376 = vld [vmem:[%s296 + $0xd8] sm:$0xff]
      %v377 = vld [vmem:[%s296 + $0xe0] sm:$0xff]
      %v378 = vld [vmem:[%s296 + $0xe8] sm:$0xff]
      %v379 = vld [vmem:[%s296 + $0xf0] sm:$0xff]
      %v380 = vld [vmem:[%s296 + $0xf8] sm:$0xff]
      %v381 = vld [vmem:[%s2] sm:$0xff]
      %v382 = vld [vmem:[%s2 + $0x8] sm:$0xff]
      %v383 = vld [vmem:[%s2 + $0x10] sm:$0xff]
      %v384 = vld [vmem:[%s2 + $0x18] sm:$0xff]
      %v385 = vld [vmem:[%s2 + $0x20] sm:$0xff]
      %v386 = vld [vmem:[%s2 + $0x28] sm:$0xff]
      %v387 = vld [vmem:[%s2 + $0x30] sm:$0xff]
      %v388 = vld [vmem:[%s2 + $0x38] sm:$0xff]
      %389 = vmatprep.subr.mxu0 0.0
      %390 = vmatpush1.msra.mxu0 %v332
      %391 = vmatprep.subr.mxu0 0.0
      %392 = vmatpush1.msra.mxu0 %v331
      %393 = vmatprep.subr.mxu0 0.0
      %394 = vmatpush1.msra.mxu0 %v330
      %395 = vmatprep.subr.mxu0 0.0
      %396 = vmatpush1.msra.mxu0 %v329
      %397 = vmatprep.subr.mxu0 0.0
      %398 = vmatpush1.msra.mxu0 %v328
      %399 = vmatprep.subr.mxu0 0.0
      %400 = vmatpush1.msra.mxu0 %v327
      %401 = vmatprep.subr.mxu0 0.0
      %402 = vmatpush1.msra.mxu0 %v326
      %403 = vmatprep.subr.mxu0 0.0
      %404 = vmatpush1.msra.mxu0 %v325
      %405 = vmatprep.subr.mxu0 0.0
      %406 = vmatpush1.msra.mxu0 %v324
      %407 = vmatprep.subr.mxu0 0.0
      %408 = vmatpush1.msra.mxu0 %v323
      %409 = vmatprep.subr.mxu0 0.0
      %410 = vmatpush1.msra.mxu0 %v322
      %411 = vmatprep.subr.mxu0 0.0
      %412 = vmatpush1.msra.mxu0 %v321
      %413 = vmatprep.subr.mxu0 0.0
      %414 = vmatpush1.msra.mxu0 %v320
      %415 = vmatprep.subr.mxu0 0.0
      %416 = vmatpush1.msra.mxu0 %v319
      %417 = vmatprep.subr.mxu0 0.0
      %418 = vmatpush1.msra.mxu0 %v318
      %419 = vmatprep.subr.mxu0 0.0
      %420 = vmatpush1.msra.mxu0 %v317
      %421 = vmatprep.subr.mxu0 0.0
      %422 = vmatpush2.msra.mxu0 %v348
      %423 = vmatprep.subr.mxu0 0.0
      %424 = vmatpush2.msra.mxu0 %v347
      %425 = vmatprep.subr.mxu0 0.0
      %426 = vmatpush2.msra.mxu0 %v346
      %427 = vmatprep.subr.mxu0 0.0
      %428 = vmatpush2.msra.mxu0 %v345
      %429 = vmatprep.subr.mxu0 0.0
      %430 = vmatpush2.msra.mxu0 %v344
      %431 = vmatprep.subr.mxu0 0.0
      %432 = vmatpush2.msra.mxu0 %v343
      %433 = vmatprep.subr.mxu0 0.0
      %434 = vmatpush2.msra.mxu0 %v342
      %435 = vmatprep.subr.mxu0 0.0
      %436 = vmatpush2.msra.mxu0 %v341
      %437 = vmatprep.subr.mxu0 0.0
      %438 = vmatpush2.msra.mxu0 %v340
      %439 = vmatprep.subr.mxu0 0.0
      %440 = vmatpush2.msra.mxu0 %v339
      %441 = vmatprep.subr.mxu0 0.0
      %442 = vmatpush2.msra.mxu0 %v338
      %443 = vmatprep.subr.mxu0 0.0
      %444 = vmatpush2.msra.mxu0 %v337
      %445 = vmatprep.subr.mxu0 0.0
      %446 = vmatpush2.msra.mxu0 %v336
      %447 = vmatprep.subr.mxu0 0.0
      %448 = vmatpush2.msra.mxu0 %v335
      %449 = vmatprep.subr.mxu0 0.0
      %450 = vmatpush2.msra.mxu0 %v334
      %451 = vmatprep.subr.mxu0 0.0
      %452 = vmatpush2.msra.mxu0 %v333
      %453 = vmatprep.mubr.f32.mxu0 %v382
      %454 = vmatmul.mubr.f32.gmra.mxu0 %v381
      %v455 = vpop.f32.mrf.mxu0
      %v456 = vadd.f32 0.0, %v455
      %v457 = vpop.f32.mrf.mxu0
      %458 = vmatprep.mubr.f32.mxu0 %v384
      %459 = vmatmul.mubr.f32.gmra.mxu0 %v383
      %v460 = vpop.f32.mrf.mxu0
      %v461 = vadd.f32 0.0, %v460
      %v462 = vpop.f32.mrf.mxu0
      %463 = vmatprep.mubr.f32.mxu0 %v386
      %464 = vmatmul.mubr.f32.gmra.mxu0 %v385
      %v465 = vpop.f32.mrf.mxu0
      %v466 = vadd.f32 0.0, %v465
      %v467 = vpop.f32.mrf.mxu0
      %468 = vmatprep.mubr.f32.mxu0 %v388
      %469 = vmatmul.mubr.f32.gmra.mxu0 %v387
      %v470 = vpop.f32.mrf.mxu0
      %v471 = vadd.f32 0.0, %v470
      %v472 = vpop.f32.mrf.mxu0
      %473 = vdwg.mxu0
      %474 = vmatprep.subr.mxu0 0.0
      %475 = vmatpush1.msra.mxu0 %v364
      %476 = vmatprep.subr.mxu0 0.0
      %477 = vmatpush1.msra.mxu0 %v363
      %478 = vmatprep.subr.mxu0 0.0
      %479 = vmatpush1.msra.mxu0 %v362
      %480 = vmatprep.subr.mxu0 0.0
      %481 = vmatpush1.msra.mxu0 %v361
      %482 = vmatprep.subr.mxu0 0.0
      %483 = vmatpush1.msra.mxu0 %v360
      %484 = vmatprep.subr.mxu0 0.0
      %485 = vmatpush1.msra.mxu0 %v359
      %486 = vmatprep.subr.mxu0 0.0
      %487 = vmatpush1.msra.mxu0 %v358
      %488 = vmatprep.subr.mxu0 0.0
      %489 = vmatpush1.msra.mxu0 %v357
      %490 = vmatprep.subr.mxu0 0.0
      %491 = vmatpush1.msra.mxu0 %v356
      %492 = vmatprep.subr.mxu0 0.0
      %493 = vmatpush1.msra.mxu0 %v355
      %494 = vmatprep.subr.mxu0 0.0
      %495 = vmatpush1.msra.mxu0 %v354
      %496 = vmatprep.subr.mxu0 0.0
      %497 = vmatpush1.msra.mxu0 %v353
      %498 = vmatprep.subr.mxu0 0.0
      %499 = vmatpush1.msra.mxu0 %v352
      %500 = vmatprep.subr.mxu0 0.0
      %501 = vmatpush1.msra.mxu0 %v351
      %502 = vmatprep.subr.mxu0 0.0
      %503 = vmatpush1.msra.mxu0 %v350
      %504 = vmatprep.subr.mxu0 0.0
      %505 = vmatpush1.msra.mxu0 %v349
      %506 = vmatprep.subr.mxu0 0.0
      %507 = vmatpush2.msra.mxu0 %v380
      %508 = vmatprep.subr.mxu0 0.0
      %509 = vmatpush2.msra.mxu0 %v379
      %510 = vmatprep.subr.mxu0 0.0
      %511 = vmatpush2.msra.mxu0 %v378
      %512 = vmatprep.subr.mxu0 0.0
      %513 = vmatpush2.msra.mxu0 %v377
      %514 = vmatprep.subr.mxu0 0.0
      %515 = vmatpush2.msra.mxu0 %v376
      %516 = vmatprep.subr.mxu0 0.0
      %517 = vmatpush2.msra.mxu0 %v375
      %518 = vmatprep.subr.mxu0 0.0
      %519 = vmatpush2.msra.mxu0 %v374
      %520 = vmatprep.subr.mxu0 0.0
      %521 = vmatpush2.msra.mxu0 %v373
      %522 = vmatprep.subr.mxu0 0.0
      %523 = vmatpush2.msra.mxu0 %v372
      %524 = vmatprep.subr.mxu0 0.0
      %525 = vmatpush2.msra.mxu0 %v371
      %526 = vmatprep.subr.mxu0 0.0
      %527 = vmatpush2.msra.mxu0 %v370
      %528 = vmatprep.subr.mxu0 0.0
      %529 = vmatpush2.msra.mxu0 %v369
      %530 = vmatprep.subr.mxu0 0.0
      %531 = vmatpush2.msra.mxu0 %v368
      %532 = vmatprep.subr.mxu0 0.0
      %533 = vmatpush2.msra.mxu0 %v367
      %534 = vmatprep.subr.mxu0 0.0
      %535 = vmatpush2.msra.mxu0 %v366
      %536 = vmatprep.subr.mxu0 0.0
      %537 = vmatpush2.msra.mxu0 %v365
      %538 = vmatprep.mubr.f32.mxu0 %v382
      %539 = vmatmul.mubr.f32.gmra.mxu0 %v381
      %v540 = vpop.f32.mrf.mxu0
      %v541 = vadd.f32 0.0, %v540
      %v542 = vpop.f32.mrf.mxu0
      %543 = vmatprep.mubr.f32.mxu0 %v384
      %544 = vmatmul.mubr.f32.gmra.mxu0 %v383
      %v545 = vpop.f32.mrf.mxu0
      %v546 = vadd.f32 0.0, %v545
      %v547 = vpop.f32.mrf.mxu0
      %548 = vmatprep.mubr.f32.mxu0 %v386
      %549 = vmatmul.mubr.f32.gmra.mxu0 %v385
      %v550 = vpop.f32.mrf.mxu0
      %v551 = vadd.f32 0.0, %v550
      %v552 = vpop.f32.mrf.mxu0
      %553 = vmatprep.mubr.f32.mxu0 %v388
      %554 = vmatmul.mubr.f32.gmra.mxu0 %v387
      %v555 = vpop.f32.mrf.mxu0
      %v556 = vadd.f32 0.0, %v555
      %v557 = vpop.f32.mrf.mxu0
      %558 = vdwg.mxu0
      %vm559 = vcmask 64512
      %v561 = vsel %vm559, %v456, 0
      %v564 = vsel %vm559, %v461, 0
      %v567 = vsel %vm559, %v466, 0
      %v570 = vsel %vm559, %v471, 0
      %v573 = vsel %vm559, %v541, 0
      %v576 = vsel %vm559, %v546, 0
      %v579 = vsel %vm559, %v551, 0
      %v582 = vsel %vm559, %v556, 0
      %584 = vmatprep.subr.mxu0 0.0
      %585 = vmatpush1.xpose.msra.mxu0 0.0
      %586 = vmatprep.subr.mxu0 0.0
      %587 = vmatpush1.xpose.msra.mxu0 0.0
      %588 = vmatprep.subr.mxu0 0.0
      %589 = vmatpush1.xpose.msra.mxu0 0.0
      %590 = vmatprep.subr.mxu0 0.0
      %591 = vmatpush1.xpose.msra.mxu0 0.0
      %592 = vmatprep.subr.mxu0 0.0
      %593 = vmatpush1.xpose.msra.mxu0 0.0
      %594 = vmatprep.subr.mxu0 0.0
      %595 = vmatpush1.xpose.msra.mxu0 0.0
      %596 = vmatprep.subr.mxu0 0.0
      %597 = vmatpush1.xpose.msra.mxu0 0.0
      %598 = vmatprep.subr.mxu0 0.0
      %599 = vmatpush1.xpose.msra.mxu0 0.0
      %600 = vmatprep.subr.mxu0 0.0
      %601 = vmatpush1.xpose.msra.mxu0 0.0
      %602 = vmatprep.subr.mxu0 0.0
      %603 = vmatpush1.xpose.msra.mxu0 0.0
      %604 = vmatprep.subr.mxu0 0.0
      %605 = vmatpush1.xpose.msra.mxu0 0.0
      %606 = vmatprep.subr.mxu0 0.0
      %607 = vmatpush1.xpose.msra.mxu0 0.0
      %608 = vmatprep.subr.mxu0 0.0
      %609 = vmatpush1.xpose.msra.mxu0 %v582
      %610 = vmatprep.subr.mxu0 0.0
      %611 = vmatpush1.xpose.msra.mxu0 %v579
      %612 = vmatprep.subr.mxu0 0.0
      %613 = vmatpush1.xpose.msra.mxu0 %v576
      %614 = vmatprep.subr.mxu0 0.0
      %615 = vmatpush1.xpose.msra.mxu0 %v573
      %616 = vmatprep.subr.mxu0 0.0
      %617 = vmatpush2.xpose.msra.mxu0 0.0
      %618 = vmatprep.subr.mxu0 0.0
      %619 = vmatpush2.xpose.msra.mxu0 0.0
      %620 = vmatprep.subr.mxu0 0.0
      %621 = vmatpush2.xpose.msra.mxu0 0.0
      %622 = vmatprep.subr.mxu0 0.0
      %623 = vmatpush2.xpose.msra.mxu0 0.0
      %624 = vmatprep.subr.mxu0 0.0
      %625 = vmatpush2.xpose.msra.mxu0 0.0
      %626 = vmatprep.subr.mxu0 0.0
      %627 = vmatpush2.xpose.msra.mxu0 0.0
      %628 = vmatprep.subr.mxu0 0.0
      %629 = vmatpush2.xpose.msra.mxu0 0.0
      %630 = vmatprep.subr.mxu0 0.0
      %631 = vmatpush2.xpose.msra.mxu0 0.0
      %632 = vmatprep.subr.mxu0 0.0
      %633 = vmatpush2.xpose.msra.mxu0 0.0
      %634 = vmatprep.subr.mxu0 0.0
      %635 = vmatpush2.xpose.msra.mxu0 0.0
      %636 = vmatprep.subr.mxu0 0.0
      %637 = vmatpush2.xpose.msra.mxu0 0.0
      %638 = vmatprep.subr.mxu0 0.0
      %639 = vmatpush2.xpose.msra.mxu0 0.0
      %640 = vmatprep.subr.mxu0 0.0
      %641 = vmatpush2.xpose.msra.mxu0 0.0
      %642 = vmatprep.subr.mxu0 0.0
      %643 = vmatpush2.xpose.msra.mxu0 0.0
      %644 = vmatprep.subr.mxu0 0.0
      %645 = vmatpush2.xpose.msra.mxu0 0.0
      %646 = vmatprep.subr.mxu0 0.0
      %647 = vmatpush2.xpose.msra.mxu0 0.0
      %648 = vmatprep.mubr.f32.mxu0 0.0
      %649 = vmatmul.mubr.f32.gmra.mxu0 %v561
      %v650 = vpop.f32.mrf.mxu0
      %v651 = vadd.f32 0.0, %v650
      %v652 = vpop.f32.mrf.mxu0
      %653 = vmatprep.mubr.f32.mxu0 0.0
      %654 = vmatmul.mubr.f32.gmra.mxu0 %v564
      %v655 = vpop.f32.mrf.mxu0
      %v656 = vadd.f32 0.0, %v655
      %v657 = vpop.f32.mrf.mxu0
      %658 = vmatprep.mubr.f32.mxu0 0.0
      %659 = vmatmul.mubr.f32.gmra.mxu0 %v567
      %v660 = vpop.f32.mrf.mxu0
      %v661 = vadd.f32 0.0, %v660
      %v662 = vpop.f32.mrf.mxu0
      %663 = vmatprep.mubr.f32.mxu0 0.0
      %664 = vmatmul.mubr.f32.gmra.mxu0 %v570
      %v665 = vpop.f32.mrf.mxu0
      %v666 = vadd.f32 0.0, %v665
      %v667 = vpop.f32.mrf.mxu0
      %668 = vdwg.mxu0
      %v669 = vmul.f32 %v651, 0.35355338
      %v670 = vmul.f32 %v656, 0.35355338
      %v671 = vmul.f32 %v661, 0.35355338
      %v672 = vmul.f32 %v666, 0.35355338
      %vm673 = vcmask 261120
      %v674 = vsel %vm673, %v669, -inf
      %675 = vmax.xlane.f32.xlu0 %v674
      %v676 = vpop.xlane.xlu0 %675
      %v677 = vsel %vm673, %v670, -inf
      %678 = vmax.xlane.f32.xlu0 %v677
      %v679 = vpop.xlane.xlu0 %678
      %v680 = vsel %vm673, %v671, -inf
      %681 = vmax.xlane.f32.xlu0 %v680
      %v682 = vpop.xlane.xlu0 %681
      %v683 = vsel %vm673, %v672, -inf
      %684 = vmax.xlane.f32.xlu0 %v683
      %v685 = vpop.xlane.xlu0 %684
      %v686 = vsub.f32 %v669, %v676
      %v687 = vsub.f32 %v670, %v679
      %v688 = vsub.f32 %v671, %v682
      %v689 = vsub.f32 %v672, %v685
      %v690 = vmul.f32 %v686, 1.442695
      %v691 = vpow.pop %v690
      %v692 = vmul.f32 %v687, 1.442695
      %v693 = vpow.pop %v692
      %v694 = vmul.f32 %v688, 1.442695
      %v695 = vpow.pop %v694
      %v696 = vmul.f32 %v689, 1.442695
      %v697 = vpow.pop %v696
      %v698 = vsel %vm673, %v691, 0.0
      %699 = vadd.xlane.f32.xlu0 %v698
      %v700 = vpop.xlane.xlu0 %699
      %v701 = vsel %vm673, %v693, 0.0
      %702 = vadd.xlane.f32.xlu0 %v701
      %v703 = vpop.xlane.xlu0 %702
      %v704 = vsel %vm673, %v695, 0.0
      %705 = vadd.xlane.f32.xlu0 %v704
      %v706 = vpop.xlane.xlu0 %705
      %v707 = vsel %vm673, %v697, 0.0
      %708 = vadd.xlane.f32.xlu0 %v707
      %v709 = vpop.xlane.xlu0 %708
      %v710 = vrcp.pop %v700
      %v711 = vmul.f32 %v691, %v710
      %v712 = vrcp.pop %v703
      %v713 = vmul.f32 %v693, %v712
      %v714 = vrcp.pop %v706
      %v715 = vmul.f32 %v695, %v714
      %v716 = vrcp.pop %v709
      %v717 = vmul.f32 %v697, %v716
      %v719 = vsel %vm559, %v349, 0
      %v722 = vsel %vm559, %v350, 0
      %v725 = vsel %vm559, %v351, 0
      %v728 = vsel %vm559, %v352, 0
      %v731 = vsel %vm559, %v353, 0
      %v734 = vsel %vm559, %v354, 0
      %v737 = vsel %vm559, %v355, 0
      %v740 = vsel %vm559, %v356, 0
      %v743 = vsel %vm559, %v357, 0
      %v746 = vsel %vm559, %v358, 0
      %v749 = vsel %vm559, %v359, 0
      %v752 = vsel %vm559, %v360, 0
      %v755 = vsel %vm559, %v361, 0
      %v758 = vsel %vm559, %v362, 0
      %v761 = vsel %vm559, %v363, 0
      %v764 = vsel %vm559, %v364, 0
      %v767 = vsel %vm559, %v365, 0
      %v770 = vsel %vm559, %v366, 0
      %v773 = vsel %vm559, %v367, 0
      %v776 = vsel %vm559, %v368, 0
      %v779 = vsel %vm559, %v369, 0
      %v782 = vsel %vm559, %v370, 0
      %v785 = vsel %vm559, %v371, 0
      %v788 = vsel %vm559, %v372, 0
      %v791 = vsel %vm559, %v373, 0
      %v794 = vsel %vm559, %v374, 0
      %v797 = vsel %vm559, %v375, 0
      %v800 = vsel %vm559, %v376, 0
      %v803 = vsel %vm559, %v377, 0
      %v806 = vsel %vm559, %v378, 0
      %v809 = vsel %vm559, %v379, 0
      %v812 = vsel %vm559, %v380, 0
      %814 = vmatprep.subr.mxu0 0.0
      %815 = vmatpush1.xpose.msra.mxu0 %v764
      %816 = vmatprep.subr.mxu0 0.0
      %817 = vmatpush1.xpose.msra.mxu0 %v761
      %818 = vmatprep.subr.mxu0 0.0
      %819 = vmatpush1.xpose.msra.mxu0 %v758
      %820 = vmatprep.subr.mxu0 0.0
      %821 = vmatpush1.xpose.msra.mxu0 %v755
      %822 = vmatprep.subr.mxu0 0.0
      %823 = vmatpush1.xpose.msra.mxu0 %v752
      %824 = vmatprep.subr.mxu0 0.0
      %825 = vmatpush1.xpose.msra.mxu0 %v749
      %826 = vmatprep.subr.mxu0 0.0
      %827 = vmatpush1.xpose.msra.mxu0 %v746
      %828 = vmatprep.subr.mxu0 0.0
      %829 = vmatpush1.xpose.msra.mxu0 %v743
      %830 = vmatprep.subr.mxu0 0.0
      %831 = vmatpush1.xpose.msra.mxu0 %v740
      %832 = vmatprep.subr.mxu0 0.0
      %833 = vmatpush1.xpose.msra.mxu0 %v737
      %834 = vmatprep.subr.mxu0 0.0
      %835 = vmatpush1.xpose.msra.mxu0 %v734
      %836 = vmatprep.subr.mxu0 0.0
      %837 = vmatpush1.xpose.msra.mxu0 %v731
      %838 = vmatprep.subr.mxu0 0.0
      %839 = vmatpush1.xpose.msra.mxu0 %v728
      %840 = vmatprep.subr.mxu0 0.0
      %841 = vmatpush1.xpose.msra.mxu0 %v725
      %842 = vmatprep.subr.mxu0 0.0
      %843 = vmatpush1.xpose.msra.mxu0 %v722
      %844 = vmatprep.subr.mxu0 0.0
      %845 = vmatpush1.xpose.msra.mxu0 %v719
      %846 = vmatprep.subr.mxu0 0.0
      %847 = vmatpush2.xpose.msra.mxu0 %v812
      %848 = vmatprep.subr.mxu0 0.0
      %849 = vmatpush2.xpose.msra.mxu0 %v809
      %850 = vmatprep.subr.mxu0 0.0
      %851 = vmatpush2.xpose.msra.mxu0 %v806
      %852 = vmatprep.subr.mxu0 0.0
      %853 = vmatpush2.xpose.msra.mxu0 %v803
      %854 = vmatprep.subr.mxu0 0.0
      %855 = vmatpush2.xpose.msra.mxu0 %v800
      %856 = vmatprep.subr.mxu0 0.0
      %857 = vmatpush2.xpose.msra.mxu0 %v797
      %858 = vmatprep.subr.mxu0 0.0
      %859 = vmatpush2.xpose.msra.mxu0 %v794
      %860 = vmatprep.subr.mxu0 0.0
      %861 = vmatpush2.xpose.msra.mxu0 %v791
      %862 = vmatprep.subr.mxu0 0.0
      %863 = vmatpush2.xpose.msra.mxu0 %v788
      %864 = vmatprep.subr.mxu0 0.0
      %865 = vmatpush2.xpose.msra.mxu0 %v785
      %866 = vmatprep.subr.mxu0 0.0
      %867 = vmatpush2.xpose.msra.mxu0 %v782
      %868 = vmatprep.subr.mxu0 0.0
      %869 = vmatpush2.xpose.msra.mxu0 %v779
      %870 = vmatprep.subr.mxu0 0.0
      %871 = vmatpush2.xpose.msra.mxu0 %v776
      %872 = vmatprep.subr.mxu0 0.0
      %873 = vmatpush2.xpose.msra.mxu0 %v773
      %874 = vmatprep.subr.mxu0 0.0
      %875 = vmatpush2.xpose.msra.mxu0 %v770
      %876 = vmatprep.subr.mxu0 0.0
      %877 = vmatpush2.xpose.msra.mxu0 %v767
      %878 = vmatprep.mubr.f32.mxu0 0.0
      %879 = vmatmul.mubr.f32.gmra.mxu0 %v561
      %v880 = vpop.f32.mrf.mxu0
      %v881 = vadd.f32 0.0, %v880
      %v882 = vpop.f32.mrf.mxu0
      %v883 = vadd.f32 0.0, %v882
      %884 = vmatprep.mubr.f32.mxu0 0.0
      %885 = vmatmul.mubr.f32.gmra.mxu0 %v564
      %v886 = vpop.f32.mrf.mxu0
      %v887 = vadd.f32 0.0, %v886
      %v888 = vpop.f32.mrf.mxu0
      %v889 = vadd.f32 0.0, %v888
      %890 = vmatprep.mubr.f32.mxu0 0.0
      %891 = vmatmul.mubr.f32.gmra.mxu0 %v567
      %v892 = vpop.f32.mrf.mxu0
      %v893 = vadd.f32 0.0, %v892
      %v894 = vpop.f32.mrf.mxu0
      %v895 = vadd.f32 0.0, %v894
      %896 = vmatprep.mubr.f32.mxu0 0.0
      %897 = vmatmul.mubr.f32.gmra.mxu0 %v570
      %v898 = vpop.f32.mrf.mxu0
      %v899 = vadd.f32 0.0, %v898
      %v900 = vpop.f32.mrf.mxu0
      %v901 = vadd.f32 0.0, %v900
      %902 = vdwg.mxu0
      %v903 = vmul.f32 %v881, 0.35355338
      %v904 = vmul.f32 %v883, 0.35355338
      %v905 = vmul.f32 %v887, 0.35355338
      %v906 = vmul.f32 %v889, 0.35355338
      %v907 = vmul.f32 %v893, 0.35355338
      %v908 = vmul.f32 %v895, 0.35355338
      %v909 = vmul.f32 %v899, 0.35355338
      %v910 = vmul.f32 %v901, 0.35355338
      %v911 = vmax.f32 %v903, %v904
      %912 = vmax.xlane.f32.xlu0 %v911
      %v913 = vpop.xlane.xlu0 %912
      %v914 = vmax.f32 %v905, %v906
      %915 = vmax.xlane.f32.xlu0 %v914
      %v916 = vpop.xlane.xlu0 %915
      %v917 = vmax.f32 %v907, %v908
      %918 = vmax.xlane.f32.xlu0 %v917
      %v919 = vpop.xlane.xlu0 %918
      %v920 = vmax.f32 %v909, %v910
      %921 = vmax.xlane.f32.xlu0 %v920
      %v922 = vpop.xlane.xlu0 %921
      %v923 = vsub.f32 %v903, %v913
      %v924 = vsub.f32 %v904, %v913
      %v925 = vsub.f32 %v905, %v916
      %v926 = vsub.f32 %v906, %v916
      %v927 = vsub.f32 %v907, %v919
      %v928 = vsub.f32 %v908, %v919
      %v929 = vsub.f32 %v909, %v922
      %v930 = vsub.f32 %v910, %v922
      %v931 = vmul.f32 %v923, 1.442695
      %v932 = vpow.pop %v931
      %v933 = vmul.f32 %v924, 1.442695
      %v934 = vpow.pop %v933
      %v935 = vmul.f32 %v925, 1.442695
      %v936 = vpow.pop %v935
      %v937 = vmul.f32 %v926, 1.442695
      %v938 = vpow.pop %v937
      %v939 = vmul.f32 %v927, 1.442695
      %v940 = vpow.pop %v939
      %v941 = vmul.f32 %v928, 1.442695
      %v942 = vpow.pop %v941
      %v943 = vmul.f32 %v929, 1.442695
      %v944 = vpow.pop %v943
      %v945 = vmul.f32 %v930, 1.442695
      %v946 = vpow.pop %v945
      %v947 = vadd.f32 %v932, %v934
      %948 = vadd.xlane.f32.xlu0 %v947
      %v949 = vpop.xlane.xlu0 %948
      %v950 = vadd.f32 %v936, %v938
      %951 = vadd.xlane.f32.xlu0 %v950
      %v952 = vpop.xlane.xlu0 %951
      %v953 = vadd.f32 %v940, %v942
      %954 = vadd.xlane.f32.xlu0 %v953
      %v955 = vpop.xlane.xlu0 %954
      %v956 = vadd.f32 %v944, %v946
      %957 = vadd.xlane.f32.xlu0 %v956
      %v958 = vpop.xlane.xlu0 %957
      %v959 = vrcp.pop %v949
      %v960 = vmul.f32 %v932, %v959
      %v961 = vmul.f32 %v934, %v959
      %v962 = vrcp.pop %v952
      %v963 = vmul.f32 %v936, %v962
      %v964 = vmul.f32 %v938, %v962
      %v965 = vrcp.pop %v955
      %v966 = vmul.f32 %v940, %v965
      %v967 = vmul.f32 %v942, %v965
      %v968 = vrcp.pop %v958
      %v969 = vmul.f32 %v944, %v968
      %v970 = vmul.f32 %v946, %v968
      %v971 = vlaneseq
      %v972 = vshrl.u32 %v971, 7
      %v973 = vadd.s32 %v972, 8
      %v974 = vadd.s32 %v972, 16
      %v975 = vadd.s32 %v972, 24
      %v976 = vlaneseq
      %v977 = vand.u32 %v976, 127
      %vm978 = vcmp.eq.s32.totalorder %v972, %v977
      %vm979 = vcmp.eq.s32.totalorder %v973, %v977
      %vm980 = vcmp.eq.s32.totalorder %v974, %v977
      %vm981 = vcmp.eq.s32.totalorder %v975, %v977
      %v982 = vsel %vm978, 1, 0
      %v983 = vsel %vm979, 1, 0
      %v984 = vsel %vm980, 1, 0
      %v985 = vsel %vm981, 1, 0
      %v986 = vcvt.s32.f32 %v982
      %v987 = vcvt.s32.f32 %v983
      %v988 = vcvt.s32.f32 %v984
      %v989 = vcvt.s32.f32 %v985
      %v991 = vsel %vm673, %v986, 0
      %v994 = vsel %vm673, %v987, 0
      %v997 = vsel %vm673, %v988, 0
      %v1000 = vsel %vm673, %v989, 0
      %v1003 = vsel %vm673, %v711, 0
      %v1006 = vsel %vm673, %v713, 0
      %v1009 = vsel %vm673, %v715, 0
      %v1012 = vsel %vm673, %v717, 0
      %1014 = vmatprep.subr.mxu0 0.0
      %1015 = vmatpush1.xpose.msra.mxu0 0.0
      %1016 = vmatprep.subr.mxu0 0.0
      %1017 = vmatpush1.xpose.msra.mxu0 0.0
      %1018 = vmatprep.subr.mxu0 0.0
      %1019 = vmatpush1.xpose.msra.mxu0 0.0
      %1020 = vmatprep.subr.mxu0 0.0
      %1021 = vmatpush1.xpose.msra.mxu0 0.0
      %1022 = vmatprep.subr.mxu0 0.0
      %1023 = vmatpush1.xpose.msra.mxu0 0.0
      %1024 = vmatprep.subr.mxu0 0.0
      %1025 = vmatpush1.xpose.msra.mxu0 0.0
      %1026 = vmatprep.subr.mxu0 0.0
      %1027 = vmatpush1.xpose.msra.mxu0 0.0
      %1028 = vmatprep.subr.mxu0 0.0
      %1029 = vmatpush1.xpose.msra.mxu0 0.0
      %1030 = vmatprep.subr.mxu0 0.0
      %1031 = vmatpush1.xpose.msra.mxu0 0.0
      %1032 = vmatprep.subr.mxu0 0.0
      %1033 = vmatpush1.xpose.msra.mxu0 0.0
      %1034 = vmatprep.subr.mxu0 0.0
      %1035 = vmatpush1.xpose.msra.mxu0 0.0
      %1036 = vmatprep.subr.mxu0 0.0
      %1037 = vmatpush1.xpose.msra.mxu0 0.0
      %1038 = vmatprep.subr.mxu0 0.0
      %1039 = vmatpush1.xpose.msra.mxu0 %v1012
      %1040 = vmatprep.subr.mxu0 0.0
      %1041 = vmatpush1.xpose.msra.mxu0 %v1009
      %1042 = vmatprep.subr.mxu0 0.0
      %1043 = vmatpush1.xpose.msra.mxu0 %v1006
      %1044 = vmatprep.subr.mxu0 0.0
      %1045 = vmatpush1.xpose.msra.mxu0 %v1003
      %1046 = vmatprep.subr.mxu0 0.0
      %1047 = vmatpush2.xpose.msra.mxu0 0.0
      %1048 = vmatprep.subr.mxu0 0.0
      %1049 = vmatpush2.xpose.msra.mxu0 0.0
      %1050 = vmatprep.subr.mxu0 0.0
      %1051 = vmatpush2.xpose.msra.mxu0 0.0
      %1052 = vmatprep.subr.mxu0 0.0
      %1053 = vmatpush2.xpose.msra.mxu0 0.0
      %1054 = vmatprep.subr.mxu0 0.0
      %1055 = vmatpush2.xpose.msra.mxu0 0.0
      %1056 = vmatprep.subr.mxu0 0.0
      %1057 = vmatpush2.xpose.msra.mxu0 0.0
      %1058 = vmatprep.subr.mxu0 0.0
      %1059 = vmatpush2.xpose.msra.mxu0 0.0
      %1060 = vmatprep.subr.mxu0 0.0
      %1061 = vmatpush2.xpose.msra.mxu0 0.0
      %1062 = vmatprep.subr.mxu0 0.0
      %1063 = vmatpush2.xpose.msra.mxu0 0.0
      %1064 = vmatprep.subr.mxu0 0.0
      %1065 = vmatpush2.xpose.msra.mxu0 0.0
      %1066 = vmatprep.subr.mxu0 0.0
      %1067 = vmatpush2.xpose.msra.mxu0 0.0
      %1068 = vmatprep.subr.mxu0 0.0
      %1069 = vmatpush2.xpose.msra.mxu0 0.0
      %1070 = vmatprep.subr.mxu0 0.0
      %1071 = vmatpush2.xpose.msra.mxu0 0.0
      %1072 = vmatprep.subr.mxu0 0.0
      %1073 = vmatpush2.xpose.msra.mxu0 0.0
      %1074 = vmatprep.subr.mxu0 0.0
      %1075 = vmatpush2.xpose.msra.mxu0 0.0
      %1076 = vmatprep.subr.mxu0 0.0
      %1077 = vmatpush2.xpose.msra.mxu0 0.0
      %1078 = vmatprep.mubr.f32.mxu0 0.0
      %1079 = vmatmul.mubr.f32.gmra.mxu0 %v991
      %v1080 = vpop.f32.mrf.mxu0
      %v1081 = vadd.f32 0.0, %v1080
      %v1082 = vpop.f32.mrf.mxu0
      %1083 = vmatprep.mubr.f32.mxu0 0.0
      %1084 = vmatmul.mubr.f32.gmra.mxu0 %v994
      %v1085 = vpop.f32.mrf.mxu0
      %v1086 = vadd.f32 0.0, %v1085
      %v1087 = vpop.f32.mrf.mxu0
      %1088 = vmatprep.mubr.f32.mxu0 0.0
      %1089 = vmatmul.mubr.f32.gmra.mxu0 %v997
      %v1090 = vpop.f32.mrf.mxu0
      %v1091 = vadd.f32 0.0, %v1090
      %v1092 = vpop.f32.mrf.mxu0
      %1093 = vmatprep.mubr.f32.mxu0 0.0
      %1094 = vmatmul.mubr.f32.gmra.mxu0 %v1000
      %v1095 = vpop.f32.mrf.mxu0
      %v1096 = vadd.f32 0.0, %v1095
      %v1097 = vpop.f32.mrf.mxu0
      %1098 = vdwg.mxu0
      %v1099 = vsel %vm673, %v711, 0.0
      %v1100 = vsel %vm673, %v713, 0.0
      %v1101 = vadd.f32 %v1099, %v1100
      %v1102 = vsel %vm673, %v715, 0.0
      %v1103 = vadd.f32 %v1101, %v1102
      %v1104 = vsel %vm673, %v717, 0.0
      %v1105 = vadd.f32 %v1103, %v1104
      %v1106 = vrot.slane %v1105, 4
      %v1107 = vadd.f32 %v1105, %v1106
      %v1108 = vrot.slane %v1107, 2
      %v1109 = vadd.f32 %v1107, %v1108
      %v1110 = vrot.slane %v1109, 1
      %v1111 = vadd.f32 %v1109, %v1110
      %v1112 = vsel %vm673, %v1111, -inf
      %1113 = vmax.xlane.f32.xlu0 %v1112
      %v1114 = vpop.xlane.xlu0 %1113
      %1115 = vadd.xlane.f32.xlu0 %v1099
      %v1116 = vpop.xlane.xlu0 %1115
      %1117 = vadd.xlane.f32.xlu0 %v1100
      %v1118 = vpop.xlane.xlu0 %1117
      %1119 = vadd.xlane.f32.xlu0 %v1102
      %v1120 = vpop.xlane.xlu0 %1119
      %1121 = vadd.xlane.f32.xlu0 %v1104
      %v1122 = vpop.xlane.xlu0 %1121
      %v1123 = vmax.f32 %v1116, %v1118
      %v1124 = vmax.f32 %v1120, %v1122
      %v1125 = vmax.f32 %v1123, %v1124
      %v1126 = vrot.slane %v1125, 4
      %v1127 = vmax.f32 %v1125, %v1126
      %v1128 = vrot.slane %v1127, 2
      %v1129 = vmax.f32 %v1127, %v1128
      %v1130 = vrot.slane %v1129, 1
      %v1131 = vmax.f32 %v1129, %v1130
      %v1132 = vmul.f32 %v1114, %v1131
      %v1133 = vrcp.pop %v1132
      %v1134 = vmul.f32 %v1081, %v1133
      %v1135 = vmul.f32 %v1086, %v1133
      %v1136 = vmul.f32 %v1091, %v1133
      %v1137 = vmul.f32 %v1096, %v1133
      %1138 = vmatprep.subr.mxu0 0.0
      %1139 = vmatpush1.msra.mxu0 0.0
      %1140 = vmatprep.subr.mxu0 0.0
      %1141 = vmatpush1.msra.mxu0 0.0
      %1142 = vmatprep.subr.mxu0 0.0
      %1143 = vmatpush1.msra.mxu0 0.0
      %1144 = vmatprep.subr.mxu0 0.0
      %1145 = vmatpush1.msra.mxu0 0.0
      %1146 = vmatprep.subr.mxu0 0.0
      %1147 = vmatpush1.msra.mxu0 0.0
      %1148 = vmatprep.subr.mxu0 0.0
      %1149 = vmatpush1.msra.mxu0 0.0
      %1150 = vmatprep.subr.mxu0 0.0
      %1151 = vmatpush1.msra.mxu0 0.0
      %1152 = vmatprep.subr.mxu0 0.0
      %1153 = vmatpush1.msra.mxu0 0.0
      %1154 = vmatprep.subr.mxu0 0.0
      %1155 = vmatpush1.msra.mxu0 0.0
      %1156 = vmatprep.subr.mxu0 0.0
      %1157 = vmatpush1.msra.mxu0 0.0
      %1158 = vmatprep.subr.mxu0 0.0
      %1159 = vmatpush1.msra.mxu0 0.0
      %1160 = vmatprep.subr.mxu0 0.0
      %1161 = vmatpush1.msra.mxu0 0.0
      %1162 = vmatprep.subr.mxu0 0.0
      %1163 = vmatpush1.msra.mxu0 %v1137
      %1164 = vmatprep.subr.mxu0 0.0
      %1165 = vmatpush1.msra.mxu0 %v1136
      %1166 = vmatprep.subr.mxu0 0.0
      %1167 = vmatpush1.msra.mxu0 %v1135
      %1168 = vmatprep.subr.mxu0 0.0
      %1169 = vmatpush1.msra.mxu0 %v1134
      %1170 = vmatprep.subr.mxu0 0.0
      %1171 = vmatpush2.msra.mxu0 0.0
      %1172 = vmatprep.subr.mxu0 0.0
      %1173 = vmatpush2.msra.mxu0 0.0
      %1174 = vmatprep.subr.mxu0 0.0
      %1175 = vmatpush2.msra.mxu0 0.0
      %1176 = vmatprep.subr.mxu0 0.0
      %1177 = vmatpush2.msra.mxu0 0.0
      %1178 = vmatprep.subr.mxu0 0.0
      %1179 = vmatpush2.msra.mxu0 0.0
      %1180 = vmatprep.subr.mxu0 0.0
      %1181 = vmatpush2.msra.mxu0 0.0
      %1182 = vmatprep.subr.mxu0 0.0
      %1183 = vmatpush2.msra.mxu0 0.0
      %1184 = vmatprep.subr.mxu0 0.0
      %1185 = vmatpush2.msra.mxu0 0.0
      %1186 = vmatprep.subr.mxu0 0.0
      %1187 = vmatpush2.msra.mxu0 0.0
      %1188 = vmatprep.subr.mxu0 0.0
      %1189 = vmatpush2.msra.mxu0 0.0
      %1190 = vmatprep.subr.mxu0 0.0
      %1191 = vmatpush2.msra.mxu0 0.0
      %1192 = vmatprep.subr.mxu0 0.0
      %1193 = vmatpush2.msra.mxu0 0.0
      %1194 = vmatprep.subr.mxu0 0.0
      %1195 = vmatpush2.msra.mxu0 0.0
      %1196 = vmatprep.subr.mxu0 0.0
      %1197 = vmatpush2.msra.mxu0 0.0
      %1198 = vmatprep.subr.mxu0 0.0
      %1199 = vmatpush2.msra.mxu0 0.0
      %1200 = vmatprep.subr.mxu0 0.0
      %1201 = vmatpush2.msra.mxu0 0.0
      %1202 = vmatprep.mubr.f32.mxu0 0.0
      %1203 = vmatmul.mubr.f32.gmra.mxu0 %v1003
      %v1204 = vpop.f32.mrf.mxu0
      %v1205 = vadd.f32 0.0, %v1204
      %v1206 = vpop.f32.mrf.mxu0
      %1207 = vmatprep.mubr.f32.mxu0 0.0
      %1208 = vmatmul.mubr.f32.gmra.mxu0 %v1006
      %v1209 = vpop.f32.mrf.mxu0
      %v1210 = vadd.f32 0.0, %v1209
      %v1211 = vpop.f32.mrf.mxu0
      %1212 = vmatprep.mubr.f32.mxu0 0.0
      %1213 = vmatmul.mubr.f32.gmra.mxu0 %v1009
      %v1214 = vpop.f32.mrf.mxu0
      %v1215 = vadd.f32 0.0, %v1214
      %v1216 = vpop.f32.mrf.mxu0
      %1217 = vmatprep.mubr.f32.mxu0 0.0
      %1218 = vmatmul.mubr.f32.gmra.mxu0 %v1012
      %v1219 = vpop.f32.mrf.mxu0
      %v1220 = vadd.f32 0.0, %v1219
      %v1221 = vpop.f32.mrf.mxu0
      %1222 = vdwg.mxu0
      %v1223 = vmul.f32 %v986, 7.0
      %v1224 = vmul.f32 %v987, 7.0
      %v1225 = vmul.f32 %v988, 7.0
      %v1226 = vmul.f32 %v989, 7.0
      %v1227 = vsub.f32 %v1223, %v1205
      %v1228 = vsub.f32 %v1224, %v1210
      %v1229 = vsub.f32 %v1225, %v1215
      %v1230 = vsub.f32 %v1226, %v1220
      %v1231 = vmul.f32 %v986, 15.0
      %v1232 = vmul.f32 %v987, 15.0
      %v1233 = vmul.f32 %v988, 15.0
      %v1234 = vmul.f32 %v989, 15.0
      %v1236 = vsel %vm673, %v1205, 0
      %v1239 = vsel %vm673, %v1210, 0
      %v1242 = vsel %vm673, %v1215, 0
      %v1245 = vsel %vm673, %v1220, 0
      %1247 = vmatprep.subr.mxu0 0.0
      %1248 = vmatpush1.msra.mxu0 0.0
      %1249 = vmatprep.subr.mxu0 0.0
      %1250 = vmatpush1.msra.mxu0 0.0
      %1251 = vmatprep.subr.mxu0 0.0
      %1252 = vmatpush1.msra.mxu0 0.0
      %1253 = vmatprep.subr.mxu0 0.0
      %1254 = vmatpush1.msra.mxu0 0.0
      %1255 = vmatprep.subr.mxu0 0.0
      %1256 = vmatpush1.msra.mxu0 0.0
      %1257 = vmatprep.subr.mxu0 0.0
      %1258 = vmatpush1.msra.mxu0 0.0
      %1259 = vmatprep.subr.mxu0 0.0
      %1260 = vmatpush1.msra.mxu0 0.0
      %1261 = vmatprep.subr.mxu0 0.0
      %1262 = vmatpush1.msra.mxu0 0.0
      %1263 = vmatprep.subr.mxu0 0.0
      %1264 = vmatpush1.msra.mxu0 0.0
      %1265 = vmatprep.subr.mxu0 0.0
      %1266 = vmatpush1.msra.mxu0 0.0
      %1267 = vmatprep.subr.mxu0 0.0
      %1268 = vmatpush1.msra.mxu0 0.0
      %1269 = vmatprep.subr.mxu0 0.0
      %1270 = vmatpush1.msra.mxu0 0.0
      %1271 = vmatprep.subr.mxu0 0.0
      %1272 = vmatpush1.msra.mxu0 %v1230
      %1273 = vmatprep.subr.mxu0 0.0
      %1274 = vmatpush1.msra.mxu0 %v1229
      %1275 = vmatprep.subr.mxu0 0.0
      %1276 = vmatpush1.msra.mxu0 %v1228
      %1277 = vmatprep.subr.mxu0 0.0
      %1278 = vmatpush1.msra.mxu0 %v1227
      %1279 = vmatprep.subr.mxu0 0.0
      %1280 = vmatpush2.msra.mxu0 0.0
      %1281 = vmatprep.subr.mxu0 0.0
      %1282 = vmatpush2.msra.mxu0 0.0
      %1283 = vmatprep.subr.mxu0 0.0
      %1284 = vmatpush2.msra.mxu0 0.0
      %1285 = vmatprep.subr.mxu0 0.0
      %1286 = vmatpush2.msra.mxu0 0.0
      %1287 = vmatprep.subr.mxu0 0.0
      %1288 = vmatpush2.msra.mxu0 0.0
      %1289 = vmatprep.subr.mxu0 0.0
      %1290 = vmatpush2.msra.mxu0 0.0
      %1291 = vmatprep.subr.mxu0 0.0
      %1292 = vmatpush2.msra.mxu0 0.0
      %1293 = vmatprep.subr.mxu0 0.0
      %1294 = vmatpush2.msra.mxu0 0.0
      %1295 = vmatprep.subr.mxu0 0.0
      %1296 = vmatpush2.msra.mxu0 0.0
      %1297 = vmatprep.subr.mxu0 0.0
      %1298 = vmatpush2.msra.mxu0 0.0
      %1299 = vmatprep.subr.mxu0 0.0
      %1300 = vmatpush2.msra.mxu0 0.0
      %1301 = vmatprep.subr.mxu0 0.0
      %1302 = vmatpush2.msra.mxu0 0.0
      %1303 = vmatprep.subr.mxu0 0.0
      %1304 = vmatpush2.msra.mxu0 0.0
      %1305 = vmatprep.subr.mxu0 0.0
      %1306 = vmatpush2.msra.mxu0 0.0
      %1307 = vmatprep.subr.mxu0 0.0
      %1308 = vmatpush2.msra.mxu0 0.0
      %1309 = vmatprep.subr.mxu0 0.0
      %1310 = vmatpush2.msra.mxu0 0.0
      %1311 = vmatprep.mubr.f32.mxu0 0.0
      %1312 = vmatmul.mubr.f32.gmra.mxu0 %v1236
      %v1313 = vpop.f32.mrf.mxu0
      %v1314 = vadd.f32 0.0, %v1313
      %v1315 = vpop.f32.mrf.mxu0
      %1316 = vmatprep.mubr.f32.mxu0 0.0
      %1317 = vmatmul.mubr.f32.gmra.mxu0 %v1239
      %v1318 = vpop.f32.mrf.mxu0
      %v1319 = vadd.f32 0.0, %v1318
      %v1320 = vpop.f32.mrf.mxu0
      %1321 = vmatprep.mubr.f32.mxu0 0.0
      %1322 = vmatmul.mubr.f32.gmra.mxu0 %v1242
      %v1323 = vpop.f32.mrf.mxu0
      %v1324 = vadd.f32 0.0, %v1323
      %v1325 = vpop.f32.mrf.mxu0
      %1326 = vmatprep.mubr.f32.mxu0 0.0
      %1327 = vmatmul.mubr.f32.gmra.mxu0 %v1245
      %v1328 = vpop.f32.mrf.mxu0
      %v1329 = vadd.f32 0.0, %v1328
      %v1330 = vpop.f32.mrf.mxu0
      %1331 = vdwg.mxu0
      %v1332 = vsub.f32 %v1231, %v1314
      %v1333 = vsub.f32 %v1232, %v1319
      %v1334 = vsub.f32 %v1233, %v1324
      %v1335 = vsub.f32 %v1234, %v1329
      %v1336 = vmul.f32 %v986, 13.0
      %v1337 = vmul.f32 %v987, 13.0
      %v1338 = vmul.f32 %v988, 13.0
      %v1339 = vmul.f32 %v989, 13.0
      %1340 = vmatprep.subr.mxu0 0.0
      %1341 = vmatpush1.msra.mxu0 0.0
      %1342 = vmatprep.subr.mxu0 0.0
      %1343 = vmatpush1.msra.mxu0 0.0
      %1344 = vmatprep.subr.mxu0 0.0
      %1345 = vmatpush1.msra.mxu0 0.0
      %1346 = vmatprep.subr.mxu0 0.0
      %1347 = vmatpush1.msra.mxu0 0.0
      %1348 = vmatprep.subr.mxu0 0.0
      %1349 = vmatpush1.msra.mxu0 0.0
      %1350 = vmatprep.subr.mxu0 0.0
      %1351 = vmatpush1.msra.mxu0 0.0
      %1352 = vmatprep.subr.mxu0 0.0
      %1353 = vmatpush1.msra.mxu0 0.0
      %1354 = vmatprep.subr.mxu0 0.0
      %1355 = vmatpush1.msra.mxu0 0.0
      %1356 = vmatprep.subr.mxu0 0.0
      %1357 = vmatpush1.msra.mxu0 0.0
      %1358 = vmatprep.subr.mxu0 0.0
      %1359 = vmatpush1.msra.mxu0 0.0
      %1360 = vmatprep.subr.mxu0 0.0
      %1361 = vmatpush1.msra.mxu0 0.0
      %1362 = vmatprep.subr.mxu0 0.0
      %1363 = vmatpush1.msra.mxu0 0.0
      %1364 = vmatprep.subr.mxu0 0.0
      %1365 = vmatpush1.msra.mxu0 %v1335
      %1366 = vmatprep.subr.mxu0 0.0
      %1367 = vmatpush1.msra.mxu0 %v1334
      %1368 = vmatprep.subr.mxu0 0.0
      %1369 = vmatpush1.msra.mxu0 %v1333
      %1370 = vmatprep.subr.mxu0 0.0
      %1371 = vmatpush1.msra.mxu0 %v1332
      %1372 = vmatprep.subr.mxu0 0.0
      %1373 = vmatpush2.msra.mxu0 0.0
      %1374 = vmatprep.subr.mxu0 0.0
      %1375 = vmatpush2.msra.mxu0 0.0
      %1376 = vmatprep.subr.mxu0 0.0
      %1377 = vmatpush2.msra.mxu0 0.0
      %1378 = vmatprep.subr.mxu0 0.0
      %1379 = vmatpush2.msra.mxu0 0.0
      %1380 = vmatprep.subr.mxu0 0.0
      %1381 = vmatpush2.msra.mxu0 0.0
      %1382 = vmatprep.subr.mxu0 0.0
      %1383 = vmatpush2.msra.mxu0 0.0
      %1384 = vmatprep.subr.mxu0 0.0
      %1385 = vmatpush2.msra.mxu0 0.0
      %1386 = vmatprep.subr.mxu0 0.0
      %1387 = vmatpush2.msra.mxu0 0.0
      %1388 = vmatprep.subr.mxu0 0.0
      %1389 = vmatpush2.msra.mxu0 0.0
      %1390 = vmatprep.subr.mxu0 0.0
      %1391 = vmatpush2.msra.mxu0 0.0
      %1392 = vmatprep.subr.mxu0 0.0
      %1393 = vmatpush2.msra.mxu0 0.0
      %1394 = vmatprep.subr.mxu0 0.0
      %1395 = vmatpush2.msra.mxu0 0.0
      %1396 = vmatprep.subr.mxu0 0.0
      %1397 = vmatpush2.msra.mxu0 0.0
      %1398 = vmatprep.subr.mxu0 0.0
      %1399 = vmatpush2.msra.mxu0 0.0
      %1400 = vmatprep.subr.mxu0 0.0
      %1401 = vmatpush2.msra.mxu0 0.0
      %1402 = vmatprep.subr.mxu0 0.0
      %1403 = vmatpush2.msra.mxu0 0.0
      %1404 = vmatprep.mubr.f32.mxu0 0.0
      %1405 = vmatmul.mubr.f32.gmra.mxu0 %v1236
      %v1406 = vpop.f32.mrf.mxu0
      %v1407 = vadd.f32 0.0, %v1406
      %v1408 = vpop.f32.mrf.mxu0
      %1409 = vmatprep.mubr.f32.mxu0 0.0
      %1410 = vmatmul.mubr.f32.gmra.mxu0 %v1239
      %v1411 = vpop.f32.mrf.mxu0
      %v1412 = vadd.f32 0.0, %v1411
      %v1413 = vpop.f32.mrf.mxu0
      %1414 = vmatprep.mubr.f32.mxu0 0.0
      %1415 = vmatmul.mubr.f32.gmra.mxu0 %v1242
      %v1416 = vpop.f32.mrf.mxu0
      %v1417 = vadd.f32 0.0, %v1416
      %v1418 = vpop.f32.mrf.mxu0
      %1419 = vmatprep.mubr.f32.mxu0 0.0
      %1420 = vmatmul.mubr.f32.gmra.mxu0 %v1245
      %v1421 = vpop.f32.mrf.mxu0
      %v1422 = vadd.f32 0.0, %v1421
      %v1423 = vpop.f32.mrf.mxu0
      %1424 = vdwg.mxu0
      %v1425 = vsub.f32 %v1336, %v1407
      %v1426 = vsub.f32 %v1337, %v1412
      %v1427 = vsub.f32 %v1338, %v1417
      %v1428 = vsub.f32 %v1339, %v1422
      %v1430 = vsel %vm673, %v1134, 0
      %v1433 = vsel %vm673, %v1135, 0
      %v1436 = vsel %vm673, %v1136, 0
      %v1439 = vsel %vm673, %v1137, 0
      %1441 = vmatprep.subr.mxu0 0.0
      %1442 = vmatpush1.msra.mxu0 0.0
      %1443 = vmatprep.subr.mxu0 0.0
      %1444 = vmatpush1.msra.mxu0 0.0
      %1445 = vmatprep.subr.mxu0 0.0
      %1446 = vmatpush1.msra.mxu0 0.0
      %1447 = vmatprep.subr.mxu0 0.0
      %1448 = vmatpush1.msra.mxu0 0.0
      %1449 = vmatprep.subr.mxu0 0.0
      %1450 = vmatpush1.msra.mxu0 0.0
      %1451 = vmatprep.subr.mxu0 0.0
      %1452 = vmatpush1.msra.mxu0 0.0
      %1453 = vmatprep.subr.mxu0 0.0
      %1454 = vmatpush1.msra.mxu0 0.0
      %1455 = vmatprep.subr.mxu0 0.0
      %1456 = vmatpush1.msra.mxu0 0.0
      %1457 = vmatprep.subr.mxu0 0.0
      %1458 = vmatpush1.msra.mxu0 0.0
      %1459 = vmatprep.subr.mxu0 0.0
      %1460 = vmatpush1.msra.mxu0 0.0
      %1461 = vmatprep.subr.mxu0 0.0
      %1462 = vmatpush1.msra.mxu0 0.0
      %1463 = vmatprep.subr.mxu0 0.0
      %1464 = vmatpush1.msra.mxu0 0.0
      %1465 = vmatprep.subr.mxu0 0.0
      %1466 = vmatpush1.msra.mxu0 %v1428
      %1467 = vmatprep.subr.mxu0 0.0
      %1468 = vmatpush1.msra.mxu0 %v1427
      %1469 = vmatprep.subr.mxu0 0.0
      %1470 = vmatpush1.msra.mxu0 %v1426
      %1471 = vmatprep.subr.mxu0 0.0
      %1472 = vmatpush1.msra.mxu0 %v1425
      %1473 = vmatprep.subr.mxu0 0.0
      %1474 = vmatpush2.msra.mxu0 0.0
      %1475 = vmatprep.subr.mxu0 0.0
      %1476 = vmatpush2.msra.mxu0 0.0
      %1477 = vmatprep.subr.mxu0 0.0
      %1478 = vmatpush2.msra.mxu0 0.0
      %1479 = vmatprep.subr.mxu0 0.0
      %1480 = vmatpush2.msra.mxu0 0.0
      %1481 = vmatprep.subr.mxu0 0.0
      %1482 = vmatpush2.msra.mxu0 0.0
      %1483 = vmatprep.subr.mxu0 0.0
      %1484 = vmatpush2.msra.mxu0 0.0
      %1485 = vmatprep.subr.mxu0 0.0
      %1486 = vmatpush2.msra.mxu0 0.0
      %1487 = vmatprep.subr.mxu0 0.0
      %1488 = vmatpush2.msra.mxu0 0.0
      %1489 = vmatprep.subr.mxu0 0.0
      %1490 = vmatpush2.msra.mxu0 0.0
      %1491 = vmatprep.subr.mxu0 0.0
      %1492 = vmatpush2.msra.mxu0 0.0
      %1493 = vmatprep.subr.mxu0 0.0
      %1494 = vmatpush2.msra.mxu0 0.0
      %1495 = vmatprep.subr.mxu0 0.0
      %1496 = vmatpush2.msra.mxu0 0.0
      %1497 = vmatprep.subr.mxu0 0.0
      %1498 = vmatpush2.msra.mxu0 0.0
      %1499 = vmatprep.subr.mxu0 0.0
      %1500 = vmatpush2.msra.mxu0 0.0
      %1501 = vmatprep.subr.mxu0 0.0
      %1502 = vmatpush2.msra.mxu0 0.0
      %1503 = vmatprep.subr.mxu0 0.0
      %1504 = vmatpush2.msra.mxu0 0.0
      %1505 = vmatprep.mubr.f32.mxu0 0.0
      %1506 = vmatmul.mubr.f32.gmra.mxu0 %v1430
      %v1507 = vpop.f32.mrf.mxu0
      %v1508 = vadd.f32 0.0, %v1507
      %v1509 = vpop.f32.mrf.mxu0
      %1510 = vmatprep.mubr.f32.mxu0 0.0
      %1511 = vmatmul.mubr.f32.gmra.mxu0 %v1433
      %v1512 = vpop.f32.mrf.mxu0
      %v1513 = vadd.f32 0.0, %v1512
      %v1514 = vpop.f32.mrf.mxu0
      %1515 = vmatprep.mubr.f32.mxu0 0.0
      %1516 = vmatmul.mubr.f32.gmra.mxu0 %v1436
      %v1517 = vpop.f32.mrf.mxu0
      %v1518 = vadd.f32 0.0, %v1517
      %v1519 = vpop.f32.mrf.mxu0
      %1520 = vmatprep.mubr.f32.mxu0 0.0
      %1521 = vmatmul.mubr.f32.gmra.mxu0 %v1439
      %v1522 = vpop.f32.mrf.mxu0
      %v1523 = vadd.f32 0.0, %v1522
      %v1524 = vpop.f32.mrf.mxu0
      %1525 = vdwg.mxu0
      %v1526 = vmul.f32 %v1508, 0.25
      %v1527 = vmul.f32 %v1513, 0.25
      %v1528 = vmul.f32 %v1518, 0.25
      %v1529 = vmul.f32 %v1523, 0.25
      %1530 = vmatprep.subr.mxu0 0.0
      %1531 = vmatpush1.msra.mxu0 0.0
      %1532 = vmatprep.subr.mxu0 0.0
      %1533 = vmatpush1.msra.mxu0 0.0
      %1534 = vmatprep.subr.mxu0 0.0
      %1535 = vmatpush1.msra.mxu0 0.0
      %1536 = vmatprep.subr.mxu0 0.0
      %1537 = vmatpush1.msra.mxu0 0.0
      %1538 = vmatprep.subr.mxu0 0.0
      %1539 = vmatpush1.msra.mxu0 0.0
      %1540 = vmatprep.subr.mxu0 0.0
      %1541 = vmatpush1.msra.mxu0 0.0
      %1542 = vmatprep.subr.mxu0 0.0
      %1543 = vmatpush1.msra.mxu0 0.0
      %1544 = vmatprep.subr.mxu0 0.0
      %1545 = vmatpush1.msra.mxu0 0.0
      %1546 = vmatprep.subr.mxu0 0.0
      %1547 = vmatpush1.msra.mxu0 0.0
      %1548 = vmatprep.subr.mxu0 0.0
      %1549 = vmatpush1.msra.mxu0 0.0
      %1550 = vmatprep.subr.mxu0 0.0
      %1551 = vmatpush1.msra.mxu0 0.0
      %1552 = vmatprep.subr.mxu0 0.0
      %1553 = vmatpush1.msra.mxu0 0.0
      %1554 = vmatprep.subr.mxu0 0.0
      %1555 = vmatpush1.msra.mxu0 %v1529
      %1556 = vmatprep.subr.mxu0 0.0
      %1557 = vmatpush1.msra.mxu0 %v1528
      %1558 = vmatprep.subr.mxu0 0.0
      %1559 = vmatpush1.msra.mxu0 %v1527
      %1560 = vmatprep.subr.mxu0 0.0
      %1561 = vmatpush1.msra.mxu0 %v1526
      %1562 = vmatprep.subr.mxu0 0.0
      %1563 = vmatpush2.msra.mxu0 0.0
      %1564 = vmatprep.subr.mxu0 0.0
      %1565 = vmatpush2.msra.mxu0 0.0
      %1566 = vmatprep.subr.mxu0 0.0
      %1567 = vmatpush2.msra.mxu0 0.0
      %1568 = vmatprep.subr.mxu0 0.0
      %1569 = vmatpush2.msra.mxu0 0.0
      %1570 = vmatprep.subr.mxu0 0.0
      %1571 = vmatpush2.msra.mxu0 0.0
      %1572 = vmatprep.subr.mxu0 0.0
      %1573 = vmatpush2.msra.mxu0 0.0
      %1574 = vmatprep.subr.mxu0 0.0
      %1575 = vmatpush2.msra.mxu0 0.0
      %1576 = vmatprep.subr.mxu0 0.0
      %1577 = vmatpush2.msra.mxu0 0.0
      %1578 = vmatprep.subr.mxu0 0.0
      %1579 = vmatpush2.msra.mxu0 0.0
      %1580 = vmatprep.subr.mxu0 0.0
      %1581 = vmatpush2.msra.mxu0 0.0
      %1582 = vmatprep.subr.mxu0 0.0
      %1583 = vmatpush2.msra.mxu0 0.0
      %1584 = vmatprep.subr.mxu0 0.0
      %1585 = vmatpush2.msra.mxu0 0.0
      %1586 = vmatprep.subr.mxu0 0.0
      %1587 = vmatpush2.msra.mxu0 0.0
      %1588 = vmatprep.subr.mxu0 0.0
      %1589 = vmatpush2.msra.mxu0 0.0
      %1590 = vmatprep.subr.mxu0 0.0
      %1591 = vmatpush2.msra.mxu0 0.0
      %1592 = vmatprep.subr.mxu0 0.0
      %1593 = vmatpush2.msra.mxu0 0.0
      %1594 = vmatprep.mubr.f32.mxu0 0.0
      %1595 = vmatmul.mubr.f32.gmra.mxu0 %v1003
      %v1596 = vpop.f32.mrf.mxu0
      %v1597 = vadd.f32 0.0, %v1596
      %v1598 = vpop.f32.mrf.mxu0
      %1599 = vmatprep.mubr.f32.mxu0 0.0
      %1600 = vmatmul.mubr.f32.gmra.mxu0 %v1006
      %v1601 = vpop.f32.mrf.mxu0
      %v1602 = vadd.f32 0.0, %v1601
      %v1603 = vpop.f32.mrf.mxu0
      %1604 = vmatprep.mubr.f32.mxu0 0.0
      %1605 = vmatmul.mubr.f32.gmra.mxu0 %v1009
      %v1606 = vpop.f32.mrf.mxu0
      %v1607 = vadd.f32 0.0, %v1606
      %v1608 = vpop.f32.mrf.mxu0
      %1609 = vmatprep.mubr.f32.mxu0 0.0
      %1610 = vmatmul.mubr.f32.gmra.mxu0 %v1012
      %v1611 = vpop.f32.mrf.mxu0
      %v1612 = vadd.f32 0.0, %v1611
      %v1613 = vpop.f32.mrf.mxu0
      %1614 = vdwg.mxu0
      %v1615 = vsub.f32 %v1223, %v1597
      %v1616 = vsub.f32 %v1224, %v1602
      %v1617 = vsub.f32 %v1225, %v1607
      %v1618 = vsub.f32 %v1226, %v1612
      %v1620 = vsel %vm673, %v1597, 0
      %v1623 = vsel %vm673, %v1602, 0
      %v1626 = vsel %vm673, %v1607, 0
      %v1629 = vsel %vm673, %v1612, 0
      %1631 = vmatprep.subr.mxu0 0.0
      %1632 = vmatpush1.msra.mxu0 0.0
      %1633 = vmatprep.subr.mxu0 0.0
      %1634 = vmatpush1.msra.mxu0 0.0
      %1635 = vmatprep.subr.mxu0 0.0
      %1636 = vmatpush1.msra.mxu0 0.0
      %1637 = vmatprep.subr.mxu0 0.0
      %1638 = vmatpush1.msra.mxu0 0.0
      %1639 = vmatprep.subr.mxu0 0.0
      %1640 = vmatpush1.msra.mxu0 0.0
      %1641 = vmatprep.subr.mxu0 0.0
      %1642 = vmatpush1.msra.mxu0 0.0
      %1643 = vmatprep.subr.mxu0 0.0
      %1644 = vmatpush1.msra.mxu0 0.0
      %1645 = vmatprep.subr.mxu0 0.0
      %1646 = vmatpush1.msra.mxu0 0.0
      %1647 = vmatprep.subr.mxu0 0.0
      %1648 = vmatpush1.msra.mxu0 0.0
      %1649 = vmatprep.subr.mxu0 0.0
      %1650 = vmatpush1.msra.mxu0 0.0
      %1651 = vmatprep.subr.mxu0 0.0
      %1652 = vmatpush1.msra.mxu0 0.0
      %1653 = vmatprep.subr.mxu0 0.0
      %1654 = vmatpush1.msra.mxu0 0.0
      %1655 = vmatprep.subr.mxu0 0.0
      %1656 = vmatpush1.msra.mxu0 %v1618
      %1657 = vmatprep.subr.mxu0 0.0
      %1658 = vmatpush1.msra.mxu0 %v1617
      %1659 = vmatprep.subr.mxu0 0.0
      %1660 = vmatpush1.msra.mxu0 %v1616
      %1661 = vmatprep.subr.mxu0 0.0
      %1662 = vmatpush1.msra.mxu0 %v1615
      %1663 = vmatprep.subr.mxu0 0.0
      %1664 = vmatpush2.msra.mxu0 0.0
      %1665 = vmatprep.subr.mxu0 0.0
      %1666 = vmatpush2.msra.mxu0 0.0
      %1667 = vmatprep.subr.mxu0 0.0
      %1668 = vmatpush2.msra.mxu0 0.0
      %1669 = vmatprep.subr.mxu0 0.0
      %1670 = vmatpush2.msra.mxu0 0.0
      %1671 = vmatprep.subr.mxu0 0.0
      %1672 = vmatpush2.msra.mxu0 0.0
      %1673 = vmatprep.subr.mxu0 0.0
      %1674 = vmatpush2.msra.mxu0 0.0
      %1675 = vmatprep.subr.mxu0 0.0
      %1676 = vmatpush2.msra.mxu0 0.0
      %1677 = vmatprep.subr.mxu0 0.0
      %1678 = vmatpush2.msra.mxu0 0.0
      %1679 = vmatprep.subr.mxu0 0.0
      %1680 = vmatpush2.msra.mxu0 0.0
      %1681 = vmatprep.subr.mxu0 0.0
      %1682 = vmatpush2.msra.mxu0 0.0
      %1683 = vmatprep.subr.mxu0 0.0
      %1684 = vmatpush2.msra.mxu0 0.0
      %1685 = vmatprep.subr.mxu0 0.0
      %1686 = vmatpush2.msra.mxu0 0.0
      %1687 = vmatprep.subr.mxu0 0.0
      %1688 = vmatpush2.msra.mxu0 0.0
      %1689 = vmatprep.subr.mxu0 0.0
      %1690 = vmatpush2.msra.mxu0 0.0
      %1691 = vmatprep.subr.mxu0 0.0
      %1692 = vmatpush2.msra.mxu0 0.0
      %1693 = vmatprep.subr.mxu0 0.0
      %1694 = vmatpush2.msra.mxu0 0.0
      %1695 = vmatprep.mubr.f32.mxu0 0.0
      %1696 = vmatmul.mubr.f32.gmra.mxu0 %v1620
      %v1697 = vpop.f32.mrf.mxu0
      %v1698 = vadd.f32 0.0, %v1697
      %v1699 = vpop.f32.mrf.mxu0
      %1700 = vmatprep.mubr.f32.mxu0 0.0
      %1701 = vmatmul.mubr.f32.gmra.mxu0 %v1623
      %v1702 = vpop.f32.mrf.mxu0
      %v1703 = vadd.f32 0.0, %v1702
      %v1704 = vpop.f32.mrf.mxu0
      %1705 = vmatprep.mubr.f32.mxu0 0.0
      %1706 = vmatmul.mubr.f32.gmra.mxu0 %v1626
      %v1707 = vpop.f32.mrf.mxu0
      %v1708 = vadd.f32 0.0, %v1707
      %v1709 = vpop.f32.mrf.mxu0
      %1710 = vmatprep.mubr.f32.mxu0 0.0
      %1711 = vmatmul.mubr.f32.gmra.mxu0 %v1629
      %v1712 = vpop.f32.mrf.mxu0
      %v1713 = vadd.f32 0.0, %v1712
      %v1714 = vpop.f32.mrf.mxu0
      %1715 = vdwg.mxu0
      %v1716 = vsub.f32 %v1231, %v1698
      %v1717 = vsub.f32 %v1232, %v1703
      %v1718 = vsub.f32 %v1233, %v1708
      %v1719 = vsub.f32 %v1234, %v1713
      %1720 = vmatprep.subr.mxu0 0.0
      %1721 = vmatpush1.msra.mxu0 0.0
      %1722 = vmatprep.subr.mxu0 0.0
      %1723 = vmatpush1.msra.mxu0 0.0
      %1724 = vmatprep.subr.mxu0 0.0
      %1725 = vmatpush1.msra.mxu0 0.0
      %1726 = vmatprep.subr.mxu0 0.0
      %1727 = vmatpush1.msra.mxu0 0.0
      %1728 = vmatprep.subr.mxu0 0.0
      %1729 = vmatpush1.msra.mxu0 0.0
      %1730 = vmatprep.subr.mxu0 0.0
      %1731 = vmatpush1.msra.mxu0 0.0
      %1732 = vmatprep.subr.mxu0 0.0
      %1733 = vmatpush1.msra.mxu0 0.0
      %1734 = vmatprep.subr.mxu0 0.0
      %1735 = vmatpush1.msra.mxu0 0.0
      %1736 = vmatprep.subr.mxu0 0.0
      %1737 = vmatpush1.msra.mxu0 0.0
      %1738 = vmatprep.subr.mxu0 0.0
      %1739 = vmatpush1.msra.mxu0 0.0
      %1740 = vmatprep.subr.mxu0 0.0
      %1741 = vmatpush1.msra.mxu0 0.0
      %1742 = vmatprep.subr.mxu0 0.0
      %1743 = vmatpush1.msra.mxu0 0.0
      %1744 = vmatprep.subr.mxu0 0.0
      %1745 = vmatpush1.msra.mxu0 %v1719
      %1746 = vmatprep.subr.mxu0 0.0
      %1747 = vmatpush1.msra.mxu0 %v1718
      %1748 = vmatprep.subr.mxu0 0.0
      %1749 = vmatpush1.msra.mxu0 %v1717
      %1750 = vmatprep.subr.mxu0 0.0
      %1751 = vmatpush1.msra.mxu0 %v1716
      %1752 = vmatprep.subr.mxu0 0.0
      %1753 = vmatpush2.msra.mxu0 0.0
      %1754 = vmatprep.subr.mxu0 0.0
      %1755 = vmatpush2.msra.mxu0 0.0
      %1756 = vmatprep.subr.mxu0 0.0
      %1757 = vmatpush2.msra.mxu0 0.0
      %1758 = vmatprep.subr.mxu0 0.0
      %1759 = vmatpush2.msra.mxu0 0.0
      %1760 = vmatprep.subr.mxu0 0.0
      %1761 = vmatpush2.msra.mxu0 0.0
      %1762 = vmatprep.subr.mxu0 0.0
      %1763 = vmatpush2.msra.mxu0 0.0
      %1764 = vmatprep.subr.mxu0 0.0
      %1765 = vmatpush2.msra.mxu0 0.0
      %1766 = vmatprep.subr.mxu0 0.0
      %1767 = vmatpush2.msra.mxu0 0.0
      %1768 = vmatprep.subr.mxu0 0.0
      %1769 = vmatpush2.msra.mxu0 0.0
      %1770 = vmatprep.subr.mxu0 0.0
      %1771 = vmatpush2.msra.mxu0 0.0
      %1772 = vmatprep.subr.mxu0 0.0
      %1773 = vmatpush2.msra.mxu0 0.0
      %1774 = vmatprep.subr.mxu0 0.0
      %1775 = vmatpush2.msra.mxu0 0.0
      %1776 = vmatprep.subr.mxu0 0.0
      %1777 = vmatpush2.msra.mxu0 0.0
      %1778 = vmatprep.subr.mxu0 0.0
      %1779 = vmatpush2.msra.mxu0 0.0
      %1780 = vmatprep.subr.mxu0 0.0
      %1781 = vmatpush2.msra.mxu0 0.0
      %1782 = vmatprep.subr.mxu0 0.0
      %1783 = vmatpush2.msra.mxu0 0.0
      %1784 = vmatprep.mubr.f32.mxu0 0.0
      %1785 = vmatmul.mubr.f32.gmra.mxu0 %v1620
      %v1786 = vpop.f32.mrf.mxu0
      %v1787 = vadd.f32 0.0, %v1786
      %v1788 = vpop.f32.mrf.mxu0
      %1789 = vmatprep.mubr.f32.mxu0 0.0
      %1790 = vmatmul.mubr.f32.gmra.mxu0 %v1623
      %v1791 = vpop.f32.mrf.mxu0
      %v1792 = vadd.f32 0.0, %v1791
      %v1793 = vpop.f32.mrf.mxu0
      %1794 = vmatprep.mubr.f32.mxu0 0.0
      %1795 = vmatmul.mubr.f32.gmra.mxu0 %v1626
      %v1796 = vpop.f32.mrf.mxu0
      %v1797 = vadd.f32 0.0, %v1796
      %v1798 = vpop.f32.mrf.mxu0
      %1799 = vmatprep.mubr.f32.mxu0 0.0
      %1800 = vmatmul.mubr.f32.gmra.mxu0 %v1629
      %v1801 = vpop.f32.mrf.mxu0
      %v1802 = vadd.f32 0.0, %v1801
      %v1803 = vpop.f32.mrf.mxu0
      %1804 = vdwg.mxu0
      %v1805 = vsub.f32 %v1336, %v1787
      %v1806 = vsub.f32 %v1337, %v1792
      %v1807 = vsub.f32 %v1338, %v1797
      %v1808 = vsub.f32 %v1339, %v1802
      %v1810 = vsel %vm673, %v1526, 0
      %v1813 = vsel %vm673, %v1527, 0
      %v1816 = vsel %vm673, %v1528, 0
      %v1819 = vsel %vm673, %v1529, 0
      %1821 = vmatprep.subr.mxu0 0.0
      %1822 = vmatpush1.msra.mxu0 0.0
      %1823 = vmatprep.subr.mxu0 0.0
      %1824 = vmatpush1.msra.mxu0 0.0
      %1825 = vmatprep.subr.mxu0 0.0
      %1826 = vmatpush1.msra.mxu0 0.0
      %1827 = vmatprep.subr.mxu0 0.0
      %1828 = vmatpush1.msra.mxu0 0.0
      %1829 = vmatprep.subr.mxu0 0.0
      %1830 = vmatpush1.msra.mxu0 0.0
      %1831 = vmatprep.subr.mxu0 0.0
      %1832 = vmatpush1.msra.mxu0 0.0
      %1833 = vmatprep.subr.mxu0 0.0
      %1834 = vmatpush1.msra.mxu0 0.0
      %1835 = vmatprep.subr.mxu0 0.0
      %1836 = vmatpush1.msra.mxu0 0.0
      %1837 = vmatprep.subr.mxu0 0.0
      %1838 = vmatpush1.msra.mxu0 0.0
      %1839 = vmatprep.subr.mxu0 0.0
      %1840 = vmatpush1.msra.mxu0 0.0
      %1841 = vmatprep.subr.mxu0 0.0
      %1842 = vmatpush1.msra.mxu0 0.0
      %1843 = vmatprep.subr.mxu0 0.0
      %1844 = vmatpush1.msra.mxu0 0.0
      %1845 = vmatprep.subr.mxu0 0.0
      %1846 = vmatpush1.msra.mxu0 %v1808
      %1847 = vmatprep.subr.mxu0 0.0
      %1848 = vmatpush1.msra.mxu0 %v1807
      %1849 = vmatprep.subr.mxu0 0.0
      %1850 = vmatpush1.msra.mxu0 %v1806
      %1851 = vmatprep.subr.mxu0 0.0
      %1852 = vmatpush1.msra.mxu0 %v1805
      %1853 = vmatprep.subr.mxu0 0.0
      %1854 = vmatpush2.msra.mxu0 0.0
      %1855 = vmatprep.subr.mxu0 0.0
      %1856 = vmatpush2.msra.mxu0 0.0
      %1857 = vmatprep.subr.mxu0 0.0
      %1858 = vmatpush2.msra.mxu0 0.0
      %1859 = vmatprep.subr.mxu0 0.0
      %1860 = vmatpush2.msra.mxu0 0.0
      %1861 = vmatprep.subr.mxu0 0.0
      %1862 = vmatpush2.msra.mxu0 0.0
      %1863 = vmatprep.subr.mxu0 0.0
      %1864 = vmatpush2.msra.mxu0 0.0
      %1865 = vmatprep.subr.mxu0 0.0
      %1866 = vmatpush2.msra.mxu0 0.0
      %1867 = vmatprep.subr.mxu0 0.0
      %1868 = vmatpush2.msra.mxu0 0.0
      %1869 = vmatprep.subr.mxu0 0.0
      %1870 = vmatpush2.msra.mxu0 0.0
      %1871 = vmatprep.subr.mxu0 0.0
      %1872 = vmatpush2.msra.mxu0 0.0
      %1873 = vmatprep.subr.mxu0 0.0
      %1874 = vmatpush2.msra.mxu0 0.0
      %1875 = vmatprep.subr.mxu0 0.0
      %1876 = vmatpush2.msra.mxu0 0.0
      %1877 = vmatprep.subr.mxu0 0.0
      %1878 = vmatpush2.msra.mxu0 0.0
      %1879 = vmatprep.subr.mxu0 0.0
      %1880 = vmatpush2.msra.mxu0 0.0
      %1881 = vmatprep.subr.mxu0 0.0
      %1882 = vmatpush2.msra.mxu0 0.0
      %1883 = vmatprep.subr.mxu0 0.0
      %1884 = vmatpush2.msra.mxu0 0.0
      %1885 = vmatprep.mubr.f32.mxu0 0.0
      %1886 = vmatmul.mubr.f32.gmra.mxu0 %v1810
      %v1887 = vpop.f32.mrf.mxu0
      %v1888 = vadd.f32 0.0, %v1887
      %v1889 = vpop.f32.mrf.mxu0
      %1890 = vmatprep.mubr.f32.mxu0 0.0
      %1891 = vmatmul.mubr.f32.gmra.mxu0 %v1813
      %v1892 = vpop.f32.mrf.mxu0
      %v1893 = vadd.f32 0.0, %v1892
      %v1894 = vpop.f32.mrf.mxu0
      %1895 = vmatprep.mubr.f32.mxu0 0.0
      %1896 = vmatmul.mubr.f32.gmra.mxu0 %v1816
      %v1897 = vpop.f32.mrf.mxu0
      %v1898 = vadd.f32 0.0, %v1897
      %v1899 = vpop.f32.mrf.mxu0
      %1900 = vmatprep.mubr.f32.mxu0 0.0
      %1901 = vmatmul.mubr.f32.gmra.mxu0 %v1819
      %v1902 = vpop.f32.mrf.mxu0
      %v1903 = vadd.f32 0.0, %v1902
      %v1904 = vpop.f32.mrf.mxu0
      %1905 = vdwg.mxu0
      %v1906 = vmul.f32 %v1888, 0.25
      %v1907 = vmul.f32 %v1893, 0.25
      %v1908 = vmul.f32 %v1898, 0.25
      %v1909 = vmul.f32 %v1903, 0.25
      %1910 = vmatprep.subr.mxu0 0.0
      %1911 = vmatpush1.msra.mxu0 0.0
      %1912 = vmatprep.subr.mxu0 0.0
      %1913 = vmatpush1.msra.mxu0 0.0
      %1914 = vmatprep.subr.mxu0 0.0
      %1915 = vmatpush1.msra.mxu0 0.0
      %1916 = vmatprep.subr.mxu0 0.0
      %1917 = vmatpush1.msra.mxu0 0.0
      %1918 = vmatprep.subr.mxu0 0.0
      %1919 = vmatpush1.msra.mxu0 0.0
      %1920 = vmatprep.subr.mxu0 0.0
      %1921 = vmatpush1.msra.mxu0 0.0
      %1922 = vmatprep.subr.mxu0 0.0
      %1923 = vmatpush1.msra.mxu0 0.0
      %1924 = vmatprep.subr.mxu0 0.0
      %1925 = vmatpush1.msra.mxu0 0.0
      %1926 = vmatprep.subr.mxu0 0.0
      %1927 = vmatpush1.msra.mxu0 0.0
      %1928 = vmatprep.subr.mxu0 0.0
      %1929 = vmatpush1.msra.mxu0 0.0
      %1930 = vmatprep.subr.mxu0 0.0
      %1931 = vmatpush1.msra.mxu0 0.0
      %1932 = vmatprep.subr.mxu0 0.0
      %1933 = vmatpush1.msra.mxu0 0.0
      %1934 = vmatprep.subr.mxu0 0.0
      %1935 = vmatpush1.msra.mxu0 %v1909
      %1936 = vmatprep.subr.mxu0 0.0
      %1937 = vmatpush1.msra.mxu0 %v1908
      %1938 = vmatprep.subr.mxu0 0.0
      %1939 = vmatpush1.msra.mxu0 %v1907
      %1940 = vmatprep.subr.mxu0 0.0
      %1941 = vmatpush1.msra.mxu0 %v1906
      %1942 = vmatprep.subr.mxu0 0.0
      %1943 = vmatpush2.msra.mxu0 0.0
      %1944 = vmatprep.subr.mxu0 0.0
      %1945 = vmatpush2.msra.mxu0 0.0
      %1946 = vmatprep.subr.mxu0 0.0
      %1947 = vmatpush2.msra.mxu0 0.0
      %1948 = vmatprep.subr.mxu0 0.0
      %1949 = vmatpush2.msra.mxu0 0.0
      %1950 = vmatprep.subr.mxu0 0.0
      %1951 = vmatpush2.msra.mxu0 0.0
      %1952 = vmatprep.subr.mxu0 0.0
      %1953 = vmatpush2.msra.mxu0 0.0
      %1954 = vmatprep.subr.mxu0 0.0
      %1955 = vmatpush2.msra.mxu0 0.0
      %1956 = vmatprep.subr.mxu0 0.0
      %1957 = vmatpush2.msra.mxu0 0.0
      %1958 = vmatprep.subr.mxu0 0.0
      %1959 = vmatpush2.msra.mxu0 0.0
      %1960 = vmatprep.subr.mxu0 0.0
      %1961 = vmatpush2.msra.mxu0 0.0
      %1962 = vmatprep.subr.mxu0 0.0
      %1963 = vmatpush2.msra.mxu0 0.0
      %1964 = vmatprep.subr.mxu0 0.0
      %1965 = vmatpush2.msra.mxu0 0.0
      %1966 = vmatprep.subr.mxu0 0.0
      %1967 = vmatpush2.msra.mxu0 0.0
      %1968 = vmatprep.subr.mxu0 0.0
      %1969 = vmatpush2.msra.mxu0 0.0
      %1970 = vmatprep.subr.mxu0 0.0
      %1971 = vmatpush2.msra.mxu0 0.0
      %1972 = vmatprep.subr.mxu0 0.0
      %1973 = vmatpush2.msra.mxu0 0.0
      %1974 = vmatprep.mubr.f32.mxu0 0.0
      %1975 = vmatmul.mubr.f32.gmra.mxu0 %v1003
      %v1976 = vpop.f32.mrf.mxu0
      %v1977 = vadd.f32 0.0, %v1976
      %v1978 = vpop.f32.mrf.mxu0
      %1979 = vmatprep.mubr.f32.mxu0 0.0
      %1980 = vmatmul.mubr.f32.gmra.mxu0 %v1006
      %v1981 = vpop.f32.mrf.mxu0
      %v1982 = vadd.f32 0.0, %v1981
      %v1983 = vpop.f32.mrf.mxu0
      %1984 = vmatprep.mubr.f32.mxu0 0.0
      %1985 = vmatmul.mubr.f32.gmra.mxu0 %v1009
      %v1986 = vpop.f32.mrf.mxu0
      %v1987 = vadd.f32 0.0, %v1986
      %v1988 = vpop.f32.mrf.mxu0
      %1989 = vmatprep.mubr.f32.mxu0 0.0
      %1990 = vmatmul.mubr.f32.gmra.mxu0 %v1012
      %v1991 = vpop.f32.mrf.mxu0
      %v1992 = vadd.f32 0.0, %v1991
      %v1993 = vpop.f32.mrf.mxu0
      %1994 = vdwg.mxu0
      %v1995 = vsub.f32 %v1223, %v1977
      %v1996 = vsub.f32 %v1224, %v1982
      %v1997 = vsub.f32 %v1225, %v1987
      %v1998 = vsub.f32 %v1226, %v1992
      %v2000 = vsel %vm673, %v1977, 0
      %v2003 = vsel %vm673, %v1982, 0
      %v2006 = vsel %vm673, %v1987, 0
      %v2009 = vsel %vm673, %v1992, 0
      %2011 = vmatprep.subr.mxu0 0.0
      %2012 = vmatpush1.msra.mxu0 0.0
      %2013 = vmatprep.subr.mxu0 0.0
      %2014 = vmatpush1.msra.mxu0 0.0
      %2015 = vmatprep.subr.mxu0 0.0
      %2016 = vmatpush1.msra.mxu0 0.0
      %2017 = vmatprep.subr.mxu0 0.0
      %2018 = vmatpush1.msra.mxu0 0.0
      %2019 = vmatprep.subr.mxu0 0.0
      %2020 = vmatpush1.msra.mxu0 0.0
      %2021 = vmatprep.subr.mxu0 0.0
      %2022 = vmatpush1.msra.mxu0 0.0
      %2023 = vmatprep.subr.mxu0 0.0
      %2024 = vmatpush1.msra.mxu0 0.0
      %2025 = vmatprep.subr.mxu0 0.0
      %2026 = vmatpush1.msra.mxu0 0.0
      %2027 = vmatprep.subr.mxu0 0.0
      %2028 = vmatpush1.msra.mxu0 0.0
      %2029 = vmatprep.subr.mxu0 0.0
      %2030 = vmatpush1.msra.mxu0 0.0
      %2031 = vmatprep.subr.mxu0 0.0
      %2032 = vmatpush1.msra.mxu0 0.0
      %2033 = vmatprep.subr.mxu0 0.0
      %2034 = vmatpush1.msra.mxu0 0.0
      %2035 = vmatprep.subr.mxu0 0.0
      %2036 = vmatpush1.msra.mxu0 %v1998
      %2037 = vmatprep.subr.mxu0 0.0
      %2038 = vmatpush1.msra.mxu0 %v1997
      %2039 = vmatprep.subr.mxu0 0.0
      %2040 = vmatpush1.msra.mxu0 %v1996
      %2041 = vmatprep.subr.mxu0 0.0
      %2042 = vmatpush1.msra.mxu0 %v1995
      %2043 = vmatprep.subr.mxu0 0.0
      %2044 = vmatpush2.msra.mxu0 0.0
      %2045 = vmatprep.subr.mxu0 0.0
      %2046 = vmatpush2.msra.mxu0 0.0
      %2047 = vmatprep.subr.mxu0 0.0
      %2048 = vmatpush2.msra.mxu0 0.0
      %2049 = vmatprep.subr.mxu0 0.0
      %2050 = vmatpush2.msra.mxu0 0.0
      %2051 = vmatprep.subr.mxu0 0.0
      %2052 = vmatpush2.msra.mxu0 0.0
      %2053 = vmatprep.subr.mxu0 0.0
      %2054 = vmatpush2.msra.mxu0 0.0
      %2055 = vmatprep.subr.mxu0 0.0
      %2056 = vmatpush2.msra.mxu0 0.0
      %2057 = vmatprep.subr.mxu0 0.0
      %2058 = vmatpush2.msra.mxu0 0.0
      %2059 = vmatprep.subr.mxu0 0.0
      %2060 = vmatpush2.msra.mxu0 0.0
      %2061 = vmatprep.subr.mxu0 0.0
      %2062 = vmatpush2.msra.mxu0 0.0
      %2063 = vmatprep.subr.mxu0 0.0
      %2064 = vmatpush2.msra.mxu0 0.0
      %2065 = vmatprep.subr.mxu0 0.0
      %2066 = vmatpush2.msra.mxu0 0.0
      %2067 = vmatprep.subr.mxu0 0.0
      %2068 = vmatpush2.msra.mxu0 0.0
      %2069 = vmatprep.subr.mxu0 0.0
      %2070 = vmatpush2.msra.mxu0 0.0
      %2071 = vmatprep.subr.mxu0 0.0
      %2072 = vmatpush2.msra.mxu0 0.0
      %2073 = vmatprep.subr.mxu0 0.0
      %2074 = vmatpush2.msra.mxu0 0.0
      %2075 = vmatprep.mubr.f32.mxu0 0.0
      %2076 = vmatmul.mubr.f32.gmra.mxu0 %v2000
      %v2077 = vpop.f32.mrf.mxu0
      %v2078 = vadd.f32 0.0, %v2077
      %v2079 = vpop.f32.mrf.mxu0
      %2080 = vmatprep.mubr.f32.mxu0 0.0
      %2081 = vmatmul.mubr.f32.gmra.mxu0 %v2003
      %v2082 = vpop.f32.mrf.mxu0
      %v2083 = vadd.f32 0.0, %v2082
      %v2084 = vpop.f32.mrf.mxu0
      %2085 = vmatprep.mubr.f32.mxu0 0.0
      %2086 = vmatmul.mubr.f32.gmra.mxu0 %v2006
      %v2087 = vpop.f32.mrf.mxu0
      %v2088 = vadd.f32 0.0, %v2087
      %v2089 = vpop.f32.mrf.mxu0
      %2090 = vmatprep.mubr.f32.mxu0 0.0
      %2091 = vmatmul.mubr.f32.gmra.mxu0 %v2009
      %v2092 = vpop.f32.mrf.mxu0
      %v2093 = vadd.f32 0.0, %v2092
      %v2094 = vpop.f32.mrf.mxu0
      %2095 = vdwg.mxu0
      %v2096 = vsub.f32 %v1231, %v2078
      %v2097 = vsub.f32 %v1232, %v2083
      %v2098 = vsub.f32 %v1233, %v2088
      %v2099 = vsub.f32 %v1234, %v2093
      %2100 = vmatprep.subr.mxu0 0.0
      %2101 = vmatpush1.msra.mxu0 0.0
      %2102 = vmatprep.subr.mxu0 0.0
      %2103 = vmatpush1.msra.mxu0 0.0
      %2104 = vmatprep.subr.mxu0 0.0
      %2105 = vmatpush1.msra.mxu0 0.0
      %2106 = vmatprep.subr.mxu0 0.0
      %2107 = vmatpush1.msra.mxu0 0.0
      %2108 = vmatprep.subr.mxu0 0.0
      %2109 = vmatpush1.msra.mxu0 0.0
      %2110 = vmatprep.subr.mxu0 0.0
      %2111 = vmatpush1.msra.mxu0 0.0
      %2112 = vmatprep.subr.mxu0 0.0
      %2113 = vmatpush1.msra.mxu0 0.0
      %2114 = vmatprep.subr.mxu0 0.0
      %2115 = vmatpush1.msra.mxu0 0.0
      %2116 = vmatprep.subr.mxu0 0.0
      %2117 = vmatpush1.msra.mxu0 0.0
      %2118 = vmatprep.subr.mxu0 0.0
      %2119 = vmatpush1.msra.mxu0 0.0
      %2120 = vmatprep.subr.mxu0 0.0
      %2121 = vmatpush1.msra.mxu0 0.0
      %2122 = vmatprep.subr.mxu0 0.0
      %2123 = vmatpush1.msra.mxu0 0.0
      %2124 = vmatprep.subr.mxu0 0.0
      %2125 = vmatpush1.msra.mxu0 %v2099
      %2126 = vmatprep.subr.mxu0 0.0
      %2127 = vmatpush1.msra.mxu0 %v2098
      %2128 = vmatprep.subr.mxu0 0.0
      %2129 = vmatpush1.msra.mxu0 %v2097
      %2130 = vmatprep.subr.mxu0 0.0
      %2131 = vmatpush1.msra.mxu0 %v2096
      %2132 = vmatprep.subr.mxu0 0.0
      %2133 = vmatpush2.msra.mxu0 0.0
      %2134 = vmatprep.subr.mxu0 0.0
      %2135 = vmatpush2.msra.mxu0 0.0
      %2136 = vmatprep.subr.mxu0 0.0
      %2137 = vmatpush2.msra.mxu0 0.0
      %2138 = vmatprep.subr.mxu0 0.0
      %2139 = vmatpush2.msra.mxu0 0.0
      %2140 = vmatprep.subr.mxu0 0.0
      %2141 = vmatpush2.msra.mxu0 0.0
      %2142 = vmatprep.subr.mxu0 0.0
      %2143 = vmatpush2.msra.mxu0 0.0
      %2144 = vmatprep.subr.mxu0 0.0
      %2145 = vmatpush2.msra.mxu0 0.0
      %2146 = vmatprep.subr.mxu0 0.0
      %2147 = vmatpush2.msra.mxu0 0.0
      %2148 = vmatprep.subr.mxu0 0.0
      %2149 = vmatpush2.msra.mxu0 0.0
      %2150 = vmatprep.subr.mxu0 0.0
      %2151 = vmatpush2.msra.mxu0 0.0
      %2152 = vmatprep.subr.mxu0 0.0
      %2153 = vmatpush2.msra.mxu0 0.0
      %2154 = vmatprep.subr.mxu0 0.0
      %2155 = vmatpush2.msra.mxu0 0.0
      %2156 = vmatprep.subr.mxu0 0.0
      %2157 = vmatpush2.msra.mxu0 0.0
      %2158 = vmatprep.subr.mxu0 0.0
      %2159 = vmatpush2.msra.mxu0 0.0
      %2160 = vmatprep.subr.mxu0 0.0
      %2161 = vmatpush2.msra.mxu0 0.0
      %2162 = vmatprep.subr.mxu0 0.0
      %2163 = vmatpush2.msra.mxu0 0.0
      %2164 = vmatprep.mubr.f32.mxu0 0.0
      %2165 = vmatmul.mubr.f32.gmra.mxu0 %v2000
      %v2166 = vpop.f32.mrf.mxu0
      %v2167 = vadd.f32 0.0, %v2166
      %v2168 = vpop.f32.mrf.mxu0
      %2169 = vmatprep.mubr.f32.mxu0 0.0
      %2170 = vmatmul.mubr.f32.gmra.mxu0 %v2003
      %v2171 = vpop.f32.mrf.mxu0
      %v2172 = vadd.f32 0.0, %v2171
      %v2173 = vpop.f32.mrf.mxu0
      %2174 = vmatprep.mubr.f32.mxu0 0.0
      %2175 = vmatmul.mubr.f32.gmra.mxu0 %v2006
      %v2176 = vpop.f32.mrf.mxu0
      %v2177 = vadd.f32 0.0, %v2176
      %v2178 = vpop.f32.mrf.mxu0
      %2179 = vmatprep.mubr.f32.mxu0 0.0
      %2180 = vmatmul.mubr.f32.gmra.mxu0 %v2009
      %v2181 = vpop.f32.mrf.mxu0
      %v2182 = vadd.f32 0.0, %v2181
      %v2183 = vpop.f32.mrf.mxu0
      %2184 = vdwg.mxu0
      %v2185 = vsub.f32 %v1336, %v2167
      %v2186 = vsub.f32 %v1337, %v2172
      %v2187 = vsub.f32 %v1338, %v2177
      %v2188 = vsub.f32 %v1339, %v2182
      %v2190 = vsel %vm673, %v1906, 0
      %v2193 = vsel %vm673, %v1907, 0
      %v2196 = vsel %vm673, %v1908, 0
      %v2199 = vsel %vm673, %v1909, 0
      %2201 = vmatprep.subr.mxu0 0.0
      %2202 = vmatpush1.msra.mxu0 0.0
      %2203 = vmatprep.subr.mxu0 0.0
      %2204 = vmatpush1.msra.mxu0 0.0
      %2205 = vmatprep.subr.mxu0 0.0
      %2206 = vmatpush1.msra.mxu0 0.0
      %2207 = vmatprep.subr.mxu0 0.0
      %2208 = vmatpush1.msra.mxu0 0.0
      %2209 = vmatprep.subr.mxu0 0.0
      %2210 = vmatpush1.msra.mxu0 0.0
      %2211 = vmatprep.subr.mxu0 0.0
      %2212 = vmatpush1.msra.mxu0 0.0
      %2213 = vmatprep.subr.mxu0 0.0
      %2214 = vmatpush1.msra.mxu0 0.0
      %2215 = vmatprep.subr.mxu0 0.0
      %2216 = vmatpush1.msra.mxu0 0.0
      %2217 = vmatprep.subr.mxu0 0.0
      %2218 = vmatpush1.msra.mxu0 0.0
      %2219 = vmatprep.subr.mxu0 0.0
      %2220 = vmatpush1.msra.mxu0 0.0
      %2221 = vmatprep.subr.mxu0 0.0
      %2222 = vmatpush1.msra.mxu0 0.0
      %2223 = vmatprep.subr.mxu0 0.0
      %2224 = vmatpush1.msra.mxu0 0.0
      %2225 = vmatprep.subr.mxu0 0.0
      %2226 = vmatpush1.msra.mxu0 %v2188
      %2227 = vmatprep.subr.mxu0 0.0
      %2228 = vmatpush1.msra.mxu0 %v2187
      %2229 = vmatprep.subr.mxu0 0.0
      %2230 = vmatpush1.msra.mxu0 %v2186
      %2231 = vmatprep.subr.mxu0 0.0
      %2232 = vmatpush1.msra.mxu0 %v2185
      %2233 = vmatprep.subr.mxu0 0.0
      %2234 = vmatpush2.msra.mxu0 0.0
      %2235 = vmatprep.subr.mxu0 0.0
      %2236 = vmatpush2.msra.mxu0 0.0
      %2237 = vmatprep.subr.mxu0 0.0
      %2238 = vmatpush2.msra.mxu0 0.0
      %2239 = vmatprep.subr.mxu0 0.0
      %2240 = vmatpush2.msra.mxu0 0.0
      %2241 = vmatprep.subr.mxu0 0.0
      %2242 = vmatpush2.msra.mxu0 0.0
      %2243 = vmatprep.subr.mxu0 0.0
      %2244 = vmatpush2.msra.mxu0 0.0
      %2245 = vmatprep.subr.mxu0 0.0
      %2246 = vmatpush2.msra.mxu0 0.0
      %2247 = vmatprep.subr.mxu0 0.0
      %2248 = vmatpush2.msra.mxu0 0.0
      %2249 = vmatprep.subr.mxu0 0.0
      %2250 = vmatpush2.msra.mxu0 0.0
      %2251 = vmatprep.subr.mxu0 0.0
      %2252 = vmatpush2.msra.mxu0 0.0
      %2253 = vmatprep.subr.mxu0 0.0
      %2254 = vmatpush2.msra.mxu0 0.0
      %2255 = vmatprep.subr.mxu0 0.0
      %2256 = vmatpush2.msra.mxu0 0.0
      %2257 = vmatprep.subr.mxu0 0.0
      %2258 = vmatpush2.msra.mxu0 0.0
      %2259 = vmatprep.subr.mxu0 0.0
      %2260 = vmatpush2.msra.mxu0 0.0
      %2261 = vmatprep.subr.mxu0 0.0
      %2262 = vmatpush2.msra.mxu0 0.0
      %2263 = vmatprep.subr.mxu0 0.0
      %2264 = vmatpush2.msra.mxu0 0.0
      %2265 = vmatprep.mubr.f32.mxu0 0.0
      %2266 = vmatmul.mubr.f32.gmra.mxu0 %v2190
      %v2267 = vpop.f32.mrf.mxu0
      %v2268 = vadd.f32 0.0, %v2267
      %v2269 = vpop.f32.mrf.mxu0
      %2270 = vmatprep.mubr.f32.mxu0 0.0
      %2271 = vmatmul.mubr.f32.gmra.mxu0 %v2193
      %v2272 = vpop.f32.mrf.mxu0
      %v2273 = vadd.f32 0.0, %v2272
      %v2274 = vpop.f32.mrf.mxu0
      %2275 = vmatprep.mubr.f32.mxu0 0.0
      %2276 = vmatmul.mubr.f32.gmra.mxu0 %v2196
      %v2277 = vpop.f32.mrf.mxu0
      %v2278 = vadd.f32 0.0, %v2277
      %v2279 = vpop.f32.mrf.mxu0
      %2280 = vmatprep.mubr.f32.mxu0 0.0
      %2281 = vmatmul.mubr.f32.gmra.mxu0 %v2199
      %v2282 = vpop.f32.mrf.mxu0
      %v2283 = vadd.f32 0.0, %v2282
      %v2284 = vpop.f32.mrf.mxu0
      %2285 = vdwg.mxu0
      %v2286 = vmul.f32 %v2268, 0.25
      %v2287 = vmul.f32 %v2273, 0.25
      %v2288 = vmul.f32 %v2278, 0.25
      %v2289 = vmul.f32 %v2283, 0.25
      %2290 = vmatprep.subr.mxu0 0.0
      %2291 = vmatpush1.msra.mxu0 0.0
      %2292 = vmatprep.subr.mxu0 0.0
      %2293 = vmatpush1.msra.mxu0 0.0
      %2294 = vmatprep.subr.mxu0 0.0
      %2295 = vmatpush1.msra.mxu0 0.0
      %2296 = vmatprep.subr.mxu0 0.0
      %2297 = vmatpush1.msra.mxu0 0.0
      %2298 = vmatprep.subr.mxu0 0.0
      %2299 = vmatpush1.msra.mxu0 0.0
      %2300 = vmatprep.subr.mxu0 0.0
      %2301 = vmatpush1.msra.mxu0 0.0
      %2302 = vmatprep.subr.mxu0 0.0
      %2303 = vmatpush1.msra.mxu0 0.0
      %2304 = vmatprep.subr.mxu0 0.0
      %2305 = vmatpush1.msra.mxu0 0.0
      %2306 = vmatprep.subr.mxu0 0.0
      %2307 = vmatpush1.msra.mxu0 0.0
      %2308 = vmatprep.subr.mxu0 0.0
      %2309 = vmatpush1.msra.mxu0 0.0
      %2310 = vmatprep.subr.mxu0 0.0
      %2311 = vmatpush1.msra.mxu0 0.0
      %2312 = vmatprep.subr.mxu0 0.0
      %2313 = vmatpush1.msra.mxu0 0.0
      %2314 = vmatprep.subr.mxu0 0.0
      %2315 = vmatpush1.msra.mxu0 %v2289
      %2316 = vmatprep.subr.mxu0 0.0
      %2317 = vmatpush1.msra.mxu0 %v2288
      %2318 = vmatprep.subr.mxu0 0.0
      %2319 = vmatpush1.msra.mxu0 %v2287
      %2320 = vmatprep.subr.mxu0 0.0
      %2321 = vmatpush1.msra.mxu0 %v2286
      %2322 = vmatprep.subr.mxu0 0.0
      %2323 = vmatpush2.msra.mxu0 0.0
      %2324 = vmatprep.subr.mxu0 0.0
      %2325 = vmatpush2.msra.mxu0 0.0
      %2326 = vmatprep.subr.mxu0 0.0
      %2327 = vmatpush2.msra.mxu0 0.0
      %2328 = vmatprep.subr.mxu0 0.0
      %2329 = vmatpush2.msra.mxu0 0.0
      %2330 = vmatprep.subr.mxu0 0.0
      %2331 = vmatpush2.msra.mxu0 0.0
      %2332 = vmatprep.subr.mxu0 0.0
      %2333 = vmatpush2.msra.mxu0 0.0
      %2334 = vmatprep.subr.mxu0 0.0
      %2335 = vmatpush2.msra.mxu0 0.0
      %2336 = vmatprep.subr.mxu0 0.0
      %2337 = vmatpush2.msra.mxu0 0.0
      %2338 = vmatprep.subr.mxu0 0.0
      %2339 = vmatpush2.msra.mxu0 0.0
      %2340 = vmatprep.subr.mxu0 0.0
      %2341 = vmatpush2.msra.mxu0 0.0
      %2342 = vmatprep.subr.mxu0 0.0
      %2343 = vmatpush2.msra.mxu0 0.0
      %2344 = vmatprep.subr.mxu0 0.0
      %2345 = vmatpush2.msra.mxu0 0.0
      %2346 = vmatprep.subr.mxu0 0.0
      %2347 = vmatpush2.msra.mxu0 0.0
      %2348 = vmatprep.subr.mxu0 0.0
      %2349 = vmatpush2.msra.mxu0 0.0
      %2350 = vmatprep.subr.mxu0 0.0
      %2351 = vmatpush2.msra.mxu0 0.0
      %2352 = vmatprep.subr.mxu0 0.0
      %2353 = vmatpush2.msra.mxu0 0.0
      %2354 = vmatprep.mubr.f32.mxu0 0.0
      %2355 = vmatmul.mubr.f32.gmra.mxu0 %v1003
      %v2356 = vpop.f32.mrf.mxu0
      %v2357 = vadd.f32 0.0, %v2356
      %v2358 = vpop.f32.mrf.mxu0
      %2359 = vmatprep.mubr.f32.mxu0 0.0
      %2360 = vmatmul.mubr.f32.gmra.mxu0 %v1006
      %v2361 = vpop.f32.mrf.mxu0
      %v2362 = vadd.f32 0.0, %v2361
      %v2363 = vpop.f32.mrf.mxu0
      %2364 = vmatprep.mubr.f32.mxu0 0.0
      %2365 = vmatmul.mubr.f32.gmra.mxu0 %v1009
      %v2366 = vpop.f32.mrf.mxu0
      %v2367 = vadd.f32 0.0, %v2366
      %v2368 = vpop.f32.mrf.mxu0
      %2369 = vmatprep.mubr.f32.mxu0 0.0
      %2370 = vmatmul.mubr.f32.gmra.mxu0 %v1012
      %v2371 = vpop.f32.mrf.mxu0
      %v2372 = vadd.f32 0.0, %v2371
      %v2373 = vpop.f32.mrf.mxu0
      %2374 = vdwg.mxu0
      %v2375 = vsub.f32 %v1223, %v2357
      %v2376 = vsub.f32 %v1224, %v2362
      %v2377 = vsub.f32 %v1225, %v2367
      %v2378 = vsub.f32 %v1226, %v2372
      %v2380 = vsel %vm673, %v2357, 0
      %v2383 = vsel %vm673, %v2362, 0
      %v2386 = vsel %vm673, %v2367, 0
      %v2389 = vsel %vm673, %v2372, 0
      %2391 = vmatprep.subr.mxu0 0.0
      %2392 = vmatpush1.msra.mxu0 0.0
      %2393 = vmatprep.subr.mxu0 0.0
      %2394 = vmatpush1.msra.mxu0 0.0
      %2395 = vmatprep.subr.mxu0 0.0
      %2396 = vmatpush1.msra.mxu0 0.0
      %2397 = vmatprep.subr.mxu0 0.0
      %2398 = vmatpush1.msra.mxu0 0.0
      %2399 = vmatprep.subr.mxu0 0.0
      %2400 = vmatpush1.msra.mxu0 0.0
      %2401 = vmatprep.subr.mxu0 0.0
      %2402 = vmatpush1.msra.mxu0 0.0
      %2403 = vmatprep.subr.mxu0 0.0
      %2404 = vmatpush1.msra.mxu0 0.0
      %2405 = vmatprep.subr.mxu0 0.0
      %2406 = vmatpush1.msra.mxu0 0.0
      %2407 = vmatprep.subr.mxu0 0.0
      %2408 = vmatpush1.msra.mxu0 0.0
      %2409 = vmatprep.subr.mxu0 0.0
      %2410 = vmatpush1.msra.mxu0 0.0
      %2411 = vmatprep.subr.mxu0 0.0
      %2412 = vmatpush1.msra.mxu0 0.0
      %2413 = vmatprep.subr.mxu0 0.0
      %2414 = vmatpush1.msra.mxu0 0.0
      %2415 = vmatprep.subr.mxu0 0.0
      %2416 = vmatpush1.msra.mxu0 %v2378
      %2417 = vmatprep.subr.mxu0 0.0
      %2418 = vmatpush1.msra.mxu0 %v2377
      %2419 = vmatprep.subr.mxu0 0.0
      %2420 = vmatpush1.msra.mxu0 %v2376
      %2421 = vmatprep.subr.mxu0 0.0
      %2422 = vmatpush1.msra.mxu0 %v2375
      %2423 = vmatprep.subr.mxu0 0.0
      %2424 = vmatpush2.msra.mxu0 0.0
      %2425 = vmatprep.subr.mxu0 0.0
      %2426 = vmatpush2.msra.mxu0 0.0
      %2427 = vmatprep.subr.mxu0 0.0
      %2428 = vmatpush2.msra.mxu0 0.0
      %2429 = vmatprep.subr.mxu0 0.0
      %2430 = vmatpush2.msra.mxu0 0.0
      %2431 = vmatprep.subr.mxu0 0.0
      %2432 = vmatpush2.msra.mxu0 0.0
      %2433 = vmatprep.subr.mxu0 0.0
      %2434 = vmatpush2.msra.mxu0 0.0
      %2435 = vmatprep.subr.mxu0 0.0
      %2436 = vmatpush2.msra.mxu0 0.0
      %2437 = vmatprep.subr.mxu0 0.0
      %2438 = vmatpush2.msra.mxu0 0.0
      %2439 = vmatprep.subr.mxu0 0.0
      %2440 = vmatpush2.msra.mxu0 0.0
      %2441 = vmatprep.subr.mxu0 0.0
      %2442 = vmatpush2.msra.mxu0 0.0
      %2443 = vmatprep.subr.mxu0 0.0
      %2444 = vmatpush2.msra.mxu0 0.0
      %2445 = vmatprep.subr.mxu0 0.0
      %2446 = vmatpush2.msra.mxu0 0.0
      %2447 = vmatprep.subr.mxu0 0.0
      %2448 = vmatpush2.msra.mxu0 0.0
      %2449 = vmatprep.subr.mxu0 0.0
      %2450 = vmatpush2.msra.mxu0 0.0
      %2451 = vmatprep.subr.mxu0 0.0
      %2452 = vmatpush2.msra.mxu0 0.0
      %2453 = vmatprep.subr.mxu0 0.0
      %2454 = vmatpush2.msra.mxu0 0.0
      %2455 = vmatprep.mubr.f32.mxu0 0.0
      %2456 = vmatmul.mubr.f32.gmra.mxu0 %v2380
      %v2457 = vpop.f32.mrf.mxu0
      %v2458 = vadd.f32 0.0, %v2457
      %v2459 = vpop.f32.mrf.mxu0
      %2460 = vmatprep.mubr.f32.mxu0 0.0
      %2461 = vmatmul.mubr.f32.gmra.mxu0 %v2383
      %v2462 = vpop.f32.mrf.mxu0
      %v2463 = vadd.f32 0.0, %v2462
      %v2464 = vpop.f32.mrf.mxu0
      %2465 = vmatprep.mubr.f32.mxu0 0.0
      %2466 = vmatmul.mubr.f32.gmra.mxu0 %v2386
      %v2467 = vpop.f32.mrf.mxu0
      %v2468 = vadd.f32 0.0, %v2467
      %v2469 = vpop.f32.mrf.mxu0
      %2470 = vmatprep.mubr.f32.mxu0 0.0
      %2471 = vmatmul.mubr.f32.gmra.mxu0 %v2389
      %v2472 = vpop.f32.mrf.mxu0
      %v2473 = vadd.f32 0.0, %v2472
      %v2474 = vpop.f32.mrf.mxu0
      %2475 = vdwg.mxu0
      %v2476 = vsub.f32 %v1231, %v2458
      %v2477 = vsub.f32 %v1232, %v2463
      %v2478 = vsub.f32 %v1233, %v2468
      %v2479 = vsub.f32 %v1234, %v2473
      %2480 = vmatprep.subr.mxu0 0.0
      %2481 = vmatpush1.msra.mxu0 0.0
      %2482 = vmatprep.subr.mxu0 0.0
      %2483 = vmatpush1.msra.mxu0 0.0
      %2484 = vmatprep.subr.mxu0 0.0
      %2485 = vmatpush1.msra.mxu0 0.0
      %2486 = vmatprep.subr.mxu0 0.0
      %2487 = vmatpush1.msra.mxu0 0.0
      %2488 = vmatprep.subr.mxu0 0.0
      %2489 = vmatpush1.msra.mxu0 0.0
      %2490 = vmatprep.subr.mxu0 0.0
      %2491 = vmatpush1.msra.mxu0 0.0
      %2492 = vmatprep.subr.mxu0 0.0
      %2493 = vmatpush1.msra.mxu0 0.0
      %2494 = vmatprep.subr.mxu0 0.0
      %2495 = vmatpush1.msra.mxu0 0.0
      %2496 = vmatprep.subr.mxu0 0.0
      %2497 = vmatpush1.msra.mxu0 0.0
      %2498 = vmatprep.subr.mxu0 0.0
      %2499 = vmatpush1.msra.mxu0 0.0
      %2500 = vmatprep.subr.mxu0 0.0
      %2501 = vmatpush1.msra.mxu0 0.0
      %2502 = vmatprep.subr.mxu0 0.0
      %2503 = vmatpush1.msra.mxu0 0.0
      %2504 = vmatprep.subr.mxu0 0.0
      %2505 = vmatpush1.msra.mxu0 %v2479
      %2506 = vmatprep.subr.mxu0 0.0
      %2507 = vmatpush1.msra.mxu0 %v2478
      %2508 = vmatprep.subr.mxu0 0.0
      %2509 = vmatpush1.msra.mxu0 %v2477
      %2510 = vmatprep.subr.mxu0 0.0
      %2511 = vmatpush1.msra.mxu0 %v2476
      %2512 = vmatprep.subr.mxu0 0.0
      %2513 = vmatpush2.msra.mxu0 0.0
      %2514 = vmatprep.subr.mxu0 0.0
      %2515 = vmatpush2.msra.mxu0 0.0
      %2516 = vmatprep.subr.mxu0 0.0
      %2517 = vmatpush2.msra.mxu0 0.0
      %2518 = vmatprep.subr.mxu0 0.0
      %2519 = vmatpush2.msra.mxu0 0.0
      %2520 = vmatprep.subr.mxu0 0.0
      %2521 = vmatpush2.msra.mxu0 0.0
      %2522 = vmatprep.subr.mxu0 0.0
      %2523 = vmatpush2.msra.mxu0 0.0
      %2524 = vmatprep.subr.mxu0 0.0
      %2525 = vmatpush2.msra.mxu0 0.0
      %2526 = vmatprep.subr.mxu0 0.0
      %2527 = vmatpush2.msra.mxu0 0.0
      %2528 = vmatprep.subr.mxu0 0.0
      %2529 = vmatpush2.msra.mxu0 0.0
      %2530 = vmatprep.subr.mxu0 0.0
      %2531 = vmatpush2.msra.mxu0 0.0
      %2532 = vmatprep.subr.mxu0 0.0
      %2533 = vmatpush2.msra.mxu0 0.0
      %2534 = vmatprep.subr.mxu0 0.0
      %2535 = vmatpush2.msra.mxu0 0.0
      %2536 = vmatprep.subr.mxu0 0.0
      %2537 = vmatpush2.msra.mxu0 0.0
      %2538 = vmatprep.subr.mxu0 0.0
      %2539 = vmatpush2.msra.mxu0 0.0
      %2540 = vmatprep.subr.mxu0 0.0
      %2541 = vmatpush2.msra.mxu0 0.0
      %2542 = vmatprep.subr.mxu0 0.0
      %2543 = vmatpush2.msra.mxu0 0.0
      %2544 = vmatprep.mubr.f32.mxu0 0.0
      %2545 = vmatmul.mubr.f32.gmra.mxu0 %v2380
      %v2546 = vpop.f32.mrf.mxu0
      %v2547 = vadd.f32 0.0, %v2546
      %v2548 = vpop.f32.mrf.mxu0
      %2549 = vmatprep.mubr.f32.mxu0 0.0
      %2550 = vmatmul.mubr.f32.gmra.mxu0 %v2383
      %v2551 = vpop.f32.mrf.mxu0
      %v2552 = vadd.f32 0.0, %v2551
      %v2553 = vpop.f32.mrf.mxu0
      %2554 = vmatprep.mubr.f32.mxu0 0.0
      %2555 = vmatmul.mubr.f32.gmra.mxu0 %v2386
      %v2556 = vpop.f32.mrf.mxu0
      %v2557 = vadd.f32 0.0, %v2556
      %v2558 = vpop.f32.mrf.mxu0
      %2559 = vmatprep.mubr.f32.mxu0 0.0
      %2560 = vmatmul.mubr.f32.gmra.mxu0 %v2389
      %v2561 = vpop.f32.mrf.mxu0
      %v2562 = vadd.f32 0.0, %v2561
      %v2563 = vpop.f32.mrf.mxu0
      %2564 = vdwg.mxu0
      %v2565 = vsub.f32 %v1336, %v2547
      %v2566 = vsub.f32 %v1337, %v2552
      %v2567 = vsub.f32 %v1338, %v2557
      %v2568 = vsub.f32 %v1339, %v2562
      %v2570 = vsel %vm673, %v2286, 0
      %v2573 = vsel %vm673, %v2287, 0
      %v2576 = vsel %vm673, %v2288, 0
      %v2579 = vsel %vm673, %v2289, 0
      %2581 = vmatprep.subr.mxu0 0.0
      %2582 = vmatpush1.msra.mxu0 0.0
      %2583 = vmatprep.subr.mxu0 0.0
      %2584 = vmatpush1.msra.mxu0 0.0
      %2585 = vmatprep.subr.mxu0 0.0
      %2586 = vmatpush1.msra.mxu0 0.0
      %2587 = vmatprep.subr.mxu0 0.0
      %2588 = vmatpush1.msra.mxu0 0.0
      %2589 = vmatprep.subr.mxu0 0.0
      %2590 = vmatpush1.msra.mxu0 0.0
      %2591 = vmatprep.subr.mxu0 0.0
      %2592 = vmatpush1.msra.mxu0 0.0
      %2593 = vmatprep.subr.mxu0 0.0
      %2594 = vmatpush1.msra.mxu0 0.0
      %2595 = vmatprep.subr.mxu0 0.0
      %2596 = vmatpush1.msra.mxu0 0.0
      %2597 = vmatprep.subr.mxu0 0.0
      %2598 = vmatpush1.msra.mxu0 0.0
      %2599 = vmatprep.subr.mxu0 0.0
      %2600 = vmatpush1.msra.mxu0 0.0
      %2601 = vmatprep.subr.mxu0 0.0
      %2602 = vmatpush1.msra.mxu0 0.0
      %2603 = vmatprep.subr.mxu0 0.0
      %2604 = vmatpush1.msra.mxu0 0.0
      %2605 = vmatprep.subr.mxu0 0.0
      %2606 = vmatpush1.msra.mxu0 %v2568
      %2607 = vmatprep.subr.mxu0 0.0
      %2608 = vmatpush1.msra.mxu0 %v2567
      %2609 = vmatprep.subr.mxu0 0.0
      %2610 = vmatpush1.msra.mxu0 %v2566
      %2611 = vmatprep.subr.mxu0 0.0
      %2612 = vmatpush1.msra.mxu0 %v2565
      %2613 = vmatprep.subr.mxu0 0.0
      %2614 = vmatpush2.msra.mxu0 0.0
      %2615 = vmatprep.subr.mxu0 0.0
      %2616 = vmatpush2.msra.mxu0 0.0
      %2617 = vmatprep.subr.mxu0 0.0
      %2618 = vmatpush2.msra.mxu0 0.0
      %2619 = vmatprep.subr.mxu0 0.0
      %2620 = vmatpush2.msra.mxu0 0.0
      %2621 = vmatprep.subr.mxu0 0.0
      %2622 = vmatpush2.msra.mxu0 0.0
      %2623 = vmatprep.subr.mxu0 0.0
      %2624 = vmatpush2.msra.mxu0 0.0
      %2625 = vmatprep.subr.mxu0 0.0
      %2626 = vmatpush2.msra.mxu0 0.0
      %2627 = vmatprep.subr.mxu0 0.0
      %2628 = vmatpush2.msra.mxu0 0.0
      %2629 = vmatprep.subr.mxu0 0.0
      %2630 = vmatpush2.msra.mxu0 0.0
      %2631 = vmatprep.subr.mxu0 0.0
      %2632 = vmatpush2.msra.mxu0 0.0
      %2633 = vmatprep.subr.mxu0 0.0
      %2634 = vmatpush2.msra.mxu0 0.0
      %2635 = vmatprep.subr.mxu0 0.0
      %2636 = vmatpush2.msra.mxu0 0.0
      %2637 = vmatprep.subr.mxu0 0.0
      %2638 = vmatpush2.msra.mxu0 0.0
      %2639 = vmatprep.subr.mxu0 0.0
      %2640 = vmatpush2.msra.mxu0 0.0
      %2641 = vmatprep.subr.mxu0 0.0
      %2642 = vmatpush2.msra.mxu0 0.0
      %2643 = vmatprep.subr.mxu0 0.0
      %2644 = vmatpush2.msra.mxu0 0.0
      %2645 = vmatprep.mubr.f32.mxu0 0.0
      %2646 = vmatmul.mubr.f32.gmra.mxu0 %v2570
      %v2647 = vpop.f32.mrf.mxu0
      %v2648 = vadd.f32 0.0, %v2647
      %v2649 = vpop.f32.mrf.mxu0
      %2650 = vmatprep.mubr.f32.mxu0 0.0
      %2651 = vmatmul.mubr.f32.gmra.mxu0 %v2573
      %v2652 = vpop.f32.mrf.mxu0
      %v2653 = vadd.f32 0.0, %v2652
      %v2654 = vpop.f32.mrf.mxu0
      %2655 = vmatprep.mubr.f32.mxu0 0.0
      %2656 = vmatmul.mubr.f32.gmra.mxu0 %v2576
      %v2657 = vpop.f32.mrf.mxu0
      %v2658 = vadd.f32 0.0, %v2657
      %v2659 = vpop.f32.mrf.mxu0
      %2660 = vmatprep.mubr.f32.mxu0 0.0
      %2661 = vmatmul.mubr.f32.gmra.mxu0 %v2579
      %v2662 = vpop.f32.mrf.mxu0
      %v2663 = vadd.f32 0.0, %v2662
      %v2664 = vpop.f32.mrf.mxu0
      %2665 = vdwg.mxu0
      %v2666 = vmul.f32 %v2648, 0.25
      %v2667 = vmul.f32 %v2653, 0.25
      %v2668 = vmul.f32 %v2658, 0.25
      %v2669 = vmul.f32 %v2663, 0.25
      %2670 = vmatprep.subr.mxu0 0.0
      %2671 = vmatpush1.msra.mxu0 0.0
      %2672 = vmatprep.subr.mxu0 0.0
      %2673 = vmatpush1.msra.mxu0 0.0
      %2674 = vmatprep.subr.mxu0 0.0
      %2675 = vmatpush1.msra.mxu0 0.0
      %2676 = vmatprep.subr.mxu0 0.0
      %2677 = vmatpush1.msra.mxu0 0.0
      %2678 = vmatprep.subr.mxu0 0.0
      %2679 = vmatpush1.msra.mxu0 0.0
      %2680 = vmatprep.subr.mxu0 0.0
      %2681 = vmatpush1.msra.mxu0 0.0
      %2682 = vmatprep.subr.mxu0 0.0
      %2683 = vmatpush1.msra.mxu0 0.0
      %2684 = vmatprep.subr.mxu0 0.0
      %2685 = vmatpush1.msra.mxu0 0.0
      %2686 = vmatprep.subr.mxu0 0.0
      %2687 = vmatpush1.msra.mxu0 0.0
      %2688 = vmatprep.subr.mxu0 0.0
      %2689 = vmatpush1.msra.mxu0 0.0
      %2690 = vmatprep.subr.mxu0 0.0
      %2691 = vmatpush1.msra.mxu0 0.0
      %2692 = vmatprep.subr.mxu0 0.0
      %2693 = vmatpush1.msra.mxu0 0.0
      %2694 = vmatprep.subr.mxu0 0.0
      %2695 = vmatpush1.msra.mxu0 %v2669
      %2696 = vmatprep.subr.mxu0 0.0
      %2697 = vmatpush1.msra.mxu0 %v2668
      %2698 = vmatprep.subr.mxu0 0.0
      %2699 = vmatpush1.msra.mxu0 %v2667
      %2700 = vmatprep.subr.mxu0 0.0
      %2701 = vmatpush1.msra.mxu0 %v2666
      %2702 = vmatprep.subr.mxu0 0.0
      %2703 = vmatpush2.msra.mxu0 0.0
      %2704 = vmatprep.subr.mxu0 0.0
      %2705 = vmatpush2.msra.mxu0 0.0
      %2706 = vmatprep.subr.mxu0 0.0
      %2707 = vmatpush2.msra.mxu0 0.0
      %2708 = vmatprep.subr.mxu0 0.0
      %2709 = vmatpush2.msra.mxu0 0.0
      %2710 = vmatprep.subr.mxu0 0.0
      %2711 = vmatpush2.msra.mxu0 0.0
      %2712 = vmatprep.subr.mxu0 0.0
      %2713 = vmatpush2.msra.mxu0 0.0
      %2714 = vmatprep.subr.mxu0 0.0
      %2715 = vmatpush2.msra.mxu0 0.0
      %2716 = vmatprep.subr.mxu0 0.0
      %2717 = vmatpush2.msra.mxu0 0.0
      %2718 = vmatprep.subr.mxu0 0.0
      %2719 = vmatpush2.msra.mxu0 0.0
      %2720 = vmatprep.subr.mxu0 0.0
      %2721 = vmatpush2.msra.mxu0 0.0
      %2722 = vmatprep.subr.mxu0 0.0
      %2723 = vmatpush2.msra.mxu0 0.0
      %2724 = vmatprep.subr.mxu0 0.0
      %2725 = vmatpush2.msra.mxu0 0.0
      %2726 = vmatprep.subr.mxu0 0.0
      %2727 = vmatpush2.msra.mxu0 0.0
      %2728 = vmatprep.subr.mxu0 0.0
      %2729 = vmatpush2.msra.mxu0 0.0
      %2730 = vmatprep.subr.mxu0 0.0
      %2731 = vmatpush2.msra.mxu0 0.0
      %2732 = vmatprep.subr.mxu0 0.0
      %2733 = vmatpush2.msra.mxu0 0.0
      %2734 = vmatprep.mubr.f32.mxu0 0.0
      %2735 = vmatmul.mubr.f32.gmra.mxu0 %v1003
      %v2736 = vpop.f32.mrf.mxu0
      %v2737 = vadd.f32 0.0, %v2736
      %v2738 = vpop.f32.mrf.mxu0
      %2739 = vmatprep.mubr.f32.mxu0 0.0
      %2740 = vmatmul.mubr.f32.gmra.mxu0 %v1006
      %v2741 = vpop.f32.mrf.mxu0
      %v2742 = vadd.f32 0.0, %v2741
      %v2743 = vpop.f32.mrf.mxu0
      %2744 = vmatprep.mubr.f32.mxu0 0.0
      %2745 = vmatmul.mubr.f32.gmra.mxu0 %v1009
      %v2746 = vpop.f32.mrf.mxu0
      %v2747 = vadd.f32 0.0, %v2746
      %v2748 = vpop.f32.mrf.mxu0
      %2749 = vmatprep.mubr.f32.mxu0 0.0
      %2750 = vmatmul.mubr.f32.gmra.mxu0 %v1012
      %v2751 = vpop.f32.mrf.mxu0
      %v2752 = vadd.f32 0.0, %v2751
      %v2753 = vpop.f32.mrf.mxu0
      %2754 = vdwg.mxu0
      %v2755 = vsub.f32 %v1223, %v2737
      %v2756 = vsub.f32 %v1224, %v2742
      %v2757 = vsub.f32 %v1225, %v2747
      %v2758 = vsub.f32 %v1226, %v2752
      %v2760 = vsel %vm673, %v2737, 0
      %v2763 = vsel %vm673, %v2742, 0
      %v2766 = vsel %vm673, %v2747, 0
      %v2769 = vsel %vm673, %v2752, 0
      %2771 = vmatprep.subr.mxu0 0.0
      %2772 = vmatpush1.msra.mxu0 0.0
      %2773 = vmatprep.subr.mxu0 0.0
      %2774 = vmatpush1.msra.mxu0 0.0
      %2775 = vmatprep.subr.mxu0 0.0
      %2776 = vmatpush1.msra.mxu0 0.0
      %2777 = vmatprep.subr.mxu0 0.0
      %2778 = vmatpush1.msra.mxu0 0.0
      %2779 = vmatprep.subr.mxu0 0.0
      %2780 = vmatpush1.msra.mxu0 0.0
      %2781 = vmatprep.subr.mxu0 0.0
      %2782 = vmatpush1.msra.mxu0 0.0
      %2783 = vmatprep.subr.mxu0 0.0
      %2784 = vmatpush1.msra.mxu0 0.0
      %2785 = vmatprep.subr.mxu0 0.0
      %2786 = vmatpush1.msra.mxu0 0.0
      %2787 = vmatprep.subr.mxu0 0.0
      %2788 = vmatpush1.msra.mxu0 0.0
      %2789 = vmatprep.subr.mxu0 0.0
      %2790 = vmatpush1.msra.mxu0 0.0
      %2791 = vmatprep.subr.mxu0 0.0
      %2792 = vmatpush1.msra.mxu0 0.0
      %2793 = vmatprep.subr.mxu0 0.0
      %2794 = vmatpush1.msra.mxu0 0.0
      %2795 = vmatprep.subr.mxu0 0.0
      %2796 = vmatpush1.msra.mxu0 %v2758
      %2797 = vmatprep.subr.mxu0 0.0
      %2798 = vmatpush1.msra.mxu0 %v2757
      %2799 = vmatprep.subr.mxu0 0.0
      %2800 = vmatpush1.msra.mxu0 %v2756
      %2801 = vmatprep.subr.mxu0 0.0
      %2802 = vmatpush1.msra.mxu0 %v2755
      %2803 = vmatprep.subr.mxu0 0.0
      %2804 = vmatpush2.msra.mxu0 0.0
      %2805 = vmatprep.subr.mxu0 0.0
      %2806 = vmatpush2.msra.mxu0 0.0
      %2807 = vmatprep.subr.mxu0 0.0
      %2808 = vmatpush2.msra.mxu0 0.0
      %2809 = vmatprep.subr.mxu0 0.0
      %2810 = vmatpush2.msra.mxu0 0.0
      %2811 = vmatprep.subr.mxu0 0.0
      %2812 = vmatpush2.msra.mxu0 0.0
      %2813 = vmatprep.subr.mxu0 0.0
      %2814 = vmatpush2.msra.mxu0 0.0
      %2815 = vmatprep.subr.mxu0 0.0
      %2816 = vmatpush2.msra.mxu0 0.0
      %2817 = vmatprep.subr.mxu0 0.0
      %2818 = vmatpush2.msra.mxu0 0.0
      %2819 = vmatprep.subr.mxu0 0.0
      %2820 = vmatpush2.msra.mxu0 0.0
      %2821 = vmatprep.subr.mxu0 0.0
      %2822 = vmatpush2.msra.mxu0 0.0
      %2823 = vmatprep.subr.mxu0 0.0
      %2824 = vmatpush2.msra.mxu0 0.0
      %2825 = vmatprep.subr.mxu0 0.0
      %2826 = vmatpush2.msra.mxu0 0.0
      %2827 = vmatprep.subr.mxu0 0.0
      %2828 = vmatpush2.msra.mxu0 0.0
      %2829 = vmatprep.subr.mxu0 0.0
      %2830 = vmatpush2.msra.mxu0 0.0
      %2831 = vmatprep.subr.mxu0 0.0
      %2832 = vmatpush2.msra.mxu0 0.0
      %2833 = vmatprep.subr.mxu0 0.0
      %2834 = vmatpush2.msra.mxu0 0.0
      %2835 = vmatprep.mubr.f32.mxu0 0.0
      %2836 = vmatmul.mubr.f32.gmra.mxu0 %v2760
      %v2837 = vpop.f32.mrf.mxu0
      %v2838 = vadd.f32 0.0, %v2837
      %v2839 = vpop.f32.mrf.mxu0
      %2840 = vmatprep.mubr.f32.mxu0 0.0
      %2841 = vmatmul.mubr.f32.gmra.mxu0 %v2763
      %v2842 = vpop.f32.mrf.mxu0
      %v2843 = vadd.f32 0.0, %v2842
      %v2844 = vpop.f32.mrf.mxu0
      %2845 = vmatprep.mubr.f32.mxu0 0.0
      %2846 = vmatmul.mubr.f32.gmra.mxu0 %v2766
      %v2847 = vpop.f32.mrf.mxu0
      %v2848 = vadd.f32 0.0, %v2847
      %v2849 = vpop.f32.mrf.mxu0
      %2850 = vmatprep.mubr.f32.mxu0 0.0
      %2851 = vmatmul.mubr.f32.gmra.mxu0 %v2769
      %v2852 = vpop.f32.mrf.mxu0
      %v2853 = vadd.f32 0.0, %v2852
      %v2854 = vpop.f32.mrf.mxu0
      %2855 = vdwg.mxu0
      %v2856 = vsub.f32 %v1231, %v2838
      %v2857 = vsub.f32 %v1232, %v2843
      %v2858 = vsub.f32 %v1233, %v2848
      %v2859 = vsub.f32 %v1234, %v2853
      %2860 = vmatprep.subr.mxu0 0.0
      %2861 = vmatpush1.msra.mxu0 0.0
      %2862 = vmatprep.subr.mxu0 0.0
      %2863 = vmatpush1.msra.mxu0 0.0
      %2864 = vmatprep.subr.mxu0 0.0
      %2865 = vmatpush1.msra.mxu0 0.0
      %2866 = vmatprep.subr.mxu0 0.0
      %2867 = vmatpush1.msra.mxu0 0.0
      %2868 = vmatprep.subr.mxu0 0.0
      %2869 = vmatpush1.msra.mxu0 0.0
      %2870 = vmatprep.subr.mxu0 0.0
      %2871 = vmatpush1.msra.mxu0 0.0
      %2872 = vmatprep.subr.mxu0 0.0
      %2873 = vmatpush1.msra.mxu0 0.0
      %2874 = vmatprep.subr.mxu0 0.0
      %2875 = vmatpush1.msra.mxu0 0.0
      %2876 = vmatprep.subr.mxu0 0.0
      %2877 = vmatpush1.msra.mxu0 0.0
      %2878 = vmatprep.subr.mxu0 0.0
      %2879 = vmatpush1.msra.mxu0 0.0
      %2880 = vmatprep.subr.mxu0 0.0
      %2881 = vmatpush1.msra.mxu0 0.0
      %2882 = vmatprep.subr.mxu0 0.0
      %2883 = vmatpush1.msra.mxu0 0.0
      %2884 = vmatprep.subr.mxu0 0.0
      %2885 = vmatpush1.msra.mxu0 %v2859
      %2886 = vmatprep.subr.mxu0 0.0
      %2887 = vmatpush1.msra.mxu0 %v2858
      %2888 = vmatprep.subr.mxu0 0.0
      %2889 = vmatpush1.msra.mxu0 %v2857
      %2890 = vmatprep.subr.mxu0 0.0
      %2891 = vmatpush1.msra.mxu0 %v2856
      %2892 = vmatprep.subr.mxu0 0.0
      %2893 = vmatpush2.msra.mxu0 0.0
      %2894 = vmatprep.subr.mxu0 0.0
      %2895 = vmatpush2.msra.mxu0 0.0
      %2896 = vmatprep.subr.mxu0 0.0
      %2897 = vmatpush2.msra.mxu0 0.0
      %2898 = vmatprep.subr.mxu0 0.0
      %2899 = vmatpush2.msra.mxu0 0.0
      %2900 = vmatprep.subr.mxu0 0.0
      %2901 = vmatpush2.msra.mxu0 0.0
      %2902 = vmatprep.subr.mxu0 0.0
      %2903 = vmatpush2.msra.mxu0 0.0
      %2904 = vmatprep.subr.mxu0 0.0
      %2905 = vmatpush2.msra.mxu0 0.0
      %2906 = vmatprep.subr.mxu0 0.0
      %2907 = vmatpush2.msra.mxu0 0.0
      %2908 = vmatprep.subr.mxu0 0.0
      %2909 = vmatpush2.msra.mxu0 0.0
      %2910 = vmatprep.subr.mxu0 0.0
      %2911 = vmatpush2.msra.mxu0 0.0
      %2912 = vmatprep.subr.mxu0 0.0
      %2913 = vmatpush2.msra.mxu0 0.0
      %2914 = vmatprep.subr.mxu0 0.0
      %2915 = vmatpush2.msra.mxu0 0.0
      %2916 = vmatprep.subr.mxu0 0.0
      %2917 = vmatpush2.msra.mxu0 0.0
      %2918 = vmatprep.subr.mxu0 0.0
      %2919 = vmatpush2.msra.mxu0 0.0
      %2920 = vmatprep.subr.mxu0 0.0
      %2921 = vmatpush2.msra.mxu0 0.0
      %2922 = vmatprep.subr.mxu0 0.0
      %2923 = vmatpush2.msra.mxu0 0.0
      %2924 = vmatprep.mubr.f32.mxu0 0.0
      %2925 = vmatmul.mubr.f32.gmra.mxu0 %v2760
      %v2926 = vpop.f32.mrf.mxu0
      %v2927 = vadd.f32 0.0, %v2926
      %v2928 = vpop.f32.mrf.mxu0
      %2929 = vmatprep.mubr.f32.mxu0 0.0
      %2930 = vmatmul.mubr.f32.gmra.mxu0 %v2763
      %v2931 = vpop.f32.mrf.mxu0
      %v2932 = vadd.f32 0.0, %v2931
      %v2933 = vpop.f32.mrf.mxu0
      %2934 = vmatprep.mubr.f32.mxu0 0.0
      %2935 = vmatmul.mubr.f32.gmra.mxu0 %v2766
      %v2936 = vpop.f32.mrf.mxu0
      %v2937 = vadd.f32 0.0, %v2936
      %v2938 = vpop.f32.mrf.mxu0
      %2939 = vmatprep.mubr.f32.mxu0 0.0
      %2940 = vmatmul.mubr.f32.gmra.mxu0 %v2769
      %v2941 = vpop.f32.mrf.mxu0
      %v2942 = vadd.f32 0.0, %v2941
      %v2943 = vpop.f32.mrf.mxu0
      %2944 = vdwg.mxu0
      %v2945 = vsub.f32 %v1336, %v2927
      %v2946 = vsub.f32 %v1337, %v2932
      %v2947 = vsub.f32 %v1338, %v2937
      %v2948 = vsub.f32 %v1339, %v2942
      %v2950 = vsel %vm673, %v2666, 0
      %v2953 = vsel %vm673, %v2667, 0
      %v2956 = vsel %vm673, %v2668, 0
      %v2959 = vsel %vm673, %v2669, 0
      %2961 = vmatprep.subr.mxu0 0.0
      %2962 = vmatpush1.msra.mxu0 0.0
      %2963 = vmatprep.subr.mxu0 0.0
      %2964 = vmatpush1.msra.mxu0 0.0
      %2965 = vmatprep.subr.mxu0 0.0
      %2966 = vmatpush1.msra.mxu0 0.0
      %2967 = vmatprep.subr.mxu0 0.0
      %2968 = vmatpush1.msra.mxu0 0.0
      %2969 = vmatprep.subr.mxu0 0.0
      %2970 = vmatpush1.msra.mxu0 0.0
      %2971 = vmatprep.subr.mxu0 0.0
      %2972 = vmatpush1.msra.mxu0 0.0
      %2973 = vmatprep.subr.mxu0 0.0
      %2974 = vmatpush1.msra.mxu0 0.0
      %2975 = vmatprep.subr.mxu0 0.0
      %2976 = vmatpush1.msra.mxu0 0.0
      %2977 = vmatprep.subr.mxu0 0.0
      %2978 = vmatpush1.msra.mxu0 0.0
      %2979 = vmatprep.subr.mxu0 0.0
      %2980 = vmatpush1.msra.mxu0 0.0
      %2981 = vmatprep.subr.mxu0 0.0
      %2982 = vmatpush1.msra.mxu0 0.0
      %2983 = vmatprep.subr.mxu0 0.0
      %2984 = vmatpush1.msra.mxu0 0.0
      %2985 = vmatprep.subr.mxu0 0.0
      %2986 = vmatpush1.msra.mxu0 %v2948
      %2987 = vmatprep.subr.mxu0 0.0
      %2988 = vmatpush1.msra.mxu0 %v2947
      %2989 = vmatprep.subr.mxu0 0.0
      %2990 = vmatpush1.msra.mxu0 %v2946
      %2991 = vmatprep.subr.mxu0 0.0
      %2992 = vmatpush1.msra.mxu0 %v2945
      %2993 = vmatprep.subr.mxu0 0.0
      %2994 = vmatpush2.msra.mxu0 0.0
      %2995 = vmatprep.subr.mxu0 0.0
      %2996 = vmatpush2.msra.mxu0 0.0
      %2997 = vmatprep.subr.mxu0 0.0
      %2998 = vmatpush2.msra.mxu0 0.0
      %2999 = vmatprep.subr.mxu0 0.0
      %3000 = vmatpush2.msra.mxu0 0.0
      %3001 = vmatprep.subr.mxu0 0.0
      %3002 = vmatpush2.msra.mxu0 0.0
      %3003 = vmatprep.subr.mxu0 0.0
      %3004 = vmatpush2.msra.mxu0 0.0
      %3005 = vmatprep.subr.mxu0 0.0
      %3006 = vmatpush2.msra.mxu0 0.0
      %3007 = vmatprep.subr.mxu0 0.0
      %3008 = vmatpush2.msra.mxu0 0.0
      %3009 = vmatprep.subr.mxu0 0.0
      %3010 = vmatpush2.msra.mxu0 0.0
      %3011 = vmatprep.subr.mxu0 0.0
      %3012 = vmatpush2.msra.mxu0 0.0
      %3013 = vmatprep.subr.mxu0 0.0
      %3014 = vmatpush2.msra.mxu0 0.0
      %3015 = vmatprep.subr.mxu0 0.0
      %3016 = vmatpush2.msra.mxu0 0.0
      %3017 = vmatprep.subr.mxu0 0.0
      %3018 = vmatpush2.msra.mxu0 0.0
      %3019 = vmatprep.subr.mxu0 0.0
      %3020 = vmatpush2.msra.mxu0 0.0
      %3021 = vmatprep.subr.mxu0 0.0
      %3022 = vmatpush2.msra.mxu0 0.0
      %3023 = vmatprep.subr.mxu0 0.0
      %3024 = vmatpush2.msra.mxu0 0.0
      %3025 = vmatprep.mubr.f32.mxu0 0.0
      %3026 = vmatmul.mubr.f32.gmra.mxu0 %v2950
      %v3027 = vpop.f32.mrf.mxu0
      %v3028 = vadd.f32 0.0, %v3027
      %v3029 = vpop.f32.mrf.mxu0
      %3030 = vmatprep.mubr.f32.mxu0 0.0
      %3031 = vmatmul.mubr.f32.gmra.mxu0 %v2953
      %v3032 = vpop.f32.mrf.mxu0
      %v3033 = vadd.f32 0.0, %v3032
      %v3034 = vpop.f32.mrf.mxu0
      %3035 = vmatprep.mubr.f32.mxu0 0.0
      %3036 = vmatmul.mubr.f32.gmra.mxu0 %v2956
      %v3037 = vpop.f32.mrf.mxu0
      %v3038 = vadd.f32 0.0, %v3037
      %v3039 = vpop.f32.mrf.mxu0
      %3040 = vmatprep.mubr.f32.mxu0 0.0
      %3041 = vmatmul.mubr.f32.gmra.mxu0 %v2959
      %v3042 = vpop.f32.mrf.mxu0
      %v3043 = vadd.f32 0.0, %v3042
      %v3044 = vpop.f32.mrf.mxu0
      %3045 = vdwg.mxu0
      %v3046 = vmul.f32 %v3028, 0.25
      %v3047 = vmul.f32 %v3033, 0.25
      %v3048 = vmul.f32 %v3038, 0.25
      %v3049 = vmul.f32 %v3043, 0.25
      %3050 = vmatprep.subr.mxu0 0.0
      %3051 = vmatpush1.msra.mxu0 0.0
      %3052 = vmatprep.subr.mxu0 0.0
      %3053 = vmatpush1.msra.mxu0 0.0
      %3054 = vmatprep.subr.mxu0 0.0
      %3055 = vmatpush1.msra.mxu0 0.0
      %3056 = vmatprep.subr.mxu0 0.0
      %3057 = vmatpush1.msra.mxu0 0.0
      %3058 = vmatprep.subr.mxu0 0.0
      %3059 = vmatpush1.msra.mxu0 0.0
      %3060 = vmatprep.subr.mxu0 0.0
      %3061 = vmatpush1.msra.mxu0 0.0
      %3062 = vmatprep.subr.mxu0 0.0
      %3063 = vmatpush1.msra.mxu0 0.0
      %3064 = vmatprep.subr.mxu0 0.0
      %3065 = vmatpush1.msra.mxu0 0.0
      %3066 = vmatprep.subr.mxu0 0.0
      %3067 = vmatpush1.msra.mxu0 0.0
      %3068 = vmatprep.subr.mxu0 0.0
      %3069 = vmatpush1.msra.mxu0 0.0
      %3070 = vmatprep.subr.mxu0 0.0
      %3071 = vmatpush1.msra.mxu0 0.0
      %3072 = vmatprep.subr.mxu0 0.0
      %3073 = vmatpush1.msra.mxu0 0.0
      %3074 = vmatprep.subr.mxu0 0.0
      %3075 = vmatpush1.msra.mxu0 %v3049
      %3076 = vmatprep.subr.mxu0 0.0
      %3077 = vmatpush1.msra.mxu0 %v3048
      %3078 = vmatprep.subr.mxu0 0.0
      %3079 = vmatpush1.msra.mxu0 %v3047
      %3080 = vmatprep.subr.mxu0 0.0
      %3081 = vmatpush1.msra.mxu0 %v3046
      %3082 = vmatprep.subr.mxu0 0.0
      %3083 = vmatpush2.msra.mxu0 0.0
      %3084 = vmatprep.subr.mxu0 0.0
      %3085 = vmatpush2.msra.mxu0 0.0
      %3086 = vmatprep.subr.mxu0 0.0
      %3087 = vmatpush2.msra.mxu0 0.0
      %3088 = vmatprep.subr.mxu0 0.0
      %3089 = vmatpush2.msra.mxu0 0.0
      %3090 = vmatprep.subr.mxu0 0.0
      %3091 = vmatpush2.msra.mxu0 0.0
      %3092 = vmatprep.subr.mxu0 0.0
      %3093 = vmatpush2.msra.mxu0 0.0
      %3094 = vmatprep.subr.mxu0 0.0
      %3095 = vmatpush2.msra.mxu0 0.0
      %3096 = vmatprep.subr.mxu0 0.0
      %3097 = vmatpush2.msra.mxu0 0.0
      %3098 = vmatprep.subr.mxu0 0.0
      %3099 = vmatpush2.msra.mxu0 0.0
      %3100 = vmatprep.subr.mxu0 0.0
      %3101 = vmatpush2.msra.mxu0 0.0
      %3102 = vmatprep.subr.mxu0 0.0
      %3103 = vmatpush2.msra.mxu0 0.0
      %3104 = vmatprep.subr.mxu0 0.0
      %3105 = vmatpush2.msra.mxu0 0.0
      %3106 = vmatprep.subr.mxu0 0.0
      %3107 = vmatpush2.msra.mxu0 0.0
      %3108 = vmatprep.subr.mxu0 0.0
      %3109 = vmatpush2.msra.mxu0 0.0
      %3110 = vmatprep.subr.mxu0 0.0
      %3111 = vmatpush2.msra.mxu0 0.0
      %3112 = vmatprep.subr.mxu0 0.0
      %3113 = vmatpush2.msra.mxu0 0.0
      %3114 = vmatprep.mubr.f32.mxu0 0.0
      %3115 = vmatmul.mubr.f32.gmra.mxu0 %v1003
      %v3116 = vpop.f32.mrf.mxu0
      %v3117 = vadd.f32 0.0, %v3116
      %v3118 = vpop.f32.mrf.mxu0
      %3119 = vmatprep.mubr.f32.mxu0 0.0
      %3120 = vmatmul.mubr.f32.gmra.mxu0 %v1006
      %v3121 = vpop.f32.mrf.mxu0
      %v3122 = vadd.f32 0.0, %v3121
      %v3123 = vpop.f32.mrf.mxu0
      %3124 = vmatprep.mubr.f32.mxu0 0.0
      %3125 = vmatmul.mubr.f32.gmra.mxu0 %v1009
      %v3126 = vpop.f32.mrf.mxu0
      %v3127 = vadd.f32 0.0, %v3126
      %v3128 = vpop.f32.mrf.mxu0
      %3129 = vmatprep.mubr.f32.mxu0 0.0
      %3130 = vmatmul.mubr.f32.gmra.mxu0 %v1012
      %v3131 = vpop.f32.mrf.mxu0
      %v3132 = vadd.f32 0.0, %v3131
      %v3133 = vpop.f32.mrf.mxu0
      %3134 = vdwg.mxu0
      %v3135 = vsub.f32 %v1223, %v3117
      %v3136 = vsub.f32 %v1224, %v3122
      %v3137 = vsub.f32 %v1225, %v3127
      %v3138 = vsub.f32 %v1226, %v3132
      %v3140 = vsel %vm673, %v3117, 0
      %v3143 = vsel %vm673, %v3122, 0
      %v3146 = vsel %vm673, %v3127, 0
      %v3149 = vsel %vm673, %v3132, 0
      %3151 = vmatprep.subr.mxu0 0.0
      %3152 = vmatpush1.msra.mxu0 0.0
      %3153 = vmatprep.subr.mxu0 0.0
      %3154 = vmatpush1.msra.mxu0 0.0
      %3155 = vmatprep.subr.mxu0 0.0
      %3156 = vmatpush1.msra.mxu0 0.0
      %3157 = vmatprep.subr.mxu0 0.0
      %3158 = vmatpush1.msra.mxu0 0.0
      %3159 = vmatprep.subr.mxu0 0.0
      %3160 = vmatpush1.msra.mxu0 0.0
      %3161 = vmatprep.subr.mxu0 0.0
      %3162 = vmatpush1.msra.mxu0 0.0
      %3163 = vmatprep.subr.mxu0 0.0
      %3164 = vmatpush1.msra.mxu0 0.0
      %3165 = vmatprep.subr.mxu0 0.0
      %3166 = vmatpush1.msra.mxu0 0.0
      %3167 = vmatprep.subr.mxu0 0.0
      %3168 = vmatpush1.msra.mxu0 0.0
      %3169 = vmatprep.subr.mxu0 0.0
      %3170 = vmatpush1.msra.mxu0 0.0
      %3171 = vmatprep.subr.mxu0 0.0
      %3172 = vmatpush1.msra.mxu0 0.0
      %3173 = vmatprep.subr.mxu0 0.0
      %3174 = vmatpush1.msra.mxu0 0.0
      %3175 = vmatprep.subr.mxu0 0.0
      %3176 = vmatpush1.msra.mxu0 %v3138
      %3177 = vmatprep.subr.mxu0 0.0
      %3178 = vmatpush1.msra.mxu0 %v3137
      %3179 = vmatprep.subr.mxu0 0.0
      %3180 = vmatpush1.msra.mxu0 %v3136
      %3181 = vmatprep.subr.mxu0 0.0
      %3182 = vmatpush1.msra.mxu0 %v3135
      %3183 = vmatprep.subr.mxu0 0.0
      %3184 = vmatpush2.msra.mxu0 0.0
      %3185 = vmatprep.subr.mxu0 0.0
      %3186 = vmatpush2.msra.mxu0 0.0
      %3187 = vmatprep.subr.mxu0 0.0
      %3188 = vmatpush2.msra.mxu0 0.0
      %3189 = vmatprep.subr.mxu0 0.0
      %3190 = vmatpush2.msra.mxu0 0.0
      %3191 = vmatprep.subr.mxu0 0.0
      %3192 = vmatpush2.msra.mxu0 0.0
      %3193 = vmatprep.subr.mxu0 0.0
      %3194 = vmatpush2.msra.mxu0 0.0
      %3195 = vmatprep.subr.mxu0 0.0
      %3196 = vmatpush2.msra.mxu0 0.0
      %3197 = vmatprep.subr.mxu0 0.0
      %3198 = vmatpush2.msra.mxu0 0.0
      %3199 = vmatprep.subr.mxu0 0.0
      %3200 = vmatpush2.msra.mxu0 0.0
      %3201 = vmatprep.subr.mxu0 0.0
      %3202 = vmatpush2.msra.mxu0 0.0
      %3203 = vmatprep.subr.mxu0 0.0
      %3204 = vmatpush2.msra.mxu0 0.0
      %3205 = vmatprep.subr.mxu0 0.0
      %3206 = vmatpush2.msra.mxu0 0.0
      %3207 = vmatprep.subr.mxu0 0.0
      %3208 = vmatpush2.msra.mxu0 0.0
      %3209 = vmatprep.subr.mxu0 0.0
      %3210 = vmatpush2.msra.mxu0 0.0
      %3211 = vmatprep.subr.mxu0 0.0
      %3212 = vmatpush2.msra.mxu0 0.0
      %3213 = vmatprep.subr.mxu0 0.0
      %3214 = vmatpush2.msra.mxu0 0.0
      %3215 = vmatprep.mubr.f32.mxu0 0.0
      %3216 = vmatmul.mubr.f32.gmra.mxu0 %v3140
      %v3217 = vpop.f32.mrf.mxu0
      %v3218 = vadd.f32 0.0, %v3217
      %v3219 = vpop.f32.mrf.mxu0
      %3220 = vmatprep.mubr.f32.mxu0 0.0
      %3221 = vmatmul.mubr.f32.gmra.mxu0 %v3143
      %v3222 = vpop.f32.mrf.mxu0
      %v3223 = vadd.f32 0.0, %v3222
      %v3224 = vpop.f32.mrf.mxu0
      %3225 = vmatprep.mubr.f32.mxu0 0.0
      %3226 = vmatmul.mubr.f32.gmra.mxu0 %v3146
      %v3227 = vpop.f32.mrf.mxu0
      %v3228 = vadd.f32 0.0, %v3227
      %v3229 = vpop.f32.mrf.mxu0
      %3230 = vmatprep.mubr.f32.mxu0 0.0
      %3231 = vmatmul.mubr.f32.gmra.mxu0 %v3149
      %v3232 = vpop.f32.mrf.mxu0
      %v3233 = vadd.f32 0.0, %v3232
      %v3234 = vpop.f32.mrf.mxu0
      %3235 = vdwg.mxu0
      %v3236 = vsub.f32 %v1231, %v3218
      %v3237 = vsub.f32 %v1232, %v3223
      %v3238 = vsub.f32 %v1233, %v3228
      %v3239 = vsub.f32 %v1234, %v3233
      %3240 = vmatprep.subr.mxu0 0.0
      %3241 = vmatpush1.msra.mxu0 0.0
      %3242 = vmatprep.subr.mxu0 0.0
      %3243 = vmatpush1.msra.mxu0 0.0
      %3244 = vmatprep.subr.mxu0 0.0
      %3245 = vmatpush1.msra.mxu0 0.0
      %3246 = vmatprep.subr.mxu0 0.0
      %3247 = vmatpush1.msra.mxu0 0.0
      %3248 = vmatprep.subr.mxu0 0.0
      %3249 = vmatpush1.msra.mxu0 0.0
      %3250 = vmatprep.subr.mxu0 0.0
      %3251 = vmatpush1.msra.mxu0 0.0
      %3252 = vmatprep.subr.mxu0 0.0
      %3253 = vmatpush1.msra.mxu0 0.0
      %3254 = vmatprep.subr.mxu0 0.0
      %3255 = vmatpush1.msra.mxu0 0.0
      %3256 = vmatprep.subr.mxu0 0.0
      %3257 = vmatpush1.msra.mxu0 0.0
      %3258 = vmatprep.subr.mxu0 0.0
      %3259 = vmatpush1.msra.mxu0 0.0
      %3260 = vmatprep.subr.mxu0 0.0
      %3261 = vmatpush1.msra.mxu0 0.0
      %3262 = vmatprep.subr.mxu0 0.0
      %3263 = vmatpush1.msra.mxu0 0.0
      %3264 = vmatprep.subr.mxu0 0.0
      %3265 = vmatpush1.msra.mxu0 %v3239
      %3266 = vmatprep.subr.mxu0 0.0
      %3267 = vmatpush1.msra.mxu0 %v3238
      %3268 = vmatprep.subr.mxu0 0.0
      %3269 = vmatpush1.msra.mxu0 %v3237
      %3270 = vmatprep.subr.mxu0 0.0
      %3271 = vmatpush1.msra.mxu0 %v3236
      %3272 = vmatprep.subr.mxu0 0.0
      %3273 = vmatpush2.msra.mxu0 0.0
      %3274 = vmatprep.subr.mxu0 0.0
      %3275 = vmatpush2.msra.mxu0 0.0
      %3276 = vmatprep.subr.mxu0 0.0
      %3277 = vmatpush2.msra.mxu0 0.0
      %3278 = vmatprep.subr.mxu0 0.0
      %3279 = vmatpush2.msra.mxu0 0.0
      %3280 = vmatprep.subr.mxu0 0.0
      %3281 = vmatpush2.msra.mxu0 0.0
      %3282 = vmatprep.subr.mxu0 0.0
      %3283 = vmatpush2.msra.mxu0 0.0
      %3284 = vmatprep.subr.mxu0 0.0
      %3285 = vmatpush2.msra.mxu0 0.0
      %3286 = vmatprep.subr.mxu0 0.0
      %3287 = vmatpush2.msra.mxu0 0.0
      %3288 = vmatprep.subr.mxu0 0.0
      %3289 = vmatpush2.msra.mxu0 0.0
      %3290 = vmatprep.subr.mxu0 0.0
      %3291 = vmatpush2.msra.mxu0 0.0
      %3292 = vmatprep.subr.mxu0 0.0
      %3293 = vmatpush2.msra.mxu0 0.0
      %3294 = vmatprep.subr.mxu0 0.0
      %3295 = vmatpush2.msra.mxu0 0.0
      %3296 = vmatprep.subr.mxu0 0.0
      %3297 = vmatpush2.msra.mxu0 0.0
      %3298 = vmatprep.subr.mxu0 0.0
      %3299 = vmatpush2.msra.mxu0 0.0
      %3300 = vmatprep.subr.mxu0 0.0
      %3301 = vmatpush2.msra.mxu0 0.0
      %3302 = vmatprep.subr.mxu0 0.0
      %3303 = vmatpush2.msra.mxu0 0.0
      %3304 = vmatprep.mubr.f32.mxu0 0.0
      %3305 = vmatmul.mubr.f32.gmra.mxu0 %v3140
      %v3306 = vpop.f32.mrf.mxu0
      %v3307 = vadd.f32 0.0, %v3306
      %v3308 = vpop.f32.mrf.mxu0
      %3309 = vmatprep.mubr.f32.mxu0 0.0
      %3310 = vmatmul.mubr.f32.gmra.mxu0 %v3143
      %v3311 = vpop.f32.mrf.mxu0
      %v3312 = vadd.f32 0.0, %v3311
      %v3313 = vpop.f32.mrf.mxu0
      %3314 = vmatprep.mubr.f32.mxu0 0.0
      %3315 = vmatmul.mubr.f32.gmra.mxu0 %v3146
      %v3316 = vpop.f32.mrf.mxu0
      %v3317 = vadd.f32 0.0, %v3316
      %v3318 = vpop.f32.mrf.mxu0
      %3319 = vmatprep.mubr.f32.mxu0 0.0
      %3320 = vmatmul.mubr.f32.gmra.mxu0 %v3149
      %v3321 = vpop.f32.mrf.mxu0
      %v3322 = vadd.f32 0.0, %v3321
      %v3323 = vpop.f32.mrf.mxu0
      %3324 = vdwg.mxu0
      %v3325 = vsub.f32 %v1336, %v3307
      %v3326 = vsub.f32 %v1337, %v3312
      %v3327 = vsub.f32 %v1338, %v3317
      %v3328 = vsub.f32 %v1339, %v3322
      %v3330 = vsel %vm673, %v3046, 0
      %v3333 = vsel %vm673, %v3047, 0
      %v3336 = vsel %vm673, %v3048, 0
      %v3339 = vsel %vm673, %v3049, 0
      %3341 = vmatprep.subr.mxu0 0.0
      %3342 = vmatpush1.msra.mxu0 0.0
      %3343 = vmatprep.subr.mxu0 0.0
      %3344 = vmatpush1.msra.mxu0 0.0
      %3345 = vmatprep.subr.mxu0 0.0
      %3346 = vmatpush1.msra.mxu0 0.0
      %3347 = vmatprep.subr.mxu0 0.0
      %3348 = vmatpush1.msra.mxu0 0.0
      %3349 = vmatprep.subr.mxu0 0.0
      %3350 = vmatpush1.msra.mxu0 0.0
      %3351 = vmatprep.subr.mxu0 0.0
      %3352 = vmatpush1.msra.mxu0 0.0
      %3353 = vmatprep.subr.mxu0 0.0
      %3354 = vmatpush1.msra.mxu0 0.0
      %3355 = vmatprep.subr.mxu0 0.0
      %3356 = vmatpush1.msra.mxu0 0.0
      %3357 = vmatprep.subr.mxu0 0.0
      %3358 = vmatpush1.msra.mxu0 0.0
      %3359 = vmatprep.subr.mxu0 0.0
      %3360 = vmatpush1.msra.mxu0 0.0
      %3361 = vmatprep.subr.mxu0 0.0
      %3362 = vmatpush1.msra.mxu0 0.0
      %3363 = vmatprep.subr.mxu0 0.0
      %3364 = vmatpush1.msra.mxu0 0.0
      %3365 = vmatprep.subr.mxu0 0.0
      %3366 = vmatpush1.msra.mxu0 %v3328
      %3367 = vmatprep.subr.mxu0 0.0
      %3368 = vmatpush1.msra.mxu0 %v3327
      %3369 = vmatprep.subr.mxu0 0.0
      %3370 = vmatpush1.msra.mxu0 %v3326
      %3371 = vmatprep.subr.mxu0 0.0
      %3372 = vmatpush1.msra.mxu0 %v3325
      %3373 = vmatprep.subr.mxu0 0.0
      %3374 = vmatpush2.msra.mxu0 0.0
      %3375 = vmatprep.subr.mxu0 0.0
      %3376 = vmatpush2.msra.mxu0 0.0
      %3377 = vmatprep.subr.mxu0 0.0
      %3378 = vmatpush2.msra.mxu0 0.0
      %3379 = vmatprep.subr.mxu0 0.0
      %3380 = vmatpush2.msra.mxu0 0.0
      %3381 = vmatprep.subr.mxu0 0.0
      %3382 = vmatpush2.msra.mxu0 0.0
      %3383 = vmatprep.subr.mxu0 0.0
      %3384 = vmatpush2.msra.mxu0 0.0
      %3385 = vmatprep.subr.mxu0 0.0
      %3386 = vmatpush2.msra.mxu0 0.0
      %3387 = vmatprep.subr.mxu0 0.0
      %3388 = vmatpush2.msra.mxu0 0.0
      %3389 = vmatprep.subr.mxu0 0.0
      %3390 = vmatpush2.msra.mxu0 0.0
      %3391 = vmatprep.subr.mxu0 0.0
      %3392 = vmatpush2.msra.mxu0 0.0
      %3393 = vmatprep.subr.mxu0 0.0
      %3394 = vmatpush2.msra.mxu0 0.0
      %3395 = vmatprep.subr.mxu0 0.0
      %3396 = vmatpush2.msra.mxu0 0.0
      %3397 = vmatprep.subr.mxu0 0.0
      %3398 = vmatpush2.msra.mxu0 0.0
      %3399 = vmatprep.subr.mxu0 0.0
      %3400 = vmatpush2.msra.mxu0 0.0
      %3401 = vmatprep.subr.mxu0 0.0
      %3402 = vmatpush2.msra.mxu0 0.0
      %3403 = vmatprep.subr.mxu0 0.0
      %3404 = vmatpush2.msra.mxu0 0.0
      %3405 = vmatprep.mubr.f32.mxu0 0.0
      %3406 = vmatmul.mubr.f32.gmra.mxu0 %v3330
      %v3407 = vpop.f32.mrf.mxu0
      %v3408 = vadd.f32 0.0, %v3407
      %v3409 = vpop.f32.mrf.mxu0
      %3410 = vmatprep.mubr.f32.mxu0 0.0
      %3411 = vmatmul.mubr.f32.gmra.mxu0 %v3333
      %v3412 = vpop.f32.mrf.mxu0
      %v3413 = vadd.f32 0.0, %v3412
      %v3414 = vpop.f32.mrf.mxu0
      %3415 = vmatprep.mubr.f32.mxu0 0.0
      %3416 = vmatmul.mubr.f32.gmra.mxu0 %v3336
      %v3417 = vpop.f32.mrf.mxu0
      %v3418 = vadd.f32 0.0, %v3417
      %v3419 = vpop.f32.mrf.mxu0
      %3420 = vmatprep.mubr.f32.mxu0 0.0
      %3421 = vmatmul.mubr.f32.gmra.mxu0 %v3339
      %v3422 = vpop.f32.mrf.mxu0
      %v3423 = vadd.f32 0.0, %v3422
      %v3424 = vpop.f32.mrf.mxu0
      %3425 = vdwg.mxu0
      %v3426 = vmul.f32 %v3408, 0.25
      %v3427 = vmul.f32 %v3413, 0.25
      %v3428 = vmul.f32 %v3418, 0.25
      %v3429 = vmul.f32 %v3423, 0.25
      %v3431 = vsel %vm673, %v3426, 0
      %v3434 = vsel %vm673, %v3427, 0
      %v3437 = vsel %vm673, %v3428, 0
      %v3440 = vsel %vm673, %v3429, 0
      %3442 = vmatprep.subr.mxu0 0.0
      %3443 = vmatpush1.msra.mxu0 0.0
      %3444 = vmatprep.subr.mxu0 0.0
      %3445 = vmatpush1.msra.mxu0 0.0
      %3446 = vmatprep.subr.mxu0 0.0
      %3447 = vmatpush1.msra.mxu0 0.0
      %3448 = vmatprep.subr.mxu0 0.0
      %3449 = vmatpush1.msra.mxu0 0.0
      %3450 = vmatprep.subr.mxu0 0.0
      %3451 = vmatpush1.msra.mxu0 0.0
      %3452 = vmatprep.subr.mxu0 0.0
      %3453 = vmatpush1.msra.mxu0 0.0
      %3454 = vmatprep.subr.mxu0 0.0
      %3455 = vmatpush1.msra.mxu0 0.0
      %3456 = vmatprep.subr.mxu0 0.0
      %3457 = vmatpush1.msra.mxu0 0.0
      %3458 = vmatprep.subr.mxu0 0.0
      %3459 = vmatpush1.msra.mxu0 0.0
      %3460 = vmatprep.subr.mxu0 0.0
      %3461 = vmatpush1.msra.mxu0 0.0
      %3462 = vmatprep.subr.mxu0 0.0
      %3463 = vmatpush1.msra.mxu0 0.0
      %3464 = vmatprep.subr.mxu0 0.0
      %3465 = vmatpush1.msra.mxu0 0.0
      %3466 = vmatprep.subr.mxu0 %v970
      %3467 = vmatpush1.msra.mxu0 %v969
      %3468 = vmatprep.subr.mxu0 %v967
      %3469 = vmatpush1.msra.mxu0 %v966
      %3470 = vmatprep.subr.mxu0 %v964
      %3471 = vmatpush1.msra.mxu0 %v963
      %3472 = vmatprep.subr.mxu0 %v961
      %3473 = vmatpush1.msra.mxu0 %v960
      %3474 = vmatprep.subr.mxu0 0.0
      %3475 = vmatpush2.msra.mxu0 0.0
      %3476 = vmatprep.subr.mxu0 0.0
      %3477 = vmatpush2.msra.mxu0 0.0
      %3478 = vmatprep.subr.mxu0 0.0
      %3479 = vmatpush2.msra.mxu0 0.0
      %3480 = vmatprep.subr.mxu0 0.0
      %3481 = vmatpush2.msra.mxu0 0.0
      %3482 = vmatprep.subr.mxu0 0.0
      %3483 = vmatpush2.msra.mxu0 0.0
      %3484 = vmatprep.subr.mxu0 0.0
      %3485 = vmatpush2.msra.mxu0 0.0
      %3486 = vmatprep.subr.mxu0 0.0
      %3487 = vmatpush2.msra.mxu0 0.0
      %3488 = vmatprep.subr.mxu0 0.0
      %3489 = vmatpush2.msra.mxu0 0.0
      %3490 = vmatprep.subr.mxu0 0.0
      %3491 = vmatpush2.msra.mxu0 0.0
      %3492 = vmatprep.subr.mxu0 0.0
      %3493 = vmatpush2.msra.mxu0 0.0
      %3494 = vmatprep.subr.mxu0 0.0
      %3495 = vmatpush2.msra.mxu0 0.0
      %3496 = vmatprep.subr.mxu0 0.0
      %3497 = vmatpush2.msra.mxu0 0.0
      %3498 = vmatprep.subr.mxu0 0.0
      %3499 = vmatpush2.msra.mxu0 0.0
      %3500 = vmatprep.subr.mxu0 0.0
      %3501 = vmatpush2.msra.mxu0 0.0
      %3502 = vmatprep.subr.mxu0 0.0
      %3503 = vmatpush2.msra.mxu0 0.0
      %3504 = vmatprep.subr.mxu0 0.0
      %3505 = vmatpush2.msra.mxu0 0.0
      %3506 = vmatprep.mubr.f32.mxu0 0.0
      %3507 = vmatmul.mubr.f32.gmra.mxu0 %v3431
      %v3508 = vpop.f32.mrf.mxu0
      %v3509 = vadd.f32 0.0, %v3508
      %v3510 = vpop.f32.mrf.mxu0
      %v3511 = vadd.f32 0.0, %v3510
      %3512 = vmatprep.mubr.f32.mxu0 0.0
      %3513 = vmatmul.mubr.f32.gmra.mxu0 %v3434
      %v3514 = vpop.f32.mrf.mxu0
      %v3515 = vadd.f32 0.0, %v3514
      %v3516 = vpop.f32.mrf.mxu0
      %v3517 = vadd.f32 0.0, %v3516
      %3518 = vmatprep.mubr.f32.mxu0 0.0
      %3519 = vmatmul.mubr.f32.gmra.mxu0 %v3437
      %v3520 = vpop.f32.mrf.mxu0
      %v3521 = vadd.f32 0.0, %v3520
      %v3522 = vpop.f32.mrf.mxu0
      %v3523 = vadd.f32 0.0, %v3522
      %3524 = vmatprep.mubr.f32.mxu0 0.0
      %3525 = vmatmul.mubr.f32.gmra.mxu0 %v3440
      %v3526 = vpop.f32.mrf.mxu0
      %v3527 = vadd.f32 0.0, %v3526
      %v3528 = vpop.f32.mrf.mxu0
      %v3529 = vadd.f32 0.0, %v3528
      %3530 = vdwg.mxu0
      %3531 = vst.msk [vmem:[%s306] sm:$0xff] %vm559, %v541
      %3532 = vst.msk [vmem:[%s306 + $0x8] sm:$0xff] %vm559, %v546
      %3533 = vst.msk [vmem:[%s306 + $0x10] sm:$0xff] %vm559, %v551
      %3534 = vst.msk [vmem:[%s306 + $0x18] sm:$0xff] %vm559, %v556
      %3535 = vst [vmem:[%s311] sm:$0xff] %v3509
      %3536 = vst [vmem:[%s311 + $0x8] sm:$0xff] %v3511
      %3537 = vst [vmem:[%s311 + $0x10] sm:$0xff] %v3515
      %3538 = vst [vmem:[%s311 + $0x18] sm:$0xff] %v3517
      %3539 = vst [vmem:[%s311 + $0x20] sm:$0xff] %v3521
      %3540 = vst [vmem:[%s311 + $0x28] sm:$0xff] %v3523
      %3541 = vst [vmem:[%s311 + $0x30] sm:$0xff] %v3527
      %3542 = vst [vmem:[%s311 + $0x38] sm:$0xff] %v3529
      %v3543 = vld [vmem:[%s301] sm:$0xff]
      %v3544 = vld [vmem:[%s301 + $0x8] sm:$0xff]
      %v3545 = vld [vmem:[%s301 + $0x10] sm:$0xff]
      %v3546 = vld [vmem:[%s301 + $0x18] sm:$0xff]
      %v3547 = vld [vmem:[%s301 + $0x20] sm:$0xff]
      %v3548 = vld [vmem:[%s301 + $0x28] sm:$0xff]
      %v3549 = vld [vmem:[%s301 + $0x30] sm:$0xff]
      %v3550 = vld [vmem:[%s301 + $0x38] sm:$0xff]
      %v3551 = vld [vmem:[%s301 + $0x40] sm:$0xff]
      %v3552 = vld [vmem:[%s301 + $0x48] sm:$0xff]
      %v3553 = vld [vmem:[%s301 + $0x50] sm:$0xff]
      %v3554 = vld [vmem:[%s301 + $0x58] sm:$0xff]
      %v3555 = vld [vmem:[%s301 + $0x60] sm:$0xff]
      %v3556 = vld [vmem:[%s301 + $0x68] sm:$0xff]
      %v3557 = vld [vmem:[%s301 + $0x70] sm:$0xff]
      %v3558 = vld [vmem:[%s301 + $0x78] sm:$0xff]
      %v3559 = vld [vmem:[%s301 + $0x80] sm:$0xff]
      %v3560 = vld [vmem:[%s301 + $0x88] sm:$0xff]
      %v3561 = vld [vmem:[%s301 + $0x90] sm:$0xff]
      %v3562 = vld [vmem:[%s301 + $0x98] sm:$0xff]
      %v3563 = vld [vmem:[%s301 + $0xa0] sm:$0xff]
      %v3564 = vld [vmem:[%s301 + $0xa8] sm:$0xff]
      %v3565 = vld [vmem:[%s301 + $0xb0] sm:$0xff]
      %v3566 = vld [vmem:[%s301 + $0xb8] sm:$0xff]
      %v3567 = vld [vmem:[%s301 + $0xc0] sm:$0xff]
      %v3568 = vld [vmem:[%s301 + $0xc8] sm:$0xff]
      %v3569 = vld [vmem:[%s301 + $0xd0] sm:$0xff]
      %v3570 = vld [vmem:[%s301 + $0xd8] sm:$0xff]
      %v3571 = vld [vmem:[%s301 + $0xe0] sm:$0xff]
      %v3572 = vld [vmem:[%s301 + $0xe8] sm:$0xff]
      %v3573 = vld [vmem:[%s301 + $0xf0] sm:$0xff]
      %v3574 = vld [vmem:[%s301 + $0xf8] sm:$0xff]
      %3575 = vmatprep.subr.mxu0 0.0
      %3576 = vmatpush1.msra.mxu0 %v3558
      %3577 = vmatprep.subr.mxu0 0.0
      %3578 = vmatpush1.msra.mxu0 %v3557
      %3579 = vmatprep.subr.mxu0 0.0
      %3580 = vmatpush1.msra.mxu0 %v3556
      %3581 = vmatprep.subr.mxu0 0.0
      %3582 = vmatpush1.msra.mxu0 %v3555
      %3583 = vmatprep.subr.mxu0 0.0
      %3584 = vmatpush1.msra.mxu0 %v3554
      %3585 = vmatprep.subr.mxu0 0.0
      %3586 = vmatpush1.msra.mxu0 %v3553
      %3587 = vmatprep.subr.mxu0 0.0
      %3588 = vmatpush1.msra.mxu0 %v3552
      %3589 = vmatprep.subr.mxu0 0.0
      %3590 = vmatpush1.msra.mxu0 %v3551
      %3591 = vmatprep.subr.mxu0 0.0
      %3592 = vmatpush1.msra.mxu0 %v3550
      %3593 = vmatprep.subr.mxu0 0.0
      %3594 = vmatpush1.msra.mxu0 %v3549
      %3595 = vmatprep.subr.mxu0 0.0
      %3596 = vmatpush1.msra.mxu0 %v3548
      %3597 = vmatprep.subr.mxu0 0.0
      %3598 = vmatpush1.msra.mxu0 %v3547
      %3599 = vmatprep.subr.mxu0 0.0
      %3600 = vmatpush1.msra.mxu0 %v3546
      %3601 = vmatprep.subr.mxu0 0.0
      %3602 = vmatpush1.msra.mxu0 %v3545
      %3603 = vmatprep.subr.mxu0 0.0
      %3604 = vmatpush1.msra.mxu0 %v3544
      %3605 = vmatprep.subr.mxu0 0.0
      %3606 = vmatpush1.msra.mxu0 %v3543
      %3607 = vmatprep.subr.mxu0 0.0
      %3608 = vmatpush2.msra.mxu0 %v3574
      %3609 = vmatprep.subr.mxu0 0.0
      %3610 = vmatpush2.msra.mxu0 %v3573
      %3611 = vmatprep.subr.mxu0 0.0
      %3612 = vmatpush2.msra.mxu0 %v3572
      %3613 = vmatprep.subr.mxu0 0.0
      %3614 = vmatpush2.msra.mxu0 %v3571
      %3615 = vmatprep.subr.mxu0 0.0
      %3616 = vmatpush2.msra.mxu0 %v3570
      %3617 = vmatprep.subr.mxu0 0.0
      %3618 = vmatpush2.msra.mxu0 %v3569
      %3619 = vmatprep.subr.mxu0 0.0
      %3620 = vmatpush2.msra.mxu0 %v3568
      %3621 = vmatprep.subr.mxu0 0.0
      %3622 = vmatpush2.msra.mxu0 %v3567
      %3623 = vmatprep.subr.mxu0 0.0
      %3624 = vmatpush2.msra.mxu0 %v3566
      %3625 = vmatprep.subr.mxu0 0.0
      %3626 = vmatpush2.msra.mxu0 %v3565
      %3627 = vmatprep.subr.mxu0 0.0
      %3628 = vmatpush2.msra.mxu0 %v3564
      %3629 = vmatprep.subr.mxu0 0.0
      %3630 = vmatpush2.msra.mxu0 %v3563
      %3631 = vmatprep.subr.mxu0 0.0
      %3632 = vmatpush2.msra.mxu0 %v3562
      %3633 = vmatprep.subr.mxu0 0.0
      %3634 = vmatpush2.msra.mxu0 %v3561
      %3635 = vmatprep.subr.mxu0 0.0
      %3636 = vmatpush2.msra.mxu0 %v3560
      %3637 = vmatprep.subr.mxu0 0.0
      %3638 = vmatpush2.msra.mxu0 %v3559
      %3639 = vmatprep.mubr.f32.mxu0 %v3511
      %3640 = vmatmul.mubr.f32.gmra.mxu0 %v3509
      %v3641 = vpop.f32.mrf.mxu0
      %v3642 = vadd.f32 0.0, %v3641
      %v3643 = vpop.f32.mrf.mxu0
      %3644 = vmatprep.mubr.f32.mxu0 %v3517
      %3645 = vmatmul.mubr.f32.gmra.mxu0 %v3515
      %v3646 = vpop.f32.mrf.mxu0
      %v3647 = vadd.f32 0.0, %v3646
      %v3648 = vpop.f32.mrf.mxu0
      %3649 = vmatprep.mubr.f32.mxu0 %v3523
      %3650 = vmatmul.mubr.f32.gmra.mxu0 %v3521
      %v3651 = vpop.f32.mrf.mxu0
      %v3652 = vadd.f32 0.0, %v3651
      %v3653 = vpop.f32.mrf.mxu0
      %3654 = vmatprep.mubr.f32.mxu0 %v3529
      %3655 = vmatmul.mubr.f32.gmra.mxu0 %v3527
      %v3656 = vpop.f32.mrf.mxu0
      %v3657 = vadd.f32 0.0, %v3656
      %v3658 = vpop.f32.mrf.mxu0
      %3659 = vdwg.mxu0
      %vm3660 = vcmask 523264
      %3661 = vst.msk [vmem:[%s316] sm:$0xff] %vm3660, %v3642
      %3662 = vst.msk [vmem:[%s316 + $0x8] sm:$0xff] %vm3660, %v3647
      %3663 = vst.msk [vmem:[%s316 + $0x10] sm:$0xff] %vm3660, %v3652
      %3664 = vst.msk [vmem:[%s316 + $0x18] sm:$0xff] %vm3660, %v3657
      %p3665 = scmp.lt.s32.totalorder %s18, 1
      %s3666 = scalar_select %p3665, %s18, 1
      %s3667 = smul.addr %s3666, 4
      %s3668 = smul.addr %s3667, 8
      %s3669 = scalar_lea.vmem %s4, %s3668
      %p3670 = scmp.lt.s32.totalorder %s18, 1
      %s3671 = scalar_select %p3670, %s18, 1
      %s3672 = smul.addr %s3671, 8
      %s3673 = smul.addr %s3672, 8
      %s3674 = scalar_lea.vmem %s5, %s3673
      %p3675 = scmp.lt.s32.totalorder %s18, 1
      %s3676 = scalar_select %p3675, %s18, 1
      %s3677 = smul.addr %s3676, 4
      %s3678 = smul.addr %s3677, 8
      %s3679 = scalar_lea.vmem %s6, %s3678
      // Predicated region
      $region37: #{self_nys_attn_forward.4} parent=35 // pred_check
        %p3680 = pneg %p135
      $region38: #{self_nys_attn_forward.4} parent=35 // pred_check_branch
        %3682 = sbr.rel (%p3680) target = $region40
      $region39: #{self_nys_attn_forward.4} parent=35 // pred_region
        _
      $region40: #{self_nys_attn_forward.4} parent=35 // pred_fallthru
        _
      // Predicated region
      $region41: #{self_nys_attn_forward.4} parent=35 // pred_check
        %p3683 = pneg %p161
      $region42: #{self_nys_attn_forward.4} parent=35 // pred_check_branch
        %3685 = sbr.rel (%p3683) target = $region44
      $region43: #{self_nys_attn_forward.4} parent=35 // pred_region
        _
      $region44: #{self_nys_attn_forward.4} parent=35 // pred_fallthru
        _
      // Predicated region
      $region45: #{self_nys_attn_forward.4} parent=35 // pred_check
        %p3686 = pneg %p187
      $region46: #{self_nys_attn_forward.4} parent=35 // pred_check_branch
        %3688 = sbr.rel (%p3686) target = $region48
      $region47: #{self_nys_attn_forward.4} parent=35 // pred_region
        _
      $region48: #{self_nys_attn_forward.4} parent=35 // pred_fallthru
        _
    $region36: #{self_nys_attn_forward.4} parent=5 // pred_fallthru
      _
    %p3689 = scmp.le.s32.totalorder 2, %s13
    // Predicated region
    $region49: #{self_nys_attn_forward.4} parent=5 // pred_check
      %p3690 = pneg %p3689
    $region50: #{self_nys_attn_forward.4} parent=5 // pred_check_branch
      %3692 = sbr.rel (%p3690) target = $region52
    $region51: #{self_nys_attn_forward.4} parent=5 // pred_region
      %s3693 = ssub.s32 %s13, 2
      // Predicated region
      $region53: #{self_nys_attn_forward.4} parent=51 // pred_check
        %p3694 = pneg %p141
      $region54: #{self_nys_attn_forward.4} parent=51 // pred_check_branch
        %3696 = sbr.rel (%p3694) target = $region56
      $region55: #{self_nys_attn_forward.4} parent=51 // pred_region
        %p3697 = scmp.lt.s32.totalorder %s19, 1
        %s3698 = scalar_select %p3697, %s19, 1
        %s3699 = smul.addr %s3698, 4
        %s3700 = smul.addr %s3699, 8
        %s3701 = scalar_lea.vmem %s4, %s3700
      $region56: #{self_nys_attn_forward.4} parent=51 // pred_fallthru
        _
      // Predicated region
      $region57: #{self_nys_attn_forward.4} parent=51 // pred_check
        %p3702 = pneg %p167
      $region58: #{self_nys_attn_forward.4} parent=51 // pred_check_branch
        %3704 = sbr.rel (%p3702) target = $region60
      $region59: #{self_nys_attn_forward.4} parent=51 // pred_region
        %p3705 = scmp.lt.s32.totalorder %s19, 1
        %s3706 = scalar_select %p3705, %s19, 1
        %s3707 = smul.addr %s3706, 8
        %s3708 = smul.addr %s3707, 8
        %s3709 = scalar_lea.vmem %s5, %s3708
      $region60: #{self_nys_attn_forward.4} parent=51 // pred_fallthru
        _
      // Predicated region
      $region61: #{self_nys_attn_forward.4} parent=51 // pred_check
        %p3710 = pneg %p193
      $region62: #{self_nys_attn_forward.4} parent=51 // pred_check_branch
        %3712 = sbr.rel (%p3710) target = $region64
      $region63: #{self_nys_attn_forward.4} parent=51 // pred_region
        %p3713 = scmp.lt.s32.totalorder %s19, 1
        %s3714 = scalar_select %p3713, %s19, 1
        %s3715 = smul.addr %s3714, 4
        %s3716 = smul.addr %s3715, 8
        %s3717 = scalar_lea.vmem %s6, %s3716
      $region64: #{self_nys_attn_forward.4} parent=51 // pred_fallthru
        _
    $region52: #{self_nys_attn_forward.4} parent=5 // pred_fallthru
      _
  $region6: #{self_nys_attn_forward.4} parent=0 // loop_footer
    %s17 = sadd.s32 1, %s13
  $region7: #{self_nys_attn_forward.4} parent=0 // loop_footer_branch
    %12 = sbr.rel target = $region3
  $region8: #{self_nys_attn_forward.4} parent=0 // loop_exit
    _

</llo_original>
